<compile_context>
chip_gen: v7x
topology: tpu7x:2x2x1
jax: 0.10.0
libtpu: 0.0.40
codegen_flags: <defaults>
</compile_context>

<pallas_src>
import functools

import jax
import jax.numpy as jnp
from jax import lax
from jax.experimental import pallas as pl
from jax.experimental.pallas import tpu as pltpu

NEG_INF = -1e30


# ----------------------------------------------------------------------------
# One GAT layer (lin_l == lin_r), tiled over (target blocks i, source blocks j)
# with an online segment softmax.  Optionally fuses post_mp + log_softmax into
# the epilogue of the last layer.
# ----------------------------------------------------------------------------
def gat_layer_kernel(x_i_ref, x_j_ref, wt_ref, wr_ref, b_ref, bcol_ref,
                     attr_ref, adj_ref, *rest,
                     heads, out_ch, eps, neg_slope, fuse_post_mp):
    if fuse_post_mp:
        w1_ref, b1_ref, w2_ref, out_ref, xl_i_s, m_s, l_s, acc_s = rest
    else:
        out_ref, xl_i_s, m_s, l_s, acc_s = rest

    j = pl.program_id(1)
    nj = pl.num_programs(1)

    wt_bf = wt_ref[...].astype(jnp.bfloat16)                      # [Fin, H*C]

    # Once per target block (first source block): project target rows and reset
    # the online-softmax state.
    @pl.when(j == 0)
    def _init():
        xl_i_s[...] = jnp.dot(x_i_ref[...].astype(jnp.bfloat16), wt_bf,
                              preferred_element_type=jnp.float32) + b_ref[...]
        m_s[...] = jnp.full_like(m_s, NEG_INF)
        l_s[...] = jnp.zeros_like(l_s)
        acc_s[...] = jnp.zeros_like(acc_s)

    # Source-block projection (bf16 MXU feeds, f32 accumulate).  Also computed
    # transposed ([H*C, TJ]) directly on the MXU so the per-channel score loop
    # can broadcast source channels along lanes without an XLU transpose.
    x_j_bf = x_j_ref[...].astype(jnp.bfloat16)                    # [TJ, Fin]
    xl_j = jnp.dot(x_j_bf, wt_bf,
                   preferred_element_type=jnp.float32) + b_ref[...]          # [TJ, H*C]
    xjT = lax.dot_general(wr_ref[...].astype(jnp.bfloat16), x_j_bf,
                          (((1,), (1,)), ((), ())),
                          preferred_element_type=jnp.float32) + bcol_ref[...]  # [H*C, TJ]

    mask = adj_ref[...] > 0                                       # [TI, TJ], edge j -> i
    xl_i = xl_i_s[...]                                            # [TI, H*C]

    for h in range(heads):                                        # static loop (H small)
        lo = h * out_ch
        xi_h = xl_i[:, lo:lo + out_ch]                            # [TI, C]

        # s[i, j] = sum_c attr[h, c] * leaky_relu(xl_j[j, c] + (1 + eps) * xl_i[i, c])
        # accumulated channel-by-channel on one [TI, TJ] tile (no [TI, TJ, C] tensor).
        s = jnp.zeros(mask.shape, jnp.float32)
        for c in range(out_ch):                                   # static loop
            z = (1.0 + eps) * xi_h[:, c:c + 1] + xjT[lo + c:lo + c + 1, :]
            z = jnp.where(z >= 0, z, neg_slope * z)               # leaky_relu (f32)
            s = s + attr_ref[h, c] * z                            # scalar from SMEM
        s = jnp.where(mask, s, NEG_INF)

        # Online (flash-style) segment softmax over incoming edges of each i.
        m_old = m_s[:, h:h + 1]
        m_new = jnp.maximum(m_old, jnp.max(s, axis=1, keepdims=True))
        scale = jnp.exp(m_old - m_new)
        p = jnp.where(mask, jnp.exp(s - m_new), 0.0)
        l_s[:, h:h + 1] = scale * l_s[:, h:h + 1] + jnp.sum(p, axis=1, keepdims=True)
        acc_s[:, lo:lo + out_ch] = (
            scale * acc_s[:, lo:lo + out_ch]
            + jnp.dot(p.astype(jnp.bfloat16),
                      xl_j[:, lo:lo + out_ch].astype(jnp.bfloat16),
                      preferred_element_type=jnp.float32))
        m_s[:, h:h + 1] = m_new

    # Epilogue (last source block): fold 1/denom into the [TI, C] output,
    # fuse the stack's ReLU, one full-width store (optionally + post_mp).
    @pl.when(j == nj - 1)
    def _finalize():
        for h in range(heads):
            lo = h * out_ch
            inv = pl.reciprocal(jnp.maximum(l_s[:, h:h + 1], 1e-16), approx=True)
            acc_s[:, lo:lo + out_ch] = jnp.maximum(acc_s[:, lo:lo + out_ch] * inv, 0.0)
        feat = acc_s[...]                                          # [TI, H*C], ReLU'd
        if fuse_post_mp:
            # post_mp: Linear + bias, Dropout(identity), Linear(no bias), log_softmax
            h1 = jnp.dot(feat.astype(jnp.bfloat16),
                         w1_ref[...].astype(jnp.bfloat16),
                         preferred_element_type=jnp.float32) + b1_ref[...]
            y = jnp.dot(h1.astype(jnp.bfloat16),
                        w2_ref[...].astype(jnp.bfloat16),
                        preferred_element_type=jnp.float32)
            mrow = jnp.max(y, axis=1, keepdims=True)
            lse = mrow + jnp.log(jnp.sum(jnp.exp(y - mrow), axis=1, keepdims=True))
            out_ref[...] = (y - lse).astype(out_ref.dtype)
        else:
            out_ref[...] = feat.astype(out_ref.dtype)


def gat_layer(x, layer, adj, *, block_i, block_j, eps=0.01, neg_slope=0.2,
              post_mp=None):
    n, fin = x.shape
    heads, out_ch = layer["attr"].shape
    hc = heads * out_ch
    fuse = post_mp is not None
    grid = (n // block_i, n // block_j)

    in_specs = [
        pl.BlockSpec((block_i, fin), lambda i, j: (i, 0)),        # x rows (targets i)
        pl.BlockSpec((block_j, fin), lambda i, j: (j, 0)),        # x rows (sources j)
        pl.BlockSpec((fin, hc), lambda i, j: (0, 0)),             # W^T   (x @ W^T form)
        pl.BlockSpec((hc, fin), lambda i, j: (0, 0)),             # W     (torch layout)
        pl.BlockSpec((1, hc), lambda i, j: (0, 0)),               # bias row
        pl.BlockSpec((hc, 1), lambda i, j: (0, 0)),               # bias column
        pl.BlockSpec(memory_space=pltpu.MemorySpace.SMEM),        # attr -> SMEM scalars
        pl.BlockSpec((block_i, block_j), lambda i, j: (i, j)),    # adj tile (bf16 mask)
    ]
    args = [x, x, layer["w_t"], layer["w"], layer["b"], layer["b_col"],
            layer["attr"], adj]

    if fuse:
        w1_t, b1, w2_t = post_mp
        hid, odim = w1_t.shape[1], w2_t.shape[1]
        in_specs += [
            pl.BlockSpec((hc, hid), lambda i, j: (0, 0)),         # post_mp W1^T
            pl.BlockSpec((1, hid), lambda i, j: (0, 0)),          # post_mp b1
            pl.BlockSpec((hid, odim), lambda i, j: (0, 0)),       # post_mp W2^T
        ]
        args += [w1_t, b1, w2_t]
        out_dim = odim
    else:
        out_dim = hc

    kernel = functools.partial(gat_layer_kernel, heads=heads, out_ch=out_ch,
                               eps=eps, neg_slope=neg_slope, fuse_post_mp=fuse)

    return pl.pallas_call(
        kernel,
        out_shape=jax.ShapeDtypeStruct((n, out_dim), jnp.float32),
        grid_spec=pltpu.PrefetchScalarGridSpec(
            num_scalar_prefetch=0,
            grid=grid,
            in_specs=in_specs,
            out_specs=pl.BlockSpec((block_i, out_dim), lambda i, j: (i, 0)),
            scratch_shapes=[
                pltpu.VMEM((block_i, hc), jnp.float32),      # projected target rows
                pltpu.VMEM((block_i, heads), jnp.float32),   # running max (per head)
                pltpu.VMEM((block_i, heads), jnp.float32),   # running denom
                pltpu.VMEM((block_i, hc), jnp.float32),      # running weighted sum
            ]),
        compiler_params=pltpu.CompilerParams(
            dimension_semantics=("parallel", "arbitrary")),
    )(*args)


# ----------------------------------------------------------------------------
# GNNStack forward (emb=False): GAT+ReLU(+dropout=identity) layers; the last
# layer fuses post_mp + log_softmax into its epilogue.
# ----------------------------------------------------------------------------
def gnn_stack_forward(x, adj, params, *, block_i=128, block_j=128):
    n = x.shape[0]
    blk = max(block_i, block_j)                     # block_i == block_j here
    n_pad = ((n + blk - 1) // blk) * blk
    if n_pad != n:                                  # padded nodes are isolated -> zeros
        x = jnp.pad(x, ((0, n_pad - n), (0, 0)))
        adj = jnp.pad(adj, ((0, n_pad - n), (0, n_pad - n)))
    adj = adj.astype(jnp.bfloat16)                  # mask only: 2x less adj traffic

    convs = params["convs"]
    for li, layer in enumerate(convs):
        last = li == len(convs) - 1
        post = (params["w1_t"], params["b1"], params["w2_t"]) if last else None
        x = gat_layer(x, layer, adj, block_i=block_i, block_j=block_j,
                      post_mp=post)
        # F.dropout(training=False) -> identity
    return x[:n]


# ----------------------------------------------------------------------------
# Deterministic parameter construction (shapes from the module's __init__).
# ----------------------------------------------------------------------------
def xavier_normal(key, shape_out_in):
    fan_out, fan_in = shape_out_in
    std = jnp.sqrt(2.0 / (fan_in + fan_out))
    return std * jax.random.normal(key, shape_out_in, dtype=jnp.float32)


def make_params(key, input_dim, hidden_dim, output_dim, heads, num_layers):
    keys = jax.random.split(key, 3 * num_layers + 2)
    ki = iter(range(len(keys)))
    convs = []
    in_dim = input_dim
    for _ in range(num_layers):
        out_feat = heads * hidden_dim
        w = xavier_normal(keys[next(ki)], (out_feat, in_dim))           # torch [out, in]
        b = 0.01 * jax.random.normal(keys[next(ki)], (1, out_feat), dtype=jnp.float32)
        bound = jnp.sqrt(6.0 / (heads + hidden_dim))
        attr = jax.random.uniform(keys[next(ki)], (heads, hidden_dim),
                                  jnp.float32, -bound, bound)           # (1,H,C) squeezed
        convs.append({"w": w, "w_t": w.T, "b": b,
                      "b_col": b.reshape(out_feat, 1), "attr": attr})
        in_dim = out_feat
    w1 = xavier_normal(keys[next(ki)], (hidden_dim, heads * hidden_dim))
    b1 = jnp.zeros((1, hidden_dim), jnp.float32)                        # zero-init bias
    w2 = xavier_normal(keys[next(ki)], (output_dim, hidden_dim))        # bias=False
    return {"convs": convs, "w1_t": w1.T, "b1": b1, "w2_t": w2.T}


if __name__ == "__main__":
    N = 256           # num_nodes (2 x 2 grid of 128-node tiles)
    input_dim = 64
    hidden_dim = 16
    output_dim = 8
    heads = 2
    num_layers = 2

    key = jax.random.PRNGKey(0)
    k_x, k_p = jax.random.split(key)

    # node features [N, input_dim]
    x = jax.random.normal(k_x, (N, input_dim), dtype=jnp.float32)

    # edge_index [2, E]: bidirectional ring + some long-range edges
    idx = jnp.arange(N)
    src = jnp.concatenate([idx, (idx + 1) % N, (7 * idx) % N])
    dst = jnp.concatenate([(idx + 1) % N, idx, (13 * idx + 5) % N])
    # dense mask adj[i, j] = 1 iff edge j -> i  (PyG: row0 = source j, row1 = target i)
    adj = jnp.zeros((N, N), jnp.float32).at[dst, src].set(1.0)

    params = make_params(k_p, input_dim, hidden_dim, output_dim, heads, num_layers)

    out = gnn_stack_forward(x, adj, params)          # [N, output_dim] log-probs
    out = jax.block_until_ready(out)

    assert out.shape == (N, output_dim)
    assert bool(jnp.all(jnp.isfinite(out)))
    # rows of log_softmax must exp-sum to ~1
    assert bool(jnp.allclose(jnp.sum(jnp.exp(out), axis=1), 1.0, atol=1e-3))
    print("KERNEL_OK")
</pallas_src>

<mosaic_0001>
module attributes {stable_mosaic.version = 11 : i64} {
  func.func @gat_layer_kernel(%arg0: i32, %arg1: i32, %arg2: memref<128x64xf32, #tpu.memory_space<vmem>>, %arg3: memref<128x64xf32, #tpu.memory_space<vmem>>, %arg4: memref<64x32xf32, #tpu.memory_space<vmem>>, %arg5: memref<32x64xf32, #tpu.memory_space<vmem>>, %arg6: memref<1x32xf32, #tpu.memory_space<vmem>>, %arg7: memref<32x1xf32, #tpu.memory_space<vmem>>, %arg8: memref<2x16xf32, #tpu.memory_space<smem>>, %arg9: memref<128x128xbf16, #tpu.memory_space<vmem>>, %arg10: memref<128x32xf32, #tpu.memory_space<vmem>>, %arg11: memref<128x32xf32, #tpu.memory_space<vmem>>, %arg12: memref<128x2xf32, #tpu.memory_space<vmem>>, %arg13: memref<128x2xf32, #tpu.memory_space<vmem>>, %arg14: memref<128x32xf32, #tpu.memory_space<vmem>>) attributes {dimension_semantics = [#tpu.dimension_semantics<parallel>, #tpu.dimension_semantics<arbitrary>], iteration_bounds = array<i64: 2, 2>, scalar_prefetch = 0 : i64, scratch_operands = 4 : i64, tpu.core_type = #tpu.core_type<tc>, window_params = [{transform_indices = @transform_0, window_bounds = array<i64: 128, 64>}, {transform_indices = @transform_1, window_bounds = array<i64: 128, 64>}, {pipeline_mode = #tpu.pipeline_mode<synchronous>, transform_indices = @transform_2, window_bounds = array<i64: 64, 32>}, {pipeline_mode = #tpu.pipeline_mode<synchronous>, transform_indices = @transform_3, window_bounds = array<i64: 32, 64>}, {pipeline_mode = #tpu.pipeline_mode<synchronous>, transform_indices = @transform_4, window_bounds = array<i64: 1, 32>}, {pipeline_mode = #tpu.pipeline_mode<synchronous>, transform_indices = @transform_5, window_bounds = array<i64: 32, 1>}, {transform_indices = @transform_6, window_bounds = array<i64: 2, 16>}, {transform_indices = @transform_7, window_bounds = array<i64: 128, 128>}, {transform_indices = @transform_8, window_bounds = array<i64: 128, 32>}]} {
    %c0 = arith.constant 0 : index
    %c0_0 = arith.constant 0 : index
    %0 = vector.load %arg4[%c0, %c0_0] : memref<64x32xf32, #tpu.memory_space<vmem>>, vector<64x32xf32>
    %1 = arith.truncf %0 : vector<64x32xf32> to vector<64x32xbf16>
    %c0_i32 = arith.constant 0 : i32
    %2 = arith.cmpi eq, %arg1, %c0_i32 : i32
    %3 = arith.extui %2 : i1 to i32
    %c0_i32_1 = arith.constant 0 : i32
    %4 = arith.cmpi ne, %3, %c0_i32_1 : i32
    scf.if %4 {
      %c0_197 = arith.constant 0 : index
      %c0_198 = arith.constant 0 : index
      %598 = vector.load %arg2[%c0_197, %c0_198] : memref<128x64xf32, #tpu.memory_space<vmem>>, vector<128x64xf32>
      %599 = arith.truncf %598 : vector<128x64xf32> to vector<128x64xbf16>
      %cst_199 = arith.constant dense<0.000000e+00> : vector<128x32xf32>
      %600 = tpu.matmul %599, %1, %cst_199 {dimension_numbers = #tpu.dot_dimension_numbers<[1], [0], [0], [1], [0, 0, 1, 1], [], []>} : vector<128x64xbf16>, vector<64x32xbf16>, vector<128x32xf32> -> vector<128x32xf32>
      %c0_200 = arith.constant 0 : index
      %c0_201 = arith.constant 0 : index
      %601 = vector.load %arg6[%c0_200, %c0_201] : memref<1x32xf32, #tpu.memory_space<vmem>>, vector<1x32xf32>
      %602 = vector.broadcast %601 : vector<1x32xf32> to vector<128x32xf32>
      %603 = arith.addf %600, %602 : vector<128x32xf32>
      %c0_202 = arith.constant 0 : index
      %c0_203 = arith.constant 0 : index
      %604 = vector.load %arg11[%c0_202, %c0_203] : memref<128x32xf32, #tpu.memory_space<vmem>>, vector<128x32xf32>
      tpu.vector_store %arg11[%c0_202, %c0_203], %603 {strides = array<i32>} : memref<128x32xf32, #tpu.memory_space<vmem>>, vector<128x32xf32>,
      %cst_204 = arith.constant -1.000000e+30 : f32
      %605 = vector.broadcast %cst_204 : f32 to vector<128x2xf32>
      %c0_205 = arith.constant 0 : index
      %c0_206 = arith.constant 0 : index
      %606 = vector.load %arg12[%c0_205, %c0_206] : memref<128x2xf32, #tpu.memory_space<vmem>>, vector<128x2xf32>
      tpu.vector_store %arg12[%c0_205, %c0_206], %605 {strides = array<i32>} : memref<128x2xf32, #tpu.memory_space<vmem>>, vector<128x2xf32>,
      %cst_207 = arith.constant 0.000000e+00 : f32
      %607 = vector.broadcast %cst_207 : f32 to vector<128x2xf32>
      %c0_208 = arith.constant 0 : index
      %c0_209 = arith.constant 0 : index
      %608 = vector.load %arg13[%c0_208, %c0_209] : memref<128x2xf32, #tpu.memory_space<vmem>>, vector<128x2xf32>
      tpu.vector_store %arg13[%c0_208, %c0_209], %607 {strides = array<i32>} : memref<128x2xf32, #tpu.memory_space<vmem>>, vector<128x2xf32>,
      %cst_210 = arith.constant 0.000000e+00 : f32
      %609 = vector.broadcast %cst_210 : f32 to vector<128x32xf32>
      %c0_211 = arith.constant 0 : index
      %c0_212 = arith.constant 0 : index
      %610 = vector.load %arg14[%c0_211, %c0_212] : memref<128x32xf32, #tpu.memory_space<vmem>>, vector<128x32xf32>
      tpu.vector_store %arg14[%c0_211, %c0_212], %609 {strides = array<i32>} : memref<128x32xf32, #tpu.memory_space<vmem>>, vector<128x32xf32>,
    } else {
    }
    %c0_2 = arith.constant 0 : index
    %c0_3 = arith.constant 0 : index
    %5 = vector.load %arg3[%c0_2, %c0_3] : memref<128x64xf32, #tpu.memory_space<vmem>>, vector<128x64xf32>
    %6 = arith.truncf %5 : vector<128x64xf32> to vector<128x64xbf16>
    %cst = arith.constant dense<0.000000e+00> : vector<128x32xf32>
    %7 = tpu.matmul %6, %1, %cst {dimension_numbers = #tpu.dot_dimension_numbers<[1], [0], [0], [1], [0, 0, 1, 1], [], []>} : vector<128x64xbf16>, vector<64x32xbf16>, vector<128x32xf32> -> vector<128x32xf32>
    %c0_4 = arith.constant 0 : index
    %c0_5 = arith.constant 0 : index
    %8 = vector.load %arg6[%c0_4, %c0_5] : memref<1x32xf32, #tpu.memory_space<vmem>>, vector<1x32xf32>
    %9 = vector.broadcast %8 : vector<1x32xf32> to vector<128x32xf32>
    %10 = arith.addf %7, %9 : vector<128x32xf32>
    %c0_6 = arith.constant 0 : index
    %c0_7 = arith.constant 0 : index
    %11 = vector.load %arg5[%c0_6, %c0_7] : memref<32x64xf32, #tpu.memory_space<vmem>>, vector<32x64xf32>
    %12 = arith.truncf %11 : vector<32x64xf32> to vector<32x64xbf16>
    %cst_8 = arith.constant dense<0.000000e+00> : vector<32x128xf32>
    %13 = tpu.matmul %12, %6, %cst_8 {dimension_numbers = #tpu.dot_dimension_numbers<[1], [1], [0], [0], [0, 0, 1, 0], [], []>} : vector<32x64xbf16>, vector<128x64xbf16>, vector<32x128xf32> -> vector<32x128xf32>
    %c0_9 = arith.constant 0 : index
    %c0_10 = arith.constant 0 : index
    %14 = vector.load %arg7[%c0_9, %c0_10] : memref<32x1xf32, #tpu.memory_space<vmem>>, vector<32x1xf32>
    %15 = vector.broadcast %14 : vector<32x1xf32> to vector<32x128xf32>
    %16 = arith.addf %13, %15 : vector<32x128xf32>
    %c0_11 = arith.constant 0 : index
    %c0_12 = arith.constant 0 : index
    %17 = vector.load %arg9[%c0_11, %c0_12] : memref<128x128xbf16, #tpu.memory_space<vmem>>, vector<128x128xbf16>
    %cst_13 = arith.constant 0.000000e+00 : bf16
    %18 = vector.broadcast %cst_13 : bf16 to vector<128x128xbf16>
    %19 = arith.cmpf ogt, %17, %18 : vector<128x128xbf16>
    %c0_14 = arith.constant 0 : index
    %c0_15 = arith.constant 0 : index
    %20 = vector.load %arg11[%c0_14, %c0_15] : memref<128x32xf32, #tpu.memory_space<vmem>>, vector<128x32xf32>
    %21 = vector.extract_strided_slice %20 {offsets = [0, 0], sizes = [128, 16], strides = [1, 1]} : vector<128x32xf32> to vector<128x16xf32>
    %cst_16 = arith.constant 0.000000e+00 : f32
    %22 = vector.broadcast %cst_16 : f32 to vector<128x128xf32>
    %23 = vector.extract_strided_slice %21 {offsets = [0, 0], sizes = [128, 1], strides = [1, 1]} : vector<128x16xf32> to vector<128x1xf32>
    %cst_17 = arith.constant 1.010000e+00 : f32
    %24 = vector.broadcast %cst_17 : f32 to vector<128x1xf32>
    %25 = arith.mulf %24, %23 : vector<128x1xf32>
    %26 = vector.extract_strided_slice %16 {offsets = [0, 0], sizes = [1, 128], strides = [1, 1]} : vector<32x128xf32> to vector<1x128xf32>
    %27 = vector.broadcast %25 : vector<128x1xf32> to vector<128x128xf32>
    %28 = vector.broadcast %26 : vector<1x128xf32> to vector<128x128xf32>
    %29 = arith.addf %27, %28 : vector<128x128xf32>
    %cst_18 = arith.constant 0.000000e+00 : f32
    %30 = vector.broadcast %cst_18 : f32 to vector<128x128xf32>
    %31 = arith.cmpf oge, %29, %30 : vector<128x128xf32>
    %cst_19 = arith.constant 2.000000e-01 : f32
    %32 = vector.broadcast %cst_19 : f32 to vector<128x128xf32>
    %33 = arith.mulf %32, %29 : vector<128x128xf32>
    %34 = arith.select %31, %29, %33 : vector<128x128xi1>, vector<128x128xf32>
    %c0_20 = arith.constant 0 : index
    %c0_21 = arith.constant 0 : index
    %35 = memref.load %arg8[%c0_20, %c0_21] : memref<2x16xf32, #tpu.memory_space<smem>>
    %36 = vector.broadcast %35 : f32 to vector<128x128xf32>
    %37 = arith.mulf %36, %34 : vector<128x128xf32>
    %38 = arith.addf %22, %37 : vector<128x128xf32>
    %39 = vector.extract_strided_slice %21 {offsets = [0, 1], sizes = [128, 1], strides = [1, 1]} : vector<128x16xf32> to vector<128x1xf32>
    %cst_22 = arith.constant 1.010000e+00 : f32
    %40 = vector.broadcast %cst_22 : f32 to vector<128x1xf32>
    %41 = arith.mulf %40, %39 : vector<128x1xf32>
    %42 = vector.extract_strided_slice %16 {offsets = [1, 0], sizes = [1, 128], strides = [1, 1]} : vector<32x128xf32> to vector<1x128xf32>
    %43 = vector.broadcast %41 : vector<128x1xf32> to vector<128x128xf32>
    %44 = vector.broadcast %42 : vector<1x128xf32> to vector<128x128xf32>
    %45 = arith.addf %43, %44 : vector<128x128xf32>
    %cst_23 = arith.constant 0.000000e+00 : f32
    %46 = vector.broadcast %cst_23 : f32 to vector<128x128xf32>
    %47 = arith.cmpf oge, %45, %46 : vector<128x128xf32>
    %cst_24 = arith.constant 2.000000e-01 : f32
    %48 = vector.broadcast %cst_24 : f32 to vector<128x128xf32>
    %49 = arith.mulf %48, %45 : vector<128x128xf32>
    %50 = arith.select %47, %45, %49 : vector<128x128xi1>, vector<128x128xf32>
    %c0_25 = arith.constant 0 : index
    %c1 = arith.constant 1 : index
    %51 = memref.load %arg8[%c0_25, %c1] : memref<2x16xf32, #tpu.memory_space<smem>>
    %52 = vector.broadcast %51 : f32 to vector<128x128xf32>
    %53 = arith.mulf %52, %50 : vector<128x128xf32>
    %54 = arith.addf %38, %53 : vector<128x128xf32>
    %55 = vector.extract_strided_slice %21 {offsets = [0, 2], sizes = [128, 1], strides = [1, 1]} : vector<128x16xf32> to vector<128x1xf32>
    %cst_26 = arith.constant 1.010000e+00 : f32
    %56 = vector.broadcast %cst_26 : f32 to vector<128x1xf32>
    %57 = arith.mulf %56, %55 : vector<128x1xf32>
    %58 = vector.extract_strided_slice %16 {offsets = [2, 0], sizes = [1, 128], strides = [1, 1]} : vector<32x128xf32> to vector<1x128xf32>
    %59 = vector.broadcast %57 : vector<128x1xf32> to vector<128x128xf32>
    %60 = vector.broadcast %58 : vector<1x128xf32> to vector<128x128xf32>
    %61 = arith.addf %59, %60 : vector<128x128xf32>
    %cst_27 = arith.constant 0.000000e+00 : f32
    %62 = vector.broadcast %cst_27 : f32 to vector<128x128xf32>
    %63 = arith.cmpf oge, %61, %62 : vector<128x128xf32>
    %cst_28 = arith.constant 2.000000e-01 : f32
    %64 = vector.broadcast %cst_28 : f32 to vector<128x128xf32>
    %65 = arith.mulf %64, %61 : vector<128x128xf32>
    %66 = arith.select %63, %61, %65 : vector<128x128xi1>, vector<128x128xf32>
    %c0_29 = arith.constant 0 : index
    %c2 = arith.constant 2 : index
    %67 = memref.load %arg8[%c0_29, %c2] : memref<2x16xf32, #tpu.memory_space<smem>>
    %68 = vector.broadcast %67 : f32 to vector<128x128xf32>
    %69 = arith.mulf %68, %66 : vector<128x128xf32>
    %70 = arith.addf %54, %69 : vector<128x128xf32>
    %71 = vector.extract_strided_slice %21 {offsets = [0, 3], sizes = [128, 1], strides = [1, 1]} : vector<128x16xf32> to vector<128x1xf32>
    %cst_30 = arith.constant 1.010000e+00 : f32
    %72 = vector.broadcast %cst_30 : f32 to vector<128x1xf32>
    %73 = arith.mulf %72, %71 : vector<128x1xf32>
    %74 = vector.extract_strided_slice %16 {offsets = [3, 0], sizes = [1, 128], strides = [1, 1]} : vector<32x128xf32> to vector<1x128xf32>
    %75 = vector.broadcast %73 : vector<128x1xf32> to vector<128x128xf32>
    %76 = vector.broadcast %74 : vector<1x128xf32> to vector<128x128xf32>
    %77 = arith.addf %75, %76 : vector<128x128xf32>
    %cst_31 = arith.constant 0.000000e+00 : f32
    %78 = vector.broadcast %cst_31 : f32 to vector<128x128xf32>
    %79 = arith.cmpf oge, %77, %78 : vector<128x128xf32>
    %cst_32 = arith.constant 2.000000e-01 : f32
    %80 = vector.broadcast %cst_32 : f32 to vector<128x128xf32>
    %81 = arith.mulf %80, %77 : vector<128x128xf32>
    %82 = arith.select %79, %77, %81 : vector<128x128xi1>, vector<128x128xf32>
    %c0_33 = arith.constant 0 : index
    %c3 = arith.constant 3 : index
    %83 = memref.load %arg8[%c0_33, %c3] : memref<2x16xf32, #tpu.memory_space<smem>>
    %84 = vector.broadcast %83 : f32 to vector<128x128xf32>
    %85 = arith.mulf %84, %82 : vector<128x128xf32>
    %86 = arith.addf %70, %85 : vector<128x128xf32>
    %87 = vector.extract_strided_slice %21 {offsets = [0, 4], sizes = [128, 1], strides = [1, 1]} : vector<128x16xf32> to vector<128x1xf32>
    %cst_34 = arith.constant 1.010000e+00 : f32
    %88 = vector.broadcast %cst_34 : f32 to vector<128x1xf32>
    %89 = arith.mulf %88, %87 : vector<128x1xf32>
    %90 = vector.extract_strided_slice %16 {offsets = [4, 0], sizes = [1, 128], strides = [1, 1]} : vector<32x128xf32> to vector<1x128xf32>
    %91 = vector.broadcast %89 : vector<128x1xf32> to vector<128x128xf32>
    %92 = vector.broadcast %90 : vector<1x128xf32> to vector<128x128xf32>
    %93 = arith.addf %91, %92 : vector<128x128xf32>
    %cst_35 = arith.constant 0.000000e+00 : f32
    %94 = vector.broadcast %cst_35 : f32 to vector<128x128xf32>
    %95 = arith.cmpf oge, %93, %94 : vector<128x128xf32>
    %cst_36 = arith.constant 2.000000e-01 : f32
    %96 = vector.broadcast %cst_36 : f32 to vector<128x128xf32>
    %97 = arith.mulf %96, %93 : vector<128x128xf32>
    %98 = arith.select %95, %93, %97 : vector<128x128xi1>, vector<128x128xf32>
    %c0_37 = arith.constant 0 : index
    %c4 = arith.constant 4 : index
    %99 = memref.load %arg8[%c0_37, %c4] : memref<2x16xf32, #tpu.memory_space<smem>>
    %100 = vector.broadcast %99 : f32 to vector<128x128xf32>
    %101 = arith.mulf %100, %98 : vector<128x128xf32>
    %102 = arith.addf %86, %101 : vector<128x128xf32>
    %103 = vector.extract_strided_slice %21 {offsets = [0, 5], sizes = [128, 1], strides = [1, 1]} : vector<128x16xf32> to vector<128x1xf32>
    %cst_38 = arith.constant 1.010000e+00 : f32
    %104 = vector.broadcast %cst_38 : f32 to vector<128x1xf32>
    %105 = arith.mulf %104, %103 : vector<128x1xf32>
    %106 = vector.extract_strided_slice %16 {offsets = [5, 0], sizes = [1, 128], strides = [1, 1]} : vector<32x128xf32> to vector<1x128xf32>
    %107 = vector.broadcast %105 : vector<128x1xf32> to vector<128x128xf32>
    %108 = vector.broadcast %106 : vector<1x128xf32> to vector<128x128xf32>
    %109 = arith.addf %107, %108 : vector<128x128xf32>
    %cst_39 = arith.constant 0.000000e+00 : f32
    %110 = vector.broadcast %cst_39 : f32 to vector<128x128xf32>
    %111 = arith.cmpf oge, %109, %110 : vector<128x128xf32>
    %cst_40 = arith.constant 2.000000e-01 : f32
    %112 = vector.broadcast %cst_40 : f32 to vector<128x128xf32>
    %113 = arith.mulf %112, %109 : vector<128x128xf32>
    %114 = arith.select %111, %109, %113 : vector<128x128xi1>, vector<128x128xf32>
    %c0_41 = arith.constant 0 : index
    %c5 = arith.constant 5 : index
    %115 = memref.load %arg8[%c0_41, %c5] : memref<2x16xf32, #tpu.memory_space<smem>>
    %116 = vector.broadcast %115 : f32 to vector<128x128xf32>
    %117 = arith.mulf %116, %114 : vector<128x128xf32>
    %118 = arith.addf %102, %117 : vector<128x128xf32>
    %119 = vector.extract_strided_slice %21 {offsets = [0, 6], sizes = [128, 1], strides = [1, 1]} : vector<128x16xf32> to vector<128x1xf32>
    %cst_42 = arith.constant 1.010000e+00 : f32
    %120 = vector.broadcast %cst_42 : f32 to vector<128x1xf32>
    %121 = arith.mulf %120, %119 : vector<128x1xf32>
    %122 = vector.extract_strided_slice %16 {offsets = [6, 0], sizes = [1, 128], strides = [1, 1]} : vector<32x128xf32> to vector<1x128xf32>
    %123 = vector.broadcast %121 : vector<128x1xf32> to vector<128x128xf32>
    %124 = vector.broadcast %122 : vector<1x128xf32> to vector<128x128xf32>
    %125 = arith.addf %123, %124 : vector<128x128xf32>
    %cst_43 = arith.constant 0.000000e+00 : f32
    %126 = vector.broadcast %cst_43 : f32 to vector<128x128xf32>
    %127 = arith.cmpf oge, %125, %126 : vector<128x128xf32>
    %cst_44 = arith.constant 2.000000e-01 : f32
    %128 = vector.broadcast %cst_44 : f32 to vector<128x128xf32>
    %129 = arith.mulf %128, %125 : vector<128x128xf32>
    %130 = arith.select %127, %125, %129 : vector<128x128xi1>, vector<128x128xf32>
    %c0_45 = arith.constant 0 : index
    %c6 = arith.constant 6 : index
    %131 = memref.load %arg8[%c0_45, %c6] : memref<2x16xf32, #tpu.memory_space<smem>>
    %132 = vector.broadcast %131 : f32 to vector<128x128xf32>
    %133 = arith.mulf %132, %130 : vector<128x128xf32>
    %134 = arith.addf %118, %133 : vector<128x128xf32>
    %135 = vector.extract_strided_slice %21 {offsets = [0, 7], sizes = [128, 1], strides = [1, 1]} : vector<128x16xf32> to vector<128x1xf32>
    %cst_46 = arith.constant 1.010000e+00 : f32
    %136 = vector.broadcast %cst_46 : f32 to vector<128x1xf32>
    %137 = arith.mulf %136, %135 : vector<128x1xf32>
    %138 = vector.extract_strided_slice %16 {offsets = [7, 0], sizes = [1, 128], strides = [1, 1]} : vector<32x128xf32> to vector<1x128xf32>
    %139 = vector.broadcast %137 : vector<128x1xf32> to vector<128x128xf32>
    %140 = vector.broadcast %138 : vector<1x128xf32> to vector<128x128xf32>
    %141 = arith.addf %139, %140 : vector<128x128xf32>
    %cst_47 = arith.constant 0.000000e+00 : f32
    %142 = vector.broadcast %cst_47 : f32 to vector<128x128xf32>
    %143 = arith.cmpf oge, %141, %142 : vector<128x128xf32>
    %cst_48 = arith.constant 2.000000e-01 : f32
    %144 = vector.broadcast %cst_48 : f32 to vector<128x128xf32>
    %145 = arith.mulf %144, %141 : vector<128x128xf32>
    %146 = arith.select %143, %141, %145 : vector<128x128xi1>, vector<128x128xf32>
    %c0_49 = arith.constant 0 : index
    %c7 = arith.constant 7 : index
    %147 = memref.load %arg8[%c0_49, %c7] : memref<2x16xf32, #tpu.memory_space<smem>>
    %148 = vector.broadcast %147 : f32 to vector<128x128xf32>
    %149 = arith.mulf %148, %146 : vector<128x128xf32>
    %150 = arith.addf %134, %149 : vector<128x128xf32>
    %151 = vector.extract_strided_slice %21 {offsets = [0, 8], sizes = [128, 1], strides = [1, 1]} : vector<128x16xf32> to vector<128x1xf32>
    %cst_50 = arith.constant 1.010000e+00 : f32
    %152 = vector.broadcast %cst_50 : f32 to vector<128x1xf32>
    %153 = arith.mulf %152, %151 : vector<128x1xf32>
    %154 = vector.extract_strided_slice %16 {offsets = [8, 0], sizes = [1, 128], strides = [1, 1]} : vector<32x128xf32> to vector<1x128xf32>
    %155 = vector.broadcast %153 : vector<128x1xf32> to vector<128x128xf32>
    %156 = vector.broadcast %154 : vector<1x128xf32> to vector<128x128xf32>
    %157 = arith.addf %155, %156 : vector<128x128xf32>
    %cst_51 = arith.constant 0.000000e+00 : f32
    %158 = vector.broadcast %cst_51 : f32 to vector<128x128xf32>
    %159 = arith.cmpf oge, %157, %158 : vector<128x128xf32>
    %cst_52 = arith.constant 2.000000e-01 : f32
    %160 = vector.broadcast %cst_52 : f32 to vector<128x128xf32>
    %161 = arith.mulf %160, %157 : vector<128x128xf32>
    %162 = arith.select %159, %157, %161 : vector<128x128xi1>, vector<128x128xf32>
    %c0_53 = arith.constant 0 : index
    %c8 = arith.constant 8 : index
    %163 = memref.load %arg8[%c0_53, %c8] : memref<2x16xf32, #tpu.memory_space<smem>>
    %164 = vector.broadcast %163 : f32 to vector<128x128xf32>
    %165 = arith.mulf %164, %162 : vector<128x128xf32>
    %166 = arith.addf %150, %165 : vector<128x128xf32>
    %167 = vector.extract_strided_slice %21 {offsets = [0, 9], sizes = [128, 1], strides = [1, 1]} : vector<128x16xf32> to vector<128x1xf32>
    %cst_54 = arith.constant 1.010000e+00 : f32
    %168 = vector.broadcast %cst_54 : f32 to vector<128x1xf32>
    %169 = arith.mulf %168, %167 : vector<128x1xf32>
    %170 = vector.extract_strided_slice %16 {offsets = [9, 0], sizes = [1, 128], strides = [1, 1]} : vector<32x128xf32> to vector<1x128xf32>
    %171 = vector.broadcast %169 : vector<128x1xf32> to vector<128x128xf32>
    %172 = vector.broadcast %170 : vector<1x128xf32> to vector<128x128xf32>
    %173 = arith.addf %171, %172 : vector<128x128xf32>
    %cst_55 = arith.constant 0.000000e+00 : f32
    %174 = vector.broadcast %cst_55 : f32 to vector<128x128xf32>
    %175 = arith.cmpf oge, %173, %174 : vector<128x128xf32>
    %cst_56 = arith.constant 2.000000e-01 : f32
    %176 = vector.broadcast %cst_56 : f32 to vector<128x128xf32>
    %177 = arith.mulf %176, %173 : vector<128x128xf32>
    %178 = arith.select %175, %173, %177 : vector<128x128xi1>, vector<128x128xf32>
    %c0_57 = arith.constant 0 : index
    %c9 = arith.constant 9 : index
    %179 = memref.load %arg8[%c0_57, %c9] : memref<2x16xf32, #tpu.memory_space<smem>>
    %180 = vector.broadcast %179 : f32 to vector<128x128xf32>
    %181 = arith.mulf %180, %178 : vector<128x128xf32>
    %182 = arith.addf %166, %181 : vector<128x128xf32>
    %183 = vector.extract_strided_slice %21 {offsets = [0, 10], sizes = [128, 1], strides = [1, 1]} : vector<128x16xf32> to vector<128x1xf32>
    %cst_58 = arith.constant 1.010000e+00 : f32
    %184 = vector.broadcast %cst_58 : f32 to vector<128x1xf32>
    %185 = arith.mulf %184, %183 : vector<128x1xf32>
    %186 = vector.extract_strided_slice %16 {offsets = [10, 0], sizes = [1, 128], strides = [1, 1]} : vector<32x128xf32> to vector<1x128xf32>
    %187 = vector.broadcast %185 : vector<128x1xf32> to vector<128x128xf32>
    %188 = vector.broadcast %186 : vector<1x128xf32> to vector<128x128xf32>
    %189 = arith.addf %187, %188 : vector<128x128xf32>
    %cst_59 = arith.constant 0.000000e+00 : f32
    %190 = vector.broadcast %cst_59 : f32 to vector<128x128xf32>
    %191 = arith.cmpf oge, %189, %190 : vector<128x128xf32>
    %cst_60 = arith.constant 2.000000e-01 : f32
    %192 = vector.broadcast %cst_60 : f32 to vector<128x128xf32>
    %193 = arith.mulf %192, %189 : vector<128x128xf32>
    %194 = arith.select %191, %189, %193 : vector<128x128xi1>, vector<128x128xf32>
    %c0_61 = arith.constant 0 : index
    %c10 = arith.constant 10 : index
    %195 = memref.load %arg8[%c0_61, %c10] : memref<2x16xf32, #tpu.memory_space<smem>>
    %196 = vector.broadcast %195 : f32 to vector<128x128xf32>
    %197 = arith.mulf %196, %194 : vector<128x128xf32>
    %198 = arith.addf %182, %197 : vector<128x128xf32>
    %199 = vector.extract_strided_slice %21 {offsets = [0, 11], sizes = [128, 1], strides = [1, 1]} : vector<128x16xf32> to vector<128x1xf32>
    %cst_62 = arith.constant 1.010000e+00 : f32
    %200 = vector.broadcast %cst_62 : f32 to vector<128x1xf32>
    %201 = arith.mulf %200, %199 : vector<128x1xf32>
    %202 = vector.extract_strided_slice %16 {offsets = [11, 0], sizes = [1, 128], strides = [1, 1]} : vector<32x128xf32> to vector<1x128xf32>
    %203 = vector.broadcast %201 : vector<128x1xf32> to vector<128x128xf32>
    %204 = vector.broadcast %202 : vector<1x128xf32> to vector<128x128xf32>
    %205 = arith.addf %203, %204 : vector<128x128xf32>
    %cst_63 = arith.constant 0.000000e+00 : f32
    %206 = vector.broadcast %cst_63 : f32 to vector<128x128xf32>
    %207 = arith.cmpf oge, %205, %206 : vector<128x128xf32>
    %cst_64 = arith.constant 2.000000e-01 : f32
    %208 = vector.broadcast %cst_64 : f32 to vector<128x128xf32>
    %209 = arith.mulf %208, %205 : vector<128x128xf32>
    %210 = arith.select %207, %205, %209 : vector<128x128xi1>, vector<128x128xf32>
    %c0_65 = arith.constant 0 : index
    %c11 = arith.constant 11 : index
    %211 = memref.load %arg8[%c0_65, %c11] : memref<2x16xf32, #tpu.memory_space<smem>>
    %212 = vector.broadcast %211 : f32 to vector<128x128xf32>
    %213 = arith.mulf %212, %210 : vector<128x128xf32>
    %214 = arith.addf %198, %213 : vector<128x128xf32>
    %215 = vector.extract_strided_slice %21 {offsets = [0, 12], sizes = [128, 1], strides = [1, 1]} : vector<128x16xf32> to vector<128x1xf32>
    %cst_66 = arith.constant 1.010000e+00 : f32
    %216 = vector.broadcast %cst_66 : f32 to vector<128x1xf32>
    %217 = arith.mulf %216, %215 : vector<128x1xf32>
    %218 = vector.extract_strided_slice %16 {offsets = [12, 0], sizes = [1, 128], strides = [1, 1]} : vector<32x128xf32> to vector<1x128xf32>
    %219 = vector.broadcast %217 : vector<128x1xf32> to vector<128x128xf32>
    %220 = vector.broadcast %218 : vector<1x128xf32> to vector<128x128xf32>
    %221 = arith.addf %219, %220 : vector<128x128xf32>
    %cst_67 = arith.constant 0.000000e+00 : f32
    %222 = vector.broadcast %cst_67 : f32 to vector<128x128xf32>
    %223 = arith.cmpf oge, %221, %222 : vector<128x128xf32>
    %cst_68 = arith.constant 2.000000e-01 : f32
    %224 = vector.broadcast %cst_68 : f32 to vector<128x128xf32>
    %225 = arith.mulf %224, %221 : vector<128x128xf32>
    %226 = arith.select %223, %221, %225 : vector<128x128xi1>, vector<128x128xf32>
    %c0_69 = arith.constant 0 : index
    %c12 = arith.constant 12 : index
    %227 = memref.load %arg8[%c0_69, %c12] : memref<2x16xf32, #tpu.memory_space<smem>>
    %228 = vector.broadcast %227 : f32 to vector<128x128xf32>
    %229 = arith.mulf %228, %226 : vector<128x128xf32>
    %230 = arith.addf %214, %229 : vector<128x128xf32>
    %231 = vector.extract_strided_slice %21 {offsets = [0, 13], sizes = [128, 1], strides = [1, 1]} : vector<128x16xf32> to vector<128x1xf32>
    %cst_70 = arith.constant 1.010000e+00 : f32
    %232 = vector.broadcast %cst_70 : f32 to vector<128x1xf32>
    %233 = arith.mulf %232, %231 : vector<128x1xf32>
    %234 = vector.extract_strided_slice %16 {offsets = [13, 0], sizes = [1, 128], strides = [1, 1]} : vector<32x128xf32> to vector<1x128xf32>
    %235 = vector.broadcast %233 : vector<128x1xf32> to vector<128x128xf32>
    %236 = vector.broadcast %234 : vector<1x128xf32> to vector<128x128xf32>
    %237 = arith.addf %235, %236 : vector<128x128xf32>
    %cst_71 = arith.constant 0.000000e+00 : f32
    %238 = vector.broadcast %cst_71 : f32 to vector<128x128xf32>
    %239 = arith.cmpf oge, %237, %238 : vector<128x128xf32>
    %cst_72 = arith.constant 2.000000e-01 : f32
    %240 = vector.broadcast %cst_72 : f32 to vector<128x128xf32>
    %241 = arith.mulf %240, %237 : vector<128x128xf32>
    %242 = arith.select %239, %237, %241 : vector<128x128xi1>, vector<128x128xf32>
    %c0_73 = arith.constant 0 : index
    %c13 = arith.constant 13 : index
    %243 = memref.load %arg8[%c0_73, %c13] : memref<2x16xf32, #tpu.memory_space<smem>>
    %244 = vector.broadcast %243 : f32 to vector<128x128xf32>
    %245 = arith.mulf %244, %242 : vector<128x128xf32>
    %246 = arith.addf %230, %245 : vector<128x128xf32>
    %247 = vector.extract_strided_slice %21 {offsets = [0, 14], sizes = [128, 1], strides = [1, 1]} : vector<128x16xf32> to vector<128x1xf32>
    %cst_74 = arith.constant 1.010000e+00 : f32
    %248 = vector.broadcast %cst_74 : f32 to vector<128x1xf32>
    %249 = arith.mulf %248, %247 : vector<128x1xf32>
    %250 = vector.extract_strided_slice %16 {offsets = [14, 0], sizes = [1, 128], strides = [1, 1]} : vector<32x128xf32> to vector<1x128xf32>
    %251 = vector.broadcast %249 : vector<128x1xf32> to vector<128x128xf32>
    %252 = vector.broadcast %250 : vector<1x128xf32> to vector<128x128xf32>
    %253 = arith.addf %251, %252 : vector<128x128xf32>
    %cst_75 = arith.constant 0.000000e+00 : f32
    %254 = vector.broadcast %cst_75 : f32 to vector<128x128xf32>
    %255 = arith.cmpf oge, %253, %254 : vector<128x128xf32>
    %cst_76 = arith.constant 2.000000e-01 : f32
    %256 = vector.broadcast %cst_76 : f32 to vector<128x128xf32>
    %257 = arith.mulf %256, %253 : vector<128x128xf32>
    %258 = arith.select %255, %253, %257 : vector<128x128xi1>, vector<128x128xf32>
    %c0_77 = arith.constant 0 : index
    %c14 = arith.constant 14 : index
    %259 = memref.load %arg8[%c0_77, %c14] : memref<2x16xf32, #tpu.memory_space<smem>>
    %260 = vector.broadcast %259 : f32 to vector<128x128xf32>
    %261 = arith.mulf %260, %258 : vector<128x128xf32>
    %262 = arith.addf %246, %261 : vector<128x128xf32>
    %263 = vector.extract_strided_slice %21 {offsets = [0, 15], sizes = [128, 1], strides = [1, 1]} : vector<128x16xf32> to vector<128x1xf32>
    %cst_78 = arith.constant 1.010000e+00 : f32
    %264 = vector.broadcast %cst_78 : f32 to vector<128x1xf32>
    %265 = arith.mulf %264, %263 : vector<128x1xf32>
    %266 = vector.extract_strided_slice %16 {offsets = [15, 0], sizes = [1, 128], strides = [1, 1]} : vector<32x128xf32> to vector<1x128xf32>
    %267 = vector.broadcast %265 : vector<128x1xf32> to vector<128x128xf32>
    %268 = vector.broadcast %266 : vector<1x128xf32> to vector<128x128xf32>
    %269 = arith.addf %267, %268 : vector<128x128xf32>
    %cst_79 = arith.constant 0.000000e+00 : f32
    %270 = vector.broadcast %cst_79 : f32 to vector<128x128xf32>
    %271 = arith.cmpf oge, %269, %270 : vector<128x128xf32>
    %cst_80 = arith.constant 2.000000e-01 : f32
    %272 = vector.broadcast %cst_80 : f32 to vector<128x128xf32>
    %273 = arith.mulf %272, %269 : vector<128x128xf32>
    %274 = arith.select %271, %269, %273 : vector<128x128xi1>, vector<128x128xf32>
    %c0_81 = arith.constant 0 : index
    %c15 = arith.constant 15 : index
    %275 = memref.load %arg8[%c0_81, %c15] : memref<2x16xf32, #tpu.memory_space<smem>>
    %276 = vector.broadcast %275 : f32 to vector<128x128xf32>
    %277 = arith.mulf %276, %274 : vector<128x128xf32>
    %278 = arith.addf %262, %277 : vector<128x128xf32>
    %cst_82 = arith.constant -1.000000e+30 : f32
    %279 = vector.broadcast %cst_82 : f32 to vector<128x128xf32>
    %280 = arith.select %19, %278, %279 : vector<128x128xi1>, vector<128x128xf32>
    %c0_83 = arith.constant 0 : index
    %c0_84 = arith.constant 0 : index
    %281 = vector.load %arg12[%c0_83, %c0_84] : memref<128x2xf32, #tpu.memory_space<vmem>>, vector<128x1xf32>
    %cst_85 = arith.constant dense<0xFF800000> : vector<128xf32>
    %282 = vector.multi_reduction <maximumf>, %280, %cst_85 [1] : vector<128x128xf32> to vector<128xf32>
    %283 = vector.shape_cast %282 : vector<128xf32> to vector<128x1xf32>
    %284 = arith.maximumf %281, %283 : vector<128x1xf32>
    %285 = arith.subf %281, %284 : vector<128x1xf32>
    %286 = math.exp %285 : vector<128x1xf32>
    %287 = vector.broadcast %284 : vector<128x1xf32> to vector<128x128xf32>
    %288 = arith.subf %280, %287 : vector<128x128xf32>
    %289 = math.exp %288 : vector<128x128xf32>
    %cst_86 = arith.constant 0.000000e+00 : f32
    %290 = vector.broadcast %cst_86 : f32 to vector<128x128xf32>
    %291 = arith.select %19, %289, %290 : vector<128x128xi1>, vector<128x128xf32>
    %c0_87 = arith.constant 0 : index
    %c0_88 = arith.constant 0 : index
    %292 = vector.load %arg13[%c0_87, %c0_88] : memref<128x2xf32, #tpu.memory_space<vmem>>, vector<128x1xf32>
    %293 = arith.mulf %286, %292 : vector<128x1xf32>
    %cst_89 = arith.constant dense<0.000000e+00> : vector<128xf32>
    %294 = vector.multi_reduction <add>, %291, %cst_89 [1] : vector<128x128xf32> to vector<128xf32>
    %295 = vector.shape_cast %294 : vector<128xf32> to vector<128x1xf32>
    %296 = arith.addf %293, %295 : vector<128x1xf32>
    %c0_90 = arith.constant 0 : index
    %c0_91 = arith.constant 0 : index
    %297 = vector.load %arg13[%c0_90, %c0_91] : memref<128x2xf32, #tpu.memory_space<vmem>>, vector<128x1xf32>
    tpu.vector_store %arg13[%c0_90, %c0_91], %296 {strides = array<i32>} : memref<128x2xf32, #tpu.memory_space<vmem>>, vector<128x1xf32>,
    %c0_92 = arith.constant 0 : index
    %c0_93 = arith.constant 0 : index
    %298 = vector.load %arg14[%c0_92, %c0_93] : memref<128x32xf32, #tpu.memory_space<vmem>>, vector<128x16xf32>
    %299 = vector.broadcast %286 : vector<128x1xf32> to vector<128x16xf32>
    %300 = arith.mulf %299, %298 : vector<128x16xf32>
    %301 = arith.truncf %291 : vector<128x128xf32> to vector<128x128xbf16>
    %302 = vector.extract_strided_slice %10 {offsets = [0, 0], sizes = [128, 16], strides = [1, 1]} : vector<128x32xf32> to vector<128x16xf32>
    %303 = arith.truncf %302 : vector<128x16xf32> to vector<128x16xbf16>
    %cst_94 = arith.constant dense<0.000000e+00> : vector<128x16xf32>
    %304 = tpu.matmul %301, %303, %cst_94 {dimension_numbers = #tpu.dot_dimension_numbers<[1], [0], [0], [1], [0, 0, 1, 1], [], []>} : vector<128x128xbf16>, vector<128x16xbf16>, vector<128x16xf32> -> vector<128x16xf32>
    %305 = arith.addf %300, %304 : vector<128x16xf32>
    %c0_95 = arith.constant 0 : index
    %c0_96 = arith.constant 0 : index
    %306 = vector.load %arg14[%c0_95, %c0_96] : memref<128x32xf32, #tpu.memory_space<vmem>>, vector<128x16xf32>
    tpu.vector_store %arg14[%c0_95, %c0_96], %305 {strides = array<i32>} : memref<128x32xf32, #tpu.memory_space<vmem>>, vector<128x16xf32>,
    %c0_97 = arith.constant 0 : index
    %c0_98 = arith.constant 0 : index
    %307 = vector.load %arg12[%c0_97, %c0_98] : memref<128x2xf32, #tpu.memory_space<vmem>>, vector<128x1xf32>
    tpu.vector_store %arg12[%c0_97, %c0_98], %284 {strides = array<i32>} : memref<128x2xf32, #tpu.memory_space<vmem>>, vector<128x1xf32>,
    %308 = vector.extract_strided_slice %20 {offsets = [0, 16], sizes = [128, 16], strides = [1, 1]} : vector<128x32xf32> to vector<128x16xf32>
    %cst_99 = arith.constant 0.000000e+00 : f32
    %309 = vector.broadcast %cst_99 : f32 to vector<128x128xf32>
    %310 = vector.extract_strided_slice %308 {offsets = [0, 0], sizes = [128, 1], strides = [1, 1]} : vector<128x16xf32> to vector<128x1xf32>
    %cst_100 = arith.constant 1.010000e+00 : f32
    %311 = vector.broadcast %cst_100 : f32 to vector<128x1xf32>
    %312 = arith.mulf %311, %310 : vector<128x1xf32>
    %313 = vector.extract_strided_slice %16 {offsets = [16, 0], sizes = [1, 128], strides = [1, 1]} : vector<32x128xf32> to vector<1x128xf32>
    %314 = vector.broadcast %312 : vector<128x1xf32> to vector<128x128xf32>
    %315 = vector.broadcast %313 : vector<1x128xf32> to vector<128x128xf32>
    %316 = arith.addf %314, %315 : vector<128x128xf32>
    %cst_101 = arith.constant 0.000000e+00 : f32
    %317 = vector.broadcast %cst_101 : f32 to vector<128x128xf32>
    %318 = arith.cmpf oge, %316, %317 : vector<128x128xf32>
    %cst_102 = arith.constant 2.000000e-01 : f32
    %319 = vector.broadcast %cst_102 : f32 to vector<128x128xf32>
    %320 = arith.mulf %319, %316 : vector<128x128xf32>
    %321 = arith.select %318, %316, %320 : vector<128x128xi1>, vector<128x128xf32>
    %c1_103 = arith.constant 1 : index
    %c0_104 = arith.constant 0 : index
    %322 = memref.load %arg8[%c1_103, %c0_104] : memref<2x16xf32, #tpu.memory_space<smem>>
    %323 = vector.broadcast %322 : f32 to vector<128x128xf32>
    %324 = arith.mulf %323, %321 : vector<128x128xf32>
    %325 = arith.addf %309, %324 : vector<128x128xf32>
    %326 = vector.extract_strided_slice %308 {offsets = [0, 1], sizes = [128, 1], strides = [1, 1]} : vector<128x16xf32> to vector<128x1xf32>
    %cst_105 = arith.constant 1.010000e+00 : f32
    %327 = vector.broadcast %cst_105 : f32 to vector<128x1xf32>
    %328 = arith.mulf %327, %326 : vector<128x1xf32>
    %329 = vector.extract_strided_slice %16 {offsets = [17, 0], sizes = [1, 128], strides = [1, 1]} : vector<32x128xf32> to vector<1x128xf32>
    %330 = vector.broadcast %328 : vector<128x1xf32> to vector<128x128xf32>
    %331 = vector.broadcast %329 : vector<1x128xf32> to vector<128x128xf32>
    %332 = arith.addf %330, %331 : vector<128x128xf32>
    %cst_106 = arith.constant 0.000000e+00 : f32
    %333 = vector.broadcast %cst_106 : f32 to vector<128x128xf32>
    %334 = arith.cmpf oge, %332, %333 : vector<128x128xf32>
    %cst_107 = arith.constant 2.000000e-01 : f32
    %335 = vector.broadcast %cst_107 : f32 to vector<128x128xf32>
    %336 = arith.mulf %335, %332 : vector<128x128xf32>
    %337 = arith.select %334, %332, %336 : vector<128x128xi1>, vector<128x128xf32>
    %c1_108 = arith.constant 1 : index
    %c1_109 = arith.constant 1 : index
    %338 = memref.load %arg8[%c1_108, %c1_109] : memref<2x16xf32, #tpu.memory_space<smem>>
    %339 = vector.broadcast %338 : f32 to vector<128x128xf32>
    %340 = arith.mulf %339, %337 : vector<128x128xf32>
    %341 = arith.addf %325, %340 : vector<128x128xf32>
    %342 = vector.extract_strided_slice %308 {offsets = [0, 2], sizes = [128, 1], strides = [1, 1]} : vector<128x16xf32> to vector<128x1xf32>
    %cst_110 = arith.constant 1.010000e+00 : f32
    %343 = vector.broadcast %cst_110 : f32 to vector<128x1xf32>
    %344 = arith.mulf %343, %342 : vector<128x1xf32>
    %345 = vector.extract_strided_slice %16 {offsets = [18, 0], sizes = [1, 128], strides = [1, 1]} : vector<32x128xf32> to vector<1x128xf32>
    %346 = vector.broadcast %344 : vector<128x1xf32> to vector<128x128xf32>
    %347 = vector.broadcast %345 : vector<1x128xf32> to vector<128x128xf32>
    %348 = arith.addf %346, %347 : vector<128x128xf32>
    %cst_111 = arith.constant 0.000000e+00 : f32
    %349 = vector.broadcast %cst_111 : f32 to vector<128x128xf32>
    %350 = arith.cmpf oge, %348, %349 : vector<128x128xf32>
    %cst_112 = arith.constant 2.000000e-01 : f32
    %351 = vector.broadcast %cst_112 : f32 to vector<128x128xf32>
    %352 = arith.mulf %351, %348 : vector<128x128xf32>
    %353 = arith.select %350, %348, %352 : vector<128x128xi1>, vector<128x128xf32>
    %c1_113 = arith.constant 1 : index
    %c2_114 = arith.constant 2 : index
    %354 = memref.load %arg8[%c1_113, %c2_114] : memref<2x16xf32, #tpu.memory_space<smem>>
    %355 = vector.broadcast %354 : f32 to vector<128x128xf32>
    %356 = arith.mulf %355, %353 : vector<128x128xf32>
    %357 = arith.addf %341, %356 : vector<128x128xf32>
    %358 = vector.extract_strided_slice %308 {offsets = [0, 3], sizes = [128, 1], strides = [1, 1]} : vector<128x16xf32> to vector<128x1xf32>
    %cst_115 = arith.constant 1.010000e+00 : f32
    %359 = vector.broadcast %cst_115 : f32 to vector<128x1xf32>
    %360 = arith.mulf %359, %358 : vector<128x1xf32>
    %361 = vector.extract_strided_slice %16 {offsets = [19, 0], sizes = [1, 128], strides = [1, 1]} : vector<32x128xf32> to vector<1x128xf32>
    %362 = vector.broadcast %360 : vector<128x1xf32> to vector<128x128xf32>
    %363 = vector.broadcast %361 : vector<1x128xf32> to vector<128x128xf32>
    %364 = arith.addf %362, %363 : vector<128x128xf32>
    %cst_116 = arith.constant 0.000000e+00 : f32
    %365 = vector.broadcast %cst_116 : f32 to vector<128x128xf32>
    %366 = arith.cmpf oge, %364, %365 : vector<128x128xf32>
    %cst_117 = arith.constant 2.000000e-01 : f32
    %367 = vector.broadcast %cst_117 : f32 to vector<128x128xf32>
    %368 = arith.mulf %367, %364 : vector<128x128xf32>
    %369 = arith.select %366, %364, %368 : vector<128x128xi1>, vector<128x128xf32>
    %c1_118 = arith.constant 1 : index
    %c3_119 = arith.constant 3 : index
    %370 = memref.load %arg8[%c1_118, %c3_119] : memref<2x16xf32, #tpu.memory_space<smem>>
    %371 = vector.broadcast %370 : f32 to vector<128x128xf32>
    %372 = arith.mulf %371, %369 : vector<128x128xf32>
    %373 = arith.addf %357, %372 : vector<128x128xf32>
    %374 = vector.extract_strided_slice %308 {offsets = [0, 4], sizes = [128, 1], strides = [1, 1]} : vector<128x16xf32> to vector<128x1xf32>
    %cst_120 = arith.constant 1.010000e+00 : f32
    %375 = vector.broadcast %cst_120 : f32 to vector<128x1xf32>
    %376 = arith.mulf %375, %374 : vector<128x1xf32>
    %377 = vector.extract_strided_slice %16 {offsets = [20, 0], sizes = [1, 128], strides = [1, 1]} : vector<32x128xf32> to vector<1x128xf32>
    %378 = vector.broadcast %376 : vector<128x1xf32> to vector<128x128xf32>
    %379 = vector.broadcast %377 : vector<1x128xf32> to vector<128x128xf32>
    %380 = arith.addf %378, %379 : vector<128x128xf32>
    %cst_121 = arith.constant 0.000000e+00 : f32
    %381 = vector.broadcast %cst_121 : f32 to vector<128x128xf32>
    %382 = arith.cmpf oge, %380, %381 : vector<128x128xf32>
    %cst_122 = arith.constant 2.000000e-01 : f32
    %383 = vector.broadcast %cst_122 : f32 to vector<128x128xf32>
    %384 = arith.mulf %383, %380 : vector<128x128xf32>
    %385 = arith.select %382, %380, %384 : vector<128x128xi1>, vector<128x128xf32>
    %c1_123 = arith.constant 1 : index
    %c4_124 = arith.constant 4 : index
    %386 = memref.load %arg8[%c1_123, %c4_124] : memref<2x16xf32, #tpu.memory_space<smem>>
    %387 = vector.broadcast %386 : f32 to vector<128x128xf32>
    %388 = arith.mulf %387, %385 : vector<128x128xf32>
    %389 = arith.addf %373, %388 : vector<128x128xf32>
    %390 = vector.extract_strided_slice %308 {offsets = [0, 5], sizes = [128, 1], strides = [1, 1]} : vector<128x16xf32> to vector<128x1xf32>
    %cst_125 = arith.constant 1.010000e+00 : f32
    %391 = vector.broadcast %cst_125 : f32 to vector<128x1xf32>
    %392 = arith.mulf %391, %390 : vector<128x1xf32>
    %393 = vector.extract_strided_slice %16 {offsets = [21, 0], sizes = [1, 128], strides = [1, 1]} : vector<32x128xf32> to vector<1x128xf32>
    %394 = vector.broadcast %392 : vector<128x1xf32> to vector<128x128xf32>
    %395 = vector.broadcast %393 : vector<1x128xf32> to vector<128x128xf32>
    %396 = arith.addf %394, %395 : vector<128x128xf32>
    %cst_126 = arith.constant 0.000000e+00 : f32
    %397 = vector.broadcast %cst_126 : f32 to vector<128x128xf32>
    %398 = arith.cmpf oge, %396, %397 : vector<128x128xf32>
    %cst_127 = arith.constant 2.000000e-01 : f32
    %399 = vector.broadcast %cst_127 : f32 to vector<128x128xf32>
    %400 = arith.mulf %399, %396 : vector<128x128xf32>
    %401 = arith.select %398, %396, %400 : vector<128x128xi1>, vector<128x128xf32>
    %c1_128 = arith.constant 1 : index
    %c5_129 = arith.constant 5 : index
    %402 = memref.load %arg8[%c1_128, %c5_129] : memref<2x16xf32, #tpu.memory_space<smem>>
    %403 = vector.broadcast %402 : f32 to vector<128x128xf32>
    %404 = arith.mulf %403, %401 : vector<128x128xf32>
    %405 = arith.addf %389, %404 : vector<128x128xf32>
    %406 = vector.extract_strided_slice %308 {offsets = [0, 6], sizes = [128, 1], strides = [1, 1]} : vector<128x16xf32> to vector<128x1xf32>
    %cst_130 = arith.constant 1.010000e+00 : f32
    %407 = vector.broadcast %cst_130 : f32 to vector<128x1xf32>
    %408 = arith.mulf %407, %406 : vector<128x1xf32>
    %409 = vector.extract_strided_slice %16 {offsets = [22, 0], sizes = [1, 128], strides = [1, 1]} : vector<32x128xf32> to vector<1x128xf32>
    %410 = vector.broadcast %408 : vector<128x1xf32> to vector<128x128xf32>
    %411 = vector.broadcast %409 : vector<1x128xf32> to vector<128x128xf32>
    %412 = arith.addf %410, %411 : vector<128x128xf32>
    %cst_131 = arith.constant 0.000000e+00 : f32
    %413 = vector.broadcast %cst_131 : f32 to vector<128x128xf32>
    %414 = arith.cmpf oge, %412, %413 : vector<128x128xf32>
    %cst_132 = arith.constant 2.000000e-01 : f32
    %415 = vector.broadcast %cst_132 : f32 to vector<128x128xf32>
    %416 = arith.mulf %415, %412 : vector<128x128xf32>
    %417 = arith.select %414, %412, %416 : vector<128x128xi1>, vector<128x128xf32>
    %c1_133 = arith.constant 1 : index
    %c6_134 = arith.constant 6 : index
    %418 = memref.load %arg8[%c1_133, %c6_134] : memref<2x16xf32, #tpu.memory_space<smem>>
    %419 = vector.broadcast %418 : f32 to vector<128x128xf32>
    %420 = arith.mulf %419, %417 : vector<128x128xf32>
    %421 = arith.addf %405, %420 : vector<128x128xf32>
    %422 = vector.extract_strided_slice %308 {offsets = [0, 7], sizes = [128, 1], strides = [1, 1]} : vector<128x16xf32> to vector<128x1xf32>
    %cst_135 = arith.constant 1.010000e+00 : f32
    %423 = vector.broadcast %cst_135 : f32 to vector<128x1xf32>
    %424 = arith.mulf %423, %422 : vector<128x1xf32>
    %425 = vector.extract_strided_slice %16 {offsets = [23, 0], sizes = [1, 128], strides = [1, 1]} : vector<32x128xf32> to vector<1x128xf32>
    %426 = vector.broadcast %424 : vector<128x1xf32> to vector<128x128xf32>
    %427 = vector.broadcast %425 : vector<1x128xf32> to vector<128x128xf32>
    %428 = arith.addf %426, %427 : vector<128x128xf32>
    %cst_136 = arith.constant 0.000000e+00 : f32
    %429 = vector.broadcast %cst_136 : f32 to vector<128x128xf32>
    %430 = arith.cmpf oge, %428, %429 : vector<128x128xf32>
    %cst_137 = arith.constant 2.000000e-01 : f32
    %431 = vector.broadcast %cst_137 : f32 to vector<128x128xf32>
    %432 = arith.mulf %431, %428 : vector<128x128xf32>
    %433 = arith.select %430, %428, %432 : vector<128x128xi1>, vector<128x128xf32>
    %c1_138 = arith.constant 1 : index
    %c7_139 = arith.constant 7 : index
    %434 = memref.load %arg8[%c1_138, %c7_139] : memref<2x16xf32, #tpu.memory_space<smem>>
    %435 = vector.broadcast %434 : f32 to vector<128x128xf32>
    %436 = arith.mulf %435, %433 : vector<128x128xf32>
    %437 = arith.addf %421, %436 : vector<128x128xf32>
    %438 = vector.extract_strided_slice %308 {offsets = [0, 8], sizes = [128, 1], strides = [1, 1]} : vector<128x16xf32> to vector<128x1xf32>
    %cst_140 = arith.constant 1.010000e+00 : f32
    %439 = vector.broadcast %cst_140 : f32 to vector<128x1xf32>
    %440 = arith.mulf %439, %438 : vector<128x1xf32>
    %441 = vector.extract_strided_slice %16 {offsets = [24, 0], sizes = [1, 128], strides = [1, 1]} : vector<32x128xf32> to vector<1x128xf32>
    %442 = vector.broadcast %440 : vector<128x1xf32> to vector<128x128xf32>
    %443 = vector.broadcast %441 : vector<1x128xf32> to vector<128x128xf32>
    %444 = arith.addf %442, %443 : vector<128x128xf32>
    %cst_141 = arith.constant 0.000000e+00 : f32
    %445 = vector.broadcast %cst_141 : f32 to vector<128x128xf32>
    %446 = arith.cmpf oge, %444, %445 : vector<128x128xf32>
    %cst_142 = arith.constant 2.000000e-01 : f32
    %447 = vector.broadcast %cst_142 : f32 to vector<128x128xf32>
    %448 = arith.mulf %447, %444 : vector<128x128xf32>
    %449 = arith.select %446, %444, %448 : vector<128x128xi1>, vector<128x128xf32>
    %c1_143 = arith.constant 1 : index
    %c8_144 = arith.constant 8 : index
    %450 = memref.load %arg8[%c1_143, %c8_144] : memref<2x16xf32, #tpu.memory_space<smem>>
    %451 = vector.broadcast %450 : f32 to vector<128x128xf32>
    %452 = arith.mulf %451, %449 : vector<128x128xf32>
    %453 = arith.addf %437, %452 : vector<128x128xf32>
    %454 = vector.extract_strided_slice %308 {offsets = [0, 9], sizes = [128, 1], strides = [1, 1]} : vector<128x16xf32> to vector<128x1xf32>
    %cst_145 = arith.constant 1.010000e+00 : f32
    %455 = vector.broadcast %cst_145 : f32 to vector<128x1xf32>
    %456 = arith.mulf %455, %454 : vector<128x1xf32>
    %457 = vector.extract_strided_slice %16 {offsets = [25, 0], sizes = [1, 128], strides = [1, 1]} : vector<32x128xf32> to vector<1x128xf32>
    %458 = vector.broadcast %456 : vector<128x1xf32> to vector<128x128xf32>
    %459 = vector.broadcast %457 : vector<1x128xf32> to vector<128x128xf32>
    %460 = arith.addf %458, %459 : vector<128x128xf32>
    %cst_146 = arith.constant 0.000000e+00 : f32
    %461 = vector.broadcast %cst_146 : f32 to vector<128x128xf32>
    %462 = arith.cmpf oge, %460, %461 : vector<128x128xf32>
    %cst_147 = arith.constant 2.000000e-01 : f32
    %463 = vector.broadcast %cst_147 : f32 to vector<128x128xf32>
    %464 = arith.mulf %463, %460 : vector<128x128xf32>
    %465 = arith.select %462, %460, %464 : vector<128x128xi1>, vector<128x128xf32>
    %c1_148 = arith.constant 1 : index
    %c9_149 = arith.constant 9 : index
    %466 = memref.load %arg8[%c1_148, %c9_149] : memref<2x16xf32, #tpu.memory_space<smem>>
    %467 = vector.broadcast %466 : f32 to vector<128x128xf32>
    %468 = arith.mulf %467, %465 : vector<128x128xf32>
    %469 = arith.addf %453, %468 : vector<128x128xf32>
    %470 = vector.extract_strided_slice %308 {offsets = [0, 10], sizes = [128, 1], strides = [1, 1]} : vector<128x16xf32> to vector<128x1xf32>
    %cst_150 = arith.constant 1.010000e+00 : f32
    %471 = vector.broadcast %cst_150 : f32 to vector<128x1xf32>
    %472 = arith.mulf %471, %470 : vector<128x1xf32>
    %473 = vector.extract_strided_slice %16 {offsets = [26, 0], sizes = [1, 128], strides = [1, 1]} : vector<32x128xf32> to vector<1x128xf32>
    %474 = vector.broadcast %472 : vector<128x1xf32> to vector<128x128xf32>
    %475 = vector.broadcast %473 : vector<1x128xf32> to vector<128x128xf32>
    %476 = arith.addf %474, %475 : vector<128x128xf32>
    %cst_151 = arith.constant 0.000000e+00 : f32
    %477 = vector.broadcast %cst_151 : f32 to vector<128x128xf32>
    %478 = arith.cmpf oge, %476, %477 : vector<128x128xf32>
    %cst_152 = arith.constant 2.000000e-01 : f32
    %479 = vector.broadcast %cst_152 : f32 to vector<128x128xf32>
    %480 = arith.mulf %479, %476 : vector<128x128xf32>
    %481 = arith.select %478, %476, %480 : vector<128x128xi1>, vector<128x128xf32>
    %c1_153 = arith.constant 1 : index
    %c10_154 = arith.constant 10 : index
    %482 = memref.load %arg8[%c1_153, %c10_154] : memref<2x16xf32, #tpu.memory_space<smem>>
    %483 = vector.broadcast %482 : f32 to vector<128x128xf32>
    %484 = arith.mulf %483, %481 : vector<128x128xf32>
    %485 = arith.addf %469, %484 : vector<128x128xf32>
    %486 = vector.extract_strided_slice %308 {offsets = [0, 11], sizes = [128, 1], strides = [1, 1]} : vector<128x16xf32> to vector<128x1xf32>
    %cst_155 = arith.constant 1.010000e+00 : f32
    %487 = vector.broadcast %cst_155 : f32 to vector<128x1xf32>
    %488 = arith.mulf %487, %486 : vector<128x1xf32>
    %489 = vector.extract_strided_slice %16 {offsets = [27, 0], sizes = [1, 128], strides = [1, 1]} : vector<32x128xf32> to vector<1x128xf32>
    %490 = vector.broadcast %488 : vector<128x1xf32> to vector<128x128xf32>
    %491 = vector.broadcast %489 : vector<1x128xf32> to vector<128x128xf32>
    %492 = arith.addf %490, %491 : vector<128x128xf32>
    %cst_156 = arith.constant 0.000000e+00 : f32
    %493 = vector.broadcast %cst_156 : f32 to vector<128x128xf32>
    %494 = arith.cmpf oge, %492, %493 : vector<128x128xf32>
    %cst_157 = arith.constant 2.000000e-01 : f32
    %495 = vector.broadcast %cst_157 : f32 to vector<128x128xf32>
    %496 = arith.mulf %495, %492 : vector<128x128xf32>
    %497 = arith.select %494, %492, %496 : vector<128x128xi1>, vector<128x128xf32>
    %c1_158 = arith.constant 1 : index
    %c11_159 = arith.constant 11 : index
    %498 = memref.load %arg8[%c1_158, %c11_159] : memref<2x16xf32, #tpu.memory_space<smem>>
    %499 = vector.broadcast %498 : f32 to vector<128x128xf32>
    %500 = arith.mulf %499, %497 : vector<128x128xf32>
    %501 = arith.addf %485, %500 : vector<128x128xf32>
    %502 = vector.extract_strided_slice %308 {offsets = [0, 12], sizes = [128, 1], strides = [1, 1]} : vector<128x16xf32> to vector<128x1xf32>
    %cst_160 = arith.constant 1.010000e+00 : f32
    %503 = vector.broadcast %cst_160 : f32 to vector<128x1xf32>
    %504 = arith.mulf %503, %502 : vector<128x1xf32>
    %505 = vector.extract_strided_slice %16 {offsets = [28, 0], sizes = [1, 128], strides = [1, 1]} : vector<32x128xf32> to vector<1x128xf32>
    %506 = vector.broadcast %504 : vector<128x1xf32> to vector<128x128xf32>
    %507 = vector.broadcast %505 : vector<1x128xf32> to vector<128x128xf32>
    %508 = arith.addf %506, %507 : vector<128x128xf32>
    %cst_161 = arith.constant 0.000000e+00 : f32
    %509 = vector.broadcast %cst_161 : f32 to vector<128x128xf32>
    %510 = arith.cmpf oge, %508, %509 : vector<128x128xf32>
    %cst_162 = arith.constant 2.000000e-01 : f32
    %511 = vector.broadcast %cst_162 : f32 to vector<128x128xf32>
    %512 = arith.mulf %511, %508 : vector<128x128xf32>
    %513 = arith.select %510, %508, %512 : vector<128x128xi1>, vector<128x128xf32>
    %c1_163 = arith.constant 1 : index
    %c12_164 = arith.constant 12 : index
    %514 = memref.load %arg8[%c1_163, %c12_164] : memref<2x16xf32, #tpu.memory_space<smem>>
    %515 = vector.broadcast %514 : f32 to vector<128x128xf32>
    %516 = arith.mulf %515, %513 : vector<128x128xf32>
    %517 = arith.addf %501, %516 : vector<128x128xf32>
    %518 = vector.extract_strided_slice %308 {offsets = [0, 13], sizes = [128, 1], strides = [1, 1]} : vector<128x16xf32> to vector<128x1xf32>
    %cst_165 = arith.constant 1.010000e+00 : f32
    %519 = vector.broadcast %cst_165 : f32 to vector<128x1xf32>
    %520 = arith.mulf %519, %518 : vector<128x1xf32>
    %521 = vector.extract_strided_slice %16 {offsets = [29, 0], sizes = [1, 128], strides = [1, 1]} : vector<32x128xf32> to vector<1x128xf32>
    %522 = vector.broadcast %520 : vector<128x1xf32> to vector<128x128xf32>
    %523 = vector.broadcast %521 : vector<1x128xf32> to vector<128x128xf32>
    %524 = arith.addf %522, %523 : vector<128x128xf32>
    %cst_166 = arith.constant 0.000000e+00 : f32
    %525 = vector.broadcast %cst_166 : f32 to vector<128x128xf32>
    %526 = arith.cmpf oge, %524, %525 : vector<128x128xf32>
    %cst_167 = arith.constant 2.000000e-01 : f32
    %527 = vector.broadcast %cst_167 : f32 to vector<128x128xf32>
    %528 = arith.mulf %527, %524 : vector<128x128xf32>
    %529 = arith.select %526, %524, %528 : vector<128x128xi1>, vector<128x128xf32>
    %c1_168 = arith.constant 1 : index
    %c13_169 = arith.constant 13 : index
    %530 = memref.load %arg8[%c1_168, %c13_169] : memref<2x16xf32, #tpu.memory_space<smem>>
    %531 = vector.broadcast %530 : f32 to vector<128x128xf32>
    %532 = arith.mulf %531, %529 : vector<128x128xf32>
    %533 = arith.addf %517, %532 : vector<128x128xf32>
    %534 = vector.extract_strided_slice %308 {offsets = [0, 14], sizes = [128, 1], strides = [1, 1]} : vector<128x16xf32> to vector<128x1xf32>
    %cst_170 = arith.constant 1.010000e+00 : f32
    %535 = vector.broadcast %cst_170 : f32 to vector<128x1xf32>
    %536 = arith.mulf %535, %534 : vector<128x1xf32>
    %537 = vector.extract_strided_slice %16 {offsets = [30, 0], sizes = [1, 128], strides = [1, 1]} : vector<32x128xf32> to vector<1x128xf32>
    %538 = vector.broadcast %536 : vector<128x1xf32> to vector<128x128xf32>
    %539 = vector.broadcast %537 : vector<1x128xf32> to vector<128x128xf32>
    %540 = arith.addf %538, %539 : vector<128x128xf32>
    %cst_171 = arith.constant 0.000000e+00 : f32
    %541 = vector.broadcast %cst_171 : f32 to vector<128x128xf32>
    %542 = arith.cmpf oge, %540, %541 : vector<128x128xf32>
    %cst_172 = arith.constant 2.000000e-01 : f32
    %543 = vector.broadcast %cst_172 : f32 to vector<128x128xf32>
    %544 = arith.mulf %543, %540 : vector<128x128xf32>
    %545 = arith.select %542, %540, %544 : vector<128x128xi1>, vector<128x128xf32>
    %c1_173 = arith.constant 1 : index
    %c14_174 = arith.constant 14 : index
    %546 = memref.load %arg8[%c1_173, %c14_174] : memref<2x16xf32, #tpu.memory_space<smem>>
    %547 = vector.broadcast %546 : f32 to vector<128x128xf32>
    %548 = arith.mulf %547, %545 : vector<128x128xf32>
    %549 = arith.addf %533, %548 : vector<128x128xf32>
    %550 = vector.extract_strided_slice %308 {offsets = [0, 15], sizes = [128, 1], strides = [1, 1]} : vector<128x16xf32> to vector<128x1xf32>
    %cst_175 = arith.constant 1.010000e+00 : f32
    %551 = vector.broadcast %cst_175 : f32 to vector<128x1xf32>
    %552 = arith.mulf %551, %550 : vector<128x1xf32>
    %553 = vector.extract_strided_slice %16 {offsets = [31, 0], sizes = [1, 128], strides = [1, 1]} : vector<32x128xf32> to vector<1x128xf32>
    %554 = vector.broadcast %552 : vector<128x1xf32> to vector<128x128xf32>
    %555 = vector.broadcast %553 : vector<1x128xf32> to vector<128x128xf32>
    %556 = arith.addf %554, %555 : vector<128x128xf32>
    %cst_176 = arith.constant 0.000000e+00 : f32
    %557 = vector.broadcast %cst_176 : f32 to vector<128x128xf32>
    %558 = arith.cmpf oge, %556, %557 : vector<128x128xf32>
    %cst_177 = arith.constant 2.000000e-01 : f32
    %559 = vector.broadcast %cst_177 : f32 to vector<128x128xf32>
    %560 = arith.mulf %559, %556 : vector<128x128xf32>
    %561 = arith.select %558, %556, %560 : vector<128x128xi1>, vector<128x128xf32>
    %c1_178 = arith.constant 1 : index
    %c15_179 = arith.constant 15 : index
    %562 = memref.load %arg8[%c1_178, %c15_179] : memref<2x16xf32, #tpu.memory_space<smem>>
    %563 = vector.broadcast %562 : f32 to vector<128x128xf32>
    %564 = arith.mulf %563, %561 : vector<128x128xf32>
    %565 = arith.addf %549, %564 : vector<128x128xf32>
    %cst_180 = arith.constant -1.000000e+30 : f32
    %566 = vector.broadcast %cst_180 : f32 to vector<128x128xf32>
    %567 = arith.select %19, %565, %566 : vector<128x128xi1>, vector<128x128xf32>
    %c0_181 = arith.constant 0 : index
    %c1_182 = arith.constant 1 : index
    %568 = vector.load %arg12[%c0_181, %c1_182] : memref<128x2xf32, #tpu.memory_space<vmem>>, vector<128x1xf32>
    %cst_183 = arith.constant dense<0xFF800000> : vector<128xf32>
    %569 = vector.multi_reduction <maximumf>, %567, %cst_183 [1] : vector<128x128xf32> to vector<128xf32>
    %570 = vector.shape_cast %569 : vector<128xf32> to vector<128x1xf32>
    %571 = arith.maximumf %568, %570 : vector<128x1xf32>
    %572 = arith.subf %568, %571 : vector<128x1xf32>
    %573 = math.exp %572 : vector<128x1xf32>
    %574 = vector.broadcast %571 : vector<128x1xf32> to vector<128x128xf32>
    %575 = arith.subf %567, %574 : vector<128x128xf32>
    %576 = math.exp %575 : vector<128x128xf32>
    %cst_184 = arith.constant 0.000000e+00 : f32
    %577 = vector.broadcast %cst_184 : f32 to vector<128x128xf32>
    %578 = arith.select %19, %576, %577 : vector<128x128xi1>, vector<128x128xf32>
    %c0_185 = arith.constant 0 : index
    %c1_186 = arith.constant 1 : index
    %579 = vector.load %arg13[%c0_185, %c1_186] : memref<128x2xf32, #tpu.memory_space<vmem>>, vector<128x1xf32>
    %580 = arith.mulf %573, %579 : vector<128x1xf32>
    %cst_187 = arith.constant dense<0.000000e+00> : vector<128xf32>
    %581 = vector.multi_reduction <add>, %578, %cst_187 [1] : vector<128x128xf32> to vector<128xf32>
    %582 = vector.shape_cast %581 : vector<128xf32> to vector<128x1xf32>
    %583 = arith.addf %580, %582 : vector<128x1xf32>
    %c0_188 = arith.constant 0 : index
    %c1_189 = arith.constant 1 : index
    %584 = vector.load %arg13[%c0_188, %c1_189] : memref<128x2xf32, #tpu.memory_space<vmem>>, vector<128x1xf32>
    tpu.vector_store %arg13[%c0_188, %c1_189], %583 {strides = array<i32>} : memref<128x2xf32, #tpu.memory_space<vmem>>, vector<128x1xf32>,
    %c0_190 = arith.constant 0 : index
    %c16 = arith.constant 16 : index
    %585 = vector.load %arg14[%c0_190, %c16] : memref<128x32xf32, #tpu.memory_space<vmem>>, vector<128x16xf32>
    %586 = vector.broadcast %573 : vector<128x1xf32> to vector<128x16xf32>
    %587 = arith.mulf %586, %585 : vector<128x16xf32>
    %588 = arith.truncf %578 : vector<128x128xf32> to vector<128x128xbf16>
    %589 = vector.extract_strided_slice %10 {offsets = [0, 16], sizes = [128, 16], strides = [1, 1]} : vector<128x32xf32> to vector<128x16xf32>
    %590 = arith.truncf %589 : vector<128x16xf32> to vector<128x16xbf16>
    %cst_191 = arith.constant dense<0.000000e+00> : vector<128x16xf32>
    %591 = tpu.matmul %588, %590, %cst_191 {dimension_numbers = #tpu.dot_dimension_numbers<[1], [0], [0], [1], [0, 0, 1, 1], [], []>} : vector<128x128xbf16>, vector<128x16xbf16>, vector<128x16xf32> -> vector<128x16xf32>
    %592 = arith.addf %587, %591 : vector<128x16xf32>
    %c0_192 = arith.constant 0 : index
    %c16_193 = arith.constant 16 : index
    %593 = vector.load %arg14[%c0_192, %c16_193] : memref<128x32xf32, #tpu.memory_space<vmem>>, vector<128x16xf32>
    tpu.vector_store %arg14[%c0_192, %c16_193], %592 {strides = array<i32>} : memref<128x32xf32, #tpu.memory_space<vmem>>, vector<128x16xf32>,
    %c0_194 = arith.constant 0 : index
    %c1_195 = arith.constant 1 : index
    %594 = vector.load %arg12[%c0_194, %c1_195] : memref<128x2xf32, #tpu.memory_space<vmem>>, vector<128x1xf32>
    tpu.vector_store %arg12[%c0_194, %c1_195], %571 {strides = array<i32>} : memref<128x2xf32, #tpu.memory_space<vmem>>, vector<128x1xf32>,
    %c1_i32 = arith.constant 1 : i32
    %595 = arith.cmpi eq, %arg1, %c1_i32 : i32
    %596 = arith.extui %595 : i1 to i32
    %c0_i32_196 = arith.constant 0 : i32
    %597 = arith.cmpi ne, %596, %c0_i32_196 : i32
    scf.if %597 {
      %c0_197 = arith.constant 0 : index
      %c0_198 = arith.constant 0 : index
      %598 = vector.load %arg13[%c0_197, %c0_198] : memref<128x2xf32, #tpu.memory_space<vmem>>, vector<128x1xf32>
      %cst_199 = arith.constant 1.000000e-16 : f32
      %599 = vector.broadcast %cst_199 : f32 to vector<128x1xf32>
      %600 = arith.maximumf %598, %599 : vector<128x1xf32>
      %601 = tpu.reciprocal %600 {approx = true} : vector<128x1xf32> -> vector<128x1xf32>
      %c0_200 = arith.constant 0 : index
      %c0_201 = arith.constant 0 : index
      %602 = vector.load %arg14[%c0_200, %c0_201] : memref<128x32xf32, #tpu.memory_space<vmem>>, vector<128x16xf32>
      %603 = vector.broadcast %601 : vector<128x1xf32> to vector<128x16xf32>
      %604 = arith.mulf %602, %603 : vector<128x16xf32>
      %cst_202 = arith.constant 0.000000e+00 : f32
      %605 = vector.broadcast %cst_202 : f32 to vector<128x16xf32>
      %606 = arith.maximumf %604, %605 : vector<128x16xf32>
      %c0_203 = arith.constant 0 : index
      %c0_204 = arith.constant 0 : index
      %607 = vector.load %arg14[%c0_203, %c0_204] : memref<128x32xf32, #tpu.memory_space<vmem>>, vector<128x16xf32>
      tpu.vector_store %arg14[%c0_203, %c0_204], %606 {strides = array<i32>} : memref<128x32xf32, #tpu.memory_space<vmem>>, vector<128x16xf32>,
      %c0_205 = arith.constant 0 : index
      %c1_206 = arith.constant 1 : index
      %608 = vector.load %arg13[%c0_205, %c1_206] : memref<128x2xf32, #tpu.memory_space<vmem>>, vector<128x1xf32>
      %cst_207 = arith.constant 1.000000e-16 : f32
      %609 = vector.broadcast %cst_207 : f32 to vector<128x1xf32>
      %610 = arith.maximumf %608, %609 : vector<128x1xf32>
      %611 = tpu.reciprocal %610 {approx = true} : vector<128x1xf32> -> vector<128x1xf32>
      %c0_208 = arith.constant 0 : index
      %c16_209 = arith.constant 16 : index
      %612 = vector.load %arg14[%c0_208, %c16_209] : memref<128x32xf32, #tpu.memory_space<vmem>>, vector<128x16xf32>
      %613 = vector.broadcast %611 : vector<128x1xf32> to vector<128x16xf32>
      %614 = arith.mulf %612, %613 : vector<128x16xf32>
      %cst_210 = arith.constant 0.000000e+00 : f32
      %615 = vector.broadcast %cst_210 : f32 to vector<128x16xf32>
      %616 = arith.maximumf %614, %615 : vector<128x16xf32>
      %c0_211 = arith.constant 0 : index
      %c16_212 = arith.constant 16 : index
      %617 = vector.load %arg14[%c0_211, %c16_212] : memref<128x32xf32, #tpu.memory_space<vmem>>, vector<128x16xf32>
      tpu.vector_store %arg14[%c0_211, %c16_212], %616 {strides = array<i32>} : memref<128x32xf32, #tpu.memory_space<vmem>>, vector<128x16xf32>,
      %c0_213 = arith.constant 0 : index
      %c0_214 = arith.constant 0 : index
      %618 = vector.load %arg14[%c0_213, %c0_214] : memref<128x32xf32, #tpu.memory_space<vmem>>, vector<128x32xf32>
      %c0_215 = arith.constant 0 : index
      %c0_216 = arith.constant 0 : index
      %619 = vector.load %arg10[%c0_215, %c0_216] : memref<128x32xf32, #tpu.memory_space<vmem>>, vector<128x32xf32>
      tpu.vector_store %arg10[%c0_215, %c0_216], %618 {strides = array<i32>} : memref<128x32xf32, #tpu.memory_space<vmem>>, vector<128x32xf32>,
    } else {
    }
    return
  }
  func.func @transform_0(%arg0: i32, %arg1: i32) -> (i32, i32) {
    %c0_i32 = arith.constant 0 : i32
    %c0_i32_0 = arith.constant 0 : i32
    return %arg0, %c0_i32 : i32, i32
  }
  func.func @transform_1(%arg0: i32, %arg1: i32) -> (i32, i32) {
    %c0_i32 = arith.constant 0 : i32
    %c0_i32_0 = arith.constant 0 : i32
    return %arg1, %c0_i32 : i32, i32
  }
  func.func @transform_2(%arg0: i32, %arg1: i32) -> (i32, i32) {
    %c0_i32 = arith.constant 0 : i32
    %c0_i32_0 = arith.constant 0 : i32
    %c0_i32_1 = arith.constant 0 : i32
    return %c0_i32, %c0_i32_0 : i32, i32
  }
  func.func @transform_3(%arg0: i32, %arg1: i32) -> (i32, i32) {
    %c0_i32 = arith.constant 0 : i32
    %c0_i32_0 = arith.constant 0 : i32
    %c0_i32_1 = arith.constant 0 : i32
    return %c0_i32, %c0_i32_0 : i32, i32
  }
  func.func @transform_4(%arg0: i32, %arg1: i32) -> (i32, i32) {
    %c0_i32 = arith.constant 0 : i32
    %c0_i32_0 = arith.constant 0 : i32
    %c0_i32_1 = arith.constant 0 : i32
    return %c0_i32, %c0_i32_0 : i32, i32
  }
  func.func @transform_5(%arg0: i32, %arg1: i32) -> (i32, i32) {
    %c0_i32 = arith.constant 0 : i32
    %c0_i32_0 = arith.constant 0 : i32
    %c0_i32_1 = arith.constant 0 : i32
    return %c0_i32, %c0_i32_0 : i32, i32
  }
  func.func @transform_6(%arg0: i32, %arg1: i32) -> (i32, i32) {
    %c0_i32 = arith.constant 0 : i32
    %c0_i32_0 = arith.constant 0 : i32
    %c0_i32_1 = arith.constant 0 : i32
    return %c0_i32, %c0_i32_0 : i32, i32
  }
  func.func @transform_7(%arg0: i32, %arg1: i32) -> (i32, i32) {
    %c0_i32 = arith.constant 0 : i32
    return %arg0, %arg1 : i32, i32
  }
  func.func @transform_8(%arg0: i32, %arg1: i32) -> (i32, i32) {
    %c0_i32 = arith.constant 0 : i32
    %c0_i32_0 = arith.constant 0 : i32
    return %arg0, %c0_i32 : i32, i32
  }
}

</mosaic_0001>

<llo_original>
// kernel: tpu_custom_call.1
$region0: #{tpu_custom_call.1}
  #allocation0 [shape = 'u32[]', space=smem, size = 0x4, offset = 0x4, fixed_abs, tag = 'smem constant byte address 0x4 - core index']
  #allocation1 [shape = 'u32[144,128]{1,0:T(1,128)}', space=vmem, size = 0x12000, scoped, tag = 'internal scratch']
  #allocation2 [shape = 'f32[128,32]{1,0:T(8,128)}', space=vmem, size = 0x10000, scoped, tag = 'scratch operand']
  #allocation3 [shape = 'f32[128,2]{1,0:T(8,128)}', space=vmem, size = 0x10000, scoped, tag = 'scratch operand']
  #allocation4 [shape = 'f32[128,2]{1,0:T(8,128)}', space=vmem, size = 0x10000, scoped, tag = 'scratch operand']
  #allocation5 [shape = 'f32[128,32]{1,0:T(8,128)}', space=vmem, size = 0x10000, scoped, tag = 'scratch operand']
  %s0 = inlined_call_operand.vmem [shape: f32[256,64], index: 0, kind: input, shape index: {}]
  %s1 = inlined_call_operand.vmem [shape: f32[256,64], index: 1, kind: input, shape index: {}]
  %s2 = inlined_call_operand.vmem [shape: f32[64,32], index: 2, kind: input, shape index: {}]
  %s3 = inlined_call_operand.vmem [shape: f32[32,64], index: 3, kind: input, shape index: {}]
  %s4 = inlined_call_operand.vmem [shape: f32[1,32], index: 4, kind: input, shape index: {}]
  %s5 = inlined_call_operand.vmem [shape: f32[32,1], index: 5, kind: input, shape index: {}]
  %s6 = inlined_call_operand.vmem [shape: f32[2,16], index: 6, kind: input, shape index: {}]
  %s7 = inlined_call_operand.vmem [shape: bf16[256,256], index: 7, kind: input, shape index: {}]
  %s8 = inlined_call_operand.vmem [shape: f32[256,32], index: 8, kind: output, shape index: {}]
  %s9 = sld [smem:[#allocation0]]
  $region118: #{tpu_custom_call.1} parent=0
    _
  %s11 = ssub.s32 1, %s9
  %s12 = scalar_select 0, %s11, %s9
  $region1: #{tpu_custom_call.1} parent=0
    #allocation6 [shape = 'u8[1024]{0}', space=smem, size = 0x400, scoped, tag = 'input window, operand 6, single buffered']
    #allocation7 [shape = 's32[2]{0}', space=sflag, size = 0x8, scoped, tag = 'scoped memory for tpu_custom_call.1']
    #allocation8 [shape = 'u8[65536]{0}', space=vmem, size = 0x10000, scoped, tag = 'input window, operand 7']
    %13 = vsyncpa [#allocation7], 0
    loop: start=0, step=1, limit=6
    $region2: #{tpu_custom_call.1} parent=1 // loop_pre_header
      _
    $region3: #{tpu_custom_call.1} parent=1 // loop_header
      %s15 = sphi 0, %s19
      %p16 = scmp.ge.s32.totalorder %s15, 6
      %s22 = sphi 0, %s34
      %s23 = sphi 0, %s30
      %s24 = sphi 0, %s22
      %s25 = sphi 0, %s23
      %s26 = sphi 0, %s24
      %s27 = sphi 0, %s25
      %s37 = sphi 0, %s39
      %s40 = sphi 0, %s37
      %s41 = sphi 0, %s40
      %s57 = sphi 0, %s41
      %s63 = sphi 0, %s65
      %s66 = sphi 0, %s63
      %s67 = sphi 0, %s66
      %s83 = sphi 0, %s67
      %s87 = sphi 0, %s87
      %s89 = sphi 0, %s87
      %s90 = sphi 0, %s89
      %s104 = sphi 0, %s90
      %s108 = sphi 0, %s108
      %s110 = sphi 0, %s108
      %s111 = sphi 0, %s110
      %s125 = sphi 0, %s111
      %s129 = sphi 0, %s129
      %s131 = sphi 0, %s129
      %s132 = sphi 0, %s131
      %s146 = sphi 0, %s132
      %s150 = sphi 0, %s150
      %s152 = sphi 0, %s150
      %s153 = sphi 0, %s152
      %s167 = sphi 0, %s153
      %s171 = sphi 0, %s171
      %s173 = sphi 0, %s171
      %s174 = sphi 0, %s173
      %s188 = sphi 0, %s174
      %s196 = sphi 0, %s198
      %s199 = sphi 0, %s196
      %s200 = sphi 0, %s199
      %s216 = sphi 0, %s200
      %s222 = sphi 0, %s224
      %s225 = sphi 0, %s222
      %s226 = sphi 0, %s225
      %s242 = sphi 0, %s226
    $region4: #{tpu_custom_call.1} parent=1 // loop_header_branch
      %18 = sbr.rel (%p16) target = $region8
    $region5: #{tpu_custom_call.1} parent=1 // loop_body
      %s20 = ssub.s32 %s15, 1
      %s21 = ssub.s32 %s15, 2
      %s28 = sadd.s32 1, %s23
      %p29 = scmp.ge.s32.totalorder %s28, 2
      %s30 = scalar_select %p29, 0, %s28
      %s31 = sadd.s32 1, %s22
      %s32 = scalar_select %p29, %s31, %s22
      %p33 = scmp.ge.s32.totalorder %s32, 2
      %s34 = scalar_select %p33, 0, %s32
      %s35 = ssub.s32 %s22, %s34
      %p36 = scmp.eq.s32.totalorder %s35, 0
      %s38 = sadd.s32 %s37, 1
      %s39 = scalar_select %p36, %s37, %s38
      %p42 = pneg %p36
      %p43 = scmp.eq.s32.totalorder %s15, 3
      %p44 = por %p42, %p43
      %p45 = scmp.ne.s32.totalorder %s37, %s40
      %p46 = scmp.eq.s32.totalorder %s15, 0
      %p47 = por %p45, %p46
      %p48 = scmp.ne.s32.totalorder %s37, %s40
      %p49 = scmp.eq.s32.totalorder %s20, 3
      %p50 = por %p48, %p49
      %p51 = scmp.ne.s32.totalorder %s40, %s41
      %p52 = scmp.eq.s32.totalorder %s20, 0
      %p53 = por %p51, %p52
      %p54 = scmp.ne.s32.totalorder %s40, %s41
      %p55 = scmp.eq.s32.totalorder %s21, 3
      %p56 = por %p54, %p55
      %p58 = scmp.ne.s32.totalorder %s41, %s57
      %p59 = scmp.eq.s32.totalorder %s21, 0
      %p60 = por %p58, %p59
      %s61 = ssub.s32 %s23, %s30
      %p62 = scmp.eq.s32.totalorder %s61, 0
      %s64 = sadd.s32 %s63, 1
      %s65 = scalar_select %p62, %s63, %s64
      %p68 = pneg %p62
      %p69 = scmp.eq.s32.totalorder %s15, 3
      %p70 = por %p68, %p69
      %p71 = scmp.ne.s32.totalorder %s63, %s66
      %p72 = scmp.eq.s32.totalorder %s15, 0
      %p73 = por %p71, %p72
      %p74 = scmp.ne.s32.totalorder %s63, %s66
      %p75 = scmp.eq.s32.totalorder %s20, 3
      %p76 = por %p74, %p75
      %p77 = scmp.ne.s32.totalorder %s66, %s67
      %p78 = scmp.eq.s32.totalorder %s20, 0
      %p79 = por %p77, %p78
      %p80 = scmp.ne.s32.totalorder %s66, %s67
      %p81 = scmp.eq.s32.totalorder %s21, 3
      %p82 = por %p80, %p81
      %p84 = scmp.ne.s32.totalorder %s67, %s83
      %p85 = scmp.eq.s32.totalorder %s21, 0
      %p86 = por %p84, %p85
      %s88 = sadd.s32 %s87, 1
      %p91 = scmp.eq.s32.totalorder %s15, 3
      %p92 = scmp.ne.s32.totalorder %s87, %s89
      %p93 = scmp.eq.s32.totalorder %s15, 0
      %p94 = por %p92, %p93
      %p95 = scmp.ne.s32.totalorder %s87, %s89
      %p96 = scmp.eq.s32.totalorder %s20, 3
      %p97 = por %p95, %p96
      %p98 = scmp.ne.s32.totalorder %s89, %s90
      %p99 = scmp.eq.s32.totalorder %s20, 0
      %p100 = por %p98, %p99
      %p101 = scmp.ne.s32.totalorder %s89, %s90
      %p102 = scmp.eq.s32.totalorder %s21, 3
      %p103 = por %p101, %p102
      %p105 = scmp.ne.s32.totalorder %s90, %s104
      %p106 = scmp.eq.s32.totalorder %s21, 0
      %p107 = por %p105, %p106
      %s109 = sadd.s32 %s108, 1
      %p112 = scmp.eq.s32.totalorder %s15, 3
      %p113 = scmp.ne.s32.totalorder %s108, %s110
      %p114 = scmp.eq.s32.totalorder %s15, 0
      %p115 = por %p113, %p114
      %p116 = scmp.ne.s32.totalorder %s108, %s110
      %p117 = scmp.eq.s32.totalorder %s20, 3
      %p118 = por %p116, %p117
      %p119 = scmp.ne.s32.totalorder %s110, %s111
      %p120 = scmp.eq.s32.totalorder %s20, 0
      %p121 = por %p119, %p120
      %p122 = scmp.ne.s32.totalorder %s110, %s111
      %p123 = scmp.eq.s32.totalorder %s21, 3
      %p124 = por %p122, %p123
      %p126 = scmp.ne.s32.totalorder %s111, %s125
      %p127 = scmp.eq.s32.totalorder %s21, 0
      %p128 = por %p126, %p127
      %s130 = sadd.s32 %s129, 1
      %p133 = scmp.eq.s32.totalorder %s15, 3
      %p134 = scmp.ne.s32.totalorder %s129, %s131
      %p135 = scmp.eq.s32.totalorder %s15, 0
      %p136 = por %p134, %p135
      %p137 = scmp.ne.s32.totalorder %s129, %s131
      %p138 = scmp.eq.s32.totalorder %s20, 3
      %p139 = por %p137, %p138
      %p140 = scmp.ne.s32.totalorder %s131, %s132
      %p141 = scmp.eq.s32.totalorder %s20, 0
      %p142 = por %p140, %p141
      %p143 = scmp.ne.s32.totalorder %s131, %s132
      %p144 = scmp.eq.s32.totalorder %s21, 3
      %p145 = por %p143, %p144
      %p147 = scmp.ne.s32.totalorder %s132, %s146
      %p148 = scmp.eq.s32.totalorder %s21, 0
      %p149 = por %p147, %p148
      %s151 = sadd.s32 %s150, 1
      %p154 = scmp.eq.s32.totalorder %s15, 3
      %p155 = scmp.ne.s32.totalorder %s150, %s152
      %p156 = scmp.eq.s32.totalorder %s15, 0
      %p157 = por %p155, %p156
      %p158 = scmp.ne.s32.totalorder %s150, %s152
      %p159 = scmp.eq.s32.totalorder %s20, 3
      %p160 = por %p158, %p159
      %p161 = scmp.ne.s32.totalorder %s152, %s153
      %p162 = scmp.eq.s32.totalorder %s20, 0
      %p163 = por %p161, %p162
      %p164 = scmp.ne.s32.totalorder %s152, %s153
      %p165 = scmp.eq.s32.totalorder %s21, 3
      %p166 = por %p164, %p165
      %p168 = scmp.ne.s32.totalorder %s153, %s167
      %p169 = scmp.eq.s32.totalorder %s21, 0
      %p170 = por %p168, %p169
      %s172 = sadd.s32 %s171, 1
      %p175 = scmp.eq.s32.totalorder %s15, 3
      %p176 = scmp.ne.s32.totalorder %s171, %s173
      %p177 = scmp.eq.s32.totalorder %s15, 0
      %p178 = por %p176, %p177
      %p179 = scmp.ne.s32.totalorder %s171, %s173
      %p180 = scmp.eq.s32.totalorder %s20, 3
      %p181 = por %p179, %p180
      %p182 = scmp.ne.s32.totalorder %s173, %s174
      %p183 = scmp.eq.s32.totalorder %s20, 0
      %p184 = por %p182, %p183
      %p185 = scmp.ne.s32.totalorder %s173, %s174
      %p186 = scmp.eq.s32.totalorder %s21, 3
      %p187 = por %p185, %p186
      %p189 = scmp.ne.s32.totalorder %s174, %s188
      %p190 = scmp.eq.s32.totalorder %s21, 0
      %p191 = por %p189, %p190
      %s192 = ssub.s32 %s22, %s34
      %s193 = ssub.s32 %s23, %s30
      %s194 = sor.u32 %s192, %s193
      %p195 = scmp.eq.s32.totalorder %s194, 0
      %s197 = sadd.s32 %s196, 1
      %s198 = scalar_select %p195, %s196, %s197
      %p201 = pneg %p195
      %p202 = scmp.eq.s32.totalorder %s15, 3
      %p203 = por %p201, %p202
      %p204 = scmp.ne.s32.totalorder %s196, %s199
      %p205 = scmp.eq.s32.totalorder %s15, 0
      %p206 = por %p204, %p205
      %p207 = scmp.ne.s32.totalorder %s196, %s199
      %p208 = scmp.eq.s32.totalorder %s20, 3
      %p209 = por %p207, %p208
      %p210 = scmp.ne.s32.totalorder %s199, %s200
      %p211 = scmp.eq.s32.totalorder %s20, 0
      %p212 = por %p210, %p211
      %p213 = scmp.ne.s32.totalorder %s199, %s200
      %p214 = scmp.eq.s32.totalorder %s21, 3
      %p215 = por %p213, %p214
      %p217 = scmp.ne.s32.totalorder %s200, %s216
      %p218 = scmp.eq.s32.totalorder %s21, 0
      %p219 = por %p217, %p218
      %s220 = ssub.s32 %s22, %s34
      %p221 = scmp.eq.s32.totalorder %s220, 0
      %s223 = sadd.s32 %s222, 1
      %s224 = scalar_select %p221, %s222, %s223
      %p227 = pneg %p221
      %p228 = scmp.eq.s32.totalorder %s15, 3
      %p229 = por %p227, %p228
      %p230 = scmp.ne.s32.totalorder %s222, %s225
      %p231 = scmp.eq.s32.totalorder %s15, 0
      %p232 = por %p230, %p231
      %p233 = scmp.ne.s32.totalorder %s222, %s225
      %p234 = scmp.eq.s32.totalorder %s20, 3
      %p235 = por %p233, %p234
      %p236 = scmp.ne.s32.totalorder %s225, %s226
      %p237 = scmp.eq.s32.totalorder %s20, 0
      %p238 = por %p236, %p237
      %p239 = scmp.ne.s32.totalorder %s225, %s226
      %p240 = scmp.eq.s32.totalorder %s21, 3
      %p241 = por %p239, %p240
      %p243 = scmp.ne.s32.totalorder %s226, %s242
      %p244 = scmp.eq.s32.totalorder %s21, 0
      %p245 = por %p243, %p244
      %p246 = scmp.le.s32.totalorder 1, %s15
      %p247 = scmp.lt.s32.totalorder %s15, 5
      %p248 = pnand %p246, %p247
      %p249 = pneg %p248
      // Predicated region
      $region9: #{tpu_custom_call.1} parent=5 // pred_check
        _
      $region10: #{tpu_custom_call.1} parent=5 // pred_check_branch
        %251 = sbr.rel (%p248) target = $region12
      $region11: #{tpu_custom_call.1} parent=5 // pred_region
        %s252 = ssub.s32 %s15, 1
        // Predicated region
        $region13: #{tpu_custom_call.1} parent=11 // pred_check
          %p253 = pneg %p100
        $region14: #{tpu_custom_call.1} parent=11 // pred_check_branch
          %255 = sbr.rel (%p253) target = $region16
        $region15: #{tpu_custom_call.1} parent=11 // pred_region
          _
        $region16: #{tpu_custom_call.1} parent=11 // pred_fallthru
          _
        // Predicated region
        $region17: #{tpu_custom_call.1} parent=11 // pred_check
          %p256 = pneg %p121
        $region18: #{tpu_custom_call.1} parent=11 // pred_check_branch
          %258 = sbr.rel (%p256) target = $region20
        $region19: #{tpu_custom_call.1} parent=11 // pred_region
          _
        $region20: #{tpu_custom_call.1} parent=11 // pred_fallthru
          _
        // Predicated region
        $region21: #{tpu_custom_call.1} parent=11 // pred_check
          %p259 = pneg %p142
        $region22: #{tpu_custom_call.1} parent=11 // pred_check_branch
          %261 = sbr.rel (%p259) target = $region24
        $region23: #{tpu_custom_call.1} parent=11 // pred_region
          _
        $region24: #{tpu_custom_call.1} parent=11 // pred_fallthru
          _
        // Predicated region
        $region25: #{tpu_custom_call.1} parent=11 // pred_check
          %p262 = pneg %p163
        $region26: #{tpu_custom_call.1} parent=11 // pred_check_branch
          %264 = sbr.rel (%p262) target = $region28
        $region27: #{tpu_custom_call.1} parent=11 // pred_region
          _
        $region28: #{tpu_custom_call.1} parent=11 // pred_fallthru
          _
        // Predicated region
        $region29: #{tpu_custom_call.1} parent=11 // pred_check
          %p265 = pneg %p184
        $region30: #{tpu_custom_call.1} parent=11 // pred_check_branch
          %267 = sbr.rel (%p265) target = $region32
        $region31: #{tpu_custom_call.1} parent=11 // pred_region
          %s269 = ssub.s32 32, 32
          %270 = vsyncadd [#allocation7], %s269
          %s272 = sshll.u32 %s6, 4
          %s273 = int_to_ptr.vmem [resolvable:$true] %s272
          %275 = dma.vmem_to_smem %s273, 32, [#allocation6], [#allocation7]
        $region32: #{tpu_custom_call.1} parent=11 // pred_fallthru
          _
      $region12: #{tpu_custom_call.1} parent=5 // pred_fallthru
        _
      %p276 = scmp.lt.s32.totalorder %s15, 4
      // Predicated region
      $region33: #{tpu_custom_call.1} parent=5 // pred_check
        %p277 = pneg %p276
      $region34: #{tpu_custom_call.1} parent=5 // pred_check_branch
        %279 = sbr.rel (%p277) target = $region36
      $region35: #{tpu_custom_call.1} parent=5 // pred_region
        // Predicated region
        $region37: #{tpu_custom_call.1} parent=35 // pred_check
          %p280 = pneg %p47
        $region38: #{tpu_custom_call.1} parent=35 // pred_check_branch
          %282 = sbr.rel (%p280) target = $region40
        $region39: #{tpu_custom_call.1} parent=35 // pred_region
          %s283 = smul.u32 16, %s22
          %p284 = scmp.lt.s32.totalorder %s283, 31
          %s285 = scalar_select %p284, %s283, 31
          %s286 = smul.addr %s285, 8
          %s287 = scalar_lea.vmem %s0, %s286
          %s288 = smul.u32 16, %s22
        $region40: #{tpu_custom_call.1} parent=35 // pred_fallthru
          _
        // Predicated region
        $region41: #{tpu_custom_call.1} parent=35 // pred_check
          %p289 = pneg %p73
        $region42: #{tpu_custom_call.1} parent=35 // pred_check_branch
          %291 = sbr.rel (%p289) target = $region44
        $region43: #{tpu_custom_call.1} parent=35 // pred_region
          %s292 = smul.u32 16, %s23
          %p293 = scmp.lt.s32.totalorder %s292, 31
          %s294 = scalar_select %p293, %s292, 31
          %s295 = smul.addr %s294, 8
          %s296 = scalar_lea.vmem %s1, %s295
          %s297 = smul.u32 16, %s23
        $region44: #{tpu_custom_call.1} parent=35 // pred_fallthru
          _
        // Predicated region
        $region45: #{tpu_custom_call.1} parent=35 // pred_check
          %p298 = pneg %p206
        $region46: #{tpu_custom_call.1} parent=35 // pred_check_branch
          %300 = sbr.rel (%p298) target = $region48
        $region47: #{tpu_custom_call.1} parent=35 // pred_region
          %s301 = sand.u32 %s196, 1
          %s302 = sand.u32 %s196, 1
          %s303 = smul.addr %s302, 64
          %s304 = scalar_lea.vmem [#allocation8], %s303
          %s305 = smul.u32 16, %s22
          %s306 = smul.addr %s305, 2
          %s307 = sadd.s32 %s23, %s306
          %s308 = smul.addr %s307, 4
          %s309 = scalar_lea.vmem %s7, %s308
          // Predicated region
          $region49: #{tpu_custom_call.1} parent=47 // pred_check
            _
          $region50: #{tpu_custom_call.1} parent=47 // pred_check_branch
            %311 = sbr.rel (0) target = $region52
          $region51: #{tpu_custom_call.1} parent=47 // pred_region
            // Predicated region
            $region53: #{tpu_custom_call.1} parent=51 // pred_check
              _
            $region54: #{tpu_custom_call.1} parent=51 // pred_check_branch
              %313 = sbr.rel target = $region56
            $region55: #{tpu_custom_call.1} parent=51 // pred_region
              // Predicated region
              $region68: #{tpu_custom_call.1} parent=55 // pred_check
                _
              $region69: #{tpu_custom_call.1} parent=55 // pred_check_branch
                %358 = sbr.rel (0) target = $region71
              $region70: #{tpu_custom_call.1} parent=55 // pred_region
                loop: start=0, step=1, limit=1
                $region72: #{tpu_custom_call.1} parent=70 // loop_pre_header
                  _
                $region73: #{tpu_custom_call.1} parent=70 // loop_header
                  %s360 = sphi 0, %s364
                  %p361 = scmp.ge.s32.totalorder %s360, 1
                  %s365 = sphi %s309, %s309
                  %s366 = sphi %s304, %s304
                $region74: #{tpu_custom_call.1} parent=70 // loop_header_branch
                  %363 = sbr.rel (%p361) target = $region78
                $region75: #{tpu_custom_call.1} parent=70 // loop_body
                  _
                $region76: #{tpu_custom_call.1} parent=70 // loop_footer
                  %s364 = sadd.s32 1, %s360
                $region77: #{tpu_custom_call.1} parent=70 // loop_footer_branch
                  %359 = sbr.rel target = $region73
                $region78: #{tpu_custom_call.1} parent=70 // loop_exit
                  _
                loop: start=0, step=1, limit=1
                $region79: #{tpu_custom_call.1} parent=70 // loop_pre_header
                  _
                $region80: #{tpu_custom_call.1} parent=70 // loop_header
                  %s369 = sphi 0, %s373
                  %p370 = scmp.ge.s32.totalorder %s369, 1
                  %s374 = sphi %s309, %s309
                  %s375 = sphi %s304, %s304
                $region81: #{tpu_custom_call.1} parent=70 // loop_header_branch
                  %372 = sbr.rel (%p370) target = $region85
                $region82: #{tpu_custom_call.1} parent=70 // loop_body
                  %v376 = vld [vmem:[%s374] sm:$0xf]
                  %377 = vst [vmem:[%s375] sm:$0xf] %v376
                  %v378 = vld [vmem:[%s374 + $0x8] sm:$0xf]
                  %379 = vst [vmem:[%s375 + $0x4] sm:$0xf] %v378
                  %v380 = vld [vmem:[%s374 + $0x10] sm:$0xf]
                  %381 = vst [vmem:[%s375 + $0x8] sm:$0xf] %v380
                  %v382 = vld [vmem:[%s374 + $0x18] sm:$0xf]
                  %383 = vst [vmem:[%s375 + $0xc] sm:$0xf] %v382
                  %v384 = vld [vmem:[%s374 + $0x20] sm:$0xf]
                  %385 = vst [vmem:[%s375 + $0x10] sm:$0xf] %v384
                  %v386 = vld [vmem:[%s374 + $0x28] sm:$0xf]
                  %387 = vst [vmem:[%s375 + $0x14] sm:$0xf] %v386
                  %v388 = vld [vmem:[%s374 + $0x30] sm:$0xf]
                  %389 = vst [vmem:[%s375 + $0x18] sm:$0xf] %v388
                  %v390 = vld [vmem:[%s374 + $0x38] sm:$0xf]
                  %391 = vst [vmem:[%s375 + $0x1c] sm:$0xf] %v390
                  %v392 = vld [vmem:[%s374 + $0x40] sm:$0xf]
                  %393 = vst [vmem:[%s375 + $0x20] sm:$0xf] %v392
                  %v394 = vld [vmem:[%s374 + $0x48] sm:$0xf]
                  %395 = vst [vmem:[%s375 + $0x24] sm:$0xf] %v394
                  %v396 = vld [vmem:[%s374 + $0x50] sm:$0xf]
                  %397 = vst [vmem:[%s375 + $0x28] sm:$0xf] %v396
                  %v398 = vld [vmem:[%s374 + $0x58] sm:$0xf]
                  %399 = vst [vmem:[%s375 + $0x2c] sm:$0xf] %v398
                  %v400 = vld [vmem:[%s374 + $0x60] sm:$0xf]
                  %401 = vst [vmem:[%s375 + $0x30] sm:$0xf] %v400
                  %v402 = vld [vmem:[%s374 + $0x68] sm:$0xf]
                  %403 = vst [vmem:[%s375 + $0x34] sm:$0xf] %v402
                  %v404 = vld [vmem:[%s374 + $0x70] sm:$0xf]
                  %405 = vst [vmem:[%s375 + $0x38] sm:$0xf] %v404
                  %v406 = vld [vmem:[%s374 + $0x78] sm:$0xf]
                  %407 = vst [vmem:[%s375 + $0x3c] sm:$0xf] %v406
                $region83: #{tpu_custom_call.1} parent=70 // loop_footer
                  %s373 = sadd.s32 1, %s369
                $region84: #{tpu_custom_call.1} parent=70 // loop_footer_branch
                  %368 = sbr.rel target = $region80
                $region85: #{tpu_custom_call.1} parent=70 // loop_exit
                  _
              $region71: #{tpu_custom_call.1} parent=55 // pred_fallthru
                _
            $region56: #{tpu_custom_call.1} parent=51 // pred_fallthru
              _
            // Predicated region
            $region57: #{tpu_custom_call.1} parent=51 // pred_check
              _
            $region58: #{tpu_custom_call.1} parent=51 // pred_check_branch
              %315 = sbr.rel (0) target = $region60
            $region59: #{tpu_custom_call.1} parent=51 // pred_region
              loop: start=0, step=1, limit=1
              $region61: #{tpu_custom_call.1} parent=59 // loop_pre_header
                _
              $region62: #{tpu_custom_call.1} parent=59 // loop_header
                %s318 = sphi 0, %s322
                %p319 = scmp.ge.s32.totalorder %s318, 1
                %s323 = sphi %s309, %s309
                %s324 = sphi %s304, %s304
              $region63: #{tpu_custom_call.1} parent=59 // loop_header_branch
                %321 = sbr.rel (%p319) target = $region67
              $region64: #{tpu_custom_call.1} parent=59 // loop_body
                %v325 = vld [vmem:[%s323] sm:$0xf]
                %326 = vst [vmem:[%s324] sm:$0xf] %v325
                %v327 = vld [vmem:[%s323 + $0x8] sm:$0xf]
                %328 = vst [vmem:[%s324 + $0x4] sm:$0xf] %v327
                %v329 = vld [vmem:[%s323 + $0x10] sm:$0xf]
                %330 = vst [vmem:[%s324 + $0x8] sm:$0xf] %v329
                %v331 = vld [vmem:[%s323 + $0x18] sm:$0xf]
                %332 = vst [vmem:[%s324 + $0xc] sm:$0xf] %v331
                %v333 = vld [vmem:[%s323 + $0x20] sm:$0xf]
                %334 = vst [vmem:[%s324 + $0x10] sm:$0xf] %v333
                %v335 = vld [vmem:[%s323 + $0x28] sm:$0xf]
                %336 = vst [vmem:[%s324 + $0x14] sm:$0xf] %v335
                %v337 = vld [vmem:[%s323 + $0x30] sm:$0xf]
                %338 = vst [vmem:[%s324 + $0x18] sm:$0xf] %v337
                %v339 = vld [vmem:[%s323 + $0x38] sm:$0xf]
                %340 = vst [vmem:[%s324 + $0x1c] sm:$0xf] %v339
                %v341 = vld [vmem:[%s323 + $0x40] sm:$0xf]
                %342 = vst [vmem:[%s324 + $0x20] sm:$0xf] %v341
                %v343 = vld [vmem:[%s323 + $0x48] sm:$0xf]
                %344 = vst [vmem:[%s324 + $0x24] sm:$0xf] %v343
                %v345 = vld [vmem:[%s323 + $0x50] sm:$0xf]
                %346 = vst [vmem:[%s324 + $0x28] sm:$0xf] %v345
                %v347 = vld [vmem:[%s323 + $0x58] sm:$0xf]
                %348 = vst [vmem:[%s324 + $0x2c] sm:$0xf] %v347
                %v349 = vld [vmem:[%s323 + $0x60] sm:$0xf]
                %350 = vst [vmem:[%s324 + $0x30] sm:$0xf] %v349
                %v351 = vld [vmem:[%s323 + $0x68] sm:$0xf]
                %352 = vst [vmem:[%s324 + $0x34] sm:$0xf] %v351
                %v353 = vld [vmem:[%s323 + $0x70] sm:$0xf]
                %354 = vst [vmem:[%s324 + $0x38] sm:$0xf] %v353
                %v355 = vld [vmem:[%s323 + $0x78] sm:$0xf]
                %356 = vst [vmem:[%s324 + $0x3c] sm:$0xf] %v355
              $region65: #{tpu_custom_call.1} parent=59 // loop_footer
                %s322 = sadd.s32 1, %s318
              $region66: #{tpu_custom_call.1} parent=59 // loop_footer_branch
                %317 = sbr.rel target = $region62
              $region67: #{tpu_custom_call.1} parent=59 // loop_exit
                _
            $region60: #{tpu_custom_call.1} parent=51 // pred_fallthru
              _
          $region52: #{tpu_custom_call.1} parent=47 // pred_fallthru
            _
          %408 = vnop
        $region48: #{tpu_custom_call.1} parent=35 // pred_fallthru
          _
      $region36: #{tpu_custom_call.1} parent=5 // pred_fallthru
        _
      %p409 = scmp.le.s32.totalorder 1, %s15
      %p410 = scmp.lt.s32.totalorder %s15, 5
      %p411 = pnand %p409, %p410
      %p412 = pneg %p411
      // Predicated region
      $region86: #{tpu_custom_call.1} parent=5 // pred_check
        _
      $region87: #{tpu_custom_call.1} parent=5 // pred_check_branch
        %414 = sbr.rel (%p411) target = $region89
      $region88: #{tpu_custom_call.1} parent=5 // pred_region
        %s415 = ssub.s32 %s15, 1
        // Predicated region
        $region90: #{tpu_custom_call.1} parent=88 // pred_check
          %p416 = pneg %p184
        $region91: #{tpu_custom_call.1} parent=88 // pred_check_branch
          %418 = sbr.rel (%p416) target = $region93
        $region92: #{tpu_custom_call.1} parent=88 // pred_region
          %419 = dma.done [#allocation7], 32
        $region93: #{tpu_custom_call.1} parent=88 // pred_fallthru
          _
        %s420 = sand.u32 %s199, 1
        %s421 = sand.u32 %s199, 1
        %s422 = smul.addr %s421, 64
        %s423 = scalar_lea.vmem [#allocation8], %s422
        // Predicated region
        $region94: #{tpu_custom_call.1} parent=88 // pred_check
          %p424 = pneg %p212
        $region95: #{tpu_custom_call.1} parent=88 // pred_check_branch
          %426 = sbr.rel (%p424) target = $region97
        $region96: #{tpu_custom_call.1} parent=88 // pred_region
          _
        $region97: #{tpu_custom_call.1} parent=88 // pred_fallthru
          _
        %427 = sfence
        %s428 = smul.u32 16, %s24
        %p429 = scmp.lt.s32.totalorder %s428, 31
        %s430 = scalar_select %p429, %s428, 31
        %s431 = smul.addr %s430, 8
        %s432 = scalar_lea.vmem %s0, %s431
        %p433 = pneg %p53
        %p434 = pneg %p50
        %s435 = smul.u32 16, %s25
        %p436 = scmp.lt.s32.totalorder %s435, 31
        %s437 = scalar_select %p436, %s435, 31
        %s438 = smul.addr %s437, 8
        %s439 = scalar_lea.vmem %s1, %s438
        %p440 = pneg %p79
        %p441 = pneg %p76
        %p442 = pneg %p100
        %p443 = pneg %p97
        %p444 = pneg %p121
        %p445 = pneg %p118
        %p446 = pneg %p142
        %p447 = pneg %p139
        %p448 = pneg %p163
        %p449 = pneg %p160
        %p450 = pneg %p184
        %p451 = pneg %p181
        %s452 = sand.u32 %s199, 1
        %s453 = sand.u32 %s199, 1
        %s454 = smul.addr %s453, 64
        %s455 = scalar_lea.vmem [#allocation8], %s454
        %p456 = pneg %p212
        %p457 = pneg %p209
        %p458 = pneg %p238
        %p459 = pneg %p235
        %s460 = smul.u32 16, %s24
        %p461 = scmp.lt.s32.totalorder %s460, 31
        %s462 = scalar_select %p461, %s460, 31
        %s463 = smul.addr %s462, 8
        %s464 = scalar_lea.vmem %s8, %s463
        %s465 = smul.u32 16, %s24
        %p466 = scmp.lt.s32.totalorder %s465, 31
        %s467 = scalar_select %p466, %s465, 31
        %s468 = smul.addr %s467, 8
        %s469 = scalar_lea.vmem %s0, %s468
        %s470 = smul.u32 16, %s24
        %s471 = smul.u32 16, %s25
        %p472 = scmp.lt.s32.totalorder %s471, 31
        %s473 = scalar_select %p472, %s471, 31
        %s474 = smul.addr %s473, 8
        %s475 = scalar_lea.vmem %s1, %s474
        %s476 = smul.u32 16, %s25
        %s477 = smul.u32 16, %s24
        %s478 = smul.u32 16, %s24
        %p479 = scmp.lt.s32.totalorder %s478, 31
        %s480 = scalar_select %p479, %s478, 31
        %s481 = smul.addr %s480, 8
        %s482 = scalar_lea.vmem %s8, %s481
        %s483 = smul.u32 16, %s24
        %v487 = vld [vmem:[%s2] sm:$0xff]
        %v488 = vld [vmem:[%s2 + $0x8] sm:$0xff]
        %v489 = vld [vmem:[%s2 + $0x10] sm:$0xff]
        %v490 = vld [vmem:[%s2 + $0x18] sm:$0xff]
        %v491 = vld [vmem:[%s2 + $0x20] sm:$0xff]
        %v492 = vld [vmem:[%s2 + $0x28] sm:$0xff]
        %v493 = vld [vmem:[%s2 + $0x30] sm:$0xff]
        %v494 = vld [vmem:[%s2 + $0x38] sm:$0xff]
        %v495 = vpack.c.bf16 %v488, %v487
        %v496 = vpack.c.bf16 %v490, %v489
        %v497 = vpack.c.bf16 %v492, %v491
        %v498 = vpack.c.bf16 %v494, %v493
        %p499 = scmp.eq.s32.totalorder %s25, 0
        // Predicated region
        $region98: #{tpu_custom_call.1} parent=88 // pred_check
          %p500 = pneg %p499
        $region99: #{tpu_custom_call.1} parent=88 // pred_check_branch
          %502 = sbr.rel (%p500) target = $region101
        $region100: #{tpu_custom_call.1} parent=88 // pred_region
          %v503 = vld [vmem:[%s469] sm:$0xff]
          %v504 = vld [vmem:[%s469 + $0x8] sm:$0xff]
          %v505 = vld [vmem:[%s469 + $0x10] sm:$0xff]
          %v506 = vld [vmem:[%s469 + $0x18] sm:$0xff]
          %v507 = vld [vmem:[%s469 + $0x20] sm:$0xff]
          %v508 = vld [vmem:[%s469 + $0x28] sm:$0xff]
          %v509 = vld [vmem:[%s469 + $0x30] sm:$0xff]
          %v510 = vld [vmem:[%s469 + $0x38] sm:$0xff]
          %v511 = vld [vmem:[%s469 + $0x40] sm:$0xff]
          %v512 = vld [vmem:[%s469 + $0x48] sm:$0xff]
          %v513 = vld [vmem:[%s469 + $0x50] sm:$0xff]
          %v514 = vld [vmem:[%s469 + $0x58] sm:$0xff]
          %v515 = vld [vmem:[%s469 + $0x60] sm:$0xff]
          %v516 = vld [vmem:[%s469 + $0x68] sm:$0xff]
          %v517 = vld [vmem:[%s469 + $0x70] sm:$0xff]
          %v518 = vld [vmem:[%s469 + $0x78] sm:$0xff]
          %v519 = vpack.c.bf16 %v504, %v503
          %v520 = vpack.c.bf16 %v506, %v505
          %v521 = vpack.c.bf16 %v508, %v507
          %v522 = vpack.c.bf16 %v510, %v509
          %v523 = vpack.c.bf16 %v512, %v511
          %v524 = vpack.c.bf16 %v514, %v513
          %v525 = vpack.c.bf16 %v516, %v515
          %v526 = vpack.c.bf16 %v518, %v517
          %v527 = vld [vmem:[%s4] sm:$0x1]
          %v529 = vlaneseq
          %v530 = vshrl.u32 %v529, 7
          %v531 = vsub.s32 0, %v530
          %v532 = vrot.slane %v527, %v531
          %vm534 = vcmask 523264
          %v536 = vsel %vm534, %v519, 0
          %v539 = vsel %vm534, %v520, 0
          %v542 = vsel %vm534, %v521, 0
          %v545 = vsel %vm534, %v522, 0
          %v548 = vsel %vm534, %v523, 0
          %v551 = vsel %vm534, %v524, 0
          %v554 = vsel %vm534, %v525, 0
          %v557 = vsel %vm534, %v526, 0
          %559 = vmatprep.subr.bf16.mxu0 0
          %560 = vmatpush1.bf16.msra.mxu0 %v495
          %561 = vmatprep.subr.bf16.mxu0 0
          %562 = vmatpush1.bf16.msra.mxu0 %v496
          %563 = vmatprep.subr.bf16.mxu0 0
          %564 = vmatpush1.bf16.msra.mxu0 %v497
          %565 = vmatprep.subr.bf16.mxu0 0
          %566 = vmatpush1.bf16.msra.mxu0 %v498
          %567 = vmatprep.subr.bf16.mxu0 0
          %568 = vmatpush1.bf16.msra.mxu0 0
          %569 = vmatprep.subr.bf16.mxu0 0
          %570 = vmatpush1.bf16.msra.mxu0 0
          %571 = vmatprep.subr.bf16.mxu0 0
          %572 = vmatpush1.bf16.msra.mxu0 0
          %573 = vmatprep.subr.bf16.mxu0 0
          %574 = vmatpush1.bf16.msra.mxu0 0
          %575 = vmatprep.subr.bf16.mxu0 0
          %576 = vmatpush1.bf16.msra.mxu0 0
          %577 = vmatprep.subr.bf16.mxu0 0
          %578 = vmatpush1.bf16.msra.mxu0 0
          %579 = vmatprep.subr.bf16.mxu0 0
          %580 = vmatpush1.bf16.msra.mxu0 0
          %581 = vmatprep.subr.bf16.mxu0 0
          %582 = vmatpush1.bf16.msra.mxu0 0
          %583 = vmatprep.subr.bf16.mxu0 0
          %584 = vmatpush1.bf16.msra.mxu0 0
          %585 = vmatprep.subr.bf16.mxu0 0
          %586 = vmatpush1.bf16.msra.mxu0 0
          %587 = vmatprep.subr.bf16.mxu0 0
          %588 = vmatpush1.bf16.msra.mxu0 0
          %589 = vmatprep.subr.bf16.mxu0 0
          %590 = vmatpush1.bf16.msra.mxu0 0
          %591 = vmatprep.mubr.bf16.mxu0 0
          %592 = vmatmul.mubr.bf16.gmra.mrb[0].mxu0 %v536
          %v593 = vpop.f32.mrb[0].mxu0
          %v594 = vadd.f32 %v532, %v593
          %v595 = vpop.f32.mrb[0].mxu0
          %v596 = vpop.f32.mrb[0].mxu0
          %v597 = vadd.f32 %v532, %v596
          %v598 = vpop.f32.mrb[0].mxu0
          %599 = vmatprep.mubr.bf16.mxu0 0
          %600 = vmatmul.mubr.bf16.gmra.mrb[0].mxu0 %v539
          %v601 = vpop.f32.mrb[0].mxu0
          %v602 = vadd.f32 %v532, %v601
          %v603 = vpop.f32.mrb[0].mxu0
          %v604 = vpop.f32.mrb[0].mxu0
          %v605 = vadd.f32 %v532, %v604
          %v606 = vpop.f32.mrb[0].mxu0
          %607 = vmatprep.mubr.bf16.mxu0 0
          %608 = vmatmul.mubr.bf16.gmra.mrb[0].mxu0 %v542
          %v609 = vpop.f32.mrb[0].mxu0
          %v610 = vadd.f32 %v532, %v609
          %v611 = vpop.f32.mrb[0].mxu0
          %v612 = vpop.f32.mrb[0].mxu0
          %v613 = vadd.f32 %v532, %v612
          %v614 = vpop.f32.mrb[0].mxu0
          %615 = vmatprep.mubr.bf16.mxu0 0
          %616 = vmatmul.mubr.bf16.gmra.mrb[0].mxu0 %v545
          %v617 = vpop.f32.mrb[0].mxu0
          %v618 = vadd.f32 %v532, %v617
          %v619 = vpop.f32.mrb[0].mxu0
          %v620 = vpop.f32.mrb[0].mxu0
          %v621 = vadd.f32 %v532, %v620
          %v622 = vpop.f32.mrb[0].mxu0
          %623 = vmatprep.mubr.bf16.mxu0 0
          %624 = vmatmul.mubr.bf16.gmra.mrb[0].mxu0 %v548
          %v625 = vpop.f32.mrb[0].mxu0
          %v626 = vadd.f32 %v532, %v625
          %v627 = vpop.f32.mrb[0].mxu0
          %v628 = vpop.f32.mrb[0].mxu0
          %v629 = vadd.f32 %v532, %v628
          %v630 = vpop.f32.mrb[0].mxu0
          %631 = vmatprep.mubr.bf16.mxu0 0
          %632 = vmatmul.mubr.bf16.gmra.mrb[0].mxu0 %v551
          %v633 = vpop.f32.mrb[0].mxu0
          %v634 = vadd.f32 %v532, %v633
          %v635 = vpop.f32.mrb[0].mxu0
          %v636 = vpop.f32.mrb[0].mxu0
          %v637 = vadd.f32 %v532, %v636
          %v638 = vpop.f32.mrb[0].mxu0
          %639 = vmatprep.mubr.bf16.mxu0 0
          %640 = vmatmul.mubr.bf16.gmra.mrb[0].mxu0 %v554
          %v641 = vpop.f32.mrb[0].mxu0
          %v642 = vadd.f32 %v532, %v641
          %v643 = vpop.f32.mrb[0].mxu0
          %v644 = vpop.f32.mrb[0].mxu0
          %v645 = vadd.f32 %v532, %v644
          %v646 = vpop.f32.mrb[0].mxu0
          %647 = vmatprep.mubr.bf16.mxu0 0
          %648 = vmatmul.mubr.bf16.gmra.mrb[0].mxu0 %v557
          %v649 = vpop.f32.mrb[0].mxu0
          %v650 = vadd.f32 %v532, %v649
          %v651 = vpop.f32.mrb[0].mxu0
          %v652 = vpop.f32.mrb[0].mxu0
          %v653 = vadd.f32 %v532, %v652
          %v654 = vpop.f32.mrb[0].mxu0
          %655 = vdwg.mxu0
          %vm656 = vcmask 261120
          %657 = vst.msk [vmem:[#allocation2] sm:$0xff] %vm656, %v594
          %658 = vst.msk [vmem:[#allocation2 + $0x8] sm:$0xff] %vm656, %v597
          %659 = vst.msk [vmem:[#allocation2 + $0x10] sm:$0xff] %vm656, %v602
          %660 = vst.msk [vmem:[#allocation2 + $0x18] sm:$0xff] %vm656, %v605
          %661 = vst.msk [vmem:[#allocation2 + $0x20] sm:$0xff] %vm656, %v610
          %662 = vst.msk [vmem:[#allocation2 + $0x28] sm:$0xff] %vm656, %v613
          %663 = vst.msk [vmem:[#allocation2 + $0x30] sm:$0xff] %vm656, %v618
          %664 = vst.msk [vmem:[#allocation2 + $0x38] sm:$0xff] %vm656, %v621
          %665 = vst.msk [vmem:[#allocation2 + $0x40] sm:$0xff] %vm656, %v626
          %666 = vst.msk [vmem:[#allocation2 + $0x48] sm:$0xff] %vm656, %v629
          %667 = vst.msk [vmem:[#allocation2 + $0x50] sm:$0xff] %vm656, %v634
          %668 = vst.msk [vmem:[#allocation2 + $0x58] sm:$0xff] %vm656, %v637
          %669 = vst.msk [vmem:[#allocation2 + $0x60] sm:$0xff] %vm656, %v642
          %670 = vst.msk [vmem:[#allocation2 + $0x68] sm:$0xff] %vm656, %v645
          %671 = vst.msk [vmem:[#allocation2 + $0x70] sm:$0xff] %vm656, %v650
          %672 = vst.msk [vmem:[#allocation2 + $0x78] sm:$0xff] %vm656, %v653
          %vm673 = vcmask 15360
          %674 = vst.msk [vmem:[#allocation3] sm:$0xff] %vm673, -1e+30
          %675 = vst.msk [vmem:[#allocation3 + $0x8] sm:$0xff] %vm673, -1e+30
          %676 = vst.msk [vmem:[#allocation3 + $0x10] sm:$0xff] %vm673, -1e+30
          %677 = vst.msk [vmem:[#allocation3 + $0x18] sm:$0xff] %vm673, -1e+30
          %678 = vst.msk [vmem:[#allocation3 + $0x20] sm:$0xff] %vm673, -1e+30
          %679 = vst.msk [vmem:[#allocation3 + $0x28] sm:$0xff] %vm673, -1e+30
          %680 = vst.msk [vmem:[#allocation3 + $0x30] sm:$0xff] %vm673, -1e+30
          %681 = vst.msk [vmem:[#allocation3 + $0x38] sm:$0xff] %vm673, -1e+30
          %682 = vst.msk [vmem:[#allocation3 + $0x40] sm:$0xff] %vm673, -1e+30
          %683 = vst.msk [vmem:[#allocation3 + $0x48] sm:$0xff] %vm673, -1e+30
          %684 = vst.msk [vmem:[#allocation3 + $0x50] sm:$0xff] %vm673, -1e+30
          %685 = vst.msk [vmem:[#allocation3 + $0x58] sm:$0xff] %vm673, -1e+30
          %686 = vst.msk [vmem:[#allocation3 + $0x60] sm:$0xff] %vm673, -1e+30
          %687 = vst.msk [vmem:[#allocation3 + $0x68] sm:$0xff] %vm673, -1e+30
          %688 = vst.msk [vmem:[#allocation3 + $0x70] sm:$0xff] %vm673, -1e+30
          %689 = vst.msk [vmem:[#allocation3 + $0x78] sm:$0xff] %vm673, -1e+30
          %690 = vst.msk [vmem:[#allocation4] sm:$0xff] %vm673, 0.0
          %691 = vst.msk [vmem:[#allocation4 + $0x8] sm:$0xff] %vm673, 0.0
          %692 = vst.msk [vmem:[#allocation4 + $0x10] sm:$0xff] %vm673, 0.0
          %693 = vst.msk [vmem:[#allocation4 + $0x18] sm:$0xff] %vm673, 0.0
          %694 = vst.msk [vmem:[#allocation4 + $0x20] sm:$0xff] %vm673, 0.0
          %695 = vst.msk [vmem:[#allocation4 + $0x28] sm:$0xff] %vm673, 0.0
          %696 = vst.msk [vmem:[#allocation4 + $0x30] sm:$0xff] %vm673, 0.0
          %697 = vst.msk [vmem:[#allocation4 + $0x38] sm:$0xff] %vm673, 0.0
          %698 = vst.msk [vmem:[#allocation4 + $0x40] sm:$0xff] %vm673, 0.0
          %699 = vst.msk [vmem:[#allocation4 + $0x48] sm:$0xff] %vm673, 0.0
          %700 = vst.msk [vmem:[#allocation4 + $0x50] sm:$0xff] %vm673, 0.0
          %701 = vst.msk [vmem:[#allocation4 + $0x58] sm:$0xff] %vm673, 0.0
          %702 = vst.msk [vmem:[#allocation4 + $0x60] sm:$0xff] %vm673, 0.0
          %703 = vst.msk [vmem:[#allocation4 + $0x68] sm:$0xff] %vm673, 0.0
          %704 = vst.msk [vmem:[#allocation4 + $0x70] sm:$0xff] %vm673, 0.0
          %705 = vst.msk [vmem:[#allocation4 + $0x78] sm:$0xff] %vm673, 0.0
          %706 = vst.msk [vmem:[#allocation5] sm:$0xff] %vm656, 0.0
          %707 = vst.msk [vmem:[#allocation5 + $0x8] sm:$0xff] %vm656, 0.0
          %708 = vst.msk [vmem:[#allocation5 + $0x10] sm:$0xff] %vm656, 0.0
          %709 = vst.msk [vmem:[#allocation5 + $0x18] sm:$0xff] %vm656, 0.0
          %710 = vst.msk [vmem:[#allocation5 + $0x20] sm:$0xff] %vm656, 0.0
          %711 = vst.msk [vmem:[#allocation5 + $0x28] sm:$0xff] %vm656, 0.0
          %712 = vst.msk [vmem:[#allocation5 + $0x30] sm:$0xff] %vm656, 0.0
          %713 = vst.msk [vmem:[#allocation5 + $0x38] sm:$0xff] %vm656, 0.0
          %714 = vst.msk [vmem:[#allocation5 + $0x40] sm:$0xff] %vm656, 0.0
          %715 = vst.msk [vmem:[#allocation5 + $0x48] sm:$0xff] %vm656, 0.0
          %716 = vst.msk [vmem:[#allocation5 + $0x50] sm:$0xff] %vm656, 0.0
          %717 = vst.msk [vmem:[#allocation5 + $0x58] sm:$0xff] %vm656, 0.0
          %718 = vst.msk [vmem:[#allocation5 + $0x60] sm:$0xff] %vm656, 0.0
          %719 = vst.msk [vmem:[#allocation5 + $0x68] sm:$0xff] %vm656, 0.0
          %720 = vst.msk [vmem:[#allocation5 + $0x70] sm:$0xff] %vm656, 0.0
          %721 = vst.msk [vmem:[#allocation5 + $0x78] sm:$0xff] %vm656, 0.0
        $region101: #{tpu_custom_call.1} parent=88 // pred_fallthru
          _
        %v722 = vld [vmem:[%s475] sm:$0xff]
        %v723 = vld [vmem:[%s475 + $0x8] sm:$0xff]
        %v724 = vld [vmem:[%s475 + $0x10] sm:$0xff]
        %v725 = vld [vmem:[%s475 + $0x18] sm:$0xff]
        %v726 = vld [vmem:[%s475 + $0x20] sm:$0xff]
        %v727 = vld [vmem:[%s475 + $0x28] sm:$0xff]
        %v728 = vld [vmem:[%s475 + $0x30] sm:$0xff]
        %v729 = vld [vmem:[%s475 + $0x38] sm:$0xff]
        %v730 = vld [vmem:[%s475 + $0x40] sm:$0xff]
        %v731 = vld [vmem:[%s475 + $0x48] sm:$0xff]
        %v732 = vld [vmem:[%s475 + $0x50] sm:$0xff]
        %v733 = vld [vmem:[%s475 + $0x58] sm:$0xff]
        %v734 = vld [vmem:[%s475 + $0x60] sm:$0xff]
        %v735 = vld [vmem:[%s475 + $0x68] sm:$0xff]
        %v736 = vld [vmem:[%s475 + $0x70] sm:$0xff]
        %v737 = vld [vmem:[%s475 + $0x78] sm:$0xff]
        %v738 = vpack.c.bf16 %v723, %v722
        %v739 = vpack.c.bf16 %v725, %v724
        %v740 = vpack.c.bf16 %v727, %v726
        %v741 = vpack.c.bf16 %v729, %v728
        %v742 = vpack.c.bf16 %v731, %v730
        %v743 = vpack.c.bf16 %v733, %v732
        %v744 = vpack.c.bf16 %v735, %v734
        %v745 = vpack.c.bf16 %v737, %v736
        %v746 = vld [vmem:[%s4] sm:$0x1]
        %v748 = vlaneseq
        %v749 = vshrl.u32 %v748, 7
        %v750 = vsub.s32 0, %v749
        %v751 = vrot.slane %v746, %v750
        %vm753 = vcmask 523264
        %v755 = vsel %vm753, %v738, 0
        %v758 = vsel %vm753, %v739, 0
        %v761 = vsel %vm753, %v740, 0
        %v764 = vsel %vm753, %v741, 0
        %v767 = vsel %vm753, %v742, 0
        %v770 = vsel %vm753, %v743, 0
        %v773 = vsel %vm753, %v744, 0
        %v776 = vsel %vm753, %v745, 0
        %778 = vmatprep.subr.bf16.mxu0 0
        %779 = vmatpush1.bf16.msra.mxu0 %v495
        %780 = vmatprep.subr.bf16.mxu0 0
        %781 = vmatpush1.bf16.msra.mxu0 %v496
        %782 = vmatprep.subr.bf16.mxu0 0
        %783 = vmatpush1.bf16.msra.mxu0 %v497
        %784 = vmatprep.subr.bf16.mxu0 0
        %785 = vmatpush1.bf16.msra.mxu0 %v498
        %786 = vmatprep.subr.bf16.mxu0 0
        %787 = vmatpush1.bf16.msra.mxu0 0
        %788 = vmatprep.subr.bf16.mxu0 0
        %789 = vmatpush1.bf16.msra.mxu0 0
        %790 = vmatprep.subr.bf16.mxu0 0
        %791 = vmatpush1.bf16.msra.mxu0 0
        %792 = vmatprep.subr.bf16.mxu0 0
        %793 = vmatpush1.bf16.msra.mxu0 0
        %794 = vmatprep.subr.bf16.mxu0 0
        %795 = vmatpush1.bf16.msra.mxu0 0
        %796 = vmatprep.subr.bf16.mxu0 0
        %797 = vmatpush1.bf16.msra.mxu0 0
        %798 = vmatprep.subr.bf16.mxu0 0
        %799 = vmatpush1.bf16.msra.mxu0 0
        %800 = vmatprep.subr.bf16.mxu0 0
        %801 = vmatpush1.bf16.msra.mxu0 0
        %802 = vmatprep.subr.bf16.mxu0 0
        %803 = vmatpush1.bf16.msra.mxu0 0
        %804 = vmatprep.subr.bf16.mxu0 0
        %805 = vmatpush1.bf16.msra.mxu0 0
        %806 = vmatprep.subr.bf16.mxu0 0
        %807 = vmatpush1.bf16.msra.mxu0 0
        %808 = vmatprep.subr.bf16.mxu0 0
        %809 = vmatpush1.bf16.msra.mxu0 0
        %810 = vmatprep.mubr.bf16.mxu0 0
        %811 = vmatmul.mubr.bf16.gmra.mrb[0].mxu0 %v755
        %v812 = vpop.f32.mrb[0].mxu0
        %v813 = vadd.f32 %v751, %v812
        %v814 = vpop.f32.mrb[0].mxu0
        %v815 = vpop.f32.mrb[0].mxu0
        %v816 = vadd.f32 %v751, %v815
        %v817 = vpop.f32.mrb[0].mxu0
        %818 = vmatprep.mubr.bf16.mxu0 0
        %819 = vmatmul.mubr.bf16.gmra.mrb[0].mxu0 %v758
        %v820 = vpop.f32.mrb[0].mxu0
        %v821 = vadd.f32 %v751, %v820
        %v822 = vpop.f32.mrb[0].mxu0
        %v823 = vpop.f32.mrb[0].mxu0
        %v824 = vadd.f32 %v751, %v823
        %v825 = vpop.f32.mrb[0].mxu0
        %826 = vmatprep.mubr.bf16.mxu0 0
        %827 = vmatmul.mubr.bf16.gmra.mrb[0].mxu0 %v761
        %v828 = vpop.f32.mrb[0].mxu0
        %v829 = vadd.f32 %v751, %v828
        %v830 = vpop.f32.mrb[0].mxu0
        %v831 = vpop.f32.mrb[0].mxu0
        %v832 = vadd.f32 %v751, %v831
        %v833 = vpop.f32.mrb[0].mxu0
        %834 = vmatprep.mubr.bf16.mxu0 0
        %835 = vmatmul.mubr.bf16.gmra.mrb[0].mxu0 %v764
        %v836 = vpop.f32.mrb[0].mxu0
        %v837 = vadd.f32 %v751, %v836
        %v838 = vpop.f32.mrb[0].mxu0
        %v839 = vpop.f32.mrb[0].mxu0
        %v840 = vadd.f32 %v751, %v839
        %v841 = vpop.f32.mrb[0].mxu0
        %842 = vmatprep.mubr.bf16.mxu0 0
        %843 = vmatmul.mubr.bf16.gmra.mrb[0].mxu0 %v767
        %v844 = vpop.f32.mrb[0].mxu0
        %v845 = vadd.f32 %v751, %v844
        %v846 = vpop.f32.mrb[0].mxu0
        %v847 = vpop.f32.mrb[0].mxu0
        %v848 = vadd.f32 %v751, %v847
        %v849 = vpop.f32.mrb[0].mxu0
        %850 = vmatprep.mubr.bf16.mxu0 0
        %851 = vmatmul.mubr.bf16.gmra.mrb[0].mxu0 %v770
        %v852 = vpop.f32.mrb[0].mxu0
        %v853 = vadd.f32 %v751, %v852
        %v854 = vpop.f32.mrb[0].mxu0
        %v855 = vpop.f32.mrb[0].mxu0
        %v856 = vadd.f32 %v751, %v855
        %v857 = vpop.f32.mrb[0].mxu0
        %858 = vmatprep.mubr.bf16.mxu0 0
        %859 = vmatmul.mubr.bf16.gmra.mrb[0].mxu0 %v773
        %v860 = vpop.f32.mrb[0].mxu0
        %v861 = vadd.f32 %v751, %v860
        %v862 = vpop.f32.mrb[0].mxu0
        %v863 = vpop.f32.mrb[0].mxu0
        %v864 = vadd.f32 %v751, %v863
        %v865 = vpop.f32.mrb[0].mxu0
        %866 = vmatprep.mubr.bf16.mxu0 0
        %867 = vmatmul.mubr.bf16.gmra.mrb[0].mxu0 %v776
        %v868 = vpop.f32.mrb[0].mxu0
        %v869 = vadd.f32 %v751, %v868
        %v870 = vpop.f32.mrb[0].mxu0
        %v871 = vpop.f32.mrb[0].mxu0
        %v872 = vadd.f32 %v751, %v871
        %v873 = vpop.f32.mrb[0].mxu0
        %874 = vdwg.mxu0
        %v875 = vld [vmem:[%s3] sm:$0xff]
        %v876 = vld [vmem:[%s3 + $0x8] sm:$0xff]
        %v877 = vld [vmem:[%s3 + $0x10] sm:$0xff]
        %v878 = vld [vmem:[%s3 + $0x18] sm:$0xff]
        %v879 = vpack.c.bf16 %v876, %v875
        %v880 = vpack.c.bf16 %v878, %v877
        %v881 = vld [vmem:[%s5] sm:$0xff]
        %v882 = vld [vmem:[%s5 + $0x8] sm:$0xff]
        %v883 = vld [vmem:[%s5 + $0x10] sm:$0xff]
        %v884 = vld [vmem:[%s5 + $0x18] sm:$0xff]
        %886 = vset.pattern.permute.xlu0 0
        %887 = vperm.xlu0 %886, %v881
        %v888 = vpop.permute.xlu0 %887
        %891 = vset.pattern.permute.xlu0 0
        %892 = vperm.xlu0 %891, %v882
        %v893 = vpop.permute.xlu0 %892
        %896 = vset.pattern.permute.xlu0 0
        %897 = vperm.xlu0 %896, %v883
        %v898 = vpop.permute.xlu0 %897
        %901 = vset.pattern.permute.xlu0 0
        %902 = vperm.xlu0 %901, %v884
        %v903 = vpop.permute.xlu0 %902
        %v906 = vsel %vm753, %v879, 0
        %v909 = vsel %vm753, %v880, 0
        %911 = vmatprep.subr.bf16.mxu0 0
        %912 = vmatpush1.bf16.xpose.msra.mxu0 %v755
        %913 = vmatprep.subr.bf16.mxu0 0
        %914 = vmatpush1.bf16.xpose.msra.mxu0 %v758
        %915 = vmatprep.subr.bf16.mxu0 0
        %916 = vmatpush1.bf16.xpose.msra.mxu0 %v761
        %917 = vmatprep.subr.bf16.mxu0 0
        %918 = vmatpush1.bf16.xpose.msra.mxu0 %v764
        %919 = vmatprep.subr.bf16.mxu0 0
        %920 = vmatpush1.bf16.xpose.msra.mxu0 %v767
        %921 = vmatprep.subr.bf16.mxu0 0
        %922 = vmatpush1.bf16.xpose.msra.mxu0 %v770
        %923 = vmatprep.subr.bf16.mxu0 0
        %924 = vmatpush1.bf16.xpose.msra.mxu0 %v773
        %925 = vmatprep.subr.bf16.mxu0 0
        %926 = vmatpush1.bf16.xpose.msra.mxu0 %v776
        %927 = vmatprep.subr.bf16.mxu0 0
        %928 = vmatpush1.bf16.xpose.msra.mxu0 0
        %929 = vmatprep.subr.bf16.mxu0 0
        %930 = vmatpush1.bf16.xpose.msra.mxu0 0
        %931 = vmatprep.subr.bf16.mxu0 0
        %932 = vmatpush1.bf16.xpose.msra.mxu0 0
        %933 = vmatprep.subr.bf16.mxu0 0
        %934 = vmatpush1.bf16.xpose.msra.mxu0 0
        %935 = vmatprep.subr.bf16.mxu0 0
        %936 = vmatpush1.bf16.xpose.msra.mxu0 0
        %937 = vmatprep.subr.bf16.mxu0 0
        %938 = vmatpush1.bf16.xpose.msra.mxu0 0
        %939 = vmatprep.subr.bf16.mxu0 0
        %940 = vmatpush1.bf16.xpose.msra.mxu0 0
        %941 = vmatprep.subr.bf16.mxu0 0
        %942 = vmatpush1.bf16.xpose.msra.mxu0 0
        %943 = vmatprep.mubr.bf16.mxu0 0
        %944 = vmatmul.mubr.bf16.gmra.mrb[0].mxu0 %v906
        %v945 = vpop.f32.mrb[0].mxu0
        %v946 = vadd.f32 %v888, %v945
        %v947 = vpop.f32.mrb[0].mxu0
        %v948 = vpop.f32.mrb[0].mxu0
        %v949 = vadd.f32 %v893, %v948
        %v950 = vpop.f32.mrb[0].mxu0
        %951 = vmatprep.mubr.bf16.mxu0 0
        %952 = vmatmul.mubr.bf16.gmra.mrb[0].mxu0 %v909
        %v953 = vpop.f32.mrb[0].mxu0
        %v954 = vadd.f32 %v898, %v953
        %v955 = vpop.f32.mrb[0].mxu0
        %v956 = vpop.f32.mrb[0].mxu0
        %v957 = vadd.f32 %v903, %v956
        %v958 = vpop.f32.mrb[0].mxu0
        %959 = vdwg.mxu0
        %v960 = vld [vmem:[%s423] sm:$0xf]
        %v961 = vld [vmem:[%s423 + $0x4] sm:$0xf]
        %v962 = vld [vmem:[%s423 + $0x8] sm:$0xf]
        %v963 = vld [vmem:[%s423 + $0xc] sm:$0xf]
        %v964 = vld [vmem:[%s423 + $0x10] sm:$0xf]
        %v965 = vld [vmem:[%s423 + $0x14] sm:$0xf]
        %v966 = vld [vmem:[%s423 + $0x18] sm:$0xf]
        %v967 = vld [vmem:[%s423 + $0x1c] sm:$0xf]
        %v968 = vld [vmem:[%s423 + $0x20] sm:$0xf]
        %v969 = vld [vmem:[%s423 + $0x24] sm:$0xf]
        %v970 = vld [vmem:[%s423 + $0x28] sm:$0xf]
        %v971 = vld [vmem:[%s423 + $0x2c] sm:$0xf]
        %v972 = vld [vmem:[%s423 + $0x30] sm:$0xf]
        %v973 = vld [vmem:[%s423 + $0x34] sm:$0xf]
        %v974 = vld [vmem:[%s423 + $0x38] sm:$0xf]
        %v975 = vld [vmem:[%s423 + $0x3c] sm:$0xf]
        %vm976 = vcmp.gt.bf16.partialorder %v960, 0
        %vm977 = vcmp.gt.bf16.partialorder %v961, 0
        %vm978 = vcmp.gt.bf16.partialorder %v962, 0
        %vm979 = vcmp.gt.bf16.partialorder %v963, 0
        %vm980 = vcmp.gt.bf16.partialorder %v964, 0
        %vm981 = vcmp.gt.bf16.partialorder %v965, 0
        %vm982 = vcmp.gt.bf16.partialorder %v966, 0
        %vm983 = vcmp.gt.bf16.partialorder %v967, 0
        %vm984 = vcmp.gt.bf16.partialorder %v968, 0
        %vm985 = vcmp.gt.bf16.partialorder %v969, 0
        %vm986 = vcmp.gt.bf16.partialorder %v970, 0
        %vm987 = vcmp.gt.bf16.partialorder %v971, 0
        %vm988 = vcmp.gt.bf16.partialorder %v972, 0
        %vm989 = vcmp.gt.bf16.partialorder %v973, 0
        %vm990 = vcmp.gt.bf16.partialorder %v974, 0
        %vm991 = vcmp.gt.bf16.partialorder %v975, 0
        %v992 = vld [vmem:[#allocation2] sm:$0xff]
        %v993 = vld [vmem:[#allocation2 + $0x8] sm:$0xff]
        %v994 = vld [vmem:[#allocation2 + $0x10] sm:$0xff]
        %v995 = vld [vmem:[#allocation2 + $0x18] sm:$0xff]
        %v996 = vld [vmem:[#allocation2 + $0x20] sm:$0xff]
        %v997 = vld [vmem:[#allocation2 + $0x28] sm:$0xff]
        %v998 = vld [vmem:[#allocation2 + $0x30] sm:$0xff]
        %v999 = vld [vmem:[#allocation2 + $0x38] sm:$0xff]
        %v1000 = vld [vmem:[#allocation2 + $0x40] sm:$0xff]
        %v1001 = vld [vmem:[#allocation2 + $0x48] sm:$0xff]
        %v1002 = vld [vmem:[#allocation2 + $0x50] sm:$0xff]
        %v1003 = vld [vmem:[#allocation2 + $0x58] sm:$0xff]
        %v1004 = vld [vmem:[#allocation2 + $0x60] sm:$0xff]
        %v1005 = vld [vmem:[#allocation2 + $0x68] sm:$0xff]
        %v1006 = vld [vmem:[#allocation2 + $0x70] sm:$0xff]
        %v1007 = vld [vmem:[#allocation2 + $0x78] sm:$0xff]
        %v1008 = vmul.f32 %v992, 1.01
        %v1009 = vmul.f32 %v993, 1.01
        %v1010 = vmul.f32 %v994, 1.01
        %v1011 = vmul.f32 %v995, 1.01
        %v1012 = vmul.f32 %v996, 1.01
        %v1013 = vmul.f32 %v997, 1.01
        %v1014 = vmul.f32 %v998, 1.01
        %v1015 = vmul.f32 %v999, 1.01
        %v1016 = vmul.f32 %v1000, 1.01
        %v1017 = vmul.f32 %v1001, 1.01
        %v1018 = vmul.f32 %v1002, 1.01
        %v1019 = vmul.f32 %v1003, 1.01
        %v1020 = vmul.f32 %v1004, 1.01
        %v1021 = vmul.f32 %v1005, 1.01
        %v1022 = vmul.f32 %v1006, 1.01
        %v1023 = vmul.f32 %v1007, 1.01
        %1025 = vset.pattern.permute.xlu0 0
        %1026 = vperm.xlu0 %1025, %v1008
        %v1027 = vpop.permute.xlu0 %1026
        %1030 = vset.pattern.permute.xlu0 0
        %1031 = vperm.xlu0 %1030, %v1009
        %v1032 = vpop.permute.xlu0 %1031
        %1035 = vset.pattern.permute.xlu0 0
        %1036 = vperm.xlu0 %1035, %v1010
        %v1037 = vpop.permute.xlu0 %1036
        %1040 = vset.pattern.permute.xlu0 0
        %1041 = vperm.xlu0 %1040, %v1011
        %v1042 = vpop.permute.xlu0 %1041
        %1045 = vset.pattern.permute.xlu0 0
        %1046 = vperm.xlu0 %1045, %v1012
        %v1047 = vpop.permute.xlu0 %1046
        %1050 = vset.pattern.permute.xlu0 0
        %1051 = vperm.xlu0 %1050, %v1013
        %v1052 = vpop.permute.xlu0 %1051
        %1055 = vset.pattern.permute.xlu0 0
        %1056 = vperm.xlu0 %1055, %v1014
        %v1057 = vpop.permute.xlu0 %1056
        %1060 = vset.pattern.permute.xlu0 0
        %1061 = vperm.xlu0 %1060, %v1015
        %v1062 = vpop.permute.xlu0 %1061
        %1065 = vset.pattern.permute.xlu0 0
        %1066 = vperm.xlu0 %1065, %v1016
        %v1067 = vpop.permute.xlu0 %1066
        %1070 = vset.pattern.permute.xlu0 0
        %1071 = vperm.xlu0 %1070, %v1017
        %v1072 = vpop.permute.xlu0 %1071
        %1075 = vset.pattern.permute.xlu0 0
        %1076 = vperm.xlu0 %1075, %v1018
        %v1077 = vpop.permute.xlu0 %1076
        %1080 = vset.pattern.permute.xlu0 0
        %1081 = vperm.xlu0 %1080, %v1019
        %v1082 = vpop.permute.xlu0 %1081
        %1085 = vset.pattern.permute.xlu0 0
        %1086 = vperm.xlu0 %1085, %v1020
        %v1087 = vpop.permute.xlu0 %1086
        %1090 = vset.pattern.permute.xlu0 0
        %1091 = vperm.xlu0 %1090, %v1021
        %v1092 = vpop.permute.xlu0 %1091
        %1095 = vset.pattern.permute.xlu0 0
        %1096 = vperm.xlu0 %1095, %v1022
        %v1097 = vpop.permute.xlu0 %1096
        %1100 = vset.pattern.permute.xlu0 0
        %1101 = vperm.xlu0 %1100, %v1023
        %v1102 = vpop.permute.xlu0 %1101
        %v1104 = vlaneseq
        %v1105 = vshrl.u32 %v1104, 7
        %v1106 = vsub.s32 0, %v1105
        %v1107 = vrot.slane %v946, %v1106
        %v1108 = vadd.f32 %v1027, %v1107
        %v1109 = vadd.f32 %v1032, %v1107
        %v1110 = vadd.f32 %v1037, %v1107
        %v1111 = vadd.f32 %v1042, %v1107
        %v1112 = vadd.f32 %v1047, %v1107
        %v1113 = vadd.f32 %v1052, %v1107
        %v1114 = vadd.f32 %v1057, %v1107
        %v1115 = vadd.f32 %v1062, %v1107
        %v1116 = vadd.f32 %v1067, %v1107
        %v1117 = vadd.f32 %v1072, %v1107
        %v1118 = vadd.f32 %v1077, %v1107
        %v1119 = vadd.f32 %v1082, %v1107
        %v1120 = vadd.f32 %v1087, %v1107
        %v1121 = vadd.f32 %v1092, %v1107
        %v1122 = vadd.f32 %v1097, %v1107
        %v1123 = vadd.f32 %v1102, %v1107
        %vm1124 = vcmp.ge.f32.partialorder %v1108, 0.0
        %vm1125 = vcmp.ge.f32.partialorder %v1109, 0.0
        %vm1126 = vcmp.ge.f32.partialorder %v1110, 0.0
        %vm1127 = vcmp.ge.f32.partialorder %v1111, 0.0
        %vm1128 = vcmp.ge.f32.partialorder %v1112, 0.0
        %vm1129 = vcmp.ge.f32.partialorder %v1113, 0.0
        %vm1130 = vcmp.ge.f32.partialorder %v1114, 0.0
        %vm1131 = vcmp.ge.f32.partialorder %v1115, 0.0
        %vm1132 = vcmp.ge.f32.partialorder %v1116, 0.0
        %vm1133 = vcmp.ge.f32.partialorder %v1117, 0.0
        %vm1134 = vcmp.ge.f32.partialorder %v1118, 0.0
        %vm1135 = vcmp.ge.f32.partialorder %v1119, 0.0
        %vm1136 = vcmp.ge.f32.partialorder %v1120, 0.0
        %vm1137 = vcmp.ge.f32.partialorder %v1121, 0.0
        %vm1138 = vcmp.ge.f32.partialorder %v1122, 0.0
        %vm1139 = vcmp.ge.f32.partialorder %v1123, 0.0
        %v1140 = vmul.f32 %v1108, 0.2
        %v1141 = vmul.f32 %v1109, 0.2
        %v1142 = vmul.f32 %v1110, 0.2
        %v1143 = vmul.f32 %v1111, 0.2
        %v1144 = vmul.f32 %v1112, 0.2
        %v1145 = vmul.f32 %v1113, 0.2
        %v1146 = vmul.f32 %v1114, 0.2
        %v1147 = vmul.f32 %v1115, 0.2
        %v1148 = vmul.f32 %v1116, 0.2
        %v1149 = vmul.f32 %v1117, 0.2
        %v1150 = vmul.f32 %v1118, 0.2
        %v1151 = vmul.f32 %v1119, 0.2
        %v1152 = vmul.f32 %v1120, 0.2
        %v1153 = vmul.f32 %v1121, 0.2
        %v1154 = vmul.f32 %v1122, 0.2
        %v1155 = vmul.f32 %v1123, 0.2
        %v1156 = vsel %vm1124, %v1108, %v1140
        %v1157 = vsel %vm1125, %v1109, %v1141
        %v1158 = vsel %vm1126, %v1110, %v1142
        %v1159 = vsel %vm1127, %v1111, %v1143
        %v1160 = vsel %vm1128, %v1112, %v1144
        %v1161 = vsel %vm1129, %v1113, %v1145
        %v1162 = vsel %vm1130, %v1114, %v1146
        %v1163 = vsel %vm1131, %v1115, %v1147
        %v1164 = vsel %vm1132, %v1116, %v1148
        %v1165 = vsel %vm1133, %v1117, %v1149
        %v1166 = vsel %vm1134, %v1118, %v1150
        %v1167 = vsel %vm1135, %v1119, %v1151
        %v1168 = vsel %vm1136, %v1120, %v1152
        %v1169 = vsel %vm1137, %v1121, %v1153
        %v1170 = vsel %vm1138, %v1122, %v1154
        %v1171 = vsel %vm1139, %v1123, %v1155
        %s1172 = sld [smem:[#allocation6]]
        %v1173 = vstv %s1172
        %v1174 = vmul.f32 %v1173, %v1156
        %v1175 = vmul.f32 %v1173, %v1157
        %v1176 = vmul.f32 %v1173, %v1158
        %v1177 = vmul.f32 %v1173, %v1159
        %v1178 = vmul.f32 %v1173, %v1160
        %v1179 = vmul.f32 %v1173, %v1161
        %v1180 = vmul.f32 %v1173, %v1162
        %v1181 = vmul.f32 %v1173, %v1163
        %v1182 = vmul.f32 %v1173, %v1164
        %v1183 = vmul.f32 %v1173, %v1165
        %v1184 = vmul.f32 %v1173, %v1166
        %v1185 = vmul.f32 %v1173, %v1167
        %v1186 = vmul.f32 %v1173, %v1168
        %v1187 = vmul.f32 %v1173, %v1169
        %v1188 = vmul.f32 %v1173, %v1170
        %v1189 = vmul.f32 %v1173, %v1171
        %v1190 = vadd.f32 %v1174, 0.0
        %v1191 = vadd.f32 %v1175, 0.0
        %v1192 = vadd.f32 %v1176, 0.0
        %v1193 = vadd.f32 %v1177, 0.0
        %v1194 = vadd.f32 %v1178, 0.0
        %v1195 = vadd.f32 %v1179, 0.0
        %v1196 = vadd.f32 %v1180, 0.0
        %v1197 = vadd.f32 %v1181, 0.0
        %v1198 = vadd.f32 %v1182, 0.0
        %v1199 = vadd.f32 %v1183, 0.0
        %v1200 = vadd.f32 %v1184, 0.0
        %v1201 = vadd.f32 %v1185, 0.0
        %v1202 = vadd.f32 %v1186, 0.0
        %v1203 = vadd.f32 %v1187, 0.0
        %v1204 = vadd.f32 %v1188, 0.0
        %v1205 = vadd.f32 %v1189, 0.0
        %1206 = vset.pattern.permute.xlu0 1
        %1207 = vperm.xlu0 %1206, %v1008
        %v1208 = vpop.permute.xlu0 %1207
        %1210 = vset.pattern.permute.xlu0 1
        %1211 = vperm.xlu0 %1210, %v1009
        %v1212 = vpop.permute.xlu0 %1211
        %1214 = vset.pattern.permute.xlu0 1
        %1215 = vperm.xlu0 %1214, %v1010
        %v1216 = vpop.permute.xlu0 %1215
        %1218 = vset.pattern.permute.xlu0 1
        %1219 = vperm.xlu0 %1218, %v1011
        %v1220 = vpop.permute.xlu0 %1219
        %1222 = vset.pattern.permute.xlu0 1
        %1223 = vperm.xlu0 %1222, %v1012
        %v1224 = vpop.permute.xlu0 %1223
        %1226 = vset.pattern.permute.xlu0 1
        %1227 = vperm.xlu0 %1226, %v1013
        %v1228 = vpop.permute.xlu0 %1227
        %1230 = vset.pattern.permute.xlu0 1
        %1231 = vperm.xlu0 %1230, %v1014
        %v1232 = vpop.permute.xlu0 %1231
        %1234 = vset.pattern.permute.xlu0 1
        %1235 = vperm.xlu0 %1234, %v1015
        %v1236 = vpop.permute.xlu0 %1235
        %1238 = vset.pattern.permute.xlu0 1
        %1239 = vperm.xlu0 %1238, %v1016
        %v1240 = vpop.permute.xlu0 %1239
        %1242 = vset.pattern.permute.xlu0 1
        %1243 = vperm.xlu0 %1242, %v1017
        %v1244 = vpop.permute.xlu0 %1243
        %1246 = vset.pattern.permute.xlu0 1
        %1247 = vperm.xlu0 %1246, %v1018
        %v1248 = vpop.permute.xlu0 %1247
        %1250 = vset.pattern.permute.xlu0 1
        %1251 = vperm.xlu0 %1250, %v1019
        %v1252 = vpop.permute.xlu0 %1251
        %1254 = vset.pattern.permute.xlu0 1
        %1255 = vperm.xlu0 %1254, %v1020
        %v1256 = vpop.permute.xlu0 %1255
        %1258 = vset.pattern.permute.xlu0 1
        %1259 = vperm.xlu0 %1258, %v1021
        %v1260 = vpop.permute.xlu0 %1259
        %1262 = vset.pattern.permute.xlu0 1
        %1263 = vperm.xlu0 %1262, %v1022
        %v1264 = vpop.permute.xlu0 %1263
        %1266 = vset.pattern.permute.xlu0 1
        %1267 = vperm.xlu0 %1266, %v1023
        %v1268 = vpop.permute.xlu0 %1267
        %v1270 = vlaneseq
        %v1271 = vshrl.u32 %v1270, 7
        %v1272 = vsub.s32 1, %v1271
        %v1273 = vrot.slane %v946, %v1272
        %v1274 = vadd.f32 %v1208, %v1273
        %v1275 = vadd.f32 %v1212, %v1273
        %v1276 = vadd.f32 %v1216, %v1273
        %v1277 = vadd.f32 %v1220, %v1273
        %v1278 = vadd.f32 %v1224, %v1273
        %v1279 = vadd.f32 %v1228, %v1273
        %v1280 = vadd.f32 %v1232, %v1273
        %v1281 = vadd.f32 %v1236, %v1273
        %v1282 = vadd.f32 %v1240, %v1273
        %v1283 = vadd.f32 %v1244, %v1273
        %v1284 = vadd.f32 %v1248, %v1273
        %v1285 = vadd.f32 %v1252, %v1273
        %v1286 = vadd.f32 %v1256, %v1273
        %v1287 = vadd.f32 %v1260, %v1273
        %v1288 = vadd.f32 %v1264, %v1273
        %v1289 = vadd.f32 %v1268, %v1273
        %vm1290 = vcmp.ge.f32.partialorder %v1274, 0.0
        %vm1291 = vcmp.ge.f32.partialorder %v1275, 0.0
        %vm1292 = vcmp.ge.f32.partialorder %v1276, 0.0
        %vm1293 = vcmp.ge.f32.partialorder %v1277, 0.0
        %vm1294 = vcmp.ge.f32.partialorder %v1278, 0.0
        %vm1295 = vcmp.ge.f32.partialorder %v1279, 0.0
        %vm1296 = vcmp.ge.f32.partialorder %v1280, 0.0
        %vm1297 = vcmp.ge.f32.partialorder %v1281, 0.0
        %vm1298 = vcmp.ge.f32.partialorder %v1282, 0.0
        %vm1299 = vcmp.ge.f32.partialorder %v1283, 0.0
        %vm1300 = vcmp.ge.f32.partialorder %v1284, 0.0
        %vm1301 = vcmp.ge.f32.partialorder %v1285, 0.0
        %vm1302 = vcmp.ge.f32.partialorder %v1286, 0.0
        %vm1303 = vcmp.ge.f32.partialorder %v1287, 0.0
        %vm1304 = vcmp.ge.f32.partialorder %v1288, 0.0
        %vm1305 = vcmp.ge.f32.partialorder %v1289, 0.0
        %v1306 = vmul.f32 %v1274, 0.2
        %v1307 = vmul.f32 %v1275, 0.2
        %v1308 = vmul.f32 %v1276, 0.2
        %v1309 = vmul.f32 %v1277, 0.2
        %v1310 = vmul.f32 %v1278, 0.2
        %v1311 = vmul.f32 %v1279, 0.2
        %v1312 = vmul.f32 %v1280, 0.2
        %v1313 = vmul.f32 %v1281, 0.2
        %v1314 = vmul.f32 %v1282, 0.2
        %v1315 = vmul.f32 %v1283, 0.2
        %v1316 = vmul.f32 %v1284, 0.2
        %v1317 = vmul.f32 %v1285, 0.2
        %v1318 = vmul.f32 %v1286, 0.2
        %v1319 = vmul.f32 %v1287, 0.2
        %v1320 = vmul.f32 %v1288, 0.2
        %v1321 = vmul.f32 %v1289, 0.2
        %v1322 = vsel %vm1290, %v1274, %v1306
        %v1323 = vsel %vm1291, %v1275, %v1307
        %v1324 = vsel %vm1292, %v1276, %v1308
        %v1325 = vsel %vm1293, %v1277, %v1309
        %v1326 = vsel %vm1294, %v1278, %v1310
        %v1327 = vsel %vm1295, %v1279, %v1311
        %v1328 = vsel %vm1296, %v1280, %v1312
        %v1329 = vsel %vm1297, %v1281, %v1313
        %v1330 = vsel %vm1298, %v1282, %v1314
        %v1331 = vsel %vm1299, %v1283, %v1315
        %v1332 = vsel %vm1300, %v1284, %v1316
        %v1333 = vsel %vm1301, %v1285, %v1317
        %v1334 = vsel %vm1302, %v1286, %v1318
        %v1335 = vsel %vm1303, %v1287, %v1319
        %v1336 = vsel %vm1304, %v1288, %v1320
        %v1337 = vsel %vm1305, %v1289, %v1321
        %s1338 = sld [smem:[#allocation6 + $0x1]]
        %v1339 = vstv %s1338
        %v1340 = vmul.f32 %v1339, %v1322
        %v1341 = vmul.f32 %v1339, %v1323
        %v1342 = vmul.f32 %v1339, %v1324
        %v1343 = vmul.f32 %v1339, %v1325
        %v1344 = vmul.f32 %v1339, %v1326
        %v1345 = vmul.f32 %v1339, %v1327
        %v1346 = vmul.f32 %v1339, %v1328
        %v1347 = vmul.f32 %v1339, %v1329
        %v1348 = vmul.f32 %v1339, %v1330
        %v1349 = vmul.f32 %v1339, %v1331
        %v1350 = vmul.f32 %v1339, %v1332
        %v1351 = vmul.f32 %v1339, %v1333
        %v1352 = vmul.f32 %v1339, %v1334
        %v1353 = vmul.f32 %v1339, %v1335
        %v1354 = vmul.f32 %v1339, %v1336
        %v1355 = vmul.f32 %v1339, %v1337
        %v1356 = vadd.f32 %v1190, %v1340
        %v1357 = vadd.f32 %v1191, %v1341
        %v1358 = vadd.f32 %v1192, %v1342
        %v1359 = vadd.f32 %v1193, %v1343
        %v1360 = vadd.f32 %v1194, %v1344
        %v1361 = vadd.f32 %v1195, %v1345
        %v1362 = vadd.f32 %v1196, %v1346
        %v1363 = vadd.f32 %v1197, %v1347
        %v1364 = vadd.f32 %v1198, %v1348
        %v1365 = vadd.f32 %v1199, %v1349
        %v1366 = vadd.f32 %v1200, %v1350
        %v1367 = vadd.f32 %v1201, %v1351
        %v1368 = vadd.f32 %v1202, %v1352
        %v1369 = vadd.f32 %v1203, %v1353
        %v1370 = vadd.f32 %v1204, %v1354
        %v1371 = vadd.f32 %v1205, %v1355
        %1372 = vset.pattern.permute.xlu0 2
        %1373 = vperm.xlu0 %1372, %v1008
        %v1374 = vpop.permute.xlu0 %1373
        %1376 = vset.pattern.permute.xlu0 2
        %1377 = vperm.xlu0 %1376, %v1009
        %v1378 = vpop.permute.xlu0 %1377
        %1380 = vset.pattern.permute.xlu0 2
        %1381 = vperm.xlu0 %1380, %v1010
        %v1382 = vpop.permute.xlu0 %1381
        %1384 = vset.pattern.permute.xlu0 2
        %1385 = vperm.xlu0 %1384, %v1011
        %v1386 = vpop.permute.xlu0 %1385
        %1388 = vset.pattern.permute.xlu0 2
        %1389 = vperm.xlu0 %1388, %v1012
        %v1390 = vpop.permute.xlu0 %1389
        %1392 = vset.pattern.permute.xlu0 2
        %1393 = vperm.xlu0 %1392, %v1013
        %v1394 = vpop.permute.xlu0 %1393
        %1396 = vset.pattern.permute.xlu0 2
        %1397 = vperm.xlu0 %1396, %v1014
        %v1398 = vpop.permute.xlu0 %1397
        %1400 = vset.pattern.permute.xlu0 2
        %1401 = vperm.xlu0 %1400, %v1015
        %v1402 = vpop.permute.xlu0 %1401
        %1404 = vset.pattern.permute.xlu0 2
        %1405 = vperm.xlu0 %1404, %v1016
        %v1406 = vpop.permute.xlu0 %1405
        %1408 = vset.pattern.permute.xlu0 2
        %1409 = vperm.xlu0 %1408, %v1017
        %v1410 = vpop.permute.xlu0 %1409
        %1412 = vset.pattern.permute.xlu0 2
        %1413 = vperm.xlu0 %1412, %v1018
        %v1414 = vpop.permute.xlu0 %1413
        %1416 = vset.pattern.permute.xlu0 2
        %1417 = vperm.xlu0 %1416, %v1019
        %v1418 = vpop.permute.xlu0 %1417
        %1420 = vset.pattern.permute.xlu0 2
        %1421 = vperm.xlu0 %1420, %v1020
        %v1422 = vpop.permute.xlu0 %1421
        %1424 = vset.pattern.permute.xlu0 2
        %1425 = vperm.xlu0 %1424, %v1021
        %v1426 = vpop.permute.xlu0 %1425
        %1428 = vset.pattern.permute.xlu0 2
        %1429 = vperm.xlu0 %1428, %v1022
        %v1430 = vpop.permute.xlu0 %1429
        %1432 = vset.pattern.permute.xlu0 2
        %1433 = vperm.xlu0 %1432, %v1023
        %v1434 = vpop.permute.xlu0 %1433
        %v1436 = vlaneseq
        %v1437 = vshrl.u32 %v1436, 7
        %v1438 = vsub.s32 2, %v1437
        %v1439 = vrot.slane %v946, %v1438
        %v1440 = vadd.f32 %v1374, %v1439
        %v1441 = vadd.f32 %v1378, %v1439
        %v1442 = vadd.f32 %v1382, %v1439
        %v1443 = vadd.f32 %v1386, %v1439
        %v1444 = vadd.f32 %v1390, %v1439
        %v1445 = vadd.f32 %v1394, %v1439
        %v1446 = vadd.f32 %v1398, %v1439
        %v1447 = vadd.f32 %v1402, %v1439
        %v1448 = vadd.f32 %v1406, %v1439
        %v1449 = vadd.f32 %v1410, %v1439
        %v1450 = vadd.f32 %v1414, %v1439
        %v1451 = vadd.f32 %v1418, %v1439
        %v1452 = vadd.f32 %v1422, %v1439
        %v1453 = vadd.f32 %v1426, %v1439
        %v1454 = vadd.f32 %v1430, %v1439
        %v1455 = vadd.f32 %v1434, %v1439
        %vm1456 = vcmp.ge.f32.partialorder %v1440, 0.0
        %vm1457 = vcmp.ge.f32.partialorder %v1441, 0.0
        %vm1458 = vcmp.ge.f32.partialorder %v1442, 0.0
        %vm1459 = vcmp.ge.f32.partialorder %v1443, 0.0
        %vm1460 = vcmp.ge.f32.partialorder %v1444, 0.0
        %vm1461 = vcmp.ge.f32.partialorder %v1445, 0.0
        %vm1462 = vcmp.ge.f32.partialorder %v1446, 0.0
        %vm1463 = vcmp.ge.f32.partialorder %v1447, 0.0
        %vm1464 = vcmp.ge.f32.partialorder %v1448, 0.0
        %vm1465 = vcmp.ge.f32.partialorder %v1449, 0.0
        %vm1466 = vcmp.ge.f32.partialorder %v1450, 0.0
        %vm1467 = vcmp.ge.f32.partialorder %v1451, 0.0
        %vm1468 = vcmp.ge.f32.partialorder %v1452, 0.0
        %vm1469 = vcmp.ge.f32.partialorder %v1453, 0.0
        %vm1470 = vcmp.ge.f32.partialorder %v1454, 0.0
        %vm1471 = vcmp.ge.f32.partialorder %v1455, 0.0
        %v1472 = vmul.f32 %v1440, 0.2
        %v1473 = vmul.f32 %v1441, 0.2
        %v1474 = vmul.f32 %v1442, 0.2
        %v1475 = vmul.f32 %v1443, 0.2
        %v1476 = vmul.f32 %v1444, 0.2
        %v1477 = vmul.f32 %v1445, 0.2
        %v1478 = vmul.f32 %v1446, 0.2
        %v1479 = vmul.f32 %v1447, 0.2
        %v1480 = vmul.f32 %v1448, 0.2
        %v1481 = vmul.f32 %v1449, 0.2
        %v1482 = vmul.f32 %v1450, 0.2
        %v1483 = vmul.f32 %v1451, 0.2
        %v1484 = vmul.f32 %v1452, 0.2
        %v1485 = vmul.f32 %v1453, 0.2
        %v1486 = vmul.f32 %v1454, 0.2
        %v1487 = vmul.f32 %v1455, 0.2
        %v1488 = vsel %vm1456, %v1440, %v1472
        %v1489 = vsel %vm1457, %v1441, %v1473
        %v1490 = vsel %vm1458, %v1442, %v1474
        %v1491 = vsel %vm1459, %v1443, %v1475
        %v1492 = vsel %vm1460, %v1444, %v1476
        %v1493 = vsel %vm1461, %v1445, %v1477
        %v1494 = vsel %vm1462, %v1446, %v1478
        %v1495 = vsel %vm1463, %v1447, %v1479
        %v1496 = vsel %vm1464, %v1448, %v1480
        %v1497 = vsel %vm1465, %v1449, %v1481
        %v1498 = vsel %vm1466, %v1450, %v1482
        %v1499 = vsel %vm1467, %v1451, %v1483
        %v1500 = vsel %vm1468, %v1452, %v1484
        %v1501 = vsel %vm1469, %v1453, %v1485
        %v1502 = vsel %vm1470, %v1454, %v1486
        %v1503 = vsel %vm1471, %v1455, %v1487
        %s1504 = sld [smem:[#allocation6 + $0x2]]
        %v1505 = vstv %s1504
        %v1506 = vmul.f32 %v1505, %v1488
        %v1507 = vmul.f32 %v1505, %v1489
        %v1508 = vmul.f32 %v1505, %v1490
        %v1509 = vmul.f32 %v1505, %v1491
        %v1510 = vmul.f32 %v1505, %v1492
        %v1511 = vmul.f32 %v1505, %v1493
        %v1512 = vmul.f32 %v1505, %v1494
        %v1513 = vmul.f32 %v1505, %v1495
        %v1514 = vmul.f32 %v1505, %v1496
        %v1515 = vmul.f32 %v1505, %v1497
        %v1516 = vmul.f32 %v1505, %v1498
        %v1517 = vmul.f32 %v1505, %v1499
        %v1518 = vmul.f32 %v1505, %v1500
        %v1519 = vmul.f32 %v1505, %v1501
        %v1520 = vmul.f32 %v1505, %v1502
        %v1521 = vmul.f32 %v1505, %v1503
        %v1522 = vadd.f32 %v1356, %v1506
        %v1523 = vadd.f32 %v1357, %v1507
        %v1524 = vadd.f32 %v1358, %v1508
        %v1525 = vadd.f32 %v1359, %v1509
        %v1526 = vadd.f32 %v1360, %v1510
        %v1527 = vadd.f32 %v1361, %v1511
        %v1528 = vadd.f32 %v1362, %v1512
        %v1529 = vadd.f32 %v1363, %v1513
        %v1530 = vadd.f32 %v1364, %v1514
        %v1531 = vadd.f32 %v1365, %v1515
        %v1532 = vadd.f32 %v1366, %v1516
        %v1533 = vadd.f32 %v1367, %v1517
        %v1534 = vadd.f32 %v1368, %v1518
        %v1535 = vadd.f32 %v1369, %v1519
        %v1536 = vadd.f32 %v1370, %v1520
        %v1537 = vadd.f32 %v1371, %v1521
        %1538 = vset.pattern.permute.xlu0 3
        %1539 = vperm.xlu0 %1538, %v1008
        %v1540 = vpop.permute.xlu0 %1539
        %1542 = vset.pattern.permute.xlu0 3
        %1543 = vperm.xlu0 %1542, %v1009
        %v1544 = vpop.permute.xlu0 %1543
        %1546 = vset.pattern.permute.xlu0 3
        %1547 = vperm.xlu0 %1546, %v1010
        %v1548 = vpop.permute.xlu0 %1547
        %1550 = vset.pattern.permute.xlu0 3
        %1551 = vperm.xlu0 %1550, %v1011
        %v1552 = vpop.permute.xlu0 %1551
        %1554 = vset.pattern.permute.xlu0 3
        %1555 = vperm.xlu0 %1554, %v1012
        %v1556 = vpop.permute.xlu0 %1555
        %1558 = vset.pattern.permute.xlu0 3
        %1559 = vperm.xlu0 %1558, %v1013
        %v1560 = vpop.permute.xlu0 %1559
        %1562 = vset.pattern.permute.xlu0 3
        %1563 = vperm.xlu0 %1562, %v1014
        %v1564 = vpop.permute.xlu0 %1563
        %1566 = vset.pattern.permute.xlu0 3
        %1567 = vperm.xlu0 %1566, %v1015
        %v1568 = vpop.permute.xlu0 %1567
        %1570 = vset.pattern.permute.xlu0 3
        %1571 = vperm.xlu0 %1570, %v1016
        %v1572 = vpop.permute.xlu0 %1571
        %1574 = vset.pattern.permute.xlu0 3
        %1575 = vperm.xlu0 %1574, %v1017
        %v1576 = vpop.permute.xlu0 %1575
        %1578 = vset.pattern.permute.xlu0 3
        %1579 = vperm.xlu0 %1578, %v1018
        %v1580 = vpop.permute.xlu0 %1579
        %1582 = vset.pattern.permute.xlu0 3
        %1583 = vperm.xlu0 %1582, %v1019
        %v1584 = vpop.permute.xlu0 %1583
        %1586 = vset.pattern.permute.xlu0 3
        %1587 = vperm.xlu0 %1586, %v1020
        %v1588 = vpop.permute.xlu0 %1587
        %1590 = vset.pattern.permute.xlu0 3
        %1591 = vperm.xlu0 %1590, %v1021
        %v1592 = vpop.permute.xlu0 %1591
        %1594 = vset.pattern.permute.xlu0 3
        %1595 = vperm.xlu0 %1594, %v1022
        %v1596 = vpop.permute.xlu0 %1595
        %1598 = vset.pattern.permute.xlu0 3
        %1599 = vperm.xlu0 %1598, %v1023
        %v1600 = vpop.permute.xlu0 %1599
        %v1602 = vlaneseq
        %v1603 = vshrl.u32 %v1602, 7
        %v1604 = vsub.s32 3, %v1603
        %v1605 = vrot.slane %v946, %v1604
        %v1606 = vadd.f32 %v1540, %v1605
        %v1607 = vadd.f32 %v1544, %v1605
        %v1608 = vadd.f32 %v1548, %v1605
        %v1609 = vadd.f32 %v1552, %v1605
        %v1610 = vadd.f32 %v1556, %v1605
        %v1611 = vadd.f32 %v1560, %v1605
        %v1612 = vadd.f32 %v1564, %v1605
        %v1613 = vadd.f32 %v1568, %v1605
        %v1614 = vadd.f32 %v1572, %v1605
        %v1615 = vadd.f32 %v1576, %v1605
        %v1616 = vadd.f32 %v1580, %v1605
        %v1617 = vadd.f32 %v1584, %v1605
        %v1618 = vadd.f32 %v1588, %v1605
        %v1619 = vadd.f32 %v1592, %v1605
        %v1620 = vadd.f32 %v1596, %v1605
        %v1621 = vadd.f32 %v1600, %v1605
        %vm1622 = vcmp.ge.f32.partialorder %v1606, 0.0
        %vm1623 = vcmp.ge.f32.partialorder %v1607, 0.0
        %vm1624 = vcmp.ge.f32.partialorder %v1608, 0.0
        %vm1625 = vcmp.ge.f32.partialorder %v1609, 0.0
        %vm1626 = vcmp.ge.f32.partialorder %v1610, 0.0
        %vm1627 = vcmp.ge.f32.partialorder %v1611, 0.0
        %vm1628 = vcmp.ge.f32.partialorder %v1612, 0.0
        %vm1629 = vcmp.ge.f32.partialorder %v1613, 0.0
        %vm1630 = vcmp.ge.f32.partialorder %v1614, 0.0
        %vm1631 = vcmp.ge.f32.partialorder %v1615, 0.0
        %vm1632 = vcmp.ge.f32.partialorder %v1616, 0.0
        %vm1633 = vcmp.ge.f32.partialorder %v1617, 0.0
        %vm1634 = vcmp.ge.f32.partialorder %v1618, 0.0
        %vm1635 = vcmp.ge.f32.partialorder %v1619, 0.0
        %vm1636 = vcmp.ge.f32.partialorder %v1620, 0.0
        %vm1637 = vcmp.ge.f32.partialorder %v1621, 0.0
        %v1638 = vmul.f32 %v1606, 0.2
        %v1639 = vmul.f32 %v1607, 0.2
        %v1640 = vmul.f32 %v1608, 0.2
        %v1641 = vmul.f32 %v1609, 0.2
        %v1642 = vmul.f32 %v1610, 0.2
        %v1643 = vmul.f32 %v1611, 0.2
        %v1644 = vmul.f32 %v1612, 0.2
        %v1645 = vmul.f32 %v1613, 0.2
        %v1646 = vmul.f32 %v1614, 0.2
        %v1647 = vmul.f32 %v1615, 0.2
        %v1648 = vmul.f32 %v1616, 0.2
        %v1649 = vmul.f32 %v1617, 0.2
        %v1650 = vmul.f32 %v1618, 0.2
        %v1651 = vmul.f32 %v1619, 0.2
        %v1652 = vmul.f32 %v1620, 0.2
        %v1653 = vmul.f32 %v1621, 0.2
        %v1654 = vsel %vm1622, %v1606, %v1638
        %v1655 = vsel %vm1623, %v1607, %v1639
        %v1656 = vsel %vm1624, %v1608, %v1640
        %v1657 = vsel %vm1625, %v1609, %v1641
        %v1658 = vsel %vm1626, %v1610, %v1642
        %v1659 = vsel %vm1627, %v1611, %v1643
        %v1660 = vsel %vm1628, %v1612, %v1644
        %v1661 = vsel %vm1629, %v1613, %v1645
        %v1662 = vsel %vm1630, %v1614, %v1646
        %v1663 = vsel %vm1631, %v1615, %v1647
        %v1664 = vsel %vm1632, %v1616, %v1648
        %v1665 = vsel %vm1633, %v1617, %v1649
        %v1666 = vsel %vm1634, %v1618, %v1650
        %v1667 = vsel %vm1635, %v1619, %v1651
        %v1668 = vsel %vm1636, %v1620, %v1652
        %v1669 = vsel %vm1637, %v1621, %v1653
        %s1670 = sld [smem:[#allocation6 + $0x3]]
        %v1671 = vstv %s1670
        %v1672 = vmul.f32 %v1671, %v1654
        %v1673 = vmul.f32 %v1671, %v1655
        %v1674 = vmul.f32 %v1671, %v1656
        %v1675 = vmul.f32 %v1671, %v1657
        %v1676 = vmul.f32 %v1671, %v1658
        %v1677 = vmul.f32 %v1671, %v1659
        %v1678 = vmul.f32 %v1671, %v1660
        %v1679 = vmul.f32 %v1671, %v1661
        %v1680 = vmul.f32 %v1671, %v1662
        %v1681 = vmul.f32 %v1671, %v1663
        %v1682 = vmul.f32 %v1671, %v1664
        %v1683 = vmul.f32 %v1671, %v1665
        %v1684 = vmul.f32 %v1671, %v1666
        %v1685 = vmul.f32 %v1671, %v1667
        %v1686 = vmul.f32 %v1671, %v1668
        %v1687 = vmul.f32 %v1671, %v1669
        %v1688 = vadd.f32 %v1522, %v1672
        %v1689 = vadd.f32 %v1523, %v1673
        %v1690 = vadd.f32 %v1524, %v1674
        %v1691 = vadd.f32 %v1525, %v1675
        %v1692 = vadd.f32 %v1526, %v1676
        %v1693 = vadd.f32 %v1527, %v1677
        %v1694 = vadd.f32 %v1528, %v1678
        %v1695 = vadd.f32 %v1529, %v1679
        %v1696 = vadd.f32 %v1530, %v1680
        %v1697 = vadd.f32 %v1531, %v1681
        %v1698 = vadd.f32 %v1532, %v1682
        %v1699 = vadd.f32 %v1533, %v1683
        %v1700 = vadd.f32 %v1534, %v1684
        %v1701 = vadd.f32 %v1535, %v1685
        %v1702 = vadd.f32 %v1536, %v1686
        %v1703 = vadd.f32 %v1537, %v1687
        %1704 = vset.pattern.permute.xlu0 4
        %1705 = vperm.xlu0 %1704, %v1008
        %v1706 = vpop.permute.xlu0 %1705
        %1708 = vset.pattern.permute.xlu0 4
        %1709 = vperm.xlu0 %1708, %v1009
        %v1710 = vpop.permute.xlu0 %1709
        %1712 = vset.pattern.permute.xlu0 4
        %1713 = vperm.xlu0 %1712, %v1010
        %v1714 = vpop.permute.xlu0 %1713
        %1716 = vset.pattern.permute.xlu0 4
        %1717 = vperm.xlu0 %1716, %v1011
        %v1718 = vpop.permute.xlu0 %1717
        %1720 = vset.pattern.permute.xlu0 4
        %1721 = vperm.xlu0 %1720, %v1012
        %v1722 = vpop.permute.xlu0 %1721
        %1724 = vset.pattern.permute.xlu0 4
        %1725 = vperm.xlu0 %1724, %v1013
        %v1726 = vpop.permute.xlu0 %1725
        %1728 = vset.pattern.permute.xlu0 4
        %1729 = vperm.xlu0 %1728, %v1014
        %v1730 = vpop.permute.xlu0 %1729
        %1732 = vset.pattern.permute.xlu0 4
        %1733 = vperm.xlu0 %1732, %v1015
        %v1734 = vpop.permute.xlu0 %1733
        %1736 = vset.pattern.permute.xlu0 4
        %1737 = vperm.xlu0 %1736, %v1016
        %v1738 = vpop.permute.xlu0 %1737
        %1740 = vset.pattern.permute.xlu0 4
        %1741 = vperm.xlu0 %1740, %v1017
        %v1742 = vpop.permute.xlu0 %1741
        %1744 = vset.pattern.permute.xlu0 4
        %1745 = vperm.xlu0 %1744, %v1018
        %v1746 = vpop.permute.xlu0 %1745
        %1748 = vset.pattern.permute.xlu0 4
        %1749 = vperm.xlu0 %1748, %v1019
        %v1750 = vpop.permute.xlu0 %1749
        %1752 = vset.pattern.permute.xlu0 4
        %1753 = vperm.xlu0 %1752, %v1020
        %v1754 = vpop.permute.xlu0 %1753
        %1756 = vset.pattern.permute.xlu0 4
        %1757 = vperm.xlu0 %1756, %v1021
        %v1758 = vpop.permute.xlu0 %1757
        %1760 = vset.pattern.permute.xlu0 4
        %1761 = vperm.xlu0 %1760, %v1022
        %v1762 = vpop.permute.xlu0 %1761
        %1764 = vset.pattern.permute.xlu0 4
        %1765 = vperm.xlu0 %1764, %v1023
        %v1766 = vpop.permute.xlu0 %1765
        %v1768 = vlaneseq
        %v1769 = vshrl.u32 %v1768, 7
        %v1770 = vsub.s32 4, %v1769
        %v1771 = vrot.slane %v946, %v1770
        %v1772 = vadd.f32 %v1706, %v1771
        %v1773 = vadd.f32 %v1710, %v1771
        %v1774 = vadd.f32 %v1714, %v1771
        %v1775 = vadd.f32 %v1718, %v1771
        %v1776 = vadd.f32 %v1722, %v1771
        %v1777 = vadd.f32 %v1726, %v1771
        %v1778 = vadd.f32 %v1730, %v1771
        %v1779 = vadd.f32 %v1734, %v1771
        %v1780 = vadd.f32 %v1738, %v1771
        %v1781 = vadd.f32 %v1742, %v1771
        %v1782 = vadd.f32 %v1746, %v1771
        %v1783 = vadd.f32 %v1750, %v1771
        %v1784 = vadd.f32 %v1754, %v1771
        %v1785 = vadd.f32 %v1758, %v1771
        %v1786 = vadd.f32 %v1762, %v1771
        %v1787 = vadd.f32 %v1766, %v1771
        %vm1788 = vcmp.ge.f32.partialorder %v1772, 0.0
        %vm1789 = vcmp.ge.f32.partialorder %v1773, 0.0
        %vm1790 = vcmp.ge.f32.partialorder %v1774, 0.0
        %vm1791 = vcmp.ge.f32.partialorder %v1775, 0.0
        %vm1792 = vcmp.ge.f32.partialorder %v1776, 0.0
        %vm1793 = vcmp.ge.f32.partialorder %v1777, 0.0
        %vm1794 = vcmp.ge.f32.partialorder %v1778, 0.0
        %vm1795 = vcmp.ge.f32.partialorder %v1779, 0.0
        %vm1796 = vcmp.ge.f32.partialorder %v1780, 0.0
        %vm1797 = vcmp.ge.f32.partialorder %v1781, 0.0
        %vm1798 = vcmp.ge.f32.partialorder %v1782, 0.0
        %vm1799 = vcmp.ge.f32.partialorder %v1783, 0.0
        %vm1800 = vcmp.ge.f32.partialorder %v1784, 0.0
        %vm1801 = vcmp.ge.f32.partialorder %v1785, 0.0
        %vm1802 = vcmp.ge.f32.partialorder %v1786, 0.0
        %vm1803 = vcmp.ge.f32.partialorder %v1787, 0.0
        %v1804 = vmul.f32 %v1772, 0.2
        %v1805 = vmul.f32 %v1773, 0.2
        %v1806 = vmul.f32 %v1774, 0.2
        %v1807 = vmul.f32 %v1775, 0.2
        %v1808 = vmul.f32 %v1776, 0.2
        %v1809 = vmul.f32 %v1777, 0.2
        %v1810 = vmul.f32 %v1778, 0.2
        %v1811 = vmul.f32 %v1779, 0.2
        %v1812 = vmul.f32 %v1780, 0.2
        %v1813 = vmul.f32 %v1781, 0.2
        %v1814 = vmul.f32 %v1782, 0.2
        %v1815 = vmul.f32 %v1783, 0.2
        %v1816 = vmul.f32 %v1784, 0.2
        %v1817 = vmul.f32 %v1785, 0.2
        %v1818 = vmul.f32 %v1786, 0.2
        %v1819 = vmul.f32 %v1787, 0.2
        %v1820 = vsel %vm1788, %v1772, %v1804
        %v1821 = vsel %vm1789, %v1773, %v1805
        %v1822 = vsel %vm1790, %v1774, %v1806
        %v1823 = vsel %vm1791, %v1775, %v1807
        %v1824 = vsel %vm1792, %v1776, %v1808
        %v1825 = vsel %vm1793, %v1777, %v1809
        %v1826 = vsel %vm1794, %v1778, %v1810
        %v1827 = vsel %vm1795, %v1779, %v1811
        %v1828 = vsel %vm1796, %v1780, %v1812
        %v1829 = vsel %vm1797, %v1781, %v1813
        %v1830 = vsel %vm1798, %v1782, %v1814
        %v1831 = vsel %vm1799, %v1783, %v1815
        %v1832 = vsel %vm1800, %v1784, %v1816
        %v1833 = vsel %vm1801, %v1785, %v1817
        %v1834 = vsel %vm1802, %v1786, %v1818
        %v1835 = vsel %vm1803, %v1787, %v1819
        %s1836 = sld [smem:[#allocation6 + $0x4]]
        %v1837 = vstv %s1836
        %v1838 = vmul.f32 %v1837, %v1820
        %v1839 = vmul.f32 %v1837, %v1821
        %v1840 = vmul.f32 %v1837, %v1822
        %v1841 = vmul.f32 %v1837, %v1823
        %v1842 = vmul.f32 %v1837, %v1824
        %v1843 = vmul.f32 %v1837, %v1825
        %v1844 = vmul.f32 %v1837, %v1826
        %v1845 = vmul.f32 %v1837, %v1827
        %v1846 = vmul.f32 %v1837, %v1828
        %v1847 = vmul.f32 %v1837, %v1829
        %v1848 = vmul.f32 %v1837, %v1830
        %v1849 = vmul.f32 %v1837, %v1831
        %v1850 = vmul.f32 %v1837, %v1832
        %v1851 = vmul.f32 %v1837, %v1833
        %v1852 = vmul.f32 %v1837, %v1834
        %v1853 = vmul.f32 %v1837, %v1835
        %v1854 = vadd.f32 %v1688, %v1838
        %v1855 = vadd.f32 %v1689, %v1839
        %v1856 = vadd.f32 %v1690, %v1840
        %v1857 = vadd.f32 %v1691, %v1841
        %v1858 = vadd.f32 %v1692, %v1842
        %v1859 = vadd.f32 %v1693, %v1843
        %v1860 = vadd.f32 %v1694, %v1844
        %v1861 = vadd.f32 %v1695, %v1845
        %v1862 = vadd.f32 %v1696, %v1846
        %v1863 = vadd.f32 %v1697, %v1847
        %v1864 = vadd.f32 %v1698, %v1848
        %v1865 = vadd.f32 %v1699, %v1849
        %v1866 = vadd.f32 %v1700, %v1850
        %v1867 = vadd.f32 %v1701, %v1851
        %v1868 = vadd.f32 %v1702, %v1852
        %v1869 = vadd.f32 %v1703, %v1853
        %1870 = vset.pattern.permute.xlu0 5
        %1871 = vperm.xlu0 %1870, %v1008
        %v1872 = vpop.permute.xlu0 %1871
        %1874 = vset.pattern.permute.xlu0 5
        %1875 = vperm.xlu0 %1874, %v1009
        %v1876 = vpop.permute.xlu0 %1875
        %1878 = vset.pattern.permute.xlu0 5
        %1879 = vperm.xlu0 %1878, %v1010
        %v1880 = vpop.permute.xlu0 %1879
        %1882 = vset.pattern.permute.xlu0 5
        %1883 = vperm.xlu0 %1882, %v1011
        %v1884 = vpop.permute.xlu0 %1883
        %1886 = vset.pattern.permute.xlu0 5
        %1887 = vperm.xlu0 %1886, %v1012
        %v1888 = vpop.permute.xlu0 %1887
        %1890 = vset.pattern.permute.xlu0 5
        %1891 = vperm.xlu0 %1890, %v1013
        %v1892 = vpop.permute.xlu0 %1891
        %1894 = vset.pattern.permute.xlu0 5
        %1895 = vperm.xlu0 %1894, %v1014
        %v1896 = vpop.permute.xlu0 %1895
        %1898 = vset.pattern.permute.xlu0 5
        %1899 = vperm.xlu0 %1898, %v1015
        %v1900 = vpop.permute.xlu0 %1899
        %1902 = vset.pattern.permute.xlu0 5
        %1903 = vperm.xlu0 %1902, %v1016
        %v1904 = vpop.permute.xlu0 %1903
        %1906 = vset.pattern.permute.xlu0 5
        %1907 = vperm.xlu0 %1906, %v1017
        %v1908 = vpop.permute.xlu0 %1907
        %1910 = vset.pattern.permute.xlu0 5
        %1911 = vperm.xlu0 %1910, %v1018
        %v1912 = vpop.permute.xlu0 %1911
        %1914 = vset.pattern.permute.xlu0 5
        %1915 = vperm.xlu0 %1914, %v1019
        %v1916 = vpop.permute.xlu0 %1915
        %1918 = vset.pattern.permute.xlu0 5
        %1919 = vperm.xlu0 %1918, %v1020
        %v1920 = vpop.permute.xlu0 %1919
        %1922 = vset.pattern.permute.xlu0 5
        %1923 = vperm.xlu0 %1922, %v1021
        %v1924 = vpop.permute.xlu0 %1923
        %1926 = vset.pattern.permute.xlu0 5
        %1927 = vperm.xlu0 %1926, %v1022
        %v1928 = vpop.permute.xlu0 %1927
        %1930 = vset.pattern.permute.xlu0 5
        %1931 = vperm.xlu0 %1930, %v1023
        %v1932 = vpop.permute.xlu0 %1931
        %v1934 = vlaneseq
        %v1935 = vshrl.u32 %v1934, 7
        %v1936 = vsub.s32 5, %v1935
        %v1937 = vrot.slane %v946, %v1936
        %v1938 = vadd.f32 %v1872, %v1937
        %v1939 = vadd.f32 %v1876, %v1937
        %v1940 = vadd.f32 %v1880, %v1937
        %v1941 = vadd.f32 %v1884, %v1937
        %v1942 = vadd.f32 %v1888, %v1937
        %v1943 = vadd.f32 %v1892, %v1937
        %v1944 = vadd.f32 %v1896, %v1937
        %v1945 = vadd.f32 %v1900, %v1937
        %v1946 = vadd.f32 %v1904, %v1937
        %v1947 = vadd.f32 %v1908, %v1937
        %v1948 = vadd.f32 %v1912, %v1937
        %v1949 = vadd.f32 %v1916, %v1937
        %v1950 = vadd.f32 %v1920, %v1937
        %v1951 = vadd.f32 %v1924, %v1937
        %v1952 = vadd.f32 %v1928, %v1937
        %v1953 = vadd.f32 %v1932, %v1937
        %vm1954 = vcmp.ge.f32.partialorder %v1938, 0.0
        %vm1955 = vcmp.ge.f32.partialorder %v1939, 0.0
        %vm1956 = vcmp.ge.f32.partialorder %v1940, 0.0
        %vm1957 = vcmp.ge.f32.partialorder %v1941, 0.0
        %vm1958 = vcmp.ge.f32.partialorder %v1942, 0.0
        %vm1959 = vcmp.ge.f32.partialorder %v1943, 0.0
        %vm1960 = vcmp.ge.f32.partialorder %v1944, 0.0
        %vm1961 = vcmp.ge.f32.partialorder %v1945, 0.0
        %vm1962 = vcmp.ge.f32.partialorder %v1946, 0.0
        %vm1963 = vcmp.ge.f32.partialorder %v1947, 0.0
        %vm1964 = vcmp.ge.f32.partialorder %v1948, 0.0
        %vm1965 = vcmp.ge.f32.partialorder %v1949, 0.0
        %vm1966 = vcmp.ge.f32.partialorder %v1950, 0.0
        %vm1967 = vcmp.ge.f32.partialorder %v1951, 0.0
        %vm1968 = vcmp.ge.f32.partialorder %v1952, 0.0
        %vm1969 = vcmp.ge.f32.partialorder %v1953, 0.0
        %v1970 = vmul.f32 %v1938, 0.2
        %v1971 = vmul.f32 %v1939, 0.2
        %v1972 = vmul.f32 %v1940, 0.2
        %v1973 = vmul.f32 %v1941, 0.2
        %v1974 = vmul.f32 %v1942, 0.2
        %v1975 = vmul.f32 %v1943, 0.2
        %v1976 = vmul.f32 %v1944, 0.2
        %v1977 = vmul.f32 %v1945, 0.2
        %v1978 = vmul.f32 %v1946, 0.2
        %v1979 = vmul.f32 %v1947, 0.2
        %v1980 = vmul.f32 %v1948, 0.2
        %v1981 = vmul.f32 %v1949, 0.2
        %v1982 = vmul.f32 %v1950, 0.2
        %v1983 = vmul.f32 %v1951, 0.2
        %v1984 = vmul.f32 %v1952, 0.2
        %v1985 = vmul.f32 %v1953, 0.2
        %v1986 = vsel %vm1954, %v1938, %v1970
        %v1987 = vsel %vm1955, %v1939, %v1971
        %v1988 = vsel %vm1956, %v1940, %v1972
        %v1989 = vsel %vm1957, %v1941, %v1973
        %v1990 = vsel %vm1958, %v1942, %v1974
        %v1991 = vsel %vm1959, %v1943, %v1975
        %v1992 = vsel %vm1960, %v1944, %v1976
        %v1993 = vsel %vm1961, %v1945, %v1977
        %v1994 = vsel %vm1962, %v1946, %v1978
        %v1995 = vsel %vm1963, %v1947, %v1979
        %v1996 = vsel %vm1964, %v1948, %v1980
        %v1997 = vsel %vm1965, %v1949, %v1981
        %v1998 = vsel %vm1966, %v1950, %v1982
        %v1999 = vsel %vm1967, %v1951, %v1983
        %v2000 = vsel %vm1968, %v1952, %v1984
        %v2001 = vsel %vm1969, %v1953, %v1985
        %s2002 = sld [smem:[#allocation6 + $0x5]]
        %v2003 = vstv %s2002
        %v2004 = vmul.f32 %v2003, %v1986
        %v2005 = vmul.f32 %v2003, %v1987
        %v2006 = vmul.f32 %v2003, %v1988
        %v2007 = vmul.f32 %v2003, %v1989
        %v2008 = vmul.f32 %v2003, %v1990
        %v2009 = vmul.f32 %v2003, %v1991
        %v2010 = vmul.f32 %v2003, %v1992
        %v2011 = vmul.f32 %v2003, %v1993
        %v2012 = vmul.f32 %v2003, %v1994
        %v2013 = vmul.f32 %v2003, %v1995
        %v2014 = vmul.f32 %v2003, %v1996
        %v2015 = vmul.f32 %v2003, %v1997
        %v2016 = vmul.f32 %v2003, %v1998
        %v2017 = vmul.f32 %v2003, %v1999
        %v2018 = vmul.f32 %v2003, %v2000
        %v2019 = vmul.f32 %v2003, %v2001
        %v2020 = vadd.f32 %v1854, %v2004
        %v2021 = vadd.f32 %v1855, %v2005
        %v2022 = vadd.f32 %v1856, %v2006
        %v2023 = vadd.f32 %v1857, %v2007
        %v2024 = vadd.f32 %v1858, %v2008
        %v2025 = vadd.f32 %v1859, %v2009
        %v2026 = vadd.f32 %v1860, %v2010
        %v2027 = vadd.f32 %v1861, %v2011
        %v2028 = vadd.f32 %v1862, %v2012
        %v2029 = vadd.f32 %v1863, %v2013
        %v2030 = vadd.f32 %v1864, %v2014
        %v2031 = vadd.f32 %v1865, %v2015
        %v2032 = vadd.f32 %v1866, %v2016
        %v2033 = vadd.f32 %v1867, %v2017
        %v2034 = vadd.f32 %v1868, %v2018
        %v2035 = vadd.f32 %v1869, %v2019
        %2036 = vset.pattern.permute.xlu0 6
        %2037 = vperm.xlu0 %2036, %v1008
        %v2038 = vpop.permute.xlu0 %2037
        %2040 = vset.pattern.permute.xlu0 6
        %2041 = vperm.xlu0 %2040, %v1009
        %v2042 = vpop.permute.xlu0 %2041
        %2044 = vset.pattern.permute.xlu0 6
        %2045 = vperm.xlu0 %2044, %v1010
        %v2046 = vpop.permute.xlu0 %2045
        %2048 = vset.pattern.permute.xlu0 6
        %2049 = vperm.xlu0 %2048, %v1011
        %v2050 = vpop.permute.xlu0 %2049
        %2052 = vset.pattern.permute.xlu0 6
        %2053 = vperm.xlu0 %2052, %v1012
        %v2054 = vpop.permute.xlu0 %2053
        %2056 = vset.pattern.permute.xlu0 6
        %2057 = vperm.xlu0 %2056, %v1013
        %v2058 = vpop.permute.xlu0 %2057
        %2060 = vset.pattern.permute.xlu0 6
        %2061 = vperm.xlu0 %2060, %v1014
        %v2062 = vpop.permute.xlu0 %2061
        %2064 = vset.pattern.permute.xlu0 6
        %2065 = vperm.xlu0 %2064, %v1015
        %v2066 = vpop.permute.xlu0 %2065
        %2068 = vset.pattern.permute.xlu0 6
        %2069 = vperm.xlu0 %2068, %v1016
        %v2070 = vpop.permute.xlu0 %2069
        %2072 = vset.pattern.permute.xlu0 6
        %2073 = vperm.xlu0 %2072, %v1017
        %v2074 = vpop.permute.xlu0 %2073
        %2076 = vset.pattern.permute.xlu0 6
        %2077 = vperm.xlu0 %2076, %v1018
        %v2078 = vpop.permute.xlu0 %2077
        %2080 = vset.pattern.permute.xlu0 6
        %2081 = vperm.xlu0 %2080, %v1019
        %v2082 = vpop.permute.xlu0 %2081
        %2084 = vset.pattern.permute.xlu0 6
        %2085 = vperm.xlu0 %2084, %v1020
        %v2086 = vpop.permute.xlu0 %2085
        %2088 = vset.pattern.permute.xlu0 6
        %2089 = vperm.xlu0 %2088, %v1021
        %v2090 = vpop.permute.xlu0 %2089
        %2092 = vset.pattern.permute.xlu0 6
        %2093 = vperm.xlu0 %2092, %v1022
        %v2094 = vpop.permute.xlu0 %2093
        %2096 = vset.pattern.permute.xlu0 6
        %2097 = vperm.xlu0 %2096, %v1023
        %v2098 = vpop.permute.xlu0 %2097
        %v2100 = vlaneseq
        %v2101 = vshrl.u32 %v2100, 7
        %v2102 = vsub.s32 6, %v2101
        %v2103 = vrot.slane %v946, %v2102
        %v2104 = vadd.f32 %v2038, %v2103
        %v2105 = vadd.f32 %v2042, %v2103
        %v2106 = vadd.f32 %v2046, %v2103
        %v2107 = vadd.f32 %v2050, %v2103
        %v2108 = vadd.f32 %v2054, %v2103
        %v2109 = vadd.f32 %v2058, %v2103
        %v2110 = vadd.f32 %v2062, %v2103
        %v2111 = vadd.f32 %v2066, %v2103
        %v2112 = vadd.f32 %v2070, %v2103
        %v2113 = vadd.f32 %v2074, %v2103
        %v2114 = vadd.f32 %v2078, %v2103
        %v2115 = vadd.f32 %v2082, %v2103
        %v2116 = vadd.f32 %v2086, %v2103
        %v2117 = vadd.f32 %v2090, %v2103
        %v2118 = vadd.f32 %v2094, %v2103
        %v2119 = vadd.f32 %v2098, %v2103
        %vm2120 = vcmp.ge.f32.partialorder %v2104, 0.0
        %vm2121 = vcmp.ge.f32.partialorder %v2105, 0.0
        %vm2122 = vcmp.ge.f32.partialorder %v2106, 0.0
        %vm2123 = vcmp.ge.f32.partialorder %v2107, 0.0
        %vm2124 = vcmp.ge.f32.partialorder %v2108, 0.0
        %vm2125 = vcmp.ge.f32.partialorder %v2109, 0.0
        %vm2126 = vcmp.ge.f32.partialorder %v2110, 0.0
        %vm2127 = vcmp.ge.f32.partialorder %v2111, 0.0
        %vm2128 = vcmp.ge.f32.partialorder %v2112, 0.0
        %vm2129 = vcmp.ge.f32.partialorder %v2113, 0.0
        %vm2130 = vcmp.ge.f32.partialorder %v2114, 0.0
        %vm2131 = vcmp.ge.f32.partialorder %v2115, 0.0
        %vm2132 = vcmp.ge.f32.partialorder %v2116, 0.0
        %vm2133 = vcmp.ge.f32.partialorder %v2117, 0.0
        %vm2134 = vcmp.ge.f32.partialorder %v2118, 0.0
        %vm2135 = vcmp.ge.f32.partialorder %v2119, 0.0
        %v2136 = vmul.f32 %v2104, 0.2
        %v2137 = vmul.f32 %v2105, 0.2
        %v2138 = vmul.f32 %v2106, 0.2
        %v2139 = vmul.f32 %v2107, 0.2
        %v2140 = vmul.f32 %v2108, 0.2
        %v2141 = vmul.f32 %v2109, 0.2
        %v2142 = vmul.f32 %v2110, 0.2
        %v2143 = vmul.f32 %v2111, 0.2
        %v2144 = vmul.f32 %v2112, 0.2
        %v2145 = vmul.f32 %v2113, 0.2
        %v2146 = vmul.f32 %v2114, 0.2
        %v2147 = vmul.f32 %v2115, 0.2
        %v2148 = vmul.f32 %v2116, 0.2
        %v2149 = vmul.f32 %v2117, 0.2
        %v2150 = vmul.f32 %v2118, 0.2
        %v2151 = vmul.f32 %v2119, 0.2
        %v2152 = vsel %vm2120, %v2104, %v2136
        %v2153 = vsel %vm2121, %v2105, %v2137
        %v2154 = vsel %vm2122, %v2106, %v2138
        %v2155 = vsel %vm2123, %v2107, %v2139
        %v2156 = vsel %vm2124, %v2108, %v2140
        %v2157 = vsel %vm2125, %v2109, %v2141
        %v2158 = vsel %vm2126, %v2110, %v2142
        %v2159 = vsel %vm2127, %v2111, %v2143
        %v2160 = vsel %vm2128, %v2112, %v2144
        %v2161 = vsel %vm2129, %v2113, %v2145
        %v2162 = vsel %vm2130, %v2114, %v2146
        %v2163 = vsel %vm2131, %v2115, %v2147
        %v2164 = vsel %vm2132, %v2116, %v2148
        %v2165 = vsel %vm2133, %v2117, %v2149
        %v2166 = vsel %vm2134, %v2118, %v2150
        %v2167 = vsel %vm2135, %v2119, %v2151
        %s2168 = sld [smem:[#allocation6 + $0x6]]
        %v2169 = vstv %s2168
        %v2170 = vmul.f32 %v2169, %v2152
        %v2171 = vmul.f32 %v2169, %v2153
        %v2172 = vmul.f32 %v2169, %v2154
        %v2173 = vmul.f32 %v2169, %v2155
        %v2174 = vmul.f32 %v2169, %v2156
        %v2175 = vmul.f32 %v2169, %v2157
        %v2176 = vmul.f32 %v2169, %v2158
        %v2177 = vmul.f32 %v2169, %v2159
        %v2178 = vmul.f32 %v2169, %v2160
        %v2179 = vmul.f32 %v2169, %v2161
        %v2180 = vmul.f32 %v2169, %v2162
        %v2181 = vmul.f32 %v2169, %v2163
        %v2182 = vmul.f32 %v2169, %v2164
        %v2183 = vmul.f32 %v2169, %v2165
        %v2184 = vmul.f32 %v2169, %v2166
        %v2185 = vmul.f32 %v2169, %v2167
        %v2186 = vadd.f32 %v2020, %v2170
        %v2187 = vadd.f32 %v2021, %v2171
        %v2188 = vadd.f32 %v2022, %v2172
        %v2189 = vadd.f32 %v2023, %v2173
        %v2190 = vadd.f32 %v2024, %v2174
        %v2191 = vadd.f32 %v2025, %v2175
        %v2192 = vadd.f32 %v2026, %v2176
        %v2193 = vadd.f32 %v2027, %v2177
        %v2194 = vadd.f32 %v2028, %v2178
        %v2195 = vadd.f32 %v2029, %v2179
        %v2196 = vadd.f32 %v2030, %v2180
        %v2197 = vadd.f32 %v2031, %v2181
        %v2198 = vadd.f32 %v2032, %v2182
        %v2199 = vadd.f32 %v2033, %v2183
        %v2200 = vadd.f32 %v2034, %v2184
        %v2201 = vadd.f32 %v2035, %v2185
        %2202 = vset.pattern.permute.xlu0 7
        %2203 = vperm.xlu0 %2202, %v1008
        %v2204 = vpop.permute.xlu0 %2203
        %2206 = vset.pattern.permute.xlu0 7
        %2207 = vperm.xlu0 %2206, %v1009
        %v2208 = vpop.permute.xlu0 %2207
        %2210 = vset.pattern.permute.xlu0 7
        %2211 = vperm.xlu0 %2210, %v1010
        %v2212 = vpop.permute.xlu0 %2211
        %2214 = vset.pattern.permute.xlu0 7
        %2215 = vperm.xlu0 %2214, %v1011
        %v2216 = vpop.permute.xlu0 %2215
        %2218 = vset.pattern.permute.xlu0 7
        %2219 = vperm.xlu0 %2218, %v1012
        %v2220 = vpop.permute.xlu0 %2219
        %2222 = vset.pattern.permute.xlu0 7
        %2223 = vperm.xlu0 %2222, %v1013
        %v2224 = vpop.permute.xlu0 %2223
        %2226 = vset.pattern.permute.xlu0 7
        %2227 = vperm.xlu0 %2226, %v1014
        %v2228 = vpop.permute.xlu0 %2227
        %2230 = vset.pattern.permute.xlu0 7
        %2231 = vperm.xlu0 %2230, %v1015
        %v2232 = vpop.permute.xlu0 %2231
        %2234 = vset.pattern.permute.xlu0 7
        %2235 = vperm.xlu0 %2234, %v1016
        %v2236 = vpop.permute.xlu0 %2235
        %2238 = vset.pattern.permute.xlu0 7
        %2239 = vperm.xlu0 %2238, %v1017
        %v2240 = vpop.permute.xlu0 %2239
        %2242 = vset.pattern.permute.xlu0 7
        %2243 = vperm.xlu0 %2242, %v1018
        %v2244 = vpop.permute.xlu0 %2243
        %2246 = vset.pattern.permute.xlu0 7
        %2247 = vperm.xlu0 %2246, %v1019
        %v2248 = vpop.permute.xlu0 %2247
        %2250 = vset.pattern.permute.xlu0 7
        %2251 = vperm.xlu0 %2250, %v1020
        %v2252 = vpop.permute.xlu0 %2251
        %2254 = vset.pattern.permute.xlu0 7
        %2255 = vperm.xlu0 %2254, %v1021
        %v2256 = vpop.permute.xlu0 %2255
        %2258 = vset.pattern.permute.xlu0 7
        %2259 = vperm.xlu0 %2258, %v1022
        %v2260 = vpop.permute.xlu0 %2259
        %2262 = vset.pattern.permute.xlu0 7
        %2263 = vperm.xlu0 %2262, %v1023
        %v2264 = vpop.permute.xlu0 %2263
        %v2266 = vlaneseq
        %v2267 = vshrl.u32 %v2266, 7
        %v2268 = vsub.s32 7, %v2267
        %v2269 = vrot.slane %v946, %v2268
        %v2270 = vadd.f32 %v2204, %v2269
        %v2271 = vadd.f32 %v2208, %v2269
        %v2272 = vadd.f32 %v2212, %v2269
        %v2273 = vadd.f32 %v2216, %v2269
        %v2274 = vadd.f32 %v2220, %v2269
        %v2275 = vadd.f32 %v2224, %v2269
        %v2276 = vadd.f32 %v2228, %v2269
        %v2277 = vadd.f32 %v2232, %v2269
        %v2278 = vadd.f32 %v2236, %v2269
        %v2279 = vadd.f32 %v2240, %v2269
        %v2280 = vadd.f32 %v2244, %v2269
        %v2281 = vadd.f32 %v2248, %v2269
        %v2282 = vadd.f32 %v2252, %v2269
        %v2283 = vadd.f32 %v2256, %v2269
        %v2284 = vadd.f32 %v2260, %v2269
        %v2285 = vadd.f32 %v2264, %v2269
        %vm2286 = vcmp.ge.f32.partialorder %v2270, 0.0
        %vm2287 = vcmp.ge.f32.partialorder %v2271, 0.0
        %vm2288 = vcmp.ge.f32.partialorder %v2272, 0.0
        %vm2289 = vcmp.ge.f32.partialorder %v2273, 0.0
        %vm2290 = vcmp.ge.f32.partialorder %v2274, 0.0
        %vm2291 = vcmp.ge.f32.partialorder %v2275, 0.0
        %vm2292 = vcmp.ge.f32.partialorder %v2276, 0.0
        %vm2293 = vcmp.ge.f32.partialorder %v2277, 0.0
        %vm2294 = vcmp.ge.f32.partialorder %v2278, 0.0
        %vm2295 = vcmp.ge.f32.partialorder %v2279, 0.0
        %vm2296 = vcmp.ge.f32.partialorder %v2280, 0.0
        %vm2297 = vcmp.ge.f32.partialorder %v2281, 0.0
        %vm2298 = vcmp.ge.f32.partialorder %v2282, 0.0
        %vm2299 = vcmp.ge.f32.partialorder %v2283, 0.0
        %vm2300 = vcmp.ge.f32.partialorder %v2284, 0.0
        %vm2301 = vcmp.ge.f32.partialorder %v2285, 0.0
        %v2302 = vmul.f32 %v2270, 0.2
        %v2303 = vmul.f32 %v2271, 0.2
        %v2304 = vmul.f32 %v2272, 0.2
        %v2305 = vmul.f32 %v2273, 0.2
        %v2306 = vmul.f32 %v2274, 0.2
        %v2307 = vmul.f32 %v2275, 0.2
        %v2308 = vmul.f32 %v2276, 0.2
        %v2309 = vmul.f32 %v2277, 0.2
        %v2310 = vmul.f32 %v2278, 0.2
        %v2311 = vmul.f32 %v2279, 0.2
        %v2312 = vmul.f32 %v2280, 0.2
        %v2313 = vmul.f32 %v2281, 0.2
        %v2314 = vmul.f32 %v2282, 0.2
        %v2315 = vmul.f32 %v2283, 0.2
        %v2316 = vmul.f32 %v2284, 0.2
        %v2317 = vmul.f32 %v2285, 0.2
        %v2318 = vsel %vm2286, %v2270, %v2302
        %v2319 = vsel %vm2287, %v2271, %v2303
        %v2320 = vsel %vm2288, %v2272, %v2304
        %v2321 = vsel %vm2289, %v2273, %v2305
        %v2322 = vsel %vm2290, %v2274, %v2306
        %v2323 = vsel %vm2291, %v2275, %v2307
        %v2324 = vsel %vm2292, %v2276, %v2308
        %v2325 = vsel %vm2293, %v2277, %v2309
        %v2326 = vsel %vm2294, %v2278, %v2310
        %v2327 = vsel %vm2295, %v2279, %v2311
        %v2328 = vsel %vm2296, %v2280, %v2312
        %v2329 = vsel %vm2297, %v2281, %v2313
        %v2330 = vsel %vm2298, %v2282, %v2314
        %v2331 = vsel %vm2299, %v2283, %v2315
        %v2332 = vsel %vm2300, %v2284, %v2316
        %v2333 = vsel %vm2301, %v2285, %v2317
        %s2334 = sld [smem:[#allocation6 + $0x7]]
        %v2335 = vstv %s2334
        %v2336 = vmul.f32 %v2335, %v2318
        %v2337 = vmul.f32 %v2335, %v2319
        %v2338 = vmul.f32 %v2335, %v2320
        %v2339 = vmul.f32 %v2335, %v2321
        %v2340 = vmul.f32 %v2335, %v2322
        %v2341 = vmul.f32 %v2335, %v2323
        %v2342 = vmul.f32 %v2335, %v2324
        %v2343 = vmul.f32 %v2335, %v2325
        %v2344 = vmul.f32 %v2335, %v2326
        %v2345 = vmul.f32 %v2335, %v2327
        %v2346 = vmul.f32 %v2335, %v2328
        %v2347 = vmul.f32 %v2335, %v2329
        %v2348 = vmul.f32 %v2335, %v2330
        %v2349 = vmul.f32 %v2335, %v2331
        %v2350 = vmul.f32 %v2335, %v2332
        %v2351 = vmul.f32 %v2335, %v2333
        %v2352 = vadd.f32 %v2186, %v2336
        %v2353 = vadd.f32 %v2187, %v2337
        %v2354 = vadd.f32 %v2188, %v2338
        %v2355 = vadd.f32 %v2189, %v2339
        %v2356 = vadd.f32 %v2190, %v2340
        %v2357 = vadd.f32 %v2191, %v2341
        %v2358 = vadd.f32 %v2192, %v2342
        %v2359 = vadd.f32 %v2193, %v2343
        %v2360 = vadd.f32 %v2194, %v2344
        %v2361 = vadd.f32 %v2195, %v2345
        %v2362 = vadd.f32 %v2196, %v2346
        %v2363 = vadd.f32 %v2197, %v2347
        %v2364 = vadd.f32 %v2198, %v2348
        %v2365 = vadd.f32 %v2199, %v2349
        %v2366 = vadd.f32 %v2200, %v2350
        %v2367 = vadd.f32 %v2201, %v2351
        %2368 = vset.pattern.permute.xlu0 8
        %2369 = vperm.xlu0 %2368, %v1008
        %v2370 = vpop.permute.xlu0 %2369
        %2372 = vset.pattern.permute.xlu0 8
        %2373 = vperm.xlu0 %2372, %v1009
        %v2374 = vpop.permute.xlu0 %2373
        %2376 = vset.pattern.permute.xlu0 8
        %2377 = vperm.xlu0 %2376, %v1010
        %v2378 = vpop.permute.xlu0 %2377
        %2380 = vset.pattern.permute.xlu0 8
        %2381 = vperm.xlu0 %2380, %v1011
        %v2382 = vpop.permute.xlu0 %2381
        %2384 = vset.pattern.permute.xlu0 8
        %2385 = vperm.xlu0 %2384, %v1012
        %v2386 = vpop.permute.xlu0 %2385
        %2388 = vset.pattern.permute.xlu0 8
        %2389 = vperm.xlu0 %2388, %v1013
        %v2390 = vpop.permute.xlu0 %2389
        %2392 = vset.pattern.permute.xlu0 8
        %2393 = vperm.xlu0 %2392, %v1014
        %v2394 = vpop.permute.xlu0 %2393
        %2396 = vset.pattern.permute.xlu0 8
        %2397 = vperm.xlu0 %2396, %v1015
        %v2398 = vpop.permute.xlu0 %2397
        %2400 = vset.pattern.permute.xlu0 8
        %2401 = vperm.xlu0 %2400, %v1016
        %v2402 = vpop.permute.xlu0 %2401
        %2404 = vset.pattern.permute.xlu0 8
        %2405 = vperm.xlu0 %2404, %v1017
        %v2406 = vpop.permute.xlu0 %2405
        %2408 = vset.pattern.permute.xlu0 8
        %2409 = vperm.xlu0 %2408, %v1018
        %v2410 = vpop.permute.xlu0 %2409
        %2412 = vset.pattern.permute.xlu0 8
        %2413 = vperm.xlu0 %2412, %v1019
        %v2414 = vpop.permute.xlu0 %2413
        %2416 = vset.pattern.permute.xlu0 8
        %2417 = vperm.xlu0 %2416, %v1020
        %v2418 = vpop.permute.xlu0 %2417
        %2420 = vset.pattern.permute.xlu0 8
        %2421 = vperm.xlu0 %2420, %v1021
        %v2422 = vpop.permute.xlu0 %2421
        %2424 = vset.pattern.permute.xlu0 8
        %2425 = vperm.xlu0 %2424, %v1022
        %v2426 = vpop.permute.xlu0 %2425
        %2428 = vset.pattern.permute.xlu0 8
        %2429 = vperm.xlu0 %2428, %v1023
        %v2430 = vpop.permute.xlu0 %2429
        %v2432 = vlaneseq
        %v2433 = vshrl.u32 %v2432, 7
        %v2434 = vsub.s32 0, %v2433
        %v2435 = vrot.slane %v949, %v2434
        %v2436 = vadd.f32 %v2370, %v2435
        %v2437 = vadd.f32 %v2374, %v2435
        %v2438 = vadd.f32 %v2378, %v2435
        %v2439 = vadd.f32 %v2382, %v2435
        %v2440 = vadd.f32 %v2386, %v2435
        %v2441 = vadd.f32 %v2390, %v2435
        %v2442 = vadd.f32 %v2394, %v2435
        %v2443 = vadd.f32 %v2398, %v2435
        %v2444 = vadd.f32 %v2402, %v2435
        %v2445 = vadd.f32 %v2406, %v2435
        %v2446 = vadd.f32 %v2410, %v2435
        %v2447 = vadd.f32 %v2414, %v2435
        %v2448 = vadd.f32 %v2418, %v2435
        %v2449 = vadd.f32 %v2422, %v2435
        %v2450 = vadd.f32 %v2426, %v2435
        %v2451 = vadd.f32 %v2430, %v2435
        %vm2452 = vcmp.ge.f32.partialorder %v2436, 0.0
        %vm2453 = vcmp.ge.f32.partialorder %v2437, 0.0
        %vm2454 = vcmp.ge.f32.partialorder %v2438, 0.0
        %vm2455 = vcmp.ge.f32.partialorder %v2439, 0.0
        %vm2456 = vcmp.ge.f32.partialorder %v2440, 0.0
        %vm2457 = vcmp.ge.f32.partialorder %v2441, 0.0
        %vm2458 = vcmp.ge.f32.partialorder %v2442, 0.0
        %vm2459 = vcmp.ge.f32.partialorder %v2443, 0.0
        %vm2460 = vcmp.ge.f32.partialorder %v2444, 0.0
        %vm2461 = vcmp.ge.f32.partialorder %v2445, 0.0
        %vm2462 = vcmp.ge.f32.partialorder %v2446, 0.0
        %vm2463 = vcmp.ge.f32.partialorder %v2447, 0.0
        %vm2464 = vcmp.ge.f32.partialorder %v2448, 0.0
        %vm2465 = vcmp.ge.f32.partialorder %v2449, 0.0
        %vm2466 = vcmp.ge.f32.partialorder %v2450, 0.0
        %vm2467 = vcmp.ge.f32.partialorder %v2451, 0.0
        %v2468 = vmul.f32 %v2436, 0.2
        %v2469 = vmul.f32 %v2437, 0.2
        %v2470 = vmul.f32 %v2438, 0.2
        %v2471 = vmul.f32 %v2439, 0.2
        %v2472 = vmul.f32 %v2440, 0.2
        %v2473 = vmul.f32 %v2441, 0.2
        %v2474 = vmul.f32 %v2442, 0.2
        %v2475 = vmul.f32 %v2443, 0.2
        %v2476 = vmul.f32 %v2444, 0.2
        %v2477 = vmul.f32 %v2445, 0.2
        %v2478 = vmul.f32 %v2446, 0.2
        %v2479 = vmul.f32 %v2447, 0.2
        %v2480 = vmul.f32 %v2448, 0.2
        %v2481 = vmul.f32 %v2449, 0.2
        %v2482 = vmul.f32 %v2450, 0.2
        %v2483 = vmul.f32 %v2451, 0.2
        %v2484 = vsel %vm2452, %v2436, %v2468
        %v2485 = vsel %vm2453, %v2437, %v2469
        %v2486 = vsel %vm2454, %v2438, %v2470
        %v2487 = vsel %vm2455, %v2439, %v2471
        %v2488 = vsel %vm2456, %v2440, %v2472
        %v2489 = vsel %vm2457, %v2441, %v2473
        %v2490 = vsel %vm2458, %v2442, %v2474
        %v2491 = vsel %vm2459, %v2443, %v2475
        %v2492 = vsel %vm2460, %v2444, %v2476
        %v2493 = vsel %vm2461, %v2445, %v2477
        %v2494 = vsel %vm2462, %v2446, %v2478
        %v2495 = vsel %vm2463, %v2447, %v2479
        %v2496 = vsel %vm2464, %v2448, %v2480
        %v2497 = vsel %vm2465, %v2449, %v2481
        %v2498 = vsel %vm2466, %v2450, %v2482
        %v2499 = vsel %vm2467, %v2451, %v2483
        %s2500 = sld [smem:[#allocation6 + $0x8]]
        %v2501 = vstv %s2500
        %v2502 = vmul.f32 %v2501, %v2484
        %v2503 = vmul.f32 %v2501, %v2485
        %v2504 = vmul.f32 %v2501, %v2486
        %v2505 = vmul.f32 %v2501, %v2487
        %v2506 = vmul.f32 %v2501, %v2488
        %v2507 = vmul.f32 %v2501, %v2489
        %v2508 = vmul.f32 %v2501, %v2490
        %v2509 = vmul.f32 %v2501, %v2491
        %v2510 = vmul.f32 %v2501, %v2492
        %v2511 = vmul.f32 %v2501, %v2493
        %v2512 = vmul.f32 %v2501, %v2494
        %v2513 = vmul.f32 %v2501, %v2495
        %v2514 = vmul.f32 %v2501, %v2496
        %v2515 = vmul.f32 %v2501, %v2497
        %v2516 = vmul.f32 %v2501, %v2498
        %v2517 = vmul.f32 %v2501, %v2499
        %v2518 = vadd.f32 %v2352, %v2502
        %v2519 = vadd.f32 %v2353, %v2503
        %v2520 = vadd.f32 %v2354, %v2504
        %v2521 = vadd.f32 %v2355, %v2505
        %v2522 = vadd.f32 %v2356, %v2506
        %v2523 = vadd.f32 %v2357, %v2507
        %v2524 = vadd.f32 %v2358, %v2508
        %v2525 = vadd.f32 %v2359, %v2509
        %v2526 = vadd.f32 %v2360, %v2510
        %v2527 = vadd.f32 %v2361, %v2511
        %v2528 = vadd.f32 %v2362, %v2512
        %v2529 = vadd.f32 %v2363, %v2513
        %v2530 = vadd.f32 %v2364, %v2514
        %v2531 = vadd.f32 %v2365, %v2515
        %v2532 = vadd.f32 %v2366, %v2516
        %v2533 = vadd.f32 %v2367, %v2517
        %2534 = vset.pattern.permute.xlu0 9
        %2535 = vperm.xlu0 %2534, %v1008
        %v2536 = vpop.permute.xlu0 %2535
        %2538 = vset.pattern.permute.xlu0 9
        %2539 = vperm.xlu0 %2538, %v1009
        %v2540 = vpop.permute.xlu0 %2539
        %2542 = vset.pattern.permute.xlu0 9
        %2543 = vperm.xlu0 %2542, %v1010
        %v2544 = vpop.permute.xlu0 %2543
        %2546 = vset.pattern.permute.xlu0 9
        %2547 = vperm.xlu0 %2546, %v1011
        %v2548 = vpop.permute.xlu0 %2547
        %2550 = vset.pattern.permute.xlu0 9
        %2551 = vperm.xlu0 %2550, %v1012
        %v2552 = vpop.permute.xlu0 %2551
        %2554 = vset.pattern.permute.xlu0 9
        %2555 = vperm.xlu0 %2554, %v1013
        %v2556 = vpop.permute.xlu0 %2555
        %2558 = vset.pattern.permute.xlu0 9
        %2559 = vperm.xlu0 %2558, %v1014
        %v2560 = vpop.permute.xlu0 %2559
        %2562 = vset.pattern.permute.xlu0 9
        %2563 = vperm.xlu0 %2562, %v1015
        %v2564 = vpop.permute.xlu0 %2563
        %2566 = vset.pattern.permute.xlu0 9
        %2567 = vperm.xlu0 %2566, %v1016
        %v2568 = vpop.permute.xlu0 %2567
        %2570 = vset.pattern.permute.xlu0 9
        %2571 = vperm.xlu0 %2570, %v1017
        %v2572 = vpop.permute.xlu0 %2571
        %2574 = vset.pattern.permute.xlu0 9
        %2575 = vperm.xlu0 %2574, %v1018
        %v2576 = vpop.permute.xlu0 %2575
        %2578 = vset.pattern.permute.xlu0 9
        %2579 = vperm.xlu0 %2578, %v1019
        %v2580 = vpop.permute.xlu0 %2579
        %2582 = vset.pattern.permute.xlu0 9
        %2583 = vperm.xlu0 %2582, %v1020
        %v2584 = vpop.permute.xlu0 %2583
        %2586 = vset.pattern.permute.xlu0 9
        %2587 = vperm.xlu0 %2586, %v1021
        %v2588 = vpop.permute.xlu0 %2587
        %2590 = vset.pattern.permute.xlu0 9
        %2591 = vperm.xlu0 %2590, %v1022
        %v2592 = vpop.permute.xlu0 %2591
        %2594 = vset.pattern.permute.xlu0 9
        %2595 = vperm.xlu0 %2594, %v1023
        %v2596 = vpop.permute.xlu0 %2595
        %v2598 = vlaneseq
        %v2599 = vshrl.u32 %v2598, 7
        %v2600 = vsub.s32 1, %v2599
        %v2601 = vrot.slane %v949, %v2600
        %v2602 = vadd.f32 %v2536, %v2601
        %v2603 = vadd.f32 %v2540, %v2601
        %v2604 = vadd.f32 %v2544, %v2601
        %v2605 = vadd.f32 %v2548, %v2601
        %v2606 = vadd.f32 %v2552, %v2601
        %v2607 = vadd.f32 %v2556, %v2601
        %v2608 = vadd.f32 %v2560, %v2601
        %v2609 = vadd.f32 %v2564, %v2601
        %v2610 = vadd.f32 %v2568, %v2601
        %v2611 = vadd.f32 %v2572, %v2601
        %v2612 = vadd.f32 %v2576, %v2601
        %v2613 = vadd.f32 %v2580, %v2601
        %v2614 = vadd.f32 %v2584, %v2601
        %v2615 = vadd.f32 %v2588, %v2601
        %v2616 = vadd.f32 %v2592, %v2601
        %v2617 = vadd.f32 %v2596, %v2601
        %vm2618 = vcmp.ge.f32.partialorder %v2602, 0.0
        %vm2619 = vcmp.ge.f32.partialorder %v2603, 0.0
        %vm2620 = vcmp.ge.f32.partialorder %v2604, 0.0
        %vm2621 = vcmp.ge.f32.partialorder %v2605, 0.0
        %vm2622 = vcmp.ge.f32.partialorder %v2606, 0.0
        %vm2623 = vcmp.ge.f32.partialorder %v2607, 0.0
        %vm2624 = vcmp.ge.f32.partialorder %v2608, 0.0
        %vm2625 = vcmp.ge.f32.partialorder %v2609, 0.0
        %vm2626 = vcmp.ge.f32.partialorder %v2610, 0.0
        %vm2627 = vcmp.ge.f32.partialorder %v2611, 0.0
        %vm2628 = vcmp.ge.f32.partialorder %v2612, 0.0
        %vm2629 = vcmp.ge.f32.partialorder %v2613, 0.0
        %vm2630 = vcmp.ge.f32.partialorder %v2614, 0.0
        %vm2631 = vcmp.ge.f32.partialorder %v2615, 0.0
        %vm2632 = vcmp.ge.f32.partialorder %v2616, 0.0
        %vm2633 = vcmp.ge.f32.partialorder %v2617, 0.0
        %v2634 = vmul.f32 %v2602, 0.2
        %v2635 = vmul.f32 %v2603, 0.2
        %v2636 = vmul.f32 %v2604, 0.2
        %v2637 = vmul.f32 %v2605, 0.2
        %v2638 = vmul.f32 %v2606, 0.2
        %v2639 = vmul.f32 %v2607, 0.2
        %v2640 = vmul.f32 %v2608, 0.2
        %v2641 = vmul.f32 %v2609, 0.2
        %v2642 = vmul.f32 %v2610, 0.2
        %v2643 = vmul.f32 %v2611, 0.2
        %v2644 = vmul.f32 %v2612, 0.2
        %v2645 = vmul.f32 %v2613, 0.2
        %v2646 = vmul.f32 %v2614, 0.2
        %v2647 = vmul.f32 %v2615, 0.2
        %v2648 = vmul.f32 %v2616, 0.2
        %v2649 = vmul.f32 %v2617, 0.2
        %v2650 = vsel %vm2618, %v2602, %v2634
        %v2651 = vsel %vm2619, %v2603, %v2635
        %v2652 = vsel %vm2620, %v2604, %v2636
        %v2653 = vsel %vm2621, %v2605, %v2637
        %v2654 = vsel %vm2622, %v2606, %v2638
        %v2655 = vsel %vm2623, %v2607, %v2639
        %v2656 = vsel %vm2624, %v2608, %v2640
        %v2657 = vsel %vm2625, %v2609, %v2641
        %v2658 = vsel %vm2626, %v2610, %v2642
        %v2659 = vsel %vm2627, %v2611, %v2643
        %v2660 = vsel %vm2628, %v2612, %v2644
        %v2661 = vsel %vm2629, %v2613, %v2645
        %v2662 = vsel %vm2630, %v2614, %v2646
        %v2663 = vsel %vm2631, %v2615, %v2647
        %v2664 = vsel %vm2632, %v2616, %v2648
        %v2665 = vsel %vm2633, %v2617, %v2649
        %s2666 = sld [smem:[#allocation6 + $0x9]]
        %v2667 = vstv %s2666
        %v2668 = vmul.f32 %v2667, %v2650
        %v2669 = vmul.f32 %v2667, %v2651
        %v2670 = vmul.f32 %v2667, %v2652
        %v2671 = vmul.f32 %v2667, %v2653
        %v2672 = vmul.f32 %v2667, %v2654
        %v2673 = vmul.f32 %v2667, %v2655
        %v2674 = vmul.f32 %v2667, %v2656
        %v2675 = vmul.f32 %v2667, %v2657
        %v2676 = vmul.f32 %v2667, %v2658
        %v2677 = vmul.f32 %v2667, %v2659
        %v2678 = vmul.f32 %v2667, %v2660
        %v2679 = vmul.f32 %v2667, %v2661
        %v2680 = vmul.f32 %v2667, %v2662
        %v2681 = vmul.f32 %v2667, %v2663
        %v2682 = vmul.f32 %v2667, %v2664
        %v2683 = vmul.f32 %v2667, %v2665
        %v2684 = vadd.f32 %v2518, %v2668
        %v2685 = vadd.f32 %v2519, %v2669
        %v2686 = vadd.f32 %v2520, %v2670
        %v2687 = vadd.f32 %v2521, %v2671
        %v2688 = vadd.f32 %v2522, %v2672
        %v2689 = vadd.f32 %v2523, %v2673
        %v2690 = vadd.f32 %v2524, %v2674
        %v2691 = vadd.f32 %v2525, %v2675
        %v2692 = vadd.f32 %v2526, %v2676
        %v2693 = vadd.f32 %v2527, %v2677
        %v2694 = vadd.f32 %v2528, %v2678
        %v2695 = vadd.f32 %v2529, %v2679
        %v2696 = vadd.f32 %v2530, %v2680
        %v2697 = vadd.f32 %v2531, %v2681
        %v2698 = vadd.f32 %v2532, %v2682
        %v2699 = vadd.f32 %v2533, %v2683
        %2700 = vset.pattern.permute.xlu0 10
        %2701 = vperm.xlu0 %2700, %v1008
        %v2702 = vpop.permute.xlu0 %2701
        %2704 = vset.pattern.permute.xlu0 10
        %2705 = vperm.xlu0 %2704, %v1009
        %v2706 = vpop.permute.xlu0 %2705
        %2708 = vset.pattern.permute.xlu0 10
        %2709 = vperm.xlu0 %2708, %v1010
        %v2710 = vpop.permute.xlu0 %2709
        %2712 = vset.pattern.permute.xlu0 10
        %2713 = vperm.xlu0 %2712, %v1011
        %v2714 = vpop.permute.xlu0 %2713
        %2716 = vset.pattern.permute.xlu0 10
        %2717 = vperm.xlu0 %2716, %v1012
        %v2718 = vpop.permute.xlu0 %2717
        %2720 = vset.pattern.permute.xlu0 10
        %2721 = vperm.xlu0 %2720, %v1013
        %v2722 = vpop.permute.xlu0 %2721
        %2724 = vset.pattern.permute.xlu0 10
        %2725 = vperm.xlu0 %2724, %v1014
        %v2726 = vpop.permute.xlu0 %2725
        %2728 = vset.pattern.permute.xlu0 10
        %2729 = vperm.xlu0 %2728, %v1015
        %v2730 = vpop.permute.xlu0 %2729
        %2732 = vset.pattern.permute.xlu0 10
        %2733 = vperm.xlu0 %2732, %v1016
        %v2734 = vpop.permute.xlu0 %2733
        %2736 = vset.pattern.permute.xlu0 10
        %2737 = vperm.xlu0 %2736, %v1017
        %v2738 = vpop.permute.xlu0 %2737
        %2740 = vset.pattern.permute.xlu0 10
        %2741 = vperm.xlu0 %2740, %v1018
        %v2742 = vpop.permute.xlu0 %2741
        %2744 = vset.pattern.permute.xlu0 10
        %2745 = vperm.xlu0 %2744, %v1019
        %v2746 = vpop.permute.xlu0 %2745
        %2748 = vset.pattern.permute.xlu0 10
        %2749 = vperm.xlu0 %2748, %v1020
        %v2750 = vpop.permute.xlu0 %2749
        %2752 = vset.pattern.permute.xlu0 10
        %2753 = vperm.xlu0 %2752, %v1021
        %v2754 = vpop.permute.xlu0 %2753
        %2756 = vset.pattern.permute.xlu0 10
        %2757 = vperm.xlu0 %2756, %v1022
        %v2758 = vpop.permute.xlu0 %2757
        %2760 = vset.pattern.permute.xlu0 10
        %2761 = vperm.xlu0 %2760, %v1023
        %v2762 = vpop.permute.xlu0 %2761
        %v2764 = vlaneseq
        %v2765 = vshrl.u32 %v2764, 7
        %v2766 = vsub.s32 2, %v2765
        %v2767 = vrot.slane %v949, %v2766
        %v2768 = vadd.f32 %v2702, %v2767
        %v2769 = vadd.f32 %v2706, %v2767
        %v2770 = vadd.f32 %v2710, %v2767
        %v2771 = vadd.f32 %v2714, %v2767
        %v2772 = vadd.f32 %v2718, %v2767
        %v2773 = vadd.f32 %v2722, %v2767
        %v2774 = vadd.f32 %v2726, %v2767
        %v2775 = vadd.f32 %v2730, %v2767
        %v2776 = vadd.f32 %v2734, %v2767
        %v2777 = vadd.f32 %v2738, %v2767
        %v2778 = vadd.f32 %v2742, %v2767
        %v2779 = vadd.f32 %v2746, %v2767
        %v2780 = vadd.f32 %v2750, %v2767
        %v2781 = vadd.f32 %v2754, %v2767
        %v2782 = vadd.f32 %v2758, %v2767
        %v2783 = vadd.f32 %v2762, %v2767
        %vm2784 = vcmp.ge.f32.partialorder %v2768, 0.0
        %vm2785 = vcmp.ge.f32.partialorder %v2769, 0.0
        %vm2786 = vcmp.ge.f32.partialorder %v2770, 0.0
        %vm2787 = vcmp.ge.f32.partialorder %v2771, 0.0
        %vm2788 = vcmp.ge.f32.partialorder %v2772, 0.0
        %vm2789 = vcmp.ge.f32.partialorder %v2773, 0.0
        %vm2790 = vcmp.ge.f32.partialorder %v2774, 0.0
        %vm2791 = vcmp.ge.f32.partialorder %v2775, 0.0
        %vm2792 = vcmp.ge.f32.partialorder %v2776, 0.0
        %vm2793 = vcmp.ge.f32.partialorder %v2777, 0.0
        %vm2794 = vcmp.ge.f32.partialorder %v2778, 0.0
        %vm2795 = vcmp.ge.f32.partialorder %v2779, 0.0
        %vm2796 = vcmp.ge.f32.partialorder %v2780, 0.0
        %vm2797 = vcmp.ge.f32.partialorder %v2781, 0.0
        %vm2798 = vcmp.ge.f32.partialorder %v2782, 0.0
        %vm2799 = vcmp.ge.f32.partialorder %v2783, 0.0
        %v2800 = vmul.f32 %v2768, 0.2
        %v2801 = vmul.f32 %v2769, 0.2
        %v2802 = vmul.f32 %v2770, 0.2
        %v2803 = vmul.f32 %v2771, 0.2
        %v2804 = vmul.f32 %v2772, 0.2
        %v2805 = vmul.f32 %v2773, 0.2
        %v2806 = vmul.f32 %v2774, 0.2
        %v2807 = vmul.f32 %v2775, 0.2
        %v2808 = vmul.f32 %v2776, 0.2
        %v2809 = vmul.f32 %v2777, 0.2
        %v2810 = vmul.f32 %v2778, 0.2
        %v2811 = vmul.f32 %v2779, 0.2
        %v2812 = vmul.f32 %v2780, 0.2
        %v2813 = vmul.f32 %v2781, 0.2
        %v2814 = vmul.f32 %v2782, 0.2
        %v2815 = vmul.f32 %v2783, 0.2
        %v2816 = vsel %vm2784, %v2768, %v2800
        %v2817 = vsel %vm2785, %v2769, %v2801
        %v2818 = vsel %vm2786, %v2770, %v2802
        %v2819 = vsel %vm2787, %v2771, %v2803
        %v2820 = vsel %vm2788, %v2772, %v2804
        %v2821 = vsel %vm2789, %v2773, %v2805
        %v2822 = vsel %vm2790, %v2774, %v2806
        %v2823 = vsel %vm2791, %v2775, %v2807
        %v2824 = vsel %vm2792, %v2776, %v2808
        %v2825 = vsel %vm2793, %v2777, %v2809
        %v2826 = vsel %vm2794, %v2778, %v2810
        %v2827 = vsel %vm2795, %v2779, %v2811
        %v2828 = vsel %vm2796, %v2780, %v2812
        %v2829 = vsel %vm2797, %v2781, %v2813
        %v2830 = vsel %vm2798, %v2782, %v2814
        %v2831 = vsel %vm2799, %v2783, %v2815
        %s2832 = sld [smem:[#allocation6 + $0xa]]
        %v2833 = vstv %s2832
        %v2834 = vmul.f32 %v2833, %v2816
        %v2835 = vmul.f32 %v2833, %v2817
        %v2836 = vmul.f32 %v2833, %v2818
        %v2837 = vmul.f32 %v2833, %v2819
        %v2838 = vmul.f32 %v2833, %v2820
        %v2839 = vmul.f32 %v2833, %v2821
        %v2840 = vmul.f32 %v2833, %v2822
        %v2841 = vmul.f32 %v2833, %v2823
        %v2842 = vmul.f32 %v2833, %v2824
        %v2843 = vmul.f32 %v2833, %v2825
        %v2844 = vmul.f32 %v2833, %v2826
        %v2845 = vmul.f32 %v2833, %v2827
        %v2846 = vmul.f32 %v2833, %v2828
        %v2847 = vmul.f32 %v2833, %v2829
        %v2848 = vmul.f32 %v2833, %v2830
        %v2849 = vmul.f32 %v2833, %v2831
        %v2850 = vadd.f32 %v2684, %v2834
        %v2851 = vadd.f32 %v2685, %v2835
        %v2852 = vadd.f32 %v2686, %v2836
        %v2853 = vadd.f32 %v2687, %v2837
        %v2854 = vadd.f32 %v2688, %v2838
        %v2855 = vadd.f32 %v2689, %v2839
        %v2856 = vadd.f32 %v2690, %v2840
        %v2857 = vadd.f32 %v2691, %v2841
        %v2858 = vadd.f32 %v2692, %v2842
        %v2859 = vadd.f32 %v2693, %v2843
        %v2860 = vadd.f32 %v2694, %v2844
        %v2861 = vadd.f32 %v2695, %v2845
        %v2862 = vadd.f32 %v2696, %v2846
        %v2863 = vadd.f32 %v2697, %v2847
        %v2864 = vadd.f32 %v2698, %v2848
        %v2865 = vadd.f32 %v2699, %v2849
        %2866 = vset.pattern.permute.xlu0 11
        %2867 = vperm.xlu0 %2866, %v1008
        %v2868 = vpop.permute.xlu0 %2867
        %2870 = vset.pattern.permute.xlu0 11
        %2871 = vperm.xlu0 %2870, %v1009
        %v2872 = vpop.permute.xlu0 %2871
        %2874 = vset.pattern.permute.xlu0 11
        %2875 = vperm.xlu0 %2874, %v1010
        %v2876 = vpop.permute.xlu0 %2875
        %2878 = vset.pattern.permute.xlu0 11
        %2879 = vperm.xlu0 %2878, %v1011
        %v2880 = vpop.permute.xlu0 %2879
        %2882 = vset.pattern.permute.xlu0 11
        %2883 = vperm.xlu0 %2882, %v1012
        %v2884 = vpop.permute.xlu0 %2883
        %2886 = vset.pattern.permute.xlu0 11
        %2887 = vperm.xlu0 %2886, %v1013
        %v2888 = vpop.permute.xlu0 %2887
        %2890 = vset.pattern.permute.xlu0 11
        %2891 = vperm.xlu0 %2890, %v1014
        %v2892 = vpop.permute.xlu0 %2891
        %2894 = vset.pattern.permute.xlu0 11
        %2895 = vperm.xlu0 %2894, %v1015
        %v2896 = vpop.permute.xlu0 %2895
        %2898 = vset.pattern.permute.xlu0 11
        %2899 = vperm.xlu0 %2898, %v1016
        %v2900 = vpop.permute.xlu0 %2899
        %2902 = vset.pattern.permute.xlu0 11
        %2903 = vperm.xlu0 %2902, %v1017
        %v2904 = vpop.permute.xlu0 %2903
        %2906 = vset.pattern.permute.xlu0 11
        %2907 = vperm.xlu0 %2906, %v1018
        %v2908 = vpop.permute.xlu0 %2907
        %2910 = vset.pattern.permute.xlu0 11
        %2911 = vperm.xlu0 %2910, %v1019
        %v2912 = vpop.permute.xlu0 %2911
        %2914 = vset.pattern.permute.xlu0 11
        %2915 = vperm.xlu0 %2914, %v1020
        %v2916 = vpop.permute.xlu0 %2915
        %2918 = vset.pattern.permute.xlu0 11
        %2919 = vperm.xlu0 %2918, %v1021
        %v2920 = vpop.permute.xlu0 %2919
        %2922 = vset.pattern.permute.xlu0 11
        %2923 = vperm.xlu0 %2922, %v1022
        %v2924 = vpop.permute.xlu0 %2923
        %2926 = vset.pattern.permute.xlu0 11
        %2927 = vperm.xlu0 %2926, %v1023
        %v2928 = vpop.permute.xlu0 %2927
        %v2930 = vlaneseq
        %v2931 = vshrl.u32 %v2930, 7
        %v2932 = vsub.s32 3, %v2931
        %v2933 = vrot.slane %v949, %v2932
        %v2934 = vadd.f32 %v2868, %v2933
        %v2935 = vadd.f32 %v2872, %v2933
        %v2936 = vadd.f32 %v2876, %v2933
        %v2937 = vadd.f32 %v2880, %v2933
        %v2938 = vadd.f32 %v2884, %v2933
        %v2939 = vadd.f32 %v2888, %v2933
        %v2940 = vadd.f32 %v2892, %v2933
        %v2941 = vadd.f32 %v2896, %v2933
        %v2942 = vadd.f32 %v2900, %v2933
        %v2943 = vadd.f32 %v2904, %v2933
        %v2944 = vadd.f32 %v2908, %v2933
        %v2945 = vadd.f32 %v2912, %v2933
        %v2946 = vadd.f32 %v2916, %v2933
        %v2947 = vadd.f32 %v2920, %v2933
        %v2948 = vadd.f32 %v2924, %v2933
        %v2949 = vadd.f32 %v2928, %v2933
        %vm2950 = vcmp.ge.f32.partialorder %v2934, 0.0
        %vm2951 = vcmp.ge.f32.partialorder %v2935, 0.0
        %vm2952 = vcmp.ge.f32.partialorder %v2936, 0.0
        %vm2953 = vcmp.ge.f32.partialorder %v2937, 0.0
        %vm2954 = vcmp.ge.f32.partialorder %v2938, 0.0
        %vm2955 = vcmp.ge.f32.partialorder %v2939, 0.0
        %vm2956 = vcmp.ge.f32.partialorder %v2940, 0.0
        %vm2957 = vcmp.ge.f32.partialorder %v2941, 0.0
        %vm2958 = vcmp.ge.f32.partialorder %v2942, 0.0
        %vm2959 = vcmp.ge.f32.partialorder %v2943, 0.0
        %vm2960 = vcmp.ge.f32.partialorder %v2944, 0.0
        %vm2961 = vcmp.ge.f32.partialorder %v2945, 0.0
        %vm2962 = vcmp.ge.f32.partialorder %v2946, 0.0
        %vm2963 = vcmp.ge.f32.partialorder %v2947, 0.0
        %vm2964 = vcmp.ge.f32.partialorder %v2948, 0.0
        %vm2965 = vcmp.ge.f32.partialorder %v2949, 0.0
        %v2966 = vmul.f32 %v2934, 0.2
        %v2967 = vmul.f32 %v2935, 0.2
        %v2968 = vmul.f32 %v2936, 0.2
        %v2969 = vmul.f32 %v2937, 0.2
        %v2970 = vmul.f32 %v2938, 0.2
        %v2971 = vmul.f32 %v2939, 0.2
        %v2972 = vmul.f32 %v2940, 0.2
        %v2973 = vmul.f32 %v2941, 0.2
        %v2974 = vmul.f32 %v2942, 0.2
        %v2975 = vmul.f32 %v2943, 0.2
        %v2976 = vmul.f32 %v2944, 0.2
        %v2977 = vmul.f32 %v2945, 0.2
        %v2978 = vmul.f32 %v2946, 0.2
        %v2979 = vmul.f32 %v2947, 0.2
        %v2980 = vmul.f32 %v2948, 0.2
        %v2981 = vmul.f32 %v2949, 0.2
        %v2982 = vsel %vm2950, %v2934, %v2966
        %v2983 = vsel %vm2951, %v2935, %v2967
        %v2984 = vsel %vm2952, %v2936, %v2968
        %v2985 = vsel %vm2953, %v2937, %v2969
        %v2986 = vsel %vm2954, %v2938, %v2970
        %v2987 = vsel %vm2955, %v2939, %v2971
        %v2988 = vsel %vm2956, %v2940, %v2972
        %v2989 = vsel %vm2957, %v2941, %v2973
        %v2990 = vsel %vm2958, %v2942, %v2974
        %v2991 = vsel %vm2959, %v2943, %v2975
        %v2992 = vsel %vm2960, %v2944, %v2976
        %v2993 = vsel %vm2961, %v2945, %v2977
        %v2994 = vsel %vm2962, %v2946, %v2978
        %v2995 = vsel %vm2963, %v2947, %v2979
        %v2996 = vsel %vm2964, %v2948, %v2980
        %v2997 = vsel %vm2965, %v2949, %v2981
        %s2998 = sld [smem:[#allocation6 + $0xb]]
        %v2999 = vstv %s2998
        %v3000 = vmul.f32 %v2999, %v2982
        %v3001 = vmul.f32 %v2999, %v2983
        %v3002 = vmul.f32 %v2999, %v2984
        %v3003 = vmul.f32 %v2999, %v2985
        %v3004 = vmul.f32 %v2999, %v2986
        %v3005 = vmul.f32 %v2999, %v2987
        %v3006 = vmul.f32 %v2999, %v2988
        %v3007 = vmul.f32 %v2999, %v2989
        %v3008 = vmul.f32 %v2999, %v2990
        %v3009 = vmul.f32 %v2999, %v2991
        %v3010 = vmul.f32 %v2999, %v2992
        %v3011 = vmul.f32 %v2999, %v2993
        %v3012 = vmul.f32 %v2999, %v2994
        %v3013 = vmul.f32 %v2999, %v2995
        %v3014 = vmul.f32 %v2999, %v2996
        %v3015 = vmul.f32 %v2999, %v2997
        %v3016 = vadd.f32 %v2850, %v3000
        %v3017 = vadd.f32 %v2851, %v3001
        %v3018 = vadd.f32 %v2852, %v3002
        %v3019 = vadd.f32 %v2853, %v3003
        %v3020 = vadd.f32 %v2854, %v3004
        %v3021 = vadd.f32 %v2855, %v3005
        %v3022 = vadd.f32 %v2856, %v3006
        %v3023 = vadd.f32 %v2857, %v3007
        %v3024 = vadd.f32 %v2858, %v3008
        %v3025 = vadd.f32 %v2859, %v3009
        %v3026 = vadd.f32 %v2860, %v3010
        %v3027 = vadd.f32 %v2861, %v3011
        %v3028 = vadd.f32 %v2862, %v3012
        %v3029 = vadd.f32 %v2863, %v3013
        %v3030 = vadd.f32 %v2864, %v3014
        %v3031 = vadd.f32 %v2865, %v3015
        %3032 = vset.pattern.permute.xlu0 12
        %3033 = vperm.xlu0 %3032, %v1008
        %v3034 = vpop.permute.xlu0 %3033
        %3036 = vset.pattern.permute.xlu0 12
        %3037 = vperm.xlu0 %3036, %v1009
        %v3038 = vpop.permute.xlu0 %3037
        %3040 = vset.pattern.permute.xlu0 12
        %3041 = vperm.xlu0 %3040, %v1010
        %v3042 = vpop.permute.xlu0 %3041
        %3044 = vset.pattern.permute.xlu0 12
        %3045 = vperm.xlu0 %3044, %v1011
        %v3046 = vpop.permute.xlu0 %3045
        %3048 = vset.pattern.permute.xlu0 12
        %3049 = vperm.xlu0 %3048, %v1012
        %v3050 = vpop.permute.xlu0 %3049
        %3052 = vset.pattern.permute.xlu0 12
        %3053 = vperm.xlu0 %3052, %v1013
        %v3054 = vpop.permute.xlu0 %3053
        %3056 = vset.pattern.permute.xlu0 12
        %3057 = vperm.xlu0 %3056, %v1014
        %v3058 = vpop.permute.xlu0 %3057
        %3060 = vset.pattern.permute.xlu0 12
        %3061 = vperm.xlu0 %3060, %v1015
        %v3062 = vpop.permute.xlu0 %3061
        %3064 = vset.pattern.permute.xlu0 12
        %3065 = vperm.xlu0 %3064, %v1016
        %v3066 = vpop.permute.xlu0 %3065
        %3068 = vset.pattern.permute.xlu0 12
        %3069 = vperm.xlu0 %3068, %v1017
        %v3070 = vpop.permute.xlu0 %3069
        %3072 = vset.pattern.permute.xlu0 12
        %3073 = vperm.xlu0 %3072, %v1018
        %v3074 = vpop.permute.xlu0 %3073
        %3076 = vset.pattern.permute.xlu0 12
        %3077 = vperm.xlu0 %3076, %v1019
        %v3078 = vpop.permute.xlu0 %3077
        %3080 = vset.pattern.permute.xlu0 12
        %3081 = vperm.xlu0 %3080, %v1020
        %v3082 = vpop.permute.xlu0 %3081
        %3084 = vset.pattern.permute.xlu0 12
        %3085 = vperm.xlu0 %3084, %v1021
        %v3086 = vpop.permute.xlu0 %3085
        %3088 = vset.pattern.permute.xlu0 12
        %3089 = vperm.xlu0 %3088, %v1022
        %v3090 = vpop.permute.xlu0 %3089
        %3092 = vset.pattern.permute.xlu0 12
        %3093 = vperm.xlu0 %3092, %v1023
        %v3094 = vpop.permute.xlu0 %3093
        %v3096 = vlaneseq
        %v3097 = vshrl.u32 %v3096, 7
        %v3098 = vsub.s32 4, %v3097
        %v3099 = vrot.slane %v949, %v3098
        %v3100 = vadd.f32 %v3034, %v3099
        %v3101 = vadd.f32 %v3038, %v3099
        %v3102 = vadd.f32 %v3042, %v3099
        %v3103 = vadd.f32 %v3046, %v3099
        %v3104 = vadd.f32 %v3050, %v3099
        %v3105 = vadd.f32 %v3054, %v3099
        %v3106 = vadd.f32 %v3058, %v3099
        %v3107 = vadd.f32 %v3062, %v3099
        %v3108 = vadd.f32 %v3066, %v3099
        %v3109 = vadd.f32 %v3070, %v3099
        %v3110 = vadd.f32 %v3074, %v3099
        %v3111 = vadd.f32 %v3078, %v3099
        %v3112 = vadd.f32 %v3082, %v3099
        %v3113 = vadd.f32 %v3086, %v3099
        %v3114 = vadd.f32 %v3090, %v3099
        %v3115 = vadd.f32 %v3094, %v3099
        %vm3116 = vcmp.ge.f32.partialorder %v3100, 0.0
        %vm3117 = vcmp.ge.f32.partialorder %v3101, 0.0
        %vm3118 = vcmp.ge.f32.partialorder %v3102, 0.0
        %vm3119 = vcmp.ge.f32.partialorder %v3103, 0.0
        %vm3120 = vcmp.ge.f32.partialorder %v3104, 0.0
        %vm3121 = vcmp.ge.f32.partialorder %v3105, 0.0
        %vm3122 = vcmp.ge.f32.partialorder %v3106, 0.0
        %vm3123 = vcmp.ge.f32.partialorder %v3107, 0.0
        %vm3124 = vcmp.ge.f32.partialorder %v3108, 0.0
        %vm3125 = vcmp.ge.f32.partialorder %v3109, 0.0
        %vm3126 = vcmp.ge.f32.partialorder %v3110, 0.0
        %vm3127 = vcmp.ge.f32.partialorder %v3111, 0.0
        %vm3128 = vcmp.ge.f32.partialorder %v3112, 0.0
        %vm3129 = vcmp.ge.f32.partialorder %v3113, 0.0
        %vm3130 = vcmp.ge.f32.partialorder %v3114, 0.0
        %vm3131 = vcmp.ge.f32.partialorder %v3115, 0.0
        %v3132 = vmul.f32 %v3100, 0.2
        %v3133 = vmul.f32 %v3101, 0.2
        %v3134 = vmul.f32 %v3102, 0.2
        %v3135 = vmul.f32 %v3103, 0.2
        %v3136 = vmul.f32 %v3104, 0.2
        %v3137 = vmul.f32 %v3105, 0.2
        %v3138 = vmul.f32 %v3106, 0.2
        %v3139 = vmul.f32 %v3107, 0.2
        %v3140 = vmul.f32 %v3108, 0.2
        %v3141 = vmul.f32 %v3109, 0.2
        %v3142 = vmul.f32 %v3110, 0.2
        %v3143 = vmul.f32 %v3111, 0.2
        %v3144 = vmul.f32 %v3112, 0.2
        %v3145 = vmul.f32 %v3113, 0.2
        %v3146 = vmul.f32 %v3114, 0.2
        %v3147 = vmul.f32 %v3115, 0.2
        %v3148 = vsel %vm3116, %v3100, %v3132
        %v3149 = vsel %vm3117, %v3101, %v3133
        %v3150 = vsel %vm3118, %v3102, %v3134
        %v3151 = vsel %vm3119, %v3103, %v3135
        %v3152 = vsel %vm3120, %v3104, %v3136
        %v3153 = vsel %vm3121, %v3105, %v3137
        %v3154 = vsel %vm3122, %v3106, %v3138
        %v3155 = vsel %vm3123, %v3107, %v3139
        %v3156 = vsel %vm3124, %v3108, %v3140
        %v3157 = vsel %vm3125, %v3109, %v3141
        %v3158 = vsel %vm3126, %v3110, %v3142
        %v3159 = vsel %vm3127, %v3111, %v3143
        %v3160 = vsel %vm3128, %v3112, %v3144
        %v3161 = vsel %vm3129, %v3113, %v3145
        %v3162 = vsel %vm3130, %v3114, %v3146
        %v3163 = vsel %vm3131, %v3115, %v3147
        %s3164 = sld [smem:[#allocation6 + $0xc]]
        %v3165 = vstv %s3164
        %v3166 = vmul.f32 %v3165, %v3148
        %v3167 = vmul.f32 %v3165, %v3149
        %v3168 = vmul.f32 %v3165, %v3150
        %v3169 = vmul.f32 %v3165, %v3151
        %v3170 = vmul.f32 %v3165, %v3152
        %v3171 = vmul.f32 %v3165, %v3153
        %v3172 = vmul.f32 %v3165, %v3154
        %v3173 = vmul.f32 %v3165, %v3155
        %v3174 = vmul.f32 %v3165, %v3156
        %v3175 = vmul.f32 %v3165, %v3157
        %v3176 = vmul.f32 %v3165, %v3158
        %v3177 = vmul.f32 %v3165, %v3159
        %v3178 = vmul.f32 %v3165, %v3160
        %v3179 = vmul.f32 %v3165, %v3161
        %v3180 = vmul.f32 %v3165, %v3162
        %v3181 = vmul.f32 %v3165, %v3163
        %v3182 = vadd.f32 %v3016, %v3166
        %v3183 = vadd.f32 %v3017, %v3167
        %v3184 = vadd.f32 %v3018, %v3168
        %v3185 = vadd.f32 %v3019, %v3169
        %v3186 = vadd.f32 %v3020, %v3170
        %v3187 = vadd.f32 %v3021, %v3171
        %v3188 = vadd.f32 %v3022, %v3172
        %v3189 = vadd.f32 %v3023, %v3173
        %v3190 = vadd.f32 %v3024, %v3174
        %v3191 = vadd.f32 %v3025, %v3175
        %v3192 = vadd.f32 %v3026, %v3176
        %v3193 = vadd.f32 %v3027, %v3177
        %v3194 = vadd.f32 %v3028, %v3178
        %v3195 = vadd.f32 %v3029, %v3179
        %v3196 = vadd.f32 %v3030, %v3180
        %v3197 = vadd.f32 %v3031, %v3181
        %3198 = vset.pattern.permute.xlu0 13
        %3199 = vperm.xlu0 %3198, %v1008
        %v3200 = vpop.permute.xlu0 %3199
        %3202 = vset.pattern.permute.xlu0 13
        %3203 = vperm.xlu0 %3202, %v1009
        %v3204 = vpop.permute.xlu0 %3203
        %3206 = vset.pattern.permute.xlu0 13
        %3207 = vperm.xlu0 %3206, %v1010
        %v3208 = vpop.permute.xlu0 %3207
        %3210 = vset.pattern.permute.xlu0 13
        %3211 = vperm.xlu0 %3210, %v1011
        %v3212 = vpop.permute.xlu0 %3211
        %3214 = vset.pattern.permute.xlu0 13
        %3215 = vperm.xlu0 %3214, %v1012
        %v3216 = vpop.permute.xlu0 %3215
        %3218 = vset.pattern.permute.xlu0 13
        %3219 = vperm.xlu0 %3218, %v1013
        %v3220 = vpop.permute.xlu0 %3219
        %3222 = vset.pattern.permute.xlu0 13
        %3223 = vperm.xlu0 %3222, %v1014
        %v3224 = vpop.permute.xlu0 %3223
        %3226 = vset.pattern.permute.xlu0 13
        %3227 = vperm.xlu0 %3226, %v1015
        %v3228 = vpop.permute.xlu0 %3227
        %3230 = vset.pattern.permute.xlu0 13
        %3231 = vperm.xlu0 %3230, %v1016
        %v3232 = vpop.permute.xlu0 %3231
        %3234 = vset.pattern.permute.xlu0 13
        %3235 = vperm.xlu0 %3234, %v1017
        %v3236 = vpop.permute.xlu0 %3235
        %3238 = vset.pattern.permute.xlu0 13
        %3239 = vperm.xlu0 %3238, %v1018
        %v3240 = vpop.permute.xlu0 %3239
        %3242 = vset.pattern.permute.xlu0 13
        %3243 = vperm.xlu0 %3242, %v1019
        %v3244 = vpop.permute.xlu0 %3243
        %3246 = vset.pattern.permute.xlu0 13
        %3247 = vperm.xlu0 %3246, %v1020
        %v3248 = vpop.permute.xlu0 %3247
        %3250 = vset.pattern.permute.xlu0 13
        %3251 = vperm.xlu0 %3250, %v1021
        %v3252 = vpop.permute.xlu0 %3251
        %3254 = vset.pattern.permute.xlu0 13
        %3255 = vperm.xlu0 %3254, %v1022
        %v3256 = vpop.permute.xlu0 %3255
        %3258 = vset.pattern.permute.xlu0 13
        %3259 = vperm.xlu0 %3258, %v1023
        %v3260 = vpop.permute.xlu0 %3259
        %v3262 = vlaneseq
        %v3263 = vshrl.u32 %v3262, 7
        %v3264 = vsub.s32 5, %v3263
        %v3265 = vrot.slane %v949, %v3264
        %v3266 = vadd.f32 %v3200, %v3265
        %v3267 = vadd.f32 %v3204, %v3265
        %v3268 = vadd.f32 %v3208, %v3265
        %v3269 = vadd.f32 %v3212, %v3265
        %v3270 = vadd.f32 %v3216, %v3265
        %v3271 = vadd.f32 %v3220, %v3265
        %v3272 = vadd.f32 %v3224, %v3265
        %v3273 = vadd.f32 %v3228, %v3265
        %v3274 = vadd.f32 %v3232, %v3265
        %v3275 = vadd.f32 %v3236, %v3265
        %v3276 = vadd.f32 %v3240, %v3265
        %v3277 = vadd.f32 %v3244, %v3265
        %v3278 = vadd.f32 %v3248, %v3265
        %v3279 = vadd.f32 %v3252, %v3265
        %v3280 = vadd.f32 %v3256, %v3265
        %v3281 = vadd.f32 %v3260, %v3265
        %vm3282 = vcmp.ge.f32.partialorder %v3266, 0.0
        %vm3283 = vcmp.ge.f32.partialorder %v3267, 0.0
        %vm3284 = vcmp.ge.f32.partialorder %v3268, 0.0
        %vm3285 = vcmp.ge.f32.partialorder %v3269, 0.0
        %vm3286 = vcmp.ge.f32.partialorder %v3270, 0.0
        %vm3287 = vcmp.ge.f32.partialorder %v3271, 0.0
        %vm3288 = vcmp.ge.f32.partialorder %v3272, 0.0
        %vm3289 = vcmp.ge.f32.partialorder %v3273, 0.0
        %vm3290 = vcmp.ge.f32.partialorder %v3274, 0.0
        %vm3291 = vcmp.ge.f32.partialorder %v3275, 0.0
        %vm3292 = vcmp.ge.f32.partialorder %v3276, 0.0
        %vm3293 = vcmp.ge.f32.partialorder %v3277, 0.0
        %vm3294 = vcmp.ge.f32.partialorder %v3278, 0.0
        %vm3295 = vcmp.ge.f32.partialorder %v3279, 0.0
        %vm3296 = vcmp.ge.f32.partialorder %v3280, 0.0
        %vm3297 = vcmp.ge.f32.partialorder %v3281, 0.0
        %v3298 = vmul.f32 %v3266, 0.2
        %v3299 = vmul.f32 %v3267, 0.2
        %v3300 = vmul.f32 %v3268, 0.2
        %v3301 = vmul.f32 %v3269, 0.2
        %v3302 = vmul.f32 %v3270, 0.2
        %v3303 = vmul.f32 %v3271, 0.2
        %v3304 = vmul.f32 %v3272, 0.2
        %v3305 = vmul.f32 %v3273, 0.2
        %v3306 = vmul.f32 %v3274, 0.2
        %v3307 = vmul.f32 %v3275, 0.2
        %v3308 = vmul.f32 %v3276, 0.2
        %v3309 = vmul.f32 %v3277, 0.2
        %v3310 = vmul.f32 %v3278, 0.2
        %v3311 = vmul.f32 %v3279, 0.2
        %v3312 = vmul.f32 %v3280, 0.2
        %v3313 = vmul.f32 %v3281, 0.2
        %v3314 = vsel %vm3282, %v3266, %v3298
        %v3315 = vsel %vm3283, %v3267, %v3299
        %v3316 = vsel %vm3284, %v3268, %v3300
        %v3317 = vsel %vm3285, %v3269, %v3301
        %v3318 = vsel %vm3286, %v3270, %v3302
        %v3319 = vsel %vm3287, %v3271, %v3303
        %v3320 = vsel %vm3288, %v3272, %v3304
        %v3321 = vsel %vm3289, %v3273, %v3305
        %v3322 = vsel %vm3290, %v3274, %v3306
        %v3323 = vsel %vm3291, %v3275, %v3307
        %v3324 = vsel %vm3292, %v3276, %v3308
        %v3325 = vsel %vm3293, %v3277, %v3309
        %v3326 = vsel %vm3294, %v3278, %v3310
        %v3327 = vsel %vm3295, %v3279, %v3311
        %v3328 = vsel %vm3296, %v3280, %v3312
        %v3329 = vsel %vm3297, %v3281, %v3313
        %s3330 = sld [smem:[#allocation6 + $0xd]]
        %v3331 = vstv %s3330
        %v3332 = vmul.f32 %v3331, %v3314
        %v3333 = vmul.f32 %v3331, %v3315
        %v3334 = vmul.f32 %v3331, %v3316
        %v3335 = vmul.f32 %v3331, %v3317
        %v3336 = vmul.f32 %v3331, %v3318
        %v3337 = vmul.f32 %v3331, %v3319
        %v3338 = vmul.f32 %v3331, %v3320
        %v3339 = vmul.f32 %v3331, %v3321
        %v3340 = vmul.f32 %v3331, %v3322
        %v3341 = vmul.f32 %v3331, %v3323
        %v3342 = vmul.f32 %v3331, %v3324
        %v3343 = vmul.f32 %v3331, %v3325
        %v3344 = vmul.f32 %v3331, %v3326
        %v3345 = vmul.f32 %v3331, %v3327
        %v3346 = vmul.f32 %v3331, %v3328
        %v3347 = vmul.f32 %v3331, %v3329
        %v3348 = vadd.f32 %v3182, %v3332
        %v3349 = vadd.f32 %v3183, %v3333
        %v3350 = vadd.f32 %v3184, %v3334
        %v3351 = vadd.f32 %v3185, %v3335
        %v3352 = vadd.f32 %v3186, %v3336
        %v3353 = vadd.f32 %v3187, %v3337
        %v3354 = vadd.f32 %v3188, %v3338
        %v3355 = vadd.f32 %v3189, %v3339
        %v3356 = vadd.f32 %v3190, %v3340
        %v3357 = vadd.f32 %v3191, %v3341
        %v3358 = vadd.f32 %v3192, %v3342
        %v3359 = vadd.f32 %v3193, %v3343
        %v3360 = vadd.f32 %v3194, %v3344
        %v3361 = vadd.f32 %v3195, %v3345
        %v3362 = vadd.f32 %v3196, %v3346
        %v3363 = vadd.f32 %v3197, %v3347
        %3364 = vset.pattern.permute.xlu0 14
        %3365 = vperm.xlu0 %3364, %v1008
        %v3366 = vpop.permute.xlu0 %3365
        %3368 = vset.pattern.permute.xlu0 14
        %3369 = vperm.xlu0 %3368, %v1009
        %v3370 = vpop.permute.xlu0 %3369
        %3372 = vset.pattern.permute.xlu0 14
        %3373 = vperm.xlu0 %3372, %v1010
        %v3374 = vpop.permute.xlu0 %3373
        %3376 = vset.pattern.permute.xlu0 14
        %3377 = vperm.xlu0 %3376, %v1011
        %v3378 = vpop.permute.xlu0 %3377
        %3380 = vset.pattern.permute.xlu0 14
        %3381 = vperm.xlu0 %3380, %v1012
        %v3382 = vpop.permute.xlu0 %3381
        %3384 = vset.pattern.permute.xlu0 14
        %3385 = vperm.xlu0 %3384, %v1013
        %v3386 = vpop.permute.xlu0 %3385
        %3388 = vset.pattern.permute.xlu0 14
        %3389 = vperm.xlu0 %3388, %v1014
        %v3390 = vpop.permute.xlu0 %3389
        %3392 = vset.pattern.permute.xlu0 14
        %3393 = vperm.xlu0 %3392, %v1015
        %v3394 = vpop.permute.xlu0 %3393
        %3396 = vset.pattern.permute.xlu0 14
        %3397 = vperm.xlu0 %3396, %v1016
        %v3398 = vpop.permute.xlu0 %3397
        %3400 = vset.pattern.permute.xlu0 14
        %3401 = vperm.xlu0 %3400, %v1017
        %v3402 = vpop.permute.xlu0 %3401
        %3404 = vset.pattern.permute.xlu0 14
        %3405 = vperm.xlu0 %3404, %v1018
        %v3406 = vpop.permute.xlu0 %3405
        %3408 = vset.pattern.permute.xlu0 14
        %3409 = vperm.xlu0 %3408, %v1019
        %v3410 = vpop.permute.xlu0 %3409
        %3412 = vset.pattern.permute.xlu0 14
        %3413 = vperm.xlu0 %3412, %v1020
        %v3414 = vpop.permute.xlu0 %3413
        %3416 = vset.pattern.permute.xlu0 14
        %3417 = vperm.xlu0 %3416, %v1021
        %v3418 = vpop.permute.xlu0 %3417
        %3420 = vset.pattern.permute.xlu0 14
        %3421 = vperm.xlu0 %3420, %v1022
        %v3422 = vpop.permute.xlu0 %3421
        %3424 = vset.pattern.permute.xlu0 14
        %3425 = vperm.xlu0 %3424, %v1023
        %v3426 = vpop.permute.xlu0 %3425
        %v3428 = vlaneseq
        %v3429 = vshrl.u32 %v3428, 7
        %v3430 = vsub.s32 6, %v3429
        %v3431 = vrot.slane %v949, %v3430
        %v3432 = vadd.f32 %v3366, %v3431
        %v3433 = vadd.f32 %v3370, %v3431
        %v3434 = vadd.f32 %v3374, %v3431
        %v3435 = vadd.f32 %v3378, %v3431
        %v3436 = vadd.f32 %v3382, %v3431
        %v3437 = vadd.f32 %v3386, %v3431
        %v3438 = vadd.f32 %v3390, %v3431
        %v3439 = vadd.f32 %v3394, %v3431
        %v3440 = vadd.f32 %v3398, %v3431
        %v3441 = vadd.f32 %v3402, %v3431
        %v3442 = vadd.f32 %v3406, %v3431
        %v3443 = vadd.f32 %v3410, %v3431
        %v3444 = vadd.f32 %v3414, %v3431
        %v3445 = vadd.f32 %v3418, %v3431
        %v3446 = vadd.f32 %v3422, %v3431
        %v3447 = vadd.f32 %v3426, %v3431
        %vm3448 = vcmp.ge.f32.partialorder %v3432, 0.0
        %vm3449 = vcmp.ge.f32.partialorder %v3433, 0.0
        %vm3450 = vcmp.ge.f32.partialorder %v3434, 0.0
        %vm3451 = vcmp.ge.f32.partialorder %v3435, 0.0
        %vm3452 = vcmp.ge.f32.partialorder %v3436, 0.0
        %vm3453 = vcmp.ge.f32.partialorder %v3437, 0.0
        %vm3454 = vcmp.ge.f32.partialorder %v3438, 0.0
        %vm3455 = vcmp.ge.f32.partialorder %v3439, 0.0
        %vm3456 = vcmp.ge.f32.partialorder %v3440, 0.0
        %vm3457 = vcmp.ge.f32.partialorder %v3441, 0.0
        %vm3458 = vcmp.ge.f32.partialorder %v3442, 0.0
        %vm3459 = vcmp.ge.f32.partialorder %v3443, 0.0
        %vm3460 = vcmp.ge.f32.partialorder %v3444, 0.0
        %vm3461 = vcmp.ge.f32.partialorder %v3445, 0.0
        %vm3462 = vcmp.ge.f32.partialorder %v3446, 0.0
        %vm3463 = vcmp.ge.f32.partialorder %v3447, 0.0
        %v3464 = vmul.f32 %v3432, 0.2
        %v3465 = vmul.f32 %v3433, 0.2
        %v3466 = vmul.f32 %v3434, 0.2
        %v3467 = vmul.f32 %v3435, 0.2
        %v3468 = vmul.f32 %v3436, 0.2
        %v3469 = vmul.f32 %v3437, 0.2
        %v3470 = vmul.f32 %v3438, 0.2
        %v3471 = vmul.f32 %v3439, 0.2
        %v3472 = vmul.f32 %v3440, 0.2
        %v3473 = vmul.f32 %v3441, 0.2
        %v3474 = vmul.f32 %v3442, 0.2
        %v3475 = vmul.f32 %v3443, 0.2
        %v3476 = vmul.f32 %v3444, 0.2
        %v3477 = vmul.f32 %v3445, 0.2
        %v3478 = vmul.f32 %v3446, 0.2
        %v3479 = vmul.f32 %v3447, 0.2
        %v3480 = vsel %vm3448, %v3432, %v3464
        %v3481 = vsel %vm3449, %v3433, %v3465
        %v3482 = vsel %vm3450, %v3434, %v3466
        %v3483 = vsel %vm3451, %v3435, %v3467
        %v3484 = vsel %vm3452, %v3436, %v3468
        %v3485 = vsel %vm3453, %v3437, %v3469
        %v3486 = vsel %vm3454, %v3438, %v3470
        %v3487 = vsel %vm3455, %v3439, %v3471
        %v3488 = vsel %vm3456, %v3440, %v3472
        %v3489 = vsel %vm3457, %v3441, %v3473
        %v3490 = vsel %vm3458, %v3442, %v3474
        %v3491 = vsel %vm3459, %v3443, %v3475
        %v3492 = vsel %vm3460, %v3444, %v3476
        %v3493 = vsel %vm3461, %v3445, %v3477
        %v3494 = vsel %vm3462, %v3446, %v3478
        %v3495 = vsel %vm3463, %v3447, %v3479
        %s3496 = sld [smem:[#allocation6 + $0xe]]
        %v3497 = vstv %s3496
        %v3498 = vmul.f32 %v3497, %v3480
        %v3499 = vmul.f32 %v3497, %v3481
        %v3500 = vmul.f32 %v3497, %v3482
        %v3501 = vmul.f32 %v3497, %v3483
        %v3502 = vmul.f32 %v3497, %v3484
        %v3503 = vmul.f32 %v3497, %v3485
        %v3504 = vmul.f32 %v3497, %v3486
        %v3505 = vmul.f32 %v3497, %v3487
        %v3506 = vmul.f32 %v3497, %v3488
        %v3507 = vmul.f32 %v3497, %v3489
        %v3508 = vmul.f32 %v3497, %v3490
        %v3509 = vmul.f32 %v3497, %v3491
        %v3510 = vmul.f32 %v3497, %v3492
        %v3511 = vmul.f32 %v3497, %v3493
        %v3512 = vmul.f32 %v3497, %v3494
        %v3513 = vmul.f32 %v3497, %v3495
        %v3514 = vadd.f32 %v3348, %v3498
        %v3515 = vadd.f32 %v3349, %v3499
        %v3516 = vadd.f32 %v3350, %v3500
        %v3517 = vadd.f32 %v3351, %v3501
        %v3518 = vadd.f32 %v3352, %v3502
        %v3519 = vadd.f32 %v3353, %v3503
        %v3520 = vadd.f32 %v3354, %v3504
        %v3521 = vadd.f32 %v3355, %v3505
        %v3522 = vadd.f32 %v3356, %v3506
        %v3523 = vadd.f32 %v3357, %v3507
        %v3524 = vadd.f32 %v3358, %v3508
        %v3525 = vadd.f32 %v3359, %v3509
        %v3526 = vadd.f32 %v3360, %v3510
        %v3527 = vadd.f32 %v3361, %v3511
        %v3528 = vadd.f32 %v3362, %v3512
        %v3529 = vadd.f32 %v3363, %v3513
        %3530 = vset.pattern.permute.xlu0 15
        %3531 = vperm.xlu0 %3530, %v1008
        %v3532 = vpop.permute.xlu0 %3531
        %3534 = vset.pattern.permute.xlu0 15
        %3535 = vperm.xlu0 %3534, %v1009
        %v3536 = vpop.permute.xlu0 %3535
        %3538 = vset.pattern.permute.xlu0 15
        %3539 = vperm.xlu0 %3538, %v1010
        %v3540 = vpop.permute.xlu0 %3539
        %3542 = vset.pattern.permute.xlu0 15
        %3543 = vperm.xlu0 %3542, %v1011
        %v3544 = vpop.permute.xlu0 %3543
        %3546 = vset.pattern.permute.xlu0 15
        %3547 = vperm.xlu0 %3546, %v1012
        %v3548 = vpop.permute.xlu0 %3547
        %3550 = vset.pattern.permute.xlu0 15
        %3551 = vperm.xlu0 %3550, %v1013
        %v3552 = vpop.permute.xlu0 %3551
        %3554 = vset.pattern.permute.xlu0 15
        %3555 = vperm.xlu0 %3554, %v1014
        %v3556 = vpop.permute.xlu0 %3555
        %3558 = vset.pattern.permute.xlu0 15
        %3559 = vperm.xlu0 %3558, %v1015
        %v3560 = vpop.permute.xlu0 %3559
        %3562 = vset.pattern.permute.xlu0 15
        %3563 = vperm.xlu0 %3562, %v1016
        %v3564 = vpop.permute.xlu0 %3563
        %3566 = vset.pattern.permute.xlu0 15
        %3567 = vperm.xlu0 %3566, %v1017
        %v3568 = vpop.permute.xlu0 %3567
        %3570 = vset.pattern.permute.xlu0 15
        %3571 = vperm.xlu0 %3570, %v1018
        %v3572 = vpop.permute.xlu0 %3571
        %3574 = vset.pattern.permute.xlu0 15
        %3575 = vperm.xlu0 %3574, %v1019
        %v3576 = vpop.permute.xlu0 %3575
        %3578 = vset.pattern.permute.xlu0 15
        %3579 = vperm.xlu0 %3578, %v1020
        %v3580 = vpop.permute.xlu0 %3579
        %3582 = vset.pattern.permute.xlu0 15
        %3583 = vperm.xlu0 %3582, %v1021
        %v3584 = vpop.permute.xlu0 %3583
        %3586 = vset.pattern.permute.xlu0 15
        %3587 = vperm.xlu0 %3586, %v1022
        %v3588 = vpop.permute.xlu0 %3587
        %3590 = vset.pattern.permute.xlu0 15
        %3591 = vperm.xlu0 %3590, %v1023
        %v3592 = vpop.permute.xlu0 %3591
        %v3594 = vlaneseq
        %v3595 = vshrl.u32 %v3594, 7
        %v3596 = vsub.s32 7, %v3595
        %v3597 = vrot.slane %v949, %v3596
        %v3598 = vadd.f32 %v3532, %v3597
        %v3599 = vadd.f32 %v3536, %v3597
        %v3600 = vadd.f32 %v3540, %v3597
        %v3601 = vadd.f32 %v3544, %v3597
        %v3602 = vadd.f32 %v3548, %v3597
        %v3603 = vadd.f32 %v3552, %v3597
        %v3604 = vadd.f32 %v3556, %v3597
        %v3605 = vadd.f32 %v3560, %v3597
        %v3606 = vadd.f32 %v3564, %v3597
        %v3607 = vadd.f32 %v3568, %v3597
        %v3608 = vadd.f32 %v3572, %v3597
        %v3609 = vadd.f32 %v3576, %v3597
        %v3610 = vadd.f32 %v3580, %v3597
        %v3611 = vadd.f32 %v3584, %v3597
        %v3612 = vadd.f32 %v3588, %v3597
        %v3613 = vadd.f32 %v3592, %v3597
        %vm3614 = vcmp.ge.f32.partialorder %v3598, 0.0
        %vm3615 = vcmp.ge.f32.partialorder %v3599, 0.0
        %vm3616 = vcmp.ge.f32.partialorder %v3600, 0.0
        %vm3617 = vcmp.ge.f32.partialorder %v3601, 0.0
        %vm3618 = vcmp.ge.f32.partialorder %v3602, 0.0
        %vm3619 = vcmp.ge.f32.partialorder %v3603, 0.0
        %vm3620 = vcmp.ge.f32.partialorder %v3604, 0.0
        %vm3621 = vcmp.ge.f32.partialorder %v3605, 0.0
        %vm3622 = vcmp.ge.f32.partialorder %v3606, 0.0
        %vm3623 = vcmp.ge.f32.partialorder %v3607, 0.0
        %vm3624 = vcmp.ge.f32.partialorder %v3608, 0.0
        %vm3625 = vcmp.ge.f32.partialorder %v3609, 0.0
        %vm3626 = vcmp.ge.f32.partialorder %v3610, 0.0
        %vm3627 = vcmp.ge.f32.partialorder %v3611, 0.0
        %vm3628 = vcmp.ge.f32.partialorder %v3612, 0.0
        %vm3629 = vcmp.ge.f32.partialorder %v3613, 0.0
        %v3630 = vmul.f32 %v3598, 0.2
        %v3631 = vmul.f32 %v3599, 0.2
        %v3632 = vmul.f32 %v3600, 0.2
        %v3633 = vmul.f32 %v3601, 0.2
        %v3634 = vmul.f32 %v3602, 0.2
        %v3635 = vmul.f32 %v3603, 0.2
        %v3636 = vmul.f32 %v3604, 0.2
        %v3637 = vmul.f32 %v3605, 0.2
        %v3638 = vmul.f32 %v3606, 0.2
        %v3639 = vmul.f32 %v3607, 0.2
        %v3640 = vmul.f32 %v3608, 0.2
        %v3641 = vmul.f32 %v3609, 0.2
        %v3642 = vmul.f32 %v3610, 0.2
        %v3643 = vmul.f32 %v3611, 0.2
        %v3644 = vmul.f32 %v3612, 0.2
        %v3645 = vmul.f32 %v3613, 0.2
        %v3646 = vsel %vm3614, %v3598, %v3630
        %v3647 = vsel %vm3615, %v3599, %v3631
        %v3648 = vsel %vm3616, %v3600, %v3632
        %v3649 = vsel %vm3617, %v3601, %v3633
        %v3650 = vsel %vm3618, %v3602, %v3634
        %v3651 = vsel %vm3619, %v3603, %v3635
        %v3652 = vsel %vm3620, %v3604, %v3636
        %v3653 = vsel %vm3621, %v3605, %v3637
        %v3654 = vsel %vm3622, %v3606, %v3638
        %v3655 = vsel %vm3623, %v3607, %v3639
        %v3656 = vsel %vm3624, %v3608, %v3640
        %v3657 = vsel %vm3625, %v3609, %v3641
        %v3658 = vsel %vm3626, %v3610, %v3642
        %v3659 = vsel %vm3627, %v3611, %v3643
        %v3660 = vsel %vm3628, %v3612, %v3644
        %v3661 = vsel %vm3629, %v3613, %v3645
        %s3662 = sld [smem:[#allocation6 + $0xf]]
        %v3663 = vstv %s3662
        %v3664 = vmul.f32 %v3663, %v3646
        %v3665 = vmul.f32 %v3663, %v3647
        %v3666 = vmul.f32 %v3663, %v3648
        %v3667 = vmul.f32 %v3663, %v3649
        %v3668 = vmul.f32 %v3663, %v3650
        %v3669 = vmul.f32 %v3663, %v3651
        %v3670 = vmul.f32 %v3663, %v3652
        %v3671 = vmul.f32 %v3663, %v3653
        %v3672 = vmul.f32 %v3663, %v3654
        %v3673 = vmul.f32 %v3663, %v3655
        %v3674 = vmul.f32 %v3663, %v3656
        %v3675 = vmul.f32 %v3663, %v3657
        %v3676 = vmul.f32 %v3663, %v3658
        %v3677 = vmul.f32 %v3663, %v3659
        %v3678 = vmul.f32 %v3663, %v3660
        %v3679 = vmul.f32 %v3663, %v3661
        %v3680 = vadd.f32 %v3514, %v3664
        %v3681 = vadd.f32 %v3515, %v3665
        %v3682 = vadd.f32 %v3516, %v3666
        %v3683 = vadd.f32 %v3517, %v3667
        %v3684 = vadd.f32 %v3518, %v3668
        %v3685 = vadd.f32 %v3519, %v3669
        %v3686 = vadd.f32 %v3520, %v3670
        %v3687 = vadd.f32 %v3521, %v3671
        %v3688 = vadd.f32 %v3522, %v3672
        %v3689 = vadd.f32 %v3523, %v3673
        %v3690 = vadd.f32 %v3524, %v3674
        %v3691 = vadd.f32 %v3525, %v3675
        %v3692 = vadd.f32 %v3526, %v3676
        %v3693 = vadd.f32 %v3527, %v3677
        %v3694 = vadd.f32 %v3528, %v3678
        %v3695 = vadd.f32 %v3529, %v3679
        %v3696 = vsel %vm976, 65537, 0
        %v3697 = vsel %vm977, 65537, 0
        %v3698 = vsel %vm978, 65537, 0
        %v3699 = vsel %vm979, 65537, 0
        %v3700 = vsel %vm980, 65537, 0
        %v3701 = vsel %vm981, 65537, 0
        %v3702 = vsel %vm982, 65537, 0
        %v3703 = vsel %vm983, 65537, 0
        %v3704 = vsel %vm984, 65537, 0
        %v3705 = vsel %vm985, 65537, 0
        %v3706 = vsel %vm986, 65537, 0
        %v3707 = vsel %vm987, 65537, 0
        %v3708 = vsel %vm988, 65537, 0
        %v3709 = vsel %vm989, 65537, 0
        %v3710 = vsel %vm990, 65537, 0
        %v3711 = vsel %vm991, 65537, 0
        %v3712 = vunpack.c.l.b16 %v3696
        %v3713 = vunpack.c.l.b16 %v3697
        %v3714 = vunpack.c.l.b16 %v3698
        %v3715 = vunpack.c.l.b16 %v3699
        %v3716 = vunpack.c.l.b16 %v3700
        %v3717 = vunpack.c.l.b16 %v3701
        %v3718 = vunpack.c.l.b16 %v3702
        %v3719 = vunpack.c.l.b16 %v3703
        %v3720 = vunpack.c.l.b16 %v3704
        %v3721 = vunpack.c.l.b16 %v3705
        %v3722 = vunpack.c.l.b16 %v3706
        %v3723 = vunpack.c.l.b16 %v3707
        %v3724 = vunpack.c.l.b16 %v3708
        %v3725 = vunpack.c.l.b16 %v3709
        %v3726 = vunpack.c.l.b16 %v3710
        %v3727 = vunpack.c.l.b16 %v3711
        %vm3728 = vcmp.ne.s32.totalorder %v3712, 0
        %vm3729 = vcmp.ne.s32.totalorder %v3713, 0
        %vm3730 = vcmp.ne.s32.totalorder %v3714, 0
        %vm3731 = vcmp.ne.s32.totalorder %v3715, 0
        %vm3732 = vcmp.ne.s32.totalorder %v3716, 0
        %vm3733 = vcmp.ne.s32.totalorder %v3717, 0
        %vm3734 = vcmp.ne.s32.totalorder %v3718, 0
        %vm3735 = vcmp.ne.s32.totalorder %v3719, 0
        %vm3736 = vcmp.ne.s32.totalorder %v3720, 0
        %vm3737 = vcmp.ne.s32.totalorder %v3721, 0
        %vm3738 = vcmp.ne.s32.totalorder %v3722, 0
        %vm3739 = vcmp.ne.s32.totalorder %v3723, 0
        %vm3740 = vcmp.ne.s32.totalorder %v3724, 0
        %vm3741 = vcmp.ne.s32.totalorder %v3725, 0
        %vm3742 = vcmp.ne.s32.totalorder %v3726, 0
        %vm3743 = vcmp.ne.s32.totalorder %v3727, 0
        %v3744 = vsel %vm3728, %v3680, -1e+30
        %v3745 = vsel %vm3729, %v3681, -1e+30
        %v3746 = vsel %vm3730, %v3682, -1e+30
        %v3747 = vsel %vm3731, %v3683, -1e+30
        %v3748 = vsel %vm3732, %v3684, -1e+30
        %v3749 = vsel %vm3733, %v3685, -1e+30
        %v3750 = vsel %vm3734, %v3686, -1e+30
        %v3751 = vsel %vm3735, %v3687, -1e+30
        %v3752 = vsel %vm3736, %v3688, -1e+30
        %v3753 = vsel %vm3737, %v3689, -1e+30
        %v3754 = vsel %vm3738, %v3690, -1e+30
        %v3755 = vsel %vm3739, %v3691, -1e+30
        %v3756 = vsel %vm3740, %v3692, -1e+30
        %v3757 = vsel %vm3741, %v3693, -1e+30
        %v3758 = vsel %vm3742, %v3694, -1e+30
        %v3759 = vsel %vm3743, %v3695, -1e+30
        %v3760 = vld [vmem:[#allocation3] sm:$0xff]
        %v3761 = vld [vmem:[#allocation3 + $0x8] sm:$0xff]
        %v3762 = vld [vmem:[#allocation3 + $0x10] sm:$0xff]
        %v3763 = vld [vmem:[#allocation3 + $0x18] sm:$0xff]
        %v3764 = vld [vmem:[#allocation3 + $0x20] sm:$0xff]
        %v3765 = vld [vmem:[#allocation3 + $0x28] sm:$0xff]
        %v3766 = vld [vmem:[#allocation3 + $0x30] sm:$0xff]
        %v3767 = vld [vmem:[#allocation3 + $0x38] sm:$0xff]
        %v3768 = vld [vmem:[#allocation3 + $0x40] sm:$0xff]
        %v3769 = vld [vmem:[#allocation3 + $0x48] sm:$0xff]
        %v3770 = vld [vmem:[#allocation3 + $0x50] sm:$0xff]
        %v3771 = vld [vmem:[#allocation3 + $0x58] sm:$0xff]
        %v3772 = vld [vmem:[#allocation3 + $0x60] sm:$0xff]
        %v3773 = vld [vmem:[#allocation3 + $0x68] sm:$0xff]
        %v3774 = vld [vmem:[#allocation3 + $0x70] sm:$0xff]
        %v3775 = vld [vmem:[#allocation3 + $0x78] sm:$0xff]
        %3776 = vmax.xlane.f32.xlu0 %v3744
        %v3777 = vpop.xlane.xlu0 %3776
        %3778 = vmax.xlane.f32.xlu0 %v3745
        %v3779 = vpop.xlane.xlu0 %3778
        %3780 = vmax.xlane.f32.xlu0 %v3746
        %v3781 = vpop.xlane.xlu0 %3780
        %3782 = vmax.xlane.f32.xlu0 %v3747
        %v3783 = vpop.xlane.xlu0 %3782
        %3784 = vmax.xlane.f32.xlu0 %v3748
        %v3785 = vpop.xlane.xlu0 %3784
        %3786 = vmax.xlane.f32.xlu0 %v3749
        %v3787 = vpop.xlane.xlu0 %3786
        %3788 = vmax.xlane.f32.xlu0 %v3750
        %v3789 = vpop.xlane.xlu0 %3788
        %3790 = vmax.xlane.f32.xlu0 %v3751
        %v3791 = vpop.xlane.xlu0 %3790
        %3792 = vmax.xlane.f32.xlu0 %v3752
        %v3793 = vpop.xlane.xlu0 %3792
        %3794 = vmax.xlane.f32.xlu0 %v3753
        %v3795 = vpop.xlane.xlu0 %3794
        %3796 = vmax.xlane.f32.xlu0 %v3754
        %v3797 = vpop.xlane.xlu0 %3796
        %3798 = vmax.xlane.f32.xlu0 %v3755
        %v3799 = vpop.xlane.xlu0 %3798
        %3800 = vmax.xlane.f32.xlu0 %v3756
        %v3801 = vpop.xlane.xlu0 %3800
        %3802 = vmax.xlane.f32.xlu0 %v3757
        %v3803 = vpop.xlane.xlu0 %3802
        %3804 = vmax.xlane.f32.xlu0 %v3758
        %v3805 = vpop.xlane.xlu0 %3804
        %3806 = vmax.xlane.f32.xlu0 %v3759
        %v3807 = vpop.xlane.xlu0 %3806
        %v3808 = vmax.f32 %v3760, %v3777
        %v3809 = vmax.f32 %v3761, %v3779
        %v3810 = vmax.f32 %v3762, %v3781
        %v3811 = vmax.f32 %v3763, %v3783
        %v3812 = vmax.f32 %v3764, %v3785
        %v3813 = vmax.f32 %v3765, %v3787
        %v3814 = vmax.f32 %v3766, %v3789
        %v3815 = vmax.f32 %v3767, %v3791
        %v3816 = vmax.f32 %v3768, %v3793
        %v3817 = vmax.f32 %v3769, %v3795
        %v3818 = vmax.f32 %v3770, %v3797
        %v3819 = vmax.f32 %v3771, %v3799
        %v3820 = vmax.f32 %v3772, %v3801
        %v3821 = vmax.f32 %v3773, %v3803
        %v3822 = vmax.f32 %v3774, %v3805
        %v3823 = vmax.f32 %v3775, %v3807
        %v3824 = vsub.f32 %v3760, %v3808
        %v3825 = vsub.f32 %v3761, %v3809
        %v3826 = vsub.f32 %v3762, %v3810
        %v3827 = vsub.f32 %v3763, %v3811
        %v3828 = vsub.f32 %v3764, %v3812
        %v3829 = vsub.f32 %v3765, %v3813
        %v3830 = vsub.f32 %v3766, %v3814
        %v3831 = vsub.f32 %v3767, %v3815
        %v3832 = vsub.f32 %v3768, %v3816
        %v3833 = vsub.f32 %v3769, %v3817
        %v3834 = vsub.f32 %v3770, %v3818
        %v3835 = vsub.f32 %v3771, %v3819
        %v3836 = vsub.f32 %v3772, %v3820
        %v3837 = vsub.f32 %v3773, %v3821
        %v3838 = vsub.f32 %v3774, %v3822
        %v3839 = vsub.f32 %v3775, %v3823
        %v3840 = vmul.f32 %v3824, 1.442695
        %v3841 = vpow.pop %v3840
        %v3842 = vmul.f32 %v3825, 1.442695
        %v3843 = vpow.pop %v3842
        %v3844 = vmul.f32 %v3826, 1.442695
        %v3845 = vpow.pop %v3844
        %v3846 = vmul.f32 %v3827, 1.442695
        %v3847 = vpow.pop %v3846
        %v3848 = vmul.f32 %v3828, 1.442695
        %v3849 = vpow.pop %v3848
        %v3850 = vmul.f32 %v3829, 1.442695
        %v3851 = vpow.pop %v3850
        %v3852 = vmul.f32 %v3830, 1.442695
        %v3853 = vpow.pop %v3852
        %v3854 = vmul.f32 %v3831, 1.442695
        %v3855 = vpow.pop %v3854
        %v3856 = vmul.f32 %v3832, 1.442695
        %v3857 = vpow.pop %v3856
        %v3858 = vmul.f32 %v3833, 1.442695
        %v3859 = vpow.pop %v3858
        %v3860 = vmul.f32 %v3834, 1.442695
        %v3861 = vpow.pop %v3860
        %v3862 = vmul.f32 %v3835, 1.442695
        %v3863 = vpow.pop %v3862
        %v3864 = vmul.f32 %v3836, 1.442695
        %v3865 = vpow.pop %v3864
        %v3866 = vmul.f32 %v3837, 1.442695
        %v3867 = vpow.pop %v3866
        %v3868 = vmul.f32 %v3838, 1.442695
        %v3869 = vpow.pop %v3868
        %v3870 = vmul.f32 %v3839, 1.442695
        %v3871 = vpow.pop %v3870
        %3873 = vset.pattern.permute.xlu0 0
        %3874 = vperm.xlu0 %3873, %v3808
        %v3875 = vpop.permute.xlu0 %3874
        %3878 = vset.pattern.permute.xlu0 0
        %3879 = vperm.xlu0 %3878, %v3809
        %v3880 = vpop.permute.xlu0 %3879
        %3883 = vset.pattern.permute.xlu0 0
        %3884 = vperm.xlu0 %3883, %v3810
        %v3885 = vpop.permute.xlu0 %3884
        %3888 = vset.pattern.permute.xlu0 0
        %3889 = vperm.xlu0 %3888, %v3811
        %v3890 = vpop.permute.xlu0 %3889
        %3893 = vset.pattern.permute.xlu0 0
        %3894 = vperm.xlu0 %3893, %v3812
        %v3895 = vpop.permute.xlu0 %3894
        %3898 = vset.pattern.permute.xlu0 0
        %3899 = vperm.xlu0 %3898, %v3813
        %v3900 = vpop.permute.xlu0 %3899
        %3903 = vset.pattern.permute.xlu0 0
        %3904 = vperm.xlu0 %3903, %v3814
        %v3905 = vpop.permute.xlu0 %3904
        %3908 = vset.pattern.permute.xlu0 0
        %3909 = vperm.xlu0 %3908, %v3815
        %v3910 = vpop.permute.xlu0 %3909
        %3913 = vset.pattern.permute.xlu0 0
        %3914 = vperm.xlu0 %3913, %v3816
        %v3915 = vpop.permute.xlu0 %3914
        %3918 = vset.pattern.permute.xlu0 0
        %3919 = vperm.xlu0 %3918, %v3817
        %v3920 = vpop.permute.xlu0 %3919
        %3923 = vset.pattern.permute.xlu0 0
        %3924 = vperm.xlu0 %3923, %v3818
        %v3925 = vpop.permute.xlu0 %3924
        %3928 = vset.pattern.permute.xlu0 0
        %3929 = vperm.xlu0 %3928, %v3819
        %v3930 = vpop.permute.xlu0 %3929
        %3933 = vset.pattern.permute.xlu0 0
        %3934 = vperm.xlu0 %3933, %v3820
        %v3935 = vpop.permute.xlu0 %3934
        %3938 = vset.pattern.permute.xlu0 0
        %3939 = vperm.xlu0 %3938, %v3821
        %v3940 = vpop.permute.xlu0 %3939
        %3943 = vset.pattern.permute.xlu0 0
        %3944 = vperm.xlu0 %3943, %v3822
        %v3945 = vpop.permute.xlu0 %3944
        %3948 = vset.pattern.permute.xlu0 0
        %3949 = vperm.xlu0 %3948, %v3823
        %v3950 = vpop.permute.xlu0 %3949
        %v3952 = vsub.f32 %v3744, %v3875
        %v3953 = vsub.f32 %v3745, %v3880
        %v3954 = vsub.f32 %v3746, %v3885
        %v3955 = vsub.f32 %v3747, %v3890
        %v3956 = vsub.f32 %v3748, %v3895
        %v3957 = vsub.f32 %v3749, %v3900
        %v3958 = vsub.f32 %v3750, %v3905
        %v3959 = vsub.f32 %v3751, %v3910
        %v3960 = vsub.f32 %v3752, %v3915
        %v3961 = vsub.f32 %v3753, %v3920
        %v3962 = vsub.f32 %v3754, %v3925
        %v3963 = vsub.f32 %v3755, %v3930
        %v3964 = vsub.f32 %v3756, %v3935
        %v3965 = vsub.f32 %v3757, %v3940
        %v3966 = vsub.f32 %v3758, %v3945
        %v3967 = vsub.f32 %v3759, %v3950
        %v3968 = vmul.f32 %v3952, 1.442695
        %v3969 = vpow.pop %v3968
        %v3970 = vmul.f32 %v3953, 1.442695
        %v3971 = vpow.pop %v3970
        %v3972 = vmul.f32 %v3954, 1.442695
        %v3973 = vpow.pop %v3972
        %v3974 = vmul.f32 %v3955, 1.442695
        %v3975 = vpow.pop %v3974
        %v3976 = vmul.f32 %v3956, 1.442695
        %v3977 = vpow.pop %v3976
        %v3978 = vmul.f32 %v3957, 1.442695
        %v3979 = vpow.pop %v3978
        %v3980 = vmul.f32 %v3958, 1.442695
        %v3981 = vpow.pop %v3980
        %v3982 = vmul.f32 %v3959, 1.442695
        %v3983 = vpow.pop %v3982
        %v3984 = vmul.f32 %v3960, 1.442695
        %v3985 = vpow.pop %v3984
        %v3986 = vmul.f32 %v3961, 1.442695
        %v3987 = vpow.pop %v3986
        %v3988 = vmul.f32 %v3962, 1.442695
        %v3989 = vpow.pop %v3988
        %v3990 = vmul.f32 %v3963, 1.442695
        %v3991 = vpow.pop %v3990
        %v3992 = vmul.f32 %v3964, 1.442695
        %v3993 = vpow.pop %v3992
        %v3994 = vmul.f32 %v3965, 1.442695
        %v3995 = vpow.pop %v3994
        %v3996 = vmul.f32 %v3966, 1.442695
        %v3997 = vpow.pop %v3996
        %v3998 = vmul.f32 %v3967, 1.442695
        %v3999 = vpow.pop %v3998
        %v4000 = vsel %vm3728, %v3969, 0.0
        %v4001 = vsel %vm3729, %v3971, 0.0
        %v4002 = vsel %vm3730, %v3973, 0.0
        %v4003 = vsel %vm3731, %v3975, 0.0
        %v4004 = vsel %vm3732, %v3977, 0.0
        %v4005 = vsel %vm3733, %v3979, 0.0
        %v4006 = vsel %vm3734, %v3981, 0.0
        %v4007 = vsel %vm3735, %v3983, 0.0
        %v4008 = vsel %vm3736, %v3985, 0.0
        %v4009 = vsel %vm3737, %v3987, 0.0
        %v4010 = vsel %vm3738, %v3989, 0.0
        %v4011 = vsel %vm3739, %v3991, 0.0
        %v4012 = vsel %vm3740, %v3993, 0.0
        %v4013 = vsel %vm3741, %v3995, 0.0
        %v4014 = vsel %vm3742, %v3997, 0.0
        %v4015 = vsel %vm3743, %v3999, 0.0
        %v4016 = vld [vmem:[#allocation4] sm:$0xff]
        %v4017 = vld [vmem:[#allocation4 + $0x8] sm:$0xff]
        %v4018 = vld [vmem:[#allocation4 + $0x10] sm:$0xff]
        %v4019 = vld [vmem:[#allocation4 + $0x18] sm:$0xff]
        %v4020 = vld [vmem:[#allocation4 + $0x20] sm:$0xff]
        %v4021 = vld [vmem:[#allocation4 + $0x28] sm:$0xff]
        %v4022 = vld [vmem:[#allocation4 + $0x30] sm:$0xff]
        %v4023 = vld [vmem:[#allocation4 + $0x38] sm:$0xff]
        %v4024 = vld [vmem:[#allocation4 + $0x40] sm:$0xff]
        %v4025 = vld [vmem:[#allocation4 + $0x48] sm:$0xff]
        %v4026 = vld [vmem:[#allocation4 + $0x50] sm:$0xff]
        %v4027 = vld [vmem:[#allocation4 + $0x58] sm:$0xff]
        %v4028 = vld [vmem:[#allocation4 + $0x60] sm:$0xff]
        %v4029 = vld [vmem:[#allocation4 + $0x68] sm:$0xff]
        %v4030 = vld [vmem:[#allocation4 + $0x70] sm:$0xff]
        %v4031 = vld [vmem:[#allocation4 + $0x78] sm:$0xff]
        %v4032 = vmul.f32 %v3841, %v4016
        %v4033 = vmul.f32 %v3843, %v4017
        %v4034 = vmul.f32 %v3845, %v4018
        %v4035 = vmul.f32 %v3847, %v4019
        %v4036 = vmul.f32 %v3849, %v4020
        %v4037 = vmul.f32 %v3851, %v4021
        %v4038 = vmul.f32 %v3853, %v4022
        %v4039 = vmul.f32 %v3855, %v4023
        %v4040 = vmul.f32 %v3857, %v4024
        %v4041 = vmul.f32 %v3859, %v4025
        %v4042 = vmul.f32 %v3861, %v4026
        %v4043 = vmul.f32 %v3863, %v4027
        %v4044 = vmul.f32 %v3865, %v4028
        %v4045 = vmul.f32 %v3867, %v4029
        %v4046 = vmul.f32 %v3869, %v4030
        %v4047 = vmul.f32 %v3871, %v4031
        %4048 = vadd.xlane.f32.xlu0 %v4000
        %v4049 = vpop.xlane.xlu0 %4048
        %4050 = vadd.xlane.f32.xlu0 %v4001
        %v4051 = vpop.xlane.xlu0 %4050
        %4052 = vadd.xlane.f32.xlu0 %v4002
        %v4053 = vpop.xlane.xlu0 %4052
        %4054 = vadd.xlane.f32.xlu0 %v4003
        %v4055 = vpop.xlane.xlu0 %4054
        %4056 = vadd.xlane.f32.xlu0 %v4004
        %v4057 = vpop.xlane.xlu0 %4056
        %4058 = vadd.xlane.f32.xlu0 %v4005
        %v4059 = vpop.xlane.xlu0 %4058
        %4060 = vadd.xlane.f32.xlu0 %v4006
        %v4061 = vpop.xlane.xlu0 %4060
        %4062 = vadd.xlane.f32.xlu0 %v4007
        %v4063 = vpop.xlane.xlu0 %4062
        %4064 = vadd.xlane.f32.xlu0 %v4008
        %v4065 = vpop.xlane.xlu0 %4064
        %4066 = vadd.xlane.f32.xlu0 %v4009
        %v4067 = vpop.xlane.xlu0 %4066
        %4068 = vadd.xlane.f32.xlu0 %v4010
        %v4069 = vpop.xlane.xlu0 %4068
        %4070 = vadd.xlane.f32.xlu0 %v4011
        %v4071 = vpop.xlane.xlu0 %4070
        %4072 = vadd.xlane.f32.xlu0 %v4012
        %v4073 = vpop.xlane.xlu0 %4072
        %4074 = vadd.xlane.f32.xlu0 %v4013
        %v4075 = vpop.xlane.xlu0 %4074
        %4076 = vadd.xlane.f32.xlu0 %v4014
        %v4077 = vpop.xlane.xlu0 %4076
        %4078 = vadd.xlane.f32.xlu0 %v4015
        %v4079 = vpop.xlane.xlu0 %4078
        %v4080 = vadd.f32 %v4032, %v4049
        %v4081 = vadd.f32 %v4033, %v4051
        %v4082 = vadd.f32 %v4034, %v4053
        %v4083 = vadd.f32 %v4035, %v4055
        %v4084 = vadd.f32 %v4036, %v4057
        %v4085 = vadd.f32 %v4037, %v4059
        %v4086 = vadd.f32 %v4038, %v4061
        %v4087 = vadd.f32 %v4039, %v4063
        %v4088 = vadd.f32 %v4040, %v4065
        %v4089 = vadd.f32 %v4041, %v4067
        %v4090 = vadd.f32 %v4042, %v4069
        %v4091 = vadd.f32 %v4043, %v4071
        %v4092 = vadd.f32 %v4044, %v4073
        %v4093 = vadd.f32 %v4045, %v4075
        %v4094 = vadd.f32 %v4046, %v4077
        %v4095 = vadd.f32 %v4047, %v4079
        %vm4096 = vcmask 7168
        %4097 = vst.msk [vmem:[#allocation4] sm:$0xff] %vm4096, %v4080
        %4098 = vst.msk [vmem:[#allocation4 + $0x8] sm:$0xff] %vm4096, %v4081
        %4099 = vst.msk [vmem:[#allocation4 + $0x10] sm:$0xff] %vm4096, %v4082
        %4100 = vst.msk [vmem:[#allocation4 + $0x18] sm:$0xff] %vm4096, %v4083
        %4101 = vst.msk [vmem:[#allocation4 + $0x20] sm:$0xff] %vm4096, %v4084
        %4102 = vst.msk [vmem:[#allocation4 + $0x28] sm:$0xff] %vm4096, %v4085
        %4103 = vst.msk [vmem:[#allocation4 + $0x30] sm:$0xff] %vm4096, %v4086
        %4104 = vst.msk [vmem:[#allocation4 + $0x38] sm:$0xff] %vm4096, %v4087
        %4105 = vst.msk [vmem:[#allocation4 + $0x40] sm:$0xff] %vm4096, %v4088
        %4106 = vst.msk [vmem:[#allocation4 + $0x48] sm:$0xff] %vm4096, %v4089
        %4107 = vst.msk [vmem:[#allocation4 + $0x50] sm:$0xff] %vm4096, %v4090
        %4108 = vst.msk [vmem:[#allocation4 + $0x58] sm:$0xff] %vm4096, %v4091
        %4109 = vst.msk [vmem:[#allocation4 + $0x60] sm:$0xff] %vm4096, %v4092
        %4110 = vst.msk [vmem:[#allocation4 + $0x68] sm:$0xff] %vm4096, %v4093
        %4111 = vst.msk [vmem:[#allocation4 + $0x70] sm:$0xff] %vm4096, %v4094
        %4112 = vst.msk [vmem:[#allocation4 + $0x78] sm:$0xff] %vm4096, %v4095
        %v4113 = vld [vmem:[#allocation5] sm:$0xff]
        %v4114 = vld [vmem:[#allocation5 + $0x8] sm:$0xff]
        %v4115 = vld [vmem:[#allocation5 + $0x10] sm:$0xff]
        %v4116 = vld [vmem:[#allocation5 + $0x18] sm:$0xff]
        %v4117 = vld [vmem:[#allocation5 + $0x20] sm:$0xff]
        %v4118 = vld [vmem:[#allocation5 + $0x28] sm:$0xff]
        %v4119 = vld [vmem:[#allocation5 + $0x30] sm:$0xff]
        %v4120 = vld [vmem:[#allocation5 + $0x38] sm:$0xff]
        %v4121 = vld [vmem:[#allocation5 + $0x40] sm:$0xff]
        %v4122 = vld [vmem:[#allocation5 + $0x48] sm:$0xff]
        %v4123 = vld [vmem:[#allocation5 + $0x50] sm:$0xff]
        %v4124 = vld [vmem:[#allocation5 + $0x58] sm:$0xff]
        %v4125 = vld [vmem:[#allocation5 + $0x60] sm:$0xff]
        %v4126 = vld [vmem:[#allocation5 + $0x68] sm:$0xff]
        %v4127 = vld [vmem:[#allocation5 + $0x70] sm:$0xff]
        %v4128 = vld [vmem:[#allocation5 + $0x78] sm:$0xff]
        %4130 = vset.pattern.permute.xlu0 0
        %4131 = vperm.xlu0 %4130, %v3841
        %v4132 = vpop.permute.xlu0 %4131
        %4135 = vset.pattern.permute.xlu0 0
        %4136 = vperm.xlu0 %4135, %v3843
        %v4137 = vpop.permute.xlu0 %4136
        %4140 = vset.pattern.permute.xlu0 0
        %4141 = vperm.xlu0 %4140, %v3845
        %v4142 = vpop.permute.xlu0 %4141
        %4145 = vset.pattern.permute.xlu0 0
        %4146 = vperm.xlu0 %4145, %v3847
        %v4147 = vpop.permute.xlu0 %4146
        %4150 = vset.pattern.permute.xlu0 0
        %4151 = vperm.xlu0 %4150, %v3849
        %v4152 = vpop.permute.xlu0 %4151
        %4155 = vset.pattern.permute.xlu0 0
        %4156 = vperm.xlu0 %4155, %v3851
        %v4157 = vpop.permute.xlu0 %4156
        %4160 = vset.pattern.permute.xlu0 0
        %4161 = vperm.xlu0 %4160, %v3853
        %v4162 = vpop.permute.xlu0 %4161
        %4165 = vset.pattern.permute.xlu0 0
        %4166 = vperm.xlu0 %4165, %v3855
        %v4167 = vpop.permute.xlu0 %4166
        %4170 = vset.pattern.permute.xlu0 0
        %4171 = vperm.xlu0 %4170, %v3857
        %v4172 = vpop.permute.xlu0 %4171
        %4175 = vset.pattern.permute.xlu0 0
        %4176 = vperm.xlu0 %4175, %v3859
        %v4177 = vpop.permute.xlu0 %4176
        %4180 = vset.pattern.permute.xlu0 0
        %4181 = vperm.xlu0 %4180, %v3861
        %v4182 = vpop.permute.xlu0 %4181
        %4185 = vset.pattern.permute.xlu0 0
        %4186 = vperm.xlu0 %4185, %v3863
        %v4187 = vpop.permute.xlu0 %4186
        %4190 = vset.pattern.permute.xlu0 0
        %4191 = vperm.xlu0 %4190, %v3865
        %v4192 = vpop.permute.xlu0 %4191
        %4195 = vset.pattern.permute.xlu0 0
        %4196 = vperm.xlu0 %4195, %v3867
        %v4197 = vpop.permute.xlu0 %4196
        %4200 = vset.pattern.permute.xlu0 0
        %4201 = vperm.xlu0 %4200, %v3869
        %v4202 = vpop.permute.xlu0 %4201
        %4205 = vset.pattern.permute.xlu0 0
        %4206 = vperm.xlu0 %4205, %v3871
        %v4207 = vpop.permute.xlu0 %4206
        %v4209 = vmul.f32 %v4132, %v4113
        %v4210 = vmul.f32 %v4137, %v4114
        %v4211 = vmul.f32 %v4142, %v4115
        %v4212 = vmul.f32 %v4147, %v4116
        %v4213 = vmul.f32 %v4152, %v4117
        %v4214 = vmul.f32 %v4157, %v4118
        %v4215 = vmul.f32 %v4162, %v4119
        %v4216 = vmul.f32 %v4167, %v4120
        %v4217 = vmul.f32 %v4172, %v4121
        %v4218 = vmul.f32 %v4177, %v4122
        %v4219 = vmul.f32 %v4182, %v4123
        %v4220 = vmul.f32 %v4187, %v4124
        %v4221 = vmul.f32 %v4192, %v4125
        %v4222 = vmul.f32 %v4197, %v4126
        %v4223 = vmul.f32 %v4202, %v4127
        %v4224 = vmul.f32 %v4207, %v4128
        %v4225 = vpack.c.bf16 %v4001, %v4000
        %v4226 = vpack.c.bf16 %v4003, %v4002
        %v4227 = vpack.c.bf16 %v4005, %v4004
        %v4228 = vpack.c.bf16 %v4007, %v4006
        %v4229 = vpack.c.bf16 %v4009, %v4008
        %v4230 = vpack.c.bf16 %v4011, %v4010
        %v4231 = vpack.c.bf16 %v4013, %v4012
        %v4232 = vpack.c.bf16 %v4015, %v4014
        %v4233 = vpack.c.bf16 %v816, %v813
        %v4234 = vpack.c.bf16 %v824, %v821
        %v4235 = vpack.c.bf16 %v832, %v829
        %v4236 = vpack.c.bf16 %v840, %v837
        %v4237 = vpack.c.bf16 %v848, %v845
        %v4238 = vpack.c.bf16 %v856, %v853
        %v4239 = vpack.c.bf16 %v864, %v861
        %v4240 = vpack.c.bf16 %v872, %v869
        %4241 = vmatprep.subr.bf16.mxu0 0
        %4242 = vmatpush1.bf16.msra.mxu0 %v4233
        %4243 = vmatprep.subr.bf16.mxu0 0
        %4244 = vmatpush1.bf16.msra.mxu0 %v4234
        %4245 = vmatprep.subr.bf16.mxu0 0
        %4246 = vmatpush1.bf16.msra.mxu0 %v4235
        %4247 = vmatprep.subr.bf16.mxu0 0
        %4248 = vmatpush1.bf16.msra.mxu0 %v4236
        %4249 = vmatprep.subr.bf16.mxu0 0
        %4250 = vmatpush1.bf16.msra.mxu0 %v4237
        %4251 = vmatprep.subr.bf16.mxu0 0
        %4252 = vmatpush1.bf16.msra.mxu0 %v4238
        %4253 = vmatprep.subr.bf16.mxu0 0
        %4254 = vmatpush1.bf16.msra.mxu0 %v4239
        %4255 = vmatprep.subr.bf16.mxu0 0
        %4256 = vmatpush1.bf16.msra.mxu0 %v4240
        %4257 = vmatprep.subr.bf16.mxu0 0
        %4258 = vmatpush1.bf16.msra.mxu0 0
        %4259 = vmatprep.subr.bf16.mxu0 0
        %4260 = vmatpush1.bf16.msra.mxu0 0
        %4261 = vmatprep.subr.bf16.mxu0 0
        %4262 = vmatpush1.bf16.msra.mxu0 0
        %4263 = vmatprep.subr.bf16.mxu0 0
        %4264 = vmatpush1.bf16.msra.mxu0 0
        %4265 = vmatprep.subr.bf16.mxu0 0
        %4266 = vmatpush1.bf16.msra.mxu0 0
        %4267 = vmatprep.subr.bf16.mxu0 0
        %4268 = vmatpush1.bf16.msra.mxu0 0
        %4269 = vmatprep.subr.bf16.mxu0 0
        %4270 = vmatpush1.bf16.msra.mxu0 0
        %4271 = vmatprep.subr.bf16.mxu0 0
        %4272 = vmatpush1.bf16.msra.mxu0 0
        %4273 = vmatprep.mubr.bf16.mxu0 0
        %4274 = vmatmul.mubr.bf16.gmra.mrb[0].mxu0 %v4225
        %v4275 = vpop.f32.mrb[0].mxu0
        %v4276 = vadd.f32 0.0, %v4275
        %v4277 = vpop.f32.mrb[0].mxu0
        %v4278 = vpop.f32.mrb[0].mxu0
        %v4279 = vadd.f32 0.0, %v4278
        %v4280 = vpop.f32.mrb[0].mxu0
        %4281 = vmatprep.mubr.bf16.mxu0 0
        %4282 = vmatmul.mubr.bf16.gmra.mrb[0].mxu0 %v4226
        %v4283 = vpop.f32.mrb[0].mxu0
        %v4284 = vadd.f32 0.0, %v4283
        %v4285 = vpop.f32.mrb[0].mxu0
        %v4286 = vpop.f32.mrb[0].mxu0
        %v4287 = vadd.f32 0.0, %v4286
        %v4288 = vpop.f32.mrb[0].mxu0
        %4289 = vmatprep.mubr.bf16.mxu0 0
        %4290 = vmatmul.mubr.bf16.gmra.mrb[0].mxu0 %v4227
        %v4291 = vpop.f32.mrb[0].mxu0
        %v4292 = vadd.f32 0.0, %v4291
        %v4293 = vpop.f32.mrb[0].mxu0
        %v4294 = vpop.f32.mrb[0].mxu0
        %v4295 = vadd.f32 0.0, %v4294
        %v4296 = vpop.f32.mrb[0].mxu0
        %4297 = vmatprep.mubr.bf16.mxu0 0
        %4298 = vmatmul.mubr.bf16.gmra.mrb[0].mxu0 %v4228
        %v4299 = vpop.f32.mrb[0].mxu0
        %v4300 = vadd.f32 0.0, %v4299
        %v4301 = vpop.f32.mrb[0].mxu0
        %v4302 = vpop.f32.mrb[0].mxu0
        %v4303 = vadd.f32 0.0, %v4302
        %v4304 = vpop.f32.mrb[0].mxu0
        %4305 = vmatprep.mubr.bf16.mxu0 0
        %4306 = vmatmul.mubr.bf16.gmra.mrb[0].mxu0 %v4229
        %v4307 = vpop.f32.mrb[0].mxu0
        %v4308 = vadd.f32 0.0, %v4307
        %v4309 = vpop.f32.mrb[0].mxu0
        %v4310 = vpop.f32.mrb[0].mxu0
        %v4311 = vadd.f32 0.0, %v4310
        %v4312 = vpop.f32.mrb[0].mxu0
        %4313 = vmatprep.mubr.bf16.mxu0 0
        %4314 = vmatmul.mubr.bf16.gmra.mrb[0].mxu0 %v4230
        %v4315 = vpop.f32.mrb[0].mxu0
        %v4316 = vadd.f32 0.0, %v4315
        %v4317 = vpop.f32.mrb[0].mxu0
        %v4318 = vpop.f32.mrb[0].mxu0
        %v4319 = vadd.f32 0.0, %v4318
        %v4320 = vpop.f32.mrb[0].mxu0
        %4321 = vmatprep.mubr.bf16.mxu0 0
        %4322 = vmatmul.mubr.bf16.gmra.mrb[0].mxu0 %v4231
        %v4323 = vpop.f32.mrb[0].mxu0
        %v4324 = vadd.f32 0.0, %v4323
        %v4325 = vpop.f32.mrb[0].mxu0
        %v4326 = vpop.f32.mrb[0].mxu0
        %v4327 = vadd.f32 0.0, %v4326
        %v4328 = vpop.f32.mrb[0].mxu0
        %4329 = vmatprep.mubr.bf16.mxu0 0
        %4330 = vmatmul.mubr.bf16.gmra.mrb[0].mxu0 %v4232
        %v4331 = vpop.f32.mrb[0].mxu0
        %v4332 = vadd.f32 0.0, %v4331
        %v4333 = vpop.f32.mrb[0].mxu0
        %v4334 = vpop.f32.mrb[0].mxu0
        %v4335 = vadd.f32 0.0, %v4334
        %v4336 = vpop.f32.mrb[0].mxu0
        %4337 = vdwg.mxu0
        %v4338 = vadd.f32 %v4209, %v4276
        %v4339 = vadd.f32 %v4210, %v4279
        %v4340 = vadd.f32 %v4211, %v4284
        %v4341 = vadd.f32 %v4212, %v4287
        %v4342 = vadd.f32 %v4213, %v4292
        %v4343 = vadd.f32 %v4214, %v4295
        %v4344 = vadd.f32 %v4215, %v4300
        %v4345 = vadd.f32 %v4216, %v4303
        %v4346 = vadd.f32 %v4217, %v4308
        %v4347 = vadd.f32 %v4218, %v4311
        %v4348 = vadd.f32 %v4219, %v4316
        %v4349 = vadd.f32 %v4220, %v4319
        %v4350 = vadd.f32 %v4221, %v4324
        %v4351 = vadd.f32 %v4222, %v4327
        %v4352 = vadd.f32 %v4223, %v4332
        %v4353 = vadd.f32 %v4224, %v4335
        %vm4354 = vcmask 130048
        %4355 = vst.msk [vmem:[#allocation5] sm:$0xff] %vm4354, %v4338
        %4356 = vst.msk [vmem:[#allocation5 + $0x8] sm:$0xff] %vm4354, %v4339
        %4357 = vst.msk [vmem:[#allocation5 + $0x10] sm:$0xff] %vm4354, %v4340
        %4358 = vst.msk [vmem:[#allocation5 + $0x18] sm:$0xff] %vm4354, %v4341
        %4359 = vst.msk [vmem:[#allocation5 + $0x20] sm:$0xff] %vm4354, %v4342
        %4360 = vst.msk [vmem:[#allocation5 + $0x28] sm:$0xff] %vm4354, %v4343
        %4361 = vst.msk [vmem:[#allocation5 + $0x30] sm:$0xff] %vm4354, %v4344
        %4362 = vst.msk [vmem:[#allocation5 + $0x38] sm:$0xff] %vm4354, %v4345
        %4363 = vst.msk [vmem:[#allocation5 + $0x40] sm:$0xff] %vm4354, %v4346
        %4364 = vst.msk [vmem:[#allocation5 + $0x48] sm:$0xff] %vm4354, %v4347
        %4365 = vst.msk [vmem:[#allocation5 + $0x50] sm:$0xff] %vm4354, %v4348
        %4366 = vst.msk [vmem:[#allocation5 + $0x58] sm:$0xff] %vm4354, %v4349
        %4367 = vst.msk [vmem:[#allocation5 + $0x60] sm:$0xff] %vm4354, %v4350
        %4368 = vst.msk [vmem:[#allocation5 + $0x68] sm:$0xff] %vm4354, %v4351
        %4369 = vst.msk [vmem:[#allocation5 + $0x70] sm:$0xff] %vm4354, %v4352
        %4370 = vst.msk [vmem:[#allocation5 + $0x78] sm:$0xff] %vm4354, %v4353
        %4371 = vst.msk [vmem:[#allocation3] sm:$0xff] %vm4096, %v3808
        %4372 = vst.msk [vmem:[#allocation3 + $0x8] sm:$0xff] %vm4096, %v3809
        %4373 = vst.msk [vmem:[#allocation3 + $0x10] sm:$0xff] %vm4096, %v3810
        %4374 = vst.msk [vmem:[#allocation3 + $0x18] sm:$0xff] %vm4096, %v3811
        %4375 = vst.msk [vmem:[#allocation3 + $0x20] sm:$0xff] %vm4096, %v3812
        %4376 = vst.msk [vmem:[#allocation3 + $0x28] sm:$0xff] %vm4096, %v3813
        %4377 = vst.msk [vmem:[#allocation3 + $0x30] sm:$0xff] %vm4096, %v3814
        %4378 = vst.msk [vmem:[#allocation3 + $0x38] sm:$0xff] %vm4096, %v3815
        %4379 = vst.msk [vmem:[#allocation3 + $0x40] sm:$0xff] %vm4096, %v3816
        %4380 = vst.msk [vmem:[#allocation3 + $0x48] sm:$0xff] %vm4096, %v3817
        %4381 = vst.msk [vmem:[#allocation3 + $0x50] sm:$0xff] %vm4096, %v3818
        %4382 = vst.msk [vmem:[#allocation3 + $0x58] sm:$0xff] %vm4096, %v3819
        %4383 = vst.msk [vmem:[#allocation3 + $0x60] sm:$0xff] %vm4096, %v3820
        %4384 = vst.msk [vmem:[#allocation3 + $0x68] sm:$0xff] %vm4096, %v3821
        %4385 = vst.msk [vmem:[#allocation3 + $0x70] sm:$0xff] %vm4096, %v3822
        %4386 = vst.msk [vmem:[#allocation3 + $0x78] sm:$0xff] %vm4096, %v3823
        %4387 = vset.pattern.permute.xlu0 16
        %4388 = vperm.xlu0 %4387, %v1008
        %v4389 = vpop.permute.xlu0 %4388
        %4391 = vset.pattern.permute.xlu0 16
        %4392 = vperm.xlu0 %4391, %v1009
        %v4393 = vpop.permute.xlu0 %4392
        %4395 = vset.pattern.permute.xlu0 16
        %4396 = vperm.xlu0 %4395, %v1010
        %v4397 = vpop.permute.xlu0 %4396
        %4399 = vset.pattern.permute.xlu0 16
        %4400 = vperm.xlu0 %4399, %v1011
        %v4401 = vpop.permute.xlu0 %4400
        %4403 = vset.pattern.permute.xlu0 16
        %4404 = vperm.xlu0 %4403, %v1012
        %v4405 = vpop.permute.xlu0 %4404
        %4407 = vset.pattern.permute.xlu0 16
        %4408 = vperm.xlu0 %4407, %v1013
        %v4409 = vpop.permute.xlu0 %4408
        %4411 = vset.pattern.permute.xlu0 16
        %4412 = vperm.xlu0 %4411, %v1014
        %v4413 = vpop.permute.xlu0 %4412
        %4415 = vset.pattern.permute.xlu0 16
        %4416 = vperm.xlu0 %4415, %v1015
        %v4417 = vpop.permute.xlu0 %4416
        %4419 = vset.pattern.permute.xlu0 16
        %4420 = vperm.xlu0 %4419, %v1016
        %v4421 = vpop.permute.xlu0 %4420
        %4423 = vset.pattern.permute.xlu0 16
        %4424 = vperm.xlu0 %4423, %v1017
        %v4425 = vpop.permute.xlu0 %4424
        %4427 = vset.pattern.permute.xlu0 16
        %4428 = vperm.xlu0 %4427, %v1018
        %v4429 = vpop.permute.xlu0 %4428
        %4431 = vset.pattern.permute.xlu0 16
        %4432 = vperm.xlu0 %4431, %v1019
        %v4433 = vpop.permute.xlu0 %4432
        %4435 = vset.pattern.permute.xlu0 16
        %4436 = vperm.xlu0 %4435, %v1020
        %v4437 = vpop.permute.xlu0 %4436
        %4439 = vset.pattern.permute.xlu0 16
        %4440 = vperm.xlu0 %4439, %v1021
        %v4441 = vpop.permute.xlu0 %4440
        %4443 = vset.pattern.permute.xlu0 16
        %4444 = vperm.xlu0 %4443, %v1022
        %v4445 = vpop.permute.xlu0 %4444
        %4447 = vset.pattern.permute.xlu0 16
        %4448 = vperm.xlu0 %4447, %v1023
        %v4449 = vpop.permute.xlu0 %4448
        %v4451 = vlaneseq
        %v4452 = vshrl.u32 %v4451, 7
        %v4453 = vsub.s32 0, %v4452
        %v4454 = vrot.slane %v954, %v4453
        %v4455 = vadd.f32 %v4389, %v4454
        %v4456 = vadd.f32 %v4393, %v4454
        %v4457 = vadd.f32 %v4397, %v4454
        %v4458 = vadd.f32 %v4401, %v4454
        %v4459 = vadd.f32 %v4405, %v4454
        %v4460 = vadd.f32 %v4409, %v4454
        %v4461 = vadd.f32 %v4413, %v4454
        %v4462 = vadd.f32 %v4417, %v4454
        %v4463 = vadd.f32 %v4421, %v4454
        %v4464 = vadd.f32 %v4425, %v4454
        %v4465 = vadd.f32 %v4429, %v4454
        %v4466 = vadd.f32 %v4433, %v4454
        %v4467 = vadd.f32 %v4437, %v4454
        %v4468 = vadd.f32 %v4441, %v4454
        %v4469 = vadd.f32 %v4445, %v4454
        %v4470 = vadd.f32 %v4449, %v4454
        %vm4471 = vcmp.ge.f32.partialorder %v4455, 0.0
        %vm4472 = vcmp.ge.f32.partialorder %v4456, 0.0
        %vm4473 = vcmp.ge.f32.partialorder %v4457, 0.0
        %vm4474 = vcmp.ge.f32.partialorder %v4458, 0.0
        %vm4475 = vcmp.ge.f32.partialorder %v4459, 0.0
        %vm4476 = vcmp.ge.f32.partialorder %v4460, 0.0
        %vm4477 = vcmp.ge.f32.partialorder %v4461, 0.0
        %vm4478 = vcmp.ge.f32.partialorder %v4462, 0.0
        %vm4479 = vcmp.ge.f32.partialorder %v4463, 0.0
        %vm4480 = vcmp.ge.f32.partialorder %v4464, 0.0
        %vm4481 = vcmp.ge.f32.partialorder %v4465, 0.0
        %vm4482 = vcmp.ge.f32.partialorder %v4466, 0.0
        %vm4483 = vcmp.ge.f32.partialorder %v4467, 0.0
        %vm4484 = vcmp.ge.f32.partialorder %v4468, 0.0
        %vm4485 = vcmp.ge.f32.partialorder %v4469, 0.0
        %vm4486 = vcmp.ge.f32.partialorder %v4470, 0.0
        %v4487 = vmul.f32 %v4455, 0.2
        %v4488 = vmul.f32 %v4456, 0.2
        %v4489 = vmul.f32 %v4457, 0.2
        %v4490 = vmul.f32 %v4458, 0.2
        %v4491 = vmul.f32 %v4459, 0.2
        %v4492 = vmul.f32 %v4460, 0.2
        %v4493 = vmul.f32 %v4461, 0.2
        %v4494 = vmul.f32 %v4462, 0.2
        %v4495 = vmul.f32 %v4463, 0.2
        %v4496 = vmul.f32 %v4464, 0.2
        %v4497 = vmul.f32 %v4465, 0.2
        %v4498 = vmul.f32 %v4466, 0.2
        %v4499 = vmul.f32 %v4467, 0.2
        %v4500 = vmul.f32 %v4468, 0.2
        %v4501 = vmul.f32 %v4469, 0.2
        %v4502 = vmul.f32 %v4470, 0.2
        %v4503 = vsel %vm4471, %v4455, %v4487
        %v4504 = vsel %vm4472, %v4456, %v4488
        %v4505 = vsel %vm4473, %v4457, %v4489
        %v4506 = vsel %vm4474, %v4458, %v4490
        %v4507 = vsel %vm4475, %v4459, %v4491
        %v4508 = vsel %vm4476, %v4460, %v4492
        %v4509 = vsel %vm4477, %v4461, %v4493
        %v4510 = vsel %vm4478, %v4462, %v4494
        %v4511 = vsel %vm4479, %v4463, %v4495
        %v4512 = vsel %vm4480, %v4464, %v4496
        %v4513 = vsel %vm4481, %v4465, %v4497
        %v4514 = vsel %vm4482, %v4466, %v4498
        %v4515 = vsel %vm4483, %v4467, %v4499
        %v4516 = vsel %vm4484, %v4468, %v4500
        %v4517 = vsel %vm4485, %v4469, %v4501
        %v4518 = vsel %vm4486, %v4470, %v4502
        %s4519 = sld [smem:[#allocation6 + $0x80]]
        %v4520 = vstv %s4519
        %v4521 = vmul.f32 %v4520, %v4503
        %v4522 = vmul.f32 %v4520, %v4504
        %v4523 = vmul.f32 %v4520, %v4505
        %v4524 = vmul.f32 %v4520, %v4506
        %v4525 = vmul.f32 %v4520, %v4507
        %v4526 = vmul.f32 %v4520, %v4508
        %v4527 = vmul.f32 %v4520, %v4509
        %v4528 = vmul.f32 %v4520, %v4510
        %v4529 = vmul.f32 %v4520, %v4511
        %v4530 = vmul.f32 %v4520, %v4512
        %v4531 = vmul.f32 %v4520, %v4513
        %v4532 = vmul.f32 %v4520, %v4514
        %v4533 = vmul.f32 %v4520, %v4515
        %v4534 = vmul.f32 %v4520, %v4516
        %v4535 = vmul.f32 %v4520, %v4517
        %v4536 = vmul.f32 %v4520, %v4518
        %v4537 = vadd.f32 %v4521, 0.0
        %v4538 = vadd.f32 %v4522, 0.0
        %v4539 = vadd.f32 %v4523, 0.0
        %v4540 = vadd.f32 %v4524, 0.0
        %v4541 = vadd.f32 %v4525, 0.0
        %v4542 = vadd.f32 %v4526, 0.0
        %v4543 = vadd.f32 %v4527, 0.0
        %v4544 = vadd.f32 %v4528, 0.0
        %v4545 = vadd.f32 %v4529, 0.0
        %v4546 = vadd.f32 %v4530, 0.0
        %v4547 = vadd.f32 %v4531, 0.0
        %v4548 = vadd.f32 %v4532, 0.0
        %v4549 = vadd.f32 %v4533, 0.0
        %v4550 = vadd.f32 %v4534, 0.0
        %v4551 = vadd.f32 %v4535, 0.0
        %v4552 = vadd.f32 %v4536, 0.0
        %4553 = vset.pattern.permute.xlu0 17
        %4554 = vperm.xlu0 %4553, %v1008
        %v4555 = vpop.permute.xlu0 %4554
        %4557 = vset.pattern.permute.xlu0 17
        %4558 = vperm.xlu0 %4557, %v1009
        %v4559 = vpop.permute.xlu0 %4558
        %4561 = vset.pattern.permute.xlu0 17
        %4562 = vperm.xlu0 %4561, %v1010
        %v4563 = vpop.permute.xlu0 %4562
        %4565 = vset.pattern.permute.xlu0 17
        %4566 = vperm.xlu0 %4565, %v1011
        %v4567 = vpop.permute.xlu0 %4566
        %4569 = vset.pattern.permute.xlu0 17
        %4570 = vperm.xlu0 %4569, %v1012
        %v4571 = vpop.permute.xlu0 %4570
        %4573 = vset.pattern.permute.xlu0 17
        %4574 = vperm.xlu0 %4573, %v1013
        %v4575 = vpop.permute.xlu0 %4574
        %4577 = vset.pattern.permute.xlu0 17
        %4578 = vperm.xlu0 %4577, %v1014
        %v4579 = vpop.permute.xlu0 %4578
        %4581 = vset.pattern.permute.xlu0 17
        %4582 = vperm.xlu0 %4581, %v1015
        %v4583 = vpop.permute.xlu0 %4582
        %4585 = vset.pattern.permute.xlu0 17
        %4586 = vperm.xlu0 %4585, %v1016
        %v4587 = vpop.permute.xlu0 %4586
        %4589 = vset.pattern.permute.xlu0 17
        %4590 = vperm.xlu0 %4589, %v1017
        %v4591 = vpop.permute.xlu0 %4590
        %4593 = vset.pattern.permute.xlu0 17
        %4594 = vperm.xlu0 %4593, %v1018
        %v4595 = vpop.permute.xlu0 %4594
        %4597 = vset.pattern.permute.xlu0 17
        %4598 = vperm.xlu0 %4597, %v1019
        %v4599 = vpop.permute.xlu0 %4598
        %4601 = vset.pattern.permute.xlu0 17
        %4602 = vperm.xlu0 %4601, %v1020
        %v4603 = vpop.permute.xlu0 %4602
        %4605 = vset.pattern.permute.xlu0 17
        %4606 = vperm.xlu0 %4605, %v1021
        %v4607 = vpop.permute.xlu0 %4606
        %4609 = vset.pattern.permute.xlu0 17
        %4610 = vperm.xlu0 %4609, %v1022
        %v4611 = vpop.permute.xlu0 %4610
        %4613 = vset.pattern.permute.xlu0 17
        %4614 = vperm.xlu0 %4613, %v1023
        %v4615 = vpop.permute.xlu0 %4614
        %v4617 = vlaneseq
        %v4618 = vshrl.u32 %v4617, 7
        %v4619 = vsub.s32 1, %v4618
        %v4620 = vrot.slane %v954, %v4619
        %v4621 = vadd.f32 %v4555, %v4620
        %v4622 = vadd.f32 %v4559, %v4620
        %v4623 = vadd.f32 %v4563, %v4620
        %v4624 = vadd.f32 %v4567, %v4620
        %v4625 = vadd.f32 %v4571, %v4620
        %v4626 = vadd.f32 %v4575, %v4620
        %v4627 = vadd.f32 %v4579, %v4620
        %v4628 = vadd.f32 %v4583, %v4620
        %v4629 = vadd.f32 %v4587, %v4620
        %v4630 = vadd.f32 %v4591, %v4620
        %v4631 = vadd.f32 %v4595, %v4620
        %v4632 = vadd.f32 %v4599, %v4620
        %v4633 = vadd.f32 %v4603, %v4620
        %v4634 = vadd.f32 %v4607, %v4620
        %v4635 = vadd.f32 %v4611, %v4620
        %v4636 = vadd.f32 %v4615, %v4620
        %vm4637 = vcmp.ge.f32.partialorder %v4621, 0.0
        %vm4638 = vcmp.ge.f32.partialorder %v4622, 0.0
        %vm4639 = vcmp.ge.f32.partialorder %v4623, 0.0
        %vm4640 = vcmp.ge.f32.partialorder %v4624, 0.0
        %vm4641 = vcmp.ge.f32.partialorder %v4625, 0.0
        %vm4642 = vcmp.ge.f32.partialorder %v4626, 0.0
        %vm4643 = vcmp.ge.f32.partialorder %v4627, 0.0
        %vm4644 = vcmp.ge.f32.partialorder %v4628, 0.0
        %vm4645 = vcmp.ge.f32.partialorder %v4629, 0.0
        %vm4646 = vcmp.ge.f32.partialorder %v4630, 0.0
        %vm4647 = vcmp.ge.f32.partialorder %v4631, 0.0
        %vm4648 = vcmp.ge.f32.partialorder %v4632, 0.0
        %vm4649 = vcmp.ge.f32.partialorder %v4633, 0.0
        %vm4650 = vcmp.ge.f32.partialorder %v4634, 0.0
        %vm4651 = vcmp.ge.f32.partialorder %v4635, 0.0
        %vm4652 = vcmp.ge.f32.partialorder %v4636, 0.0
        %v4653 = vmul.f32 %v4621, 0.2
        %v4654 = vmul.f32 %v4622, 0.2
        %v4655 = vmul.f32 %v4623, 0.2
        %v4656 = vmul.f32 %v4624, 0.2
        %v4657 = vmul.f32 %v4625, 0.2
        %v4658 = vmul.f32 %v4626, 0.2
        %v4659 = vmul.f32 %v4627, 0.2
        %v4660 = vmul.f32 %v4628, 0.2
        %v4661 = vmul.f32 %v4629, 0.2
        %v4662 = vmul.f32 %v4630, 0.2
        %v4663 = vmul.f32 %v4631, 0.2
        %v4664 = vmul.f32 %v4632, 0.2
        %v4665 = vmul.f32 %v4633, 0.2
        %v4666 = vmul.f32 %v4634, 0.2
        %v4667 = vmul.f32 %v4635, 0.2
        %v4668 = vmul.f32 %v4636, 0.2
        %v4669 = vsel %vm4637, %v4621, %v4653
        %v4670 = vsel %vm4638, %v4622, %v4654
        %v4671 = vsel %vm4639, %v4623, %v4655
        %v4672 = vsel %vm4640, %v4624, %v4656
        %v4673 = vsel %vm4641, %v4625, %v4657
        %v4674 = vsel %vm4642, %v4626, %v4658
        %v4675 = vsel %vm4643, %v4627, %v4659
        %v4676 = vsel %vm4644, %v4628, %v4660
        %v4677 = vsel %vm4645, %v4629, %v4661
        %v4678 = vsel %vm4646, %v4630, %v4662
        %v4679 = vsel %vm4647, %v4631, %v4663
        %v4680 = vsel %vm4648, %v4632, %v4664
        %v4681 = vsel %vm4649, %v4633, %v4665
        %v4682 = vsel %vm4650, %v4634, %v4666
        %v4683 = vsel %vm4651, %v4635, %v4667
        %v4684 = vsel %vm4652, %v4636, %v4668
        %s4685 = sld [smem:[#allocation6 + $0x81]]
        %v4686 = vstv %s4685
        %v4687 = vmul.f32 %v4686, %v4669
        %v4688 = vmul.f32 %v4686, %v4670
        %v4689 = vmul.f32 %v4686, %v4671
        %v4690 = vmul.f32 %v4686, %v4672
        %v4691 = vmul.f32 %v4686, %v4673
        %v4692 = vmul.f32 %v4686, %v4674
        %v4693 = vmul.f32 %v4686, %v4675
        %v4694 = vmul.f32 %v4686, %v4676
        %v4695 = vmul.f32 %v4686, %v4677
        %v4696 = vmul.f32 %v4686, %v4678
        %v4697 = vmul.f32 %v4686, %v4679
        %v4698 = vmul.f32 %v4686, %v4680
        %v4699 = vmul.f32 %v4686, %v4681
        %v4700 = vmul.f32 %v4686, %v4682
        %v4701 = vmul.f32 %v4686, %v4683
        %v4702 = vmul.f32 %v4686, %v4684
        %v4703 = vadd.f32 %v4537, %v4687
        %v4704 = vadd.f32 %v4538, %v4688
        %v4705 = vadd.f32 %v4539, %v4689
        %v4706 = vadd.f32 %v4540, %v4690
        %v4707 = vadd.f32 %v4541, %v4691
        %v4708 = vadd.f32 %v4542, %v4692
        %v4709 = vadd.f32 %v4543, %v4693
        %v4710 = vadd.f32 %v4544, %v4694
        %v4711 = vadd.f32 %v4545, %v4695
        %v4712 = vadd.f32 %v4546, %v4696
        %v4713 = vadd.f32 %v4547, %v4697
        %v4714 = vadd.f32 %v4548, %v4698
        %v4715 = vadd.f32 %v4549, %v4699
        %v4716 = vadd.f32 %v4550, %v4700
        %v4717 = vadd.f32 %v4551, %v4701
        %v4718 = vadd.f32 %v4552, %v4702
        %4719 = vset.pattern.permute.xlu0 18
        %4720 = vperm.xlu0 %4719, %v1008
        %v4721 = vpop.permute.xlu0 %4720
        %4723 = vset.pattern.permute.xlu0 18
        %4724 = vperm.xlu0 %4723, %v1009
        %v4725 = vpop.permute.xlu0 %4724
        %4727 = vset.pattern.permute.xlu0 18
        %4728 = vperm.xlu0 %4727, %v1010
        %v4729 = vpop.permute.xlu0 %4728
        %4731 = vset.pattern.permute.xlu0 18
        %4732 = vperm.xlu0 %4731, %v1011
        %v4733 = vpop.permute.xlu0 %4732
        %4735 = vset.pattern.permute.xlu0 18
        %4736 = vperm.xlu0 %4735, %v1012
        %v4737 = vpop.permute.xlu0 %4736
        %4739 = vset.pattern.permute.xlu0 18
        %4740 = vperm.xlu0 %4739, %v1013
        %v4741 = vpop.permute.xlu0 %4740
        %4743 = vset.pattern.permute.xlu0 18
        %4744 = vperm.xlu0 %4743, %v1014
        %v4745 = vpop.permute.xlu0 %4744
        %4747 = vset.pattern.permute.xlu0 18
        %4748 = vperm.xlu0 %4747, %v1015
        %v4749 = vpop.permute.xlu0 %4748
        %4751 = vset.pattern.permute.xlu0 18
        %4752 = vperm.xlu0 %4751, %v1016
        %v4753 = vpop.permute.xlu0 %4752
        %4755 = vset.pattern.permute.xlu0 18
        %4756 = vperm.xlu0 %4755, %v1017
        %v4757 = vpop.permute.xlu0 %4756
        %4759 = vset.pattern.permute.xlu0 18
        %4760 = vperm.xlu0 %4759, %v1018
        %v4761 = vpop.permute.xlu0 %4760
        %4763 = vset.pattern.permute.xlu0 18
        %4764 = vperm.xlu0 %4763, %v1019
        %v4765 = vpop.permute.xlu0 %4764
        %4767 = vset.pattern.permute.xlu0 18
        %4768 = vperm.xlu0 %4767, %v1020
        %v4769 = vpop.permute.xlu0 %4768
        %4771 = vset.pattern.permute.xlu0 18
        %4772 = vperm.xlu0 %4771, %v1021
        %v4773 = vpop.permute.xlu0 %4772
        %4775 = vset.pattern.permute.xlu0 18
        %4776 = vperm.xlu0 %4775, %v1022
        %v4777 = vpop.permute.xlu0 %4776
        %4779 = vset.pattern.permute.xlu0 18
        %4780 = vperm.xlu0 %4779, %v1023
        %v4781 = vpop.permute.xlu0 %4780
        %v4783 = vlaneseq
        %v4784 = vshrl.u32 %v4783, 7
        %v4785 = vsub.s32 2, %v4784
        %v4786 = vrot.slane %v954, %v4785
        %v4787 = vadd.f32 %v4721, %v4786
        %v4788 = vadd.f32 %v4725, %v4786
        %v4789 = vadd.f32 %v4729, %v4786
        %v4790 = vadd.f32 %v4733, %v4786
        %v4791 = vadd.f32 %v4737, %v4786
        %v4792 = vadd.f32 %v4741, %v4786
        %v4793 = vadd.f32 %v4745, %v4786
        %v4794 = vadd.f32 %v4749, %v4786
        %v4795 = vadd.f32 %v4753, %v4786
        %v4796 = vadd.f32 %v4757, %v4786
        %v4797 = vadd.f32 %v4761, %v4786
        %v4798 = vadd.f32 %v4765, %v4786
        %v4799 = vadd.f32 %v4769, %v4786
        %v4800 = vadd.f32 %v4773, %v4786
        %v4801 = vadd.f32 %v4777, %v4786
        %v4802 = vadd.f32 %v4781, %v4786
        %vm4803 = vcmp.ge.f32.partialorder %v4787, 0.0
        %vm4804 = vcmp.ge.f32.partialorder %v4788, 0.0
        %vm4805 = vcmp.ge.f32.partialorder %v4789, 0.0
        %vm4806 = vcmp.ge.f32.partialorder %v4790, 0.0
        %vm4807 = vcmp.ge.f32.partialorder %v4791, 0.0
        %vm4808 = vcmp.ge.f32.partialorder %v4792, 0.0
        %vm4809 = vcmp.ge.f32.partialorder %v4793, 0.0
        %vm4810 = vcmp.ge.f32.partialorder %v4794, 0.0
        %vm4811 = vcmp.ge.f32.partialorder %v4795, 0.0
        %vm4812 = vcmp.ge.f32.partialorder %v4796, 0.0
        %vm4813 = vcmp.ge.f32.partialorder %v4797, 0.0
        %vm4814 = vcmp.ge.f32.partialorder %v4798, 0.0
        %vm4815 = vcmp.ge.f32.partialorder %v4799, 0.0
        %vm4816 = vcmp.ge.f32.partialorder %v4800, 0.0
        %vm4817 = vcmp.ge.f32.partialorder %v4801, 0.0
        %vm4818 = vcmp.ge.f32.partialorder %v4802, 0.0
        %v4819 = vmul.f32 %v4787, 0.2
        %v4820 = vmul.f32 %v4788, 0.2
        %v4821 = vmul.f32 %v4789, 0.2
        %v4822 = vmul.f32 %v4790, 0.2
        %v4823 = vmul.f32 %v4791, 0.2
        %v4824 = vmul.f32 %v4792, 0.2
        %v4825 = vmul.f32 %v4793, 0.2
        %v4826 = vmul.f32 %v4794, 0.2
        %v4827 = vmul.f32 %v4795, 0.2
        %v4828 = vmul.f32 %v4796, 0.2
        %v4829 = vmul.f32 %v4797, 0.2
        %v4830 = vmul.f32 %v4798, 0.2
        %v4831 = vmul.f32 %v4799, 0.2
        %v4832 = vmul.f32 %v4800, 0.2
        %v4833 = vmul.f32 %v4801, 0.2
        %v4834 = vmul.f32 %v4802, 0.2
        %v4835 = vsel %vm4803, %v4787, %v4819
        %v4836 = vsel %vm4804, %v4788, %v4820
        %v4837 = vsel %vm4805, %v4789, %v4821
        %v4838 = vsel %vm4806, %v4790, %v4822
        %v4839 = vsel %vm4807, %v4791, %v4823
        %v4840 = vsel %vm4808, %v4792, %v4824
        %v4841 = vsel %vm4809, %v4793, %v4825
        %v4842 = vsel %vm4810, %v4794, %v4826
        %v4843 = vsel %vm4811, %v4795, %v4827
        %v4844 = vsel %vm4812, %v4796, %v4828
        %v4845 = vsel %vm4813, %v4797, %v4829
        %v4846 = vsel %vm4814, %v4798, %v4830
        %v4847 = vsel %vm4815, %v4799, %v4831
        %v4848 = vsel %vm4816, %v4800, %v4832
        %v4849 = vsel %vm4817, %v4801, %v4833
        %v4850 = vsel %vm4818, %v4802, %v4834
        %s4851 = sld [smem:[#allocation6 + $0x82]]
        %v4852 = vstv %s4851
        %v4853 = vmul.f32 %v4852, %v4835
        %v4854 = vmul.f32 %v4852, %v4836
        %v4855 = vmul.f32 %v4852, %v4837
        %v4856 = vmul.f32 %v4852, %v4838
        %v4857 = vmul.f32 %v4852, %v4839
        %v4858 = vmul.f32 %v4852, %v4840
        %v4859 = vmul.f32 %v4852, %v4841
        %v4860 = vmul.f32 %v4852, %v4842
        %v4861 = vmul.f32 %v4852, %v4843
        %v4862 = vmul.f32 %v4852, %v4844
        %v4863 = vmul.f32 %v4852, %v4845
        %v4864 = vmul.f32 %v4852, %v4846
        %v4865 = vmul.f32 %v4852, %v4847
        %v4866 = vmul.f32 %v4852, %v4848
        %v4867 = vmul.f32 %v4852, %v4849
        %v4868 = vmul.f32 %v4852, %v4850
        %v4869 = vadd.f32 %v4703, %v4853
        %v4870 = vadd.f32 %v4704, %v4854
        %v4871 = vadd.f32 %v4705, %v4855
        %v4872 = vadd.f32 %v4706, %v4856
        %v4873 = vadd.f32 %v4707, %v4857
        %v4874 = vadd.f32 %v4708, %v4858
        %v4875 = vadd.f32 %v4709, %v4859
        %v4876 = vadd.f32 %v4710, %v4860
        %v4877 = vadd.f32 %v4711, %v4861
        %v4878 = vadd.f32 %v4712, %v4862
        %v4879 = vadd.f32 %v4713, %v4863
        %v4880 = vadd.f32 %v4714, %v4864
        %v4881 = vadd.f32 %v4715, %v4865
        %v4882 = vadd.f32 %v4716, %v4866
        %v4883 = vadd.f32 %v4717, %v4867
        %v4884 = vadd.f32 %v4718, %v4868
        %4885 = vset.pattern.permute.xlu0 19
        %4886 = vperm.xlu0 %4885, %v1008
        %v4887 = vpop.permute.xlu0 %4886
        %4889 = vset.pattern.permute.xlu0 19
        %4890 = vperm.xlu0 %4889, %v1009
        %v4891 = vpop.permute.xlu0 %4890
        %4893 = vset.pattern.permute.xlu0 19
        %4894 = vperm.xlu0 %4893, %v1010
        %v4895 = vpop.permute.xlu0 %4894
        %4897 = vset.pattern.permute.xlu0 19
        %4898 = vperm.xlu0 %4897, %v1011
        %v4899 = vpop.permute.xlu0 %4898
        %4901 = vset.pattern.permute.xlu0 19
        %4902 = vperm.xlu0 %4901, %v1012
        %v4903 = vpop.permute.xlu0 %4902
        %4905 = vset.pattern.permute.xlu0 19
        %4906 = vperm.xlu0 %4905, %v1013
        %v4907 = vpop.permute.xlu0 %4906
        %4909 = vset.pattern.permute.xlu0 19
        %4910 = vperm.xlu0 %4909, %v1014
        %v4911 = vpop.permute.xlu0 %4910
        %4913 = vset.pattern.permute.xlu0 19
        %4914 = vperm.xlu0 %4913, %v1015
        %v4915 = vpop.permute.xlu0 %4914
        %4917 = vset.pattern.permute.xlu0 19
        %4918 = vperm.xlu0 %4917, %v1016
        %v4919 = vpop.permute.xlu0 %4918
        %4921 = vset.pattern.permute.xlu0 19
        %4922 = vperm.xlu0 %4921, %v1017
        %v4923 = vpop.permute.xlu0 %4922
        %4925 = vset.pattern.permute.xlu0 19
        %4926 = vperm.xlu0 %4925, %v1018
        %v4927 = vpop.permute.xlu0 %4926
        %4929 = vset.pattern.permute.xlu0 19
        %4930 = vperm.xlu0 %4929, %v1019
        %v4931 = vpop.permute.xlu0 %4930
        %4933 = vset.pattern.permute.xlu0 19
        %4934 = vperm.xlu0 %4933, %v1020
        %v4935 = vpop.permute.xlu0 %4934
        %4937 = vset.pattern.permute.xlu0 19
        %4938 = vperm.xlu0 %4937, %v1021
        %v4939 = vpop.permute.xlu0 %4938
        %4941 = vset.pattern.permute.xlu0 19
        %4942 = vperm.xlu0 %4941, %v1022
        %v4943 = vpop.permute.xlu0 %4942
        %4945 = vset.pattern.permute.xlu0 19
        %4946 = vperm.xlu0 %4945, %v1023
        %v4947 = vpop.permute.xlu0 %4946
        %v4949 = vlaneseq
        %v4950 = vshrl.u32 %v4949, 7
        %v4951 = vsub.s32 3, %v4950
        %v4952 = vrot.slane %v954, %v4951
        %v4953 = vadd.f32 %v4887, %v4952
        %v4954 = vadd.f32 %v4891, %v4952
        %v4955 = vadd.f32 %v4895, %v4952
        %v4956 = vadd.f32 %v4899, %v4952
        %v4957 = vadd.f32 %v4903, %v4952
        %v4958 = vadd.f32 %v4907, %v4952
        %v4959 = vadd.f32 %v4911, %v4952
        %v4960 = vadd.f32 %v4915, %v4952
        %v4961 = vadd.f32 %v4919, %v4952
        %v4962 = vadd.f32 %v4923, %v4952
        %v4963 = vadd.f32 %v4927, %v4952
        %v4964 = vadd.f32 %v4931, %v4952
        %v4965 = vadd.f32 %v4935, %v4952
        %v4966 = vadd.f32 %v4939, %v4952
        %v4967 = vadd.f32 %v4943, %v4952
        %v4968 = vadd.f32 %v4947, %v4952
        %vm4969 = vcmp.ge.f32.partialorder %v4953, 0.0
        %vm4970 = vcmp.ge.f32.partialorder %v4954, 0.0
        %vm4971 = vcmp.ge.f32.partialorder %v4955, 0.0
        %vm4972 = vcmp.ge.f32.partialorder %v4956, 0.0
        %vm4973 = vcmp.ge.f32.partialorder %v4957, 0.0
        %vm4974 = vcmp.ge.f32.partialorder %v4958, 0.0
        %vm4975 = vcmp.ge.f32.partialorder %v4959, 0.0
        %vm4976 = vcmp.ge.f32.partialorder %v4960, 0.0
        %vm4977 = vcmp.ge.f32.partialorder %v4961, 0.0
        %vm4978 = vcmp.ge.f32.partialorder %v4962, 0.0
        %vm4979 = vcmp.ge.f32.partialorder %v4963, 0.0
        %vm4980 = vcmp.ge.f32.partialorder %v4964, 0.0
        %vm4981 = vcmp.ge.f32.partialorder %v4965, 0.0
        %vm4982 = vcmp.ge.f32.partialorder %v4966, 0.0
        %vm4983 = vcmp.ge.f32.partialorder %v4967, 0.0
        %vm4984 = vcmp.ge.f32.partialorder %v4968, 0.0
        %v4985 = vmul.f32 %v4953, 0.2
        %v4986 = vmul.f32 %v4954, 0.2
        %v4987 = vmul.f32 %v4955, 0.2
        %v4988 = vmul.f32 %v4956, 0.2
        %v4989 = vmul.f32 %v4957, 0.2
        %v4990 = vmul.f32 %v4958, 0.2
        %v4991 = vmul.f32 %v4959, 0.2
        %v4992 = vmul.f32 %v4960, 0.2
        %v4993 = vmul.f32 %v4961, 0.2
        %v4994 = vmul.f32 %v4962, 0.2
        %v4995 = vmul.f32 %v4963, 0.2
        %v4996 = vmul.f32 %v4964, 0.2
        %v4997 = vmul.f32 %v4965, 0.2
        %v4998 = vmul.f32 %v4966, 0.2
        %v4999 = vmul.f32 %v4967, 0.2
        %v5000 = vmul.f32 %v4968, 0.2
        %v5001 = vsel %vm4969, %v4953, %v4985
        %v5002 = vsel %vm4970, %v4954, %v4986
        %v5003 = vsel %vm4971, %v4955, %v4987
        %v5004 = vsel %vm4972, %v4956, %v4988
        %v5005 = vsel %vm4973, %v4957, %v4989
        %v5006 = vsel %vm4974, %v4958, %v4990
        %v5007 = vsel %vm4975, %v4959, %v4991
        %v5008 = vsel %vm4976, %v4960, %v4992
        %v5009 = vsel %vm4977, %v4961, %v4993
        %v5010 = vsel %vm4978, %v4962, %v4994
        %v5011 = vsel %vm4979, %v4963, %v4995
        %v5012 = vsel %vm4980, %v4964, %v4996
        %v5013 = vsel %vm4981, %v4965, %v4997
        %v5014 = vsel %vm4982, %v4966, %v4998
        %v5015 = vsel %vm4983, %v4967, %v4999
        %v5016 = vsel %vm4984, %v4968, %v5000
        %s5017 = sld [smem:[#allocation6 + $0x83]]
        %v5018 = vstv %s5017
        %v5019 = vmul.f32 %v5018, %v5001
        %v5020 = vmul.f32 %v5018, %v5002
        %v5021 = vmul.f32 %v5018, %v5003
        %v5022 = vmul.f32 %v5018, %v5004
        %v5023 = vmul.f32 %v5018, %v5005
        %v5024 = vmul.f32 %v5018, %v5006
        %v5025 = vmul.f32 %v5018, %v5007
        %v5026 = vmul.f32 %v5018, %v5008
        %v5027 = vmul.f32 %v5018, %v5009
        %v5028 = vmul.f32 %v5018, %v5010
        %v5029 = vmul.f32 %v5018, %v5011
        %v5030 = vmul.f32 %v5018, %v5012
        %v5031 = vmul.f32 %v5018, %v5013
        %v5032 = vmul.f32 %v5018, %v5014
        %v5033 = vmul.f32 %v5018, %v5015
        %v5034 = vmul.f32 %v5018, %v5016
        %v5035 = vadd.f32 %v4869, %v5019
        %v5036 = vadd.f32 %v4870, %v5020
        %v5037 = vadd.f32 %v4871, %v5021
        %v5038 = vadd.f32 %v4872, %v5022
        %v5039 = vadd.f32 %v4873, %v5023
        %v5040 = vadd.f32 %v4874, %v5024
        %v5041 = vadd.f32 %v4875, %v5025
        %v5042 = vadd.f32 %v4876, %v5026
        %v5043 = vadd.f32 %v4877, %v5027
        %v5044 = vadd.f32 %v4878, %v5028
        %v5045 = vadd.f32 %v4879, %v5029
        %v5046 = vadd.f32 %v4880, %v5030
        %v5047 = vadd.f32 %v4881, %v5031
        %v5048 = vadd.f32 %v4882, %v5032
        %v5049 = vadd.f32 %v4883, %v5033
        %v5050 = vadd.f32 %v4884, %v5034
        %5051 = vset.pattern.permute.xlu0 20
        %5052 = vperm.xlu0 %5051, %v1008
        %v5053 = vpop.permute.xlu0 %5052
        %5055 = vset.pattern.permute.xlu0 20
        %5056 = vperm.xlu0 %5055, %v1009
        %v5057 = vpop.permute.xlu0 %5056
        %5059 = vset.pattern.permute.xlu0 20
        %5060 = vperm.xlu0 %5059, %v1010
        %v5061 = vpop.permute.xlu0 %5060
        %5063 = vset.pattern.permute.xlu0 20
        %5064 = vperm.xlu0 %5063, %v1011
        %v5065 = vpop.permute.xlu0 %5064
        %5067 = vset.pattern.permute.xlu0 20
        %5068 = vperm.xlu0 %5067, %v1012
        %v5069 = vpop.permute.xlu0 %5068
        %5071 = vset.pattern.permute.xlu0 20
        %5072 = vperm.xlu0 %5071, %v1013
        %v5073 = vpop.permute.xlu0 %5072
        %5075 = vset.pattern.permute.xlu0 20
        %5076 = vperm.xlu0 %5075, %v1014
        %v5077 = vpop.permute.xlu0 %5076
        %5079 = vset.pattern.permute.xlu0 20
        %5080 = vperm.xlu0 %5079, %v1015
        %v5081 = vpop.permute.xlu0 %5080
        %5083 = vset.pattern.permute.xlu0 20
        %5084 = vperm.xlu0 %5083, %v1016
        %v5085 = vpop.permute.xlu0 %5084
        %5087 = vset.pattern.permute.xlu0 20
        %5088 = vperm.xlu0 %5087, %v1017
        %v5089 = vpop.permute.xlu0 %5088
        %5091 = vset.pattern.permute.xlu0 20
        %5092 = vperm.xlu0 %5091, %v1018
        %v5093 = vpop.permute.xlu0 %5092
        %5095 = vset.pattern.permute.xlu0 20
        %5096 = vperm.xlu0 %5095, %v1019
        %v5097 = vpop.permute.xlu0 %5096
        %5099 = vset.pattern.permute.xlu0 20
        %5100 = vperm.xlu0 %5099, %v1020
        %v5101 = vpop.permute.xlu0 %5100
        %5103 = vset.pattern.permute.xlu0 20
        %5104 = vperm.xlu0 %5103, %v1021
        %v5105 = vpop.permute.xlu0 %5104
        %5107 = vset.pattern.permute.xlu0 20
        %5108 = vperm.xlu0 %5107, %v1022
        %v5109 = vpop.permute.xlu0 %5108
        %5111 = vset.pattern.permute.xlu0 20
        %5112 = vperm.xlu0 %5111, %v1023
        %v5113 = vpop.permute.xlu0 %5112
        %v5115 = vlaneseq
        %v5116 = vshrl.u32 %v5115, 7
        %v5117 = vsub.s32 4, %v5116
        %v5118 = vrot.slane %v954, %v5117
        %v5119 = vadd.f32 %v5053, %v5118
        %v5120 = vadd.f32 %v5057, %v5118
        %v5121 = vadd.f32 %v5061, %v5118
        %v5122 = vadd.f32 %v5065, %v5118
        %v5123 = vadd.f32 %v5069, %v5118
        %v5124 = vadd.f32 %v5073, %v5118
        %v5125 = vadd.f32 %v5077, %v5118
        %v5126 = vadd.f32 %v5081, %v5118
        %v5127 = vadd.f32 %v5085, %v5118
        %v5128 = vadd.f32 %v5089, %v5118
        %v5129 = vadd.f32 %v5093, %v5118
        %v5130 = vadd.f32 %v5097, %v5118
        %v5131 = vadd.f32 %v5101, %v5118
        %v5132 = vadd.f32 %v5105, %v5118
        %v5133 = vadd.f32 %v5109, %v5118
        %v5134 = vadd.f32 %v5113, %v5118
        %vm5135 = vcmp.ge.f32.partialorder %v5119, 0.0
        %vm5136 = vcmp.ge.f32.partialorder %v5120, 0.0
        %vm5137 = vcmp.ge.f32.partialorder %v5121, 0.0
        %vm5138 = vcmp.ge.f32.partialorder %v5122, 0.0
        %vm5139 = vcmp.ge.f32.partialorder %v5123, 0.0
        %vm5140 = vcmp.ge.f32.partialorder %v5124, 0.0
        %vm5141 = vcmp.ge.f32.partialorder %v5125, 0.0
        %vm5142 = vcmp.ge.f32.partialorder %v5126, 0.0
        %vm5143 = vcmp.ge.f32.partialorder %v5127, 0.0
        %vm5144 = vcmp.ge.f32.partialorder %v5128, 0.0
        %vm5145 = vcmp.ge.f32.partialorder %v5129, 0.0
        %vm5146 = vcmp.ge.f32.partialorder %v5130, 0.0
        %vm5147 = vcmp.ge.f32.partialorder %v5131, 0.0
        %vm5148 = vcmp.ge.f32.partialorder %v5132, 0.0
        %vm5149 = vcmp.ge.f32.partialorder %v5133, 0.0
        %vm5150 = vcmp.ge.f32.partialorder %v5134, 0.0
        %v5151 = vmul.f32 %v5119, 0.2
        %v5152 = vmul.f32 %v5120, 0.2
        %v5153 = vmul.f32 %v5121, 0.2
        %v5154 = vmul.f32 %v5122, 0.2
        %v5155 = vmul.f32 %v5123, 0.2
        %v5156 = vmul.f32 %v5124, 0.2
        %v5157 = vmul.f32 %v5125, 0.2
        %v5158 = vmul.f32 %v5126, 0.2
        %v5159 = vmul.f32 %v5127, 0.2
        %v5160 = vmul.f32 %v5128, 0.2
        %v5161 = vmul.f32 %v5129, 0.2
        %v5162 = vmul.f32 %v5130, 0.2
        %v5163 = vmul.f32 %v5131, 0.2
        %v5164 = vmul.f32 %v5132, 0.2
        %v5165 = vmul.f32 %v5133, 0.2
        %v5166 = vmul.f32 %v5134, 0.2
        %v5167 = vsel %vm5135, %v5119, %v5151
        %v5168 = vsel %vm5136, %v5120, %v5152
        %v5169 = vsel %vm5137, %v5121, %v5153
        %v5170 = vsel %vm5138, %v5122, %v5154
        %v5171 = vsel %vm5139, %v5123, %v5155
        %v5172 = vsel %vm5140, %v5124, %v5156
        %v5173 = vsel %vm5141, %v5125, %v5157
        %v5174 = vsel %vm5142, %v5126, %v5158
        %v5175 = vsel %vm5143, %v5127, %v5159
        %v5176 = vsel %vm5144, %v5128, %v5160
        %v5177 = vsel %vm5145, %v5129, %v5161
        %v5178 = vsel %vm5146, %v5130, %v5162
        %v5179 = vsel %vm5147, %v5131, %v5163
        %v5180 = vsel %vm5148, %v5132, %v5164
        %v5181 = vsel %vm5149, %v5133, %v5165
        %v5182 = vsel %vm5150, %v5134, %v5166
        %s5183 = sld [smem:[#allocation6 + $0x84]]
        %v5184 = vstv %s5183
        %v5185 = vmul.f32 %v5184, %v5167
        %v5186 = vmul.f32 %v5184, %v5168
        %v5187 = vmul.f32 %v5184, %v5169
        %v5188 = vmul.f32 %v5184, %v5170
        %v5189 = vmul.f32 %v5184, %v5171
        %v5190 = vmul.f32 %v5184, %v5172
        %v5191 = vmul.f32 %v5184, %v5173
        %v5192 = vmul.f32 %v5184, %v5174
        %v5193 = vmul.f32 %v5184, %v5175
        %v5194 = vmul.f32 %v5184, %v5176
        %v5195 = vmul.f32 %v5184, %v5177
        %v5196 = vmul.f32 %v5184, %v5178
        %v5197 = vmul.f32 %v5184, %v5179
        %v5198 = vmul.f32 %v5184, %v5180
        %v5199 = vmul.f32 %v5184, %v5181
        %v5200 = vmul.f32 %v5184, %v5182
        %v5201 = vadd.f32 %v5035, %v5185
        %v5202 = vadd.f32 %v5036, %v5186
        %v5203 = vadd.f32 %v5037, %v5187
        %v5204 = vadd.f32 %v5038, %v5188
        %v5205 = vadd.f32 %v5039, %v5189
        %v5206 = vadd.f32 %v5040, %v5190
        %v5207 = vadd.f32 %v5041, %v5191
        %v5208 = vadd.f32 %v5042, %v5192
        %v5209 = vadd.f32 %v5043, %v5193
        %v5210 = vadd.f32 %v5044, %v5194
        %v5211 = vadd.f32 %v5045, %v5195
        %v5212 = vadd.f32 %v5046, %v5196
        %v5213 = vadd.f32 %v5047, %v5197
        %v5214 = vadd.f32 %v5048, %v5198
        %v5215 = vadd.f32 %v5049, %v5199
        %v5216 = vadd.f32 %v5050, %v5200
        %5217 = vset.pattern.permute.xlu0 21
        %5218 = vperm.xlu0 %5217, %v1008
        %v5219 = vpop.permute.xlu0 %5218
        %5221 = vset.pattern.permute.xlu0 21
        %5222 = vperm.xlu0 %5221, %v1009
        %v5223 = vpop.permute.xlu0 %5222
        %5225 = vset.pattern.permute.xlu0 21
        %5226 = vperm.xlu0 %5225, %v1010
        %v5227 = vpop.permute.xlu0 %5226
        %5229 = vset.pattern.permute.xlu0 21
        %5230 = vperm.xlu0 %5229, %v1011
        %v5231 = vpop.permute.xlu0 %5230
        %5233 = vset.pattern.permute.xlu0 21
        %5234 = vperm.xlu0 %5233, %v1012
        %v5235 = vpop.permute.xlu0 %5234
        %5237 = vset.pattern.permute.xlu0 21
        %5238 = vperm.xlu0 %5237, %v1013
        %v5239 = vpop.permute.xlu0 %5238
        %5241 = vset.pattern.permute.xlu0 21
        %5242 = vperm.xlu0 %5241, %v1014
        %v5243 = vpop.permute.xlu0 %5242
        %5245 = vset.pattern.permute.xlu0 21
        %5246 = vperm.xlu0 %5245, %v1015
        %v5247 = vpop.permute.xlu0 %5246
        %5249 = vset.pattern.permute.xlu0 21
        %5250 = vperm.xlu0 %5249, %v1016
        %v5251 = vpop.permute.xlu0 %5250
        %5253 = vset.pattern.permute.xlu0 21
        %5254 = vperm.xlu0 %5253, %v1017
        %v5255 = vpop.permute.xlu0 %5254
        %5257 = vset.pattern.permute.xlu0 21
        %5258 = vperm.xlu0 %5257, %v1018
        %v5259 = vpop.permute.xlu0 %5258
        %5261 = vset.pattern.permute.xlu0 21
        %5262 = vperm.xlu0 %5261, %v1019
        %v5263 = vpop.permute.xlu0 %5262
        %5265 = vset.pattern.permute.xlu0 21
        %5266 = vperm.xlu0 %5265, %v1020
        %v5267 = vpop.permute.xlu0 %5266
        %5269 = vset.pattern.permute.xlu0 21
        %5270 = vperm.xlu0 %5269, %v1021
        %v5271 = vpop.permute.xlu0 %5270
        %5273 = vset.pattern.permute.xlu0 21
        %5274 = vperm.xlu0 %5273, %v1022
        %v5275 = vpop.permute.xlu0 %5274
        %5277 = vset.pattern.permute.xlu0 21
        %5278 = vperm.xlu0 %5277, %v1023
        %v5279 = vpop.permute.xlu0 %5278
        %v5281 = vlaneseq
        %v5282 = vshrl.u32 %v5281, 7
        %v5283 = vsub.s32 5, %v5282
        %v5284 = vrot.slane %v954, %v5283
        %v5285 = vadd.f32 %v5219, %v5284
        %v5286 = vadd.f32 %v5223, %v5284
        %v5287 = vadd.f32 %v5227, %v5284
        %v5288 = vadd.f32 %v5231, %v5284
        %v5289 = vadd.f32 %v5235, %v5284
        %v5290 = vadd.f32 %v5239, %v5284
        %v5291 = vadd.f32 %v5243, %v5284
        %v5292 = vadd.f32 %v5247, %v5284
        %v5293 = vadd.f32 %v5251, %v5284
        %v5294 = vadd.f32 %v5255, %v5284
        %v5295 = vadd.f32 %v5259, %v5284
        %v5296 = vadd.f32 %v5263, %v5284
        %v5297 = vadd.f32 %v5267, %v5284
        %v5298 = vadd.f32 %v5271, %v5284
        %v5299 = vadd.f32 %v5275, %v5284
        %v5300 = vadd.f32 %v5279, %v5284
        %vm5301 = vcmp.ge.f32.partialorder %v5285, 0.0
        %vm5302 = vcmp.ge.f32.partialorder %v5286, 0.0
        %vm5303 = vcmp.ge.f32.partialorder %v5287, 0.0
        %vm5304 = vcmp.ge.f32.partialorder %v5288, 0.0
        %vm5305 = vcmp.ge.f32.partialorder %v5289, 0.0
        %vm5306 = vcmp.ge.f32.partialorder %v5290, 0.0
        %vm5307 = vcmp.ge.f32.partialorder %v5291, 0.0
        %vm5308 = vcmp.ge.f32.partialorder %v5292, 0.0
        %vm5309 = vcmp.ge.f32.partialorder %v5293, 0.0
        %vm5310 = vcmp.ge.f32.partialorder %v5294, 0.0
        %vm5311 = vcmp.ge.f32.partialorder %v5295, 0.0
        %vm5312 = vcmp.ge.f32.partialorder %v5296, 0.0
        %vm5313 = vcmp.ge.f32.partialorder %v5297, 0.0
        %vm5314 = vcmp.ge.f32.partialorder %v5298, 0.0
        %vm5315 = vcmp.ge.f32.partialorder %v5299, 0.0
        %vm5316 = vcmp.ge.f32.partialorder %v5300, 0.0
        %v5317 = vmul.f32 %v5285, 0.2
        %v5318 = vmul.f32 %v5286, 0.2
        %v5319 = vmul.f32 %v5287, 0.2
        %v5320 = vmul.f32 %v5288, 0.2
        %v5321 = vmul.f32 %v5289, 0.2
        %v5322 = vmul.f32 %v5290, 0.2
        %v5323 = vmul.f32 %v5291, 0.2
        %v5324 = vmul.f32 %v5292, 0.2
        %v5325 = vmul.f32 %v5293, 0.2
        %v5326 = vmul.f32 %v5294, 0.2
        %v5327 = vmul.f32 %v5295, 0.2
        %v5328 = vmul.f32 %v5296, 0.2
        %v5329 = vmul.f32 %v5297, 0.2
        %v5330 = vmul.f32 %v5298, 0.2
        %v5331 = vmul.f32 %v5299, 0.2
        %v5332 = vmul.f32 %v5300, 0.2
        %v5333 = vsel %vm5301, %v5285, %v5317
        %v5334 = vsel %vm5302, %v5286, %v5318
        %v5335 = vsel %vm5303, %v5287, %v5319
        %v5336 = vsel %vm5304, %v5288, %v5320
        %v5337 = vsel %vm5305, %v5289, %v5321
        %v5338 = vsel %vm5306, %v5290, %v5322
        %v5339 = vsel %vm5307, %v5291, %v5323
        %v5340 = vsel %vm5308, %v5292, %v5324
        %v5341 = vsel %vm5309, %v5293, %v5325
        %v5342 = vsel %vm5310, %v5294, %v5326
        %v5343 = vsel %vm5311, %v5295, %v5327
        %v5344 = vsel %vm5312, %v5296, %v5328
        %v5345 = vsel %vm5313, %v5297, %v5329
        %v5346 = vsel %vm5314, %v5298, %v5330
        %v5347 = vsel %vm5315, %v5299, %v5331
        %v5348 = vsel %vm5316, %v5300, %v5332
        %s5349 = sld [smem:[#allocation6 + $0x85]]
        %v5350 = vstv %s5349
        %v5351 = vmul.f32 %v5350, %v5333
        %v5352 = vmul.f32 %v5350, %v5334
        %v5353 = vmul.f32 %v5350, %v5335
        %v5354 = vmul.f32 %v5350, %v5336
        %v5355 = vmul.f32 %v5350, %v5337
        %v5356 = vmul.f32 %v5350, %v5338
        %v5357 = vmul.f32 %v5350, %v5339
        %v5358 = vmul.f32 %v5350, %v5340
        %v5359 = vmul.f32 %v5350, %v5341
        %v5360 = vmul.f32 %v5350, %v5342
        %v5361 = vmul.f32 %v5350, %v5343
        %v5362 = vmul.f32 %v5350, %v5344
        %v5363 = vmul.f32 %v5350, %v5345
        %v5364 = vmul.f32 %v5350, %v5346
        %v5365 = vmul.f32 %v5350, %v5347
        %v5366 = vmul.f32 %v5350, %v5348
        %v5367 = vadd.f32 %v5201, %v5351
        %v5368 = vadd.f32 %v5202, %v5352
        %v5369 = vadd.f32 %v5203, %v5353
        %v5370 = vadd.f32 %v5204, %v5354
        %v5371 = vadd.f32 %v5205, %v5355
        %v5372 = vadd.f32 %v5206, %v5356
        %v5373 = vadd.f32 %v5207, %v5357
        %v5374 = vadd.f32 %v5208, %v5358
        %v5375 = vadd.f32 %v5209, %v5359
        %v5376 = vadd.f32 %v5210, %v5360
        %v5377 = vadd.f32 %v5211, %v5361
        %v5378 = vadd.f32 %v5212, %v5362
        %v5379 = vadd.f32 %v5213, %v5363
        %v5380 = vadd.f32 %v5214, %v5364
        %v5381 = vadd.f32 %v5215, %v5365
        %v5382 = vadd.f32 %v5216, %v5366
        %5383 = vset.pattern.permute.xlu0 22
        %5384 = vperm.xlu0 %5383, %v1008
        %v5385 = vpop.permute.xlu0 %5384
        %5387 = vset.pattern.permute.xlu0 22
        %5388 = vperm.xlu0 %5387, %v1009
        %v5389 = vpop.permute.xlu0 %5388
        %5391 = vset.pattern.permute.xlu0 22
        %5392 = vperm.xlu0 %5391, %v1010
        %v5393 = vpop.permute.xlu0 %5392
        %5395 = vset.pattern.permute.xlu0 22
        %5396 = vperm.xlu0 %5395, %v1011
        %v5397 = vpop.permute.xlu0 %5396
        %5399 = vset.pattern.permute.xlu0 22
        %5400 = vperm.xlu0 %5399, %v1012
        %v5401 = vpop.permute.xlu0 %5400
        %5403 = vset.pattern.permute.xlu0 22
        %5404 = vperm.xlu0 %5403, %v1013
        %v5405 = vpop.permute.xlu0 %5404
        %5407 = vset.pattern.permute.xlu0 22
        %5408 = vperm.xlu0 %5407, %v1014
        %v5409 = vpop.permute.xlu0 %5408
        %5411 = vset.pattern.permute.xlu0 22
        %5412 = vperm.xlu0 %5411, %v1015
        %v5413 = vpop.permute.xlu0 %5412
        %5415 = vset.pattern.permute.xlu0 22
        %5416 = vperm.xlu0 %5415, %v1016
        %v5417 = vpop.permute.xlu0 %5416
        %5419 = vset.pattern.permute.xlu0 22
        %5420 = vperm.xlu0 %5419, %v1017
        %v5421 = vpop.permute.xlu0 %5420
        %5423 = vset.pattern.permute.xlu0 22
        %5424 = vperm.xlu0 %5423, %v1018
        %v5425 = vpop.permute.xlu0 %5424
        %5427 = vset.pattern.permute.xlu0 22
        %5428 = vperm.xlu0 %5427, %v1019
        %v5429 = vpop.permute.xlu0 %5428
        %5431 = vset.pattern.permute.xlu0 22
        %5432 = vperm.xlu0 %5431, %v1020
        %v5433 = vpop.permute.xlu0 %5432
        %5435 = vset.pattern.permute.xlu0 22
        %5436 = vperm.xlu0 %5435, %v1021
        %v5437 = vpop.permute.xlu0 %5436
        %5439 = vset.pattern.permute.xlu0 22
        %5440 = vperm.xlu0 %5439, %v1022
        %v5441 = vpop.permute.xlu0 %5440
        %5443 = vset.pattern.permute.xlu0 22
        %5444 = vperm.xlu0 %5443, %v1023
        %v5445 = vpop.permute.xlu0 %5444
        %v5447 = vlaneseq
        %v5448 = vshrl.u32 %v5447, 7
        %v5449 = vsub.s32 6, %v5448
        %v5450 = vrot.slane %v954, %v5449
        %v5451 = vadd.f32 %v5385, %v5450
        %v5452 = vadd.f32 %v5389, %v5450
        %v5453 = vadd.f32 %v5393, %v5450
        %v5454 = vadd.f32 %v5397, %v5450
        %v5455 = vadd.f32 %v5401, %v5450
        %v5456 = vadd.f32 %v5405, %v5450
        %v5457 = vadd.f32 %v5409, %v5450
        %v5458 = vadd.f32 %v5413, %v5450
        %v5459 = vadd.f32 %v5417, %v5450
        %v5460 = vadd.f32 %v5421, %v5450
        %v5461 = vadd.f32 %v5425, %v5450
        %v5462 = vadd.f32 %v5429, %v5450
        %v5463 = vadd.f32 %v5433, %v5450
        %v5464 = vadd.f32 %v5437, %v5450
        %v5465 = vadd.f32 %v5441, %v5450
        %v5466 = vadd.f32 %v5445, %v5450
        %vm5467 = vcmp.ge.f32.partialorder %v5451, 0.0
        %vm5468 = vcmp.ge.f32.partialorder %v5452, 0.0
        %vm5469 = vcmp.ge.f32.partialorder %v5453, 0.0
        %vm5470 = vcmp.ge.f32.partialorder %v5454, 0.0
        %vm5471 = vcmp.ge.f32.partialorder %v5455, 0.0
        %vm5472 = vcmp.ge.f32.partialorder %v5456, 0.0
        %vm5473 = vcmp.ge.f32.partialorder %v5457, 0.0
        %vm5474 = vcmp.ge.f32.partialorder %v5458, 0.0
        %vm5475 = vcmp.ge.f32.partialorder %v5459, 0.0
        %vm5476 = vcmp.ge.f32.partialorder %v5460, 0.0
        %vm5477 = vcmp.ge.f32.partialorder %v5461, 0.0
        %vm5478 = vcmp.ge.f32.partialorder %v5462, 0.0
        %vm5479 = vcmp.ge.f32.partialorder %v5463, 0.0
        %vm5480 = vcmp.ge.f32.partialorder %v5464, 0.0
        %vm5481 = vcmp.ge.f32.partialorder %v5465, 0.0
        %vm5482 = vcmp.ge.f32.partialorder %v5466, 0.0
        %v5483 = vmul.f32 %v5451, 0.2
        %v5484 = vmul.f32 %v5452, 0.2
        %v5485 = vmul.f32 %v5453, 0.2
        %v5486 = vmul.f32 %v5454, 0.2
        %v5487 = vmul.f32 %v5455, 0.2
        %v5488 = vmul.f32 %v5456, 0.2
        %v5489 = vmul.f32 %v5457, 0.2
        %v5490 = vmul.f32 %v5458, 0.2
        %v5491 = vmul.f32 %v5459, 0.2
        %v5492 = vmul.f32 %v5460, 0.2
        %v5493 = vmul.f32 %v5461, 0.2
        %v5494 = vmul.f32 %v5462, 0.2
        %v5495 = vmul.f32 %v5463, 0.2
        %v5496 = vmul.f32 %v5464, 0.2
        %v5497 = vmul.f32 %v5465, 0.2
        %v5498 = vmul.f32 %v5466, 0.2
        %v5499 = vsel %vm5467, %v5451, %v5483
        %v5500 = vsel %vm5468, %v5452, %v5484
        %v5501 = vsel %vm5469, %v5453, %v5485
        %v5502 = vsel %vm5470, %v5454, %v5486
        %v5503 = vsel %vm5471, %v5455, %v5487
        %v5504 = vsel %vm5472, %v5456, %v5488
        %v5505 = vsel %vm5473, %v5457, %v5489
        %v5506 = vsel %vm5474, %v5458, %v5490
        %v5507 = vsel %vm5475, %v5459, %v5491
        %v5508 = vsel %vm5476, %v5460, %v5492
        %v5509 = vsel %vm5477, %v5461, %v5493
        %v5510 = vsel %vm5478, %v5462, %v5494
        %v5511 = vsel %vm5479, %v5463, %v5495
        %v5512 = vsel %vm5480, %v5464, %v5496
        %v5513 = vsel %vm5481, %v5465, %v5497
        %v5514 = vsel %vm5482, %v5466, %v5498
        %s5515 = sld [smem:[#allocation6 + $0x86]]
        %v5516 = vstv %s5515
        %v5517 = vmul.f32 %v5516, %v5499
        %v5518 = vmul.f32 %v5516, %v5500
        %v5519 = vmul.f32 %v5516, %v5501
        %v5520 = vmul.f32 %v5516, %v5502
        %v5521 = vmul.f32 %v5516, %v5503
        %v5522 = vmul.f32 %v5516, %v5504
        %v5523 = vmul.f32 %v5516, %v5505
        %v5524 = vmul.f32 %v5516, %v5506
        %v5525 = vmul.f32 %v5516, %v5507
        %v5526 = vmul.f32 %v5516, %v5508
        %v5527 = vmul.f32 %v5516, %v5509
        %v5528 = vmul.f32 %v5516, %v5510
        %v5529 = vmul.f32 %v5516, %v5511
        %v5530 = vmul.f32 %v5516, %v5512
        %v5531 = vmul.f32 %v5516, %v5513
        %v5532 = vmul.f32 %v5516, %v5514
        %v5533 = vadd.f32 %v5367, %v5517
        %v5534 = vadd.f32 %v5368, %v5518
        %v5535 = vadd.f32 %v5369, %v5519
        %v5536 = vadd.f32 %v5370, %v5520
        %v5537 = vadd.f32 %v5371, %v5521
        %v5538 = vadd.f32 %v5372, %v5522
        %v5539 = vadd.f32 %v5373, %v5523
        %v5540 = vadd.f32 %v5374, %v5524
        %v5541 = vadd.f32 %v5375, %v5525
        %v5542 = vadd.f32 %v5376, %v5526
        %v5543 = vadd.f32 %v5377, %v5527
        %v5544 = vadd.f32 %v5378, %v5528
        %v5545 = vadd.f32 %v5379, %v5529
        %v5546 = vadd.f32 %v5380, %v5530
        %v5547 = vadd.f32 %v5381, %v5531
        %v5548 = vadd.f32 %v5382, %v5532
        %5549 = vset.pattern.permute.xlu0 23
        %5550 = vperm.xlu0 %5549, %v1008
        %v5551 = vpop.permute.xlu0 %5550
        %5553 = vset.pattern.permute.xlu0 23
        %5554 = vperm.xlu0 %5553, %v1009
        %v5555 = vpop.permute.xlu0 %5554
        %5557 = vset.pattern.permute.xlu0 23
        %5558 = vperm.xlu0 %5557, %v1010
        %v5559 = vpop.permute.xlu0 %5558
        %5561 = vset.pattern.permute.xlu0 23
        %5562 = vperm.xlu0 %5561, %v1011
        %v5563 = vpop.permute.xlu0 %5562
        %5565 = vset.pattern.permute.xlu0 23
        %5566 = vperm.xlu0 %5565, %v1012
        %v5567 = vpop.permute.xlu0 %5566
        %5569 = vset.pattern.permute.xlu0 23
        %5570 = vperm.xlu0 %5569, %v1013
        %v5571 = vpop.permute.xlu0 %5570
        %5573 = vset.pattern.permute.xlu0 23
        %5574 = vperm.xlu0 %5573, %v1014
        %v5575 = vpop.permute.xlu0 %5574
        %5577 = vset.pattern.permute.xlu0 23
        %5578 = vperm.xlu0 %5577, %v1015
        %v5579 = vpop.permute.xlu0 %5578
        %5581 = vset.pattern.permute.xlu0 23
        %5582 = vperm.xlu0 %5581, %v1016
        %v5583 = vpop.permute.xlu0 %5582
        %5585 = vset.pattern.permute.xlu0 23
        %5586 = vperm.xlu0 %5585, %v1017
        %v5587 = vpop.permute.xlu0 %5586
        %5589 = vset.pattern.permute.xlu0 23
        %5590 = vperm.xlu0 %5589, %v1018
        %v5591 = vpop.permute.xlu0 %5590
        %5593 = vset.pattern.permute.xlu0 23
        %5594 = vperm.xlu0 %5593, %v1019
        %v5595 = vpop.permute.xlu0 %5594
        %5597 = vset.pattern.permute.xlu0 23
        %5598 = vperm.xlu0 %5597, %v1020
        %v5599 = vpop.permute.xlu0 %5598
        %5601 = vset.pattern.permute.xlu0 23
        %5602 = vperm.xlu0 %5601, %v1021
        %v5603 = vpop.permute.xlu0 %5602
        %5605 = vset.pattern.permute.xlu0 23
        %5606 = vperm.xlu0 %5605, %v1022
        %v5607 = vpop.permute.xlu0 %5606
        %5609 = vset.pattern.permute.xlu0 23
        %5610 = vperm.xlu0 %5609, %v1023
        %v5611 = vpop.permute.xlu0 %5610
        %v5613 = vlaneseq
        %v5614 = vshrl.u32 %v5613, 7
        %v5615 = vsub.s32 7, %v5614
        %v5616 = vrot.slane %v954, %v5615
        %v5617 = vadd.f32 %v5551, %v5616
        %v5618 = vadd.f32 %v5555, %v5616
        %v5619 = vadd.f32 %v5559, %v5616
        %v5620 = vadd.f32 %v5563, %v5616
        %v5621 = vadd.f32 %v5567, %v5616
        %v5622 = vadd.f32 %v5571, %v5616
        %v5623 = vadd.f32 %v5575, %v5616
        %v5624 = vadd.f32 %v5579, %v5616
        %v5625 = vadd.f32 %v5583, %v5616
        %v5626 = vadd.f32 %v5587, %v5616
        %v5627 = vadd.f32 %v5591, %v5616
        %v5628 = vadd.f32 %v5595, %v5616
        %v5629 = vadd.f32 %v5599, %v5616
        %v5630 = vadd.f32 %v5603, %v5616
        %v5631 = vadd.f32 %v5607, %v5616
        %v5632 = vadd.f32 %v5611, %v5616
        %vm5633 = vcmp.ge.f32.partialorder %v5617, 0.0
        %vm5634 = vcmp.ge.f32.partialorder %v5618, 0.0
        %vm5635 = vcmp.ge.f32.partialorder %v5619, 0.0
        %vm5636 = vcmp.ge.f32.partialorder %v5620, 0.0
        %vm5637 = vcmp.ge.f32.partialorder %v5621, 0.0
        %vm5638 = vcmp.ge.f32.partialorder %v5622, 0.0
        %vm5639 = vcmp.ge.f32.partialorder %v5623, 0.0
        %vm5640 = vcmp.ge.f32.partialorder %v5624, 0.0
        %vm5641 = vcmp.ge.f32.partialorder %v5625, 0.0
        %vm5642 = vcmp.ge.f32.partialorder %v5626, 0.0
        %vm5643 = vcmp.ge.f32.partialorder %v5627, 0.0
        %vm5644 = vcmp.ge.f32.partialorder %v5628, 0.0
        %vm5645 = vcmp.ge.f32.partialorder %v5629, 0.0
        %vm5646 = vcmp.ge.f32.partialorder %v5630, 0.0
        %vm5647 = vcmp.ge.f32.partialorder %v5631, 0.0
        %vm5648 = vcmp.ge.f32.partialorder %v5632, 0.0
        %v5649 = vmul.f32 %v5617, 0.2
        %v5650 = vmul.f32 %v5618, 0.2
        %v5651 = vmul.f32 %v5619, 0.2
        %v5652 = vmul.f32 %v5620, 0.2
        %v5653 = vmul.f32 %v5621, 0.2
        %v5654 = vmul.f32 %v5622, 0.2
        %v5655 = vmul.f32 %v5623, 0.2
        %v5656 = vmul.f32 %v5624, 0.2
        %v5657 = vmul.f32 %v5625, 0.2
        %v5658 = vmul.f32 %v5626, 0.2
        %v5659 = vmul.f32 %v5627, 0.2
        %v5660 = vmul.f32 %v5628, 0.2
        %v5661 = vmul.f32 %v5629, 0.2
        %v5662 = vmul.f32 %v5630, 0.2
        %v5663 = vmul.f32 %v5631, 0.2
        %v5664 = vmul.f32 %v5632, 0.2
        %v5665 = vsel %vm5633, %v5617, %v5649
        %v5666 = vsel %vm5634, %v5618, %v5650
        %v5667 = vsel %vm5635, %v5619, %v5651
        %v5668 = vsel %vm5636, %v5620, %v5652
        %v5669 = vsel %vm5637, %v5621, %v5653
        %v5670 = vsel %vm5638, %v5622, %v5654
        %v5671 = vsel %vm5639, %v5623, %v5655
        %v5672 = vsel %vm5640, %v5624, %v5656
        %v5673 = vsel %vm5641, %v5625, %v5657
        %v5674 = vsel %vm5642, %v5626, %v5658
        %v5675 = vsel %vm5643, %v5627, %v5659
        %v5676 = vsel %vm5644, %v5628, %v5660
        %v5677 = vsel %vm5645, %v5629, %v5661
        %v5678 = vsel %vm5646, %v5630, %v5662
        %v5679 = vsel %vm5647, %v5631, %v5663
        %v5680 = vsel %vm5648, %v5632, %v5664
        %s5681 = sld [smem:[#allocation6 + $0x87]]
        %v5682 = vstv %s5681
        %v5683 = vmul.f32 %v5682, %v5665
        %v5684 = vmul.f32 %v5682, %v5666
        %v5685 = vmul.f32 %v5682, %v5667
        %v5686 = vmul.f32 %v5682, %v5668
        %v5687 = vmul.f32 %v5682, %v5669
        %v5688 = vmul.f32 %v5682, %v5670
        %v5689 = vmul.f32 %v5682, %v5671
        %v5690 = vmul.f32 %v5682, %v5672
        %v5691 = vmul.f32 %v5682, %v5673
        %v5692 = vmul.f32 %v5682, %v5674
        %v5693 = vmul.f32 %v5682, %v5675
        %v5694 = vmul.f32 %v5682, %v5676
        %v5695 = vmul.f32 %v5682, %v5677
        %v5696 = vmul.f32 %v5682, %v5678
        %v5697 = vmul.f32 %v5682, %v5679
        %v5698 = vmul.f32 %v5682, %v5680
        %v5699 = vadd.f32 %v5533, %v5683
        %v5700 = vadd.f32 %v5534, %v5684
        %v5701 = vadd.f32 %v5535, %v5685
        %v5702 = vadd.f32 %v5536, %v5686
        %v5703 = vadd.f32 %v5537, %v5687
        %v5704 = vadd.f32 %v5538, %v5688
        %v5705 = vadd.f32 %v5539, %v5689
        %v5706 = vadd.f32 %v5540, %v5690
        %v5707 = vadd.f32 %v5541, %v5691
        %v5708 = vadd.f32 %v5542, %v5692
        %v5709 = vadd.f32 %v5543, %v5693
        %v5710 = vadd.f32 %v5544, %v5694
        %v5711 = vadd.f32 %v5545, %v5695
        %v5712 = vadd.f32 %v5546, %v5696
        %v5713 = vadd.f32 %v5547, %v5697
        %v5714 = vadd.f32 %v5548, %v5698
        %5715 = vset.pattern.permute.xlu0 24
        %5716 = vperm.xlu0 %5715, %v1008
        %v5717 = vpop.permute.xlu0 %5716
        %5719 = vset.pattern.permute.xlu0 24
        %5720 = vperm.xlu0 %5719, %v1009
        %v5721 = vpop.permute.xlu0 %5720
        %5723 = vset.pattern.permute.xlu0 24
        %5724 = vperm.xlu0 %5723, %v1010
        %v5725 = vpop.permute.xlu0 %5724
        %5727 = vset.pattern.permute.xlu0 24
        %5728 = vperm.xlu0 %5727, %v1011
        %v5729 = vpop.permute.xlu0 %5728
        %5731 = vset.pattern.permute.xlu0 24
        %5732 = vperm.xlu0 %5731, %v1012
        %v5733 = vpop.permute.xlu0 %5732
        %5735 = vset.pattern.permute.xlu0 24
        %5736 = vperm.xlu0 %5735, %v1013
        %v5737 = vpop.permute.xlu0 %5736
        %5739 = vset.pattern.permute.xlu0 24
        %5740 = vperm.xlu0 %5739, %v1014
        %v5741 = vpop.permute.xlu0 %5740
        %5743 = vset.pattern.permute.xlu0 24
        %5744 = vperm.xlu0 %5743, %v1015
        %v5745 = vpop.permute.xlu0 %5744
        %5747 = vset.pattern.permute.xlu0 24
        %5748 = vperm.xlu0 %5747, %v1016
        %v5749 = vpop.permute.xlu0 %5748
        %5751 = vset.pattern.permute.xlu0 24
        %5752 = vperm.xlu0 %5751, %v1017
        %v5753 = vpop.permute.xlu0 %5752
        %5755 = vset.pattern.permute.xlu0 24
        %5756 = vperm.xlu0 %5755, %v1018
        %v5757 = vpop.permute.xlu0 %5756
        %5759 = vset.pattern.permute.xlu0 24
        %5760 = vperm.xlu0 %5759, %v1019
        %v5761 = vpop.permute.xlu0 %5760
        %5763 = vset.pattern.permute.xlu0 24
        %5764 = vperm.xlu0 %5763, %v1020
        %v5765 = vpop.permute.xlu0 %5764
        %5767 = vset.pattern.permute.xlu0 24
        %5768 = vperm.xlu0 %5767, %v1021
        %v5769 = vpop.permute.xlu0 %5768
        %5771 = vset.pattern.permute.xlu0 24
        %5772 = vperm.xlu0 %5771, %v1022
        %v5773 = vpop.permute.xlu0 %5772
        %5775 = vset.pattern.permute.xlu0 24
        %5776 = vperm.xlu0 %5775, %v1023
        %v5777 = vpop.permute.xlu0 %5776
        %v5779 = vlaneseq
        %v5780 = vshrl.u32 %v5779, 7
        %v5781 = vsub.s32 0, %v5780
        %v5782 = vrot.slane %v957, %v5781
        %v5783 = vadd.f32 %v5717, %v5782
        %v5784 = vadd.f32 %v5721, %v5782
        %v5785 = vadd.f32 %v5725, %v5782
        %v5786 = vadd.f32 %v5729, %v5782
        %v5787 = vadd.f32 %v5733, %v5782
        %v5788 = vadd.f32 %v5737, %v5782
        %v5789 = vadd.f32 %v5741, %v5782
        %v5790 = vadd.f32 %v5745, %v5782
        %v5791 = vadd.f32 %v5749, %v5782
        %v5792 = vadd.f32 %v5753, %v5782
        %v5793 = vadd.f32 %v5757, %v5782
        %v5794 = vadd.f32 %v5761, %v5782
        %v5795 = vadd.f32 %v5765, %v5782
        %v5796 = vadd.f32 %v5769, %v5782
        %v5797 = vadd.f32 %v5773, %v5782
        %v5798 = vadd.f32 %v5777, %v5782
        %vm5799 = vcmp.ge.f32.partialorder %v5783, 0.0
        %vm5800 = vcmp.ge.f32.partialorder %v5784, 0.0
        %vm5801 = vcmp.ge.f32.partialorder %v5785, 0.0
        %vm5802 = vcmp.ge.f32.partialorder %v5786, 0.0
        %vm5803 = vcmp.ge.f32.partialorder %v5787, 0.0
        %vm5804 = vcmp.ge.f32.partialorder %v5788, 0.0
        %vm5805 = vcmp.ge.f32.partialorder %v5789, 0.0
        %vm5806 = vcmp.ge.f32.partialorder %v5790, 0.0
        %vm5807 = vcmp.ge.f32.partialorder %v5791, 0.0
        %vm5808 = vcmp.ge.f32.partialorder %v5792, 0.0
        %vm5809 = vcmp.ge.f32.partialorder %v5793, 0.0
        %vm5810 = vcmp.ge.f32.partialorder %v5794, 0.0
        %vm5811 = vcmp.ge.f32.partialorder %v5795, 0.0
        %vm5812 = vcmp.ge.f32.partialorder %v5796, 0.0
        %vm5813 = vcmp.ge.f32.partialorder %v5797, 0.0
        %vm5814 = vcmp.ge.f32.partialorder %v5798, 0.0
        %v5815 = vmul.f32 %v5783, 0.2
        %v5816 = vmul.f32 %v5784, 0.2
        %v5817 = vmul.f32 %v5785, 0.2
        %v5818 = vmul.f32 %v5786, 0.2
        %v5819 = vmul.f32 %v5787, 0.2
        %v5820 = vmul.f32 %v5788, 0.2
        %v5821 = vmul.f32 %v5789, 0.2
        %v5822 = vmul.f32 %v5790, 0.2
        %v5823 = vmul.f32 %v5791, 0.2
        %v5824 = vmul.f32 %v5792, 0.2
        %v5825 = vmul.f32 %v5793, 0.2
        %v5826 = vmul.f32 %v5794, 0.2
        %v5827 = vmul.f32 %v5795, 0.2
        %v5828 = vmul.f32 %v5796, 0.2
        %v5829 = vmul.f32 %v5797, 0.2
        %v5830 = vmul.f32 %v5798, 0.2
        %v5831 = vsel %vm5799, %v5783, %v5815
        %v5832 = vsel %vm5800, %v5784, %v5816
        %v5833 = vsel %vm5801, %v5785, %v5817
        %v5834 = vsel %vm5802, %v5786, %v5818
        %v5835 = vsel %vm5803, %v5787, %v5819
        %v5836 = vsel %vm5804, %v5788, %v5820
        %v5837 = vsel %vm5805, %v5789, %v5821
        %v5838 = vsel %vm5806, %v5790, %v5822
        %v5839 = vsel %vm5807, %v5791, %v5823
        %v5840 = vsel %vm5808, %v5792, %v5824
        %v5841 = vsel %vm5809, %v5793, %v5825
        %v5842 = vsel %vm5810, %v5794, %v5826
        %v5843 = vsel %vm5811, %v5795, %v5827
        %v5844 = vsel %vm5812, %v5796, %v5828
        %v5845 = vsel %vm5813, %v5797, %v5829
        %v5846 = vsel %vm5814, %v5798, %v5830
        %s5847 = sld [smem:[#allocation6 + $0x88]]
        %v5848 = vstv %s5847
        %v5849 = vmul.f32 %v5848, %v5831
        %v5850 = vmul.f32 %v5848, %v5832
        %v5851 = vmul.f32 %v5848, %v5833
        %v5852 = vmul.f32 %v5848, %v5834
        %v5853 = vmul.f32 %v5848, %v5835
        %v5854 = vmul.f32 %v5848, %v5836
        %v5855 = vmul.f32 %v5848, %v5837
        %v5856 = vmul.f32 %v5848, %v5838
        %v5857 = vmul.f32 %v5848, %v5839
        %v5858 = vmul.f32 %v5848, %v5840
        %v5859 = vmul.f32 %v5848, %v5841
        %v5860 = vmul.f32 %v5848, %v5842
        %v5861 = vmul.f32 %v5848, %v5843
        %v5862 = vmul.f32 %v5848, %v5844
        %v5863 = vmul.f32 %v5848, %v5845
        %v5864 = vmul.f32 %v5848, %v5846
        %v5865 = vadd.f32 %v5699, %v5849
        %v5866 = vadd.f32 %v5700, %v5850
        %v5867 = vadd.f32 %v5701, %v5851
        %v5868 = vadd.f32 %v5702, %v5852
        %v5869 = vadd.f32 %v5703, %v5853
        %v5870 = vadd.f32 %v5704, %v5854
        %v5871 = vadd.f32 %v5705, %v5855
        %v5872 = vadd.f32 %v5706, %v5856
        %v5873 = vadd.f32 %v5707, %v5857
        %v5874 = vadd.f32 %v5708, %v5858
        %v5875 = vadd.f32 %v5709, %v5859
        %v5876 = vadd.f32 %v5710, %v5860
        %v5877 = vadd.f32 %v5711, %v5861
        %v5878 = vadd.f32 %v5712, %v5862
        %v5879 = vadd.f32 %v5713, %v5863
        %v5880 = vadd.f32 %v5714, %v5864
        %5881 = vset.pattern.permute.xlu0 25
        %5882 = vperm.xlu0 %5881, %v1008
        %v5883 = vpop.permute.xlu0 %5882
        %5885 = vset.pattern.permute.xlu0 25
        %5886 = vperm.xlu0 %5885, %v1009
        %v5887 = vpop.permute.xlu0 %5886
        %5889 = vset.pattern.permute.xlu0 25
        %5890 = vperm.xlu0 %5889, %v1010
        %v5891 = vpop.permute.xlu0 %5890
        %5893 = vset.pattern.permute.xlu0 25
        %5894 = vperm.xlu0 %5893, %v1011
        %v5895 = vpop.permute.xlu0 %5894
        %5897 = vset.pattern.permute.xlu0 25
        %5898 = vperm.xlu0 %5897, %v1012
        %v5899 = vpop.permute.xlu0 %5898
        %5901 = vset.pattern.permute.xlu0 25
        %5902 = vperm.xlu0 %5901, %v1013
        %v5903 = vpop.permute.xlu0 %5902
        %5905 = vset.pattern.permute.xlu0 25
        %5906 = vperm.xlu0 %5905, %v1014
        %v5907 = vpop.permute.xlu0 %5906
        %5909 = vset.pattern.permute.xlu0 25
        %5910 = vperm.xlu0 %5909, %v1015
        %v5911 = vpop.permute.xlu0 %5910
        %5913 = vset.pattern.permute.xlu0 25
        %5914 = vperm.xlu0 %5913, %v1016
        %v5915 = vpop.permute.xlu0 %5914
        %5917 = vset.pattern.permute.xlu0 25
        %5918 = vperm.xlu0 %5917, %v1017
        %v5919 = vpop.permute.xlu0 %5918
        %5921 = vset.pattern.permute.xlu0 25
        %5922 = vperm.xlu0 %5921, %v1018
        %v5923 = vpop.permute.xlu0 %5922
        %5925 = vset.pattern.permute.xlu0 25
        %5926 = vperm.xlu0 %5925, %v1019
        %v5927 = vpop.permute.xlu0 %5926
        %5929 = vset.pattern.permute.xlu0 25
        %5930 = vperm.xlu0 %5929, %v1020
        %v5931 = vpop.permute.xlu0 %5930
        %5933 = vset.pattern.permute.xlu0 25
        %5934 = vperm.xlu0 %5933, %v1021
        %v5935 = vpop.permute.xlu0 %5934
        %5937 = vset.pattern.permute.xlu0 25
        %5938 = vperm.xlu0 %5937, %v1022
        %v5939 = vpop.permute.xlu0 %5938
        %5941 = vset.pattern.permute.xlu0 25
        %5942 = vperm.xlu0 %5941, %v1023
        %v5943 = vpop.permute.xlu0 %5942
        %v5945 = vlaneseq
        %v5946 = vshrl.u32 %v5945, 7
        %v5947 = vsub.s32 1, %v5946
        %v5948 = vrot.slane %v957, %v5947
        %v5949 = vadd.f32 %v5883, %v5948
        %v5950 = vadd.f32 %v5887, %v5948
        %v5951 = vadd.f32 %v5891, %v5948
        %v5952 = vadd.f32 %v5895, %v5948
        %v5953 = vadd.f32 %v5899, %v5948
        %v5954 = vadd.f32 %v5903, %v5948
        %v5955 = vadd.f32 %v5907, %v5948
        %v5956 = vadd.f32 %v5911, %v5948
        %v5957 = vadd.f32 %v5915, %v5948
        %v5958 = vadd.f32 %v5919, %v5948
        %v5959 = vadd.f32 %v5923, %v5948
        %v5960 = vadd.f32 %v5927, %v5948
        %v5961 = vadd.f32 %v5931, %v5948
        %v5962 = vadd.f32 %v5935, %v5948
        %v5963 = vadd.f32 %v5939, %v5948
        %v5964 = vadd.f32 %v5943, %v5948
        %vm5965 = vcmp.ge.f32.partialorder %v5949, 0.0
        %vm5966 = vcmp.ge.f32.partialorder %v5950, 0.0
        %vm5967 = vcmp.ge.f32.partialorder %v5951, 0.0
        %vm5968 = vcmp.ge.f32.partialorder %v5952, 0.0
        %vm5969 = vcmp.ge.f32.partialorder %v5953, 0.0
        %vm5970 = vcmp.ge.f32.partialorder %v5954, 0.0
        %vm5971 = vcmp.ge.f32.partialorder %v5955, 0.0
        %vm5972 = vcmp.ge.f32.partialorder %v5956, 0.0
        %vm5973 = vcmp.ge.f32.partialorder %v5957, 0.0
        %vm5974 = vcmp.ge.f32.partialorder %v5958, 0.0
        %vm5975 = vcmp.ge.f32.partialorder %v5959, 0.0
        %vm5976 = vcmp.ge.f32.partialorder %v5960, 0.0
        %vm5977 = vcmp.ge.f32.partialorder %v5961, 0.0
        %vm5978 = vcmp.ge.f32.partialorder %v5962, 0.0
        %vm5979 = vcmp.ge.f32.partialorder %v5963, 0.0
        %vm5980 = vcmp.ge.f32.partialorder %v5964, 0.0
        %v5981 = vmul.f32 %v5949, 0.2
        %v5982 = vmul.f32 %v5950, 0.2
        %v5983 = vmul.f32 %v5951, 0.2
        %v5984 = vmul.f32 %v5952, 0.2
        %v5985 = vmul.f32 %v5953, 0.2
        %v5986 = vmul.f32 %v5954, 0.2
        %v5987 = vmul.f32 %v5955, 0.2
        %v5988 = vmul.f32 %v5956, 0.2
        %v5989 = vmul.f32 %v5957, 0.2
        %v5990 = vmul.f32 %v5958, 0.2
        %v5991 = vmul.f32 %v5959, 0.2
        %v5992 = vmul.f32 %v5960, 0.2
        %v5993 = vmul.f32 %v5961, 0.2
        %v5994 = vmul.f32 %v5962, 0.2
        %v5995 = vmul.f32 %v5963, 0.2
        %v5996 = vmul.f32 %v5964, 0.2
        %v5997 = vsel %vm5965, %v5949, %v5981
        %v5998 = vsel %vm5966, %v5950, %v5982
        %v5999 = vsel %vm5967, %v5951, %v5983
        %v6000 = vsel %vm5968, %v5952, %v5984
        %v6001 = vsel %vm5969, %v5953, %v5985
        %v6002 = vsel %vm5970, %v5954, %v5986
        %v6003 = vsel %vm5971, %v5955, %v5987
        %v6004 = vsel %vm5972, %v5956, %v5988
        %v6005 = vsel %vm5973, %v5957, %v5989
        %v6006 = vsel %vm5974, %v5958, %v5990
        %v6007 = vsel %vm5975, %v5959, %v5991
        %v6008 = vsel %vm5976, %v5960, %v5992
        %v6009 = vsel %vm5977, %v5961, %v5993
        %v6010 = vsel %vm5978, %v5962, %v5994
        %v6011 = vsel %vm5979, %v5963, %v5995
        %v6012 = vsel %vm5980, %v5964, %v5996
        %s6013 = sld [smem:[#allocation6 + $0x89]]
        %v6014 = vstv %s6013
        %v6015 = vmul.f32 %v6014, %v5997
        %v6016 = vmul.f32 %v6014, %v5998
        %v6017 = vmul.f32 %v6014, %v5999
        %v6018 = vmul.f32 %v6014, %v6000
        %v6019 = vmul.f32 %v6014, %v6001
        %v6020 = vmul.f32 %v6014, %v6002
        %v6021 = vmul.f32 %v6014, %v6003
        %v6022 = vmul.f32 %v6014, %v6004
        %v6023 = vmul.f32 %v6014, %v6005
        %v6024 = vmul.f32 %v6014, %v6006
        %v6025 = vmul.f32 %v6014, %v6007
        %v6026 = vmul.f32 %v6014, %v6008
        %v6027 = vmul.f32 %v6014, %v6009
        %v6028 = vmul.f32 %v6014, %v6010
        %v6029 = vmul.f32 %v6014, %v6011
        %v6030 = vmul.f32 %v6014, %v6012
        %v6031 = vadd.f32 %v5865, %v6015
        %v6032 = vadd.f32 %v5866, %v6016
        %v6033 = vadd.f32 %v5867, %v6017
        %v6034 = vadd.f32 %v5868, %v6018
        %v6035 = vadd.f32 %v5869, %v6019
        %v6036 = vadd.f32 %v5870, %v6020
        %v6037 = vadd.f32 %v5871, %v6021
        %v6038 = vadd.f32 %v5872, %v6022
        %v6039 = vadd.f32 %v5873, %v6023
        %v6040 = vadd.f32 %v5874, %v6024
        %v6041 = vadd.f32 %v5875, %v6025
        %v6042 = vadd.f32 %v5876, %v6026
        %v6043 = vadd.f32 %v5877, %v6027
        %v6044 = vadd.f32 %v5878, %v6028
        %v6045 = vadd.f32 %v5879, %v6029
        %v6046 = vadd.f32 %v5880, %v6030
        %6047 = vset.pattern.permute.xlu0 26
        %6048 = vperm.xlu0 %6047, %v1008
        %v6049 = vpop.permute.xlu0 %6048
        %6051 = vset.pattern.permute.xlu0 26
        %6052 = vperm.xlu0 %6051, %v1009
        %v6053 = vpop.permute.xlu0 %6052
        %6055 = vset.pattern.permute.xlu0 26
        %6056 = vperm.xlu0 %6055, %v1010
        %v6057 = vpop.permute.xlu0 %6056
        %6059 = vset.pattern.permute.xlu0 26
        %6060 = vperm.xlu0 %6059, %v1011
        %v6061 = vpop.permute.xlu0 %6060
        %6063 = vset.pattern.permute.xlu0 26
        %6064 = vperm.xlu0 %6063, %v1012
        %v6065 = vpop.permute.xlu0 %6064
        %6067 = vset.pattern.permute.xlu0 26
        %6068 = vperm.xlu0 %6067, %v1013
        %v6069 = vpop.permute.xlu0 %6068
        %6071 = vset.pattern.permute.xlu0 26
        %6072 = vperm.xlu0 %6071, %v1014
        %v6073 = vpop.permute.xlu0 %6072
        %6075 = vset.pattern.permute.xlu0 26
        %6076 = vperm.xlu0 %6075, %v1015
        %v6077 = vpop.permute.xlu0 %6076
        %6079 = vset.pattern.permute.xlu0 26
        %6080 = vperm.xlu0 %6079, %v1016
        %v6081 = vpop.permute.xlu0 %6080
        %6083 = vset.pattern.permute.xlu0 26
        %6084 = vperm.xlu0 %6083, %v1017
        %v6085 = vpop.permute.xlu0 %6084
        %6087 = vset.pattern.permute.xlu0 26
        %6088 = vperm.xlu0 %6087, %v1018
        %v6089 = vpop.permute.xlu0 %6088
        %6091 = vset.pattern.permute.xlu0 26
        %6092 = vperm.xlu0 %6091, %v1019
        %v6093 = vpop.permute.xlu0 %6092
        %6095 = vset.pattern.permute.xlu0 26
        %6096 = vperm.xlu0 %6095, %v1020
        %v6097 = vpop.permute.xlu0 %6096
        %6099 = vset.pattern.permute.xlu0 26
        %6100 = vperm.xlu0 %6099, %v1021
        %v6101 = vpop.permute.xlu0 %6100
        %6103 = vset.pattern.permute.xlu0 26
        %6104 = vperm.xlu0 %6103, %v1022
        %v6105 = vpop.permute.xlu0 %6104
        %6107 = vset.pattern.permute.xlu0 26
        %6108 = vperm.xlu0 %6107, %v1023
        %v6109 = vpop.permute.xlu0 %6108
        %v6111 = vlaneseq
        %v6112 = vshrl.u32 %v6111, 7
        %v6113 = vsub.s32 2, %v6112
        %v6114 = vrot.slane %v957, %v6113
        %v6115 = vadd.f32 %v6049, %v6114
        %v6116 = vadd.f32 %v6053, %v6114
        %v6117 = vadd.f32 %v6057, %v6114
        %v6118 = vadd.f32 %v6061, %v6114
        %v6119 = vadd.f32 %v6065, %v6114
        %v6120 = vadd.f32 %v6069, %v6114
        %v6121 = vadd.f32 %v6073, %v6114
        %v6122 = vadd.f32 %v6077, %v6114
        %v6123 = vadd.f32 %v6081, %v6114
        %v6124 = vadd.f32 %v6085, %v6114
        %v6125 = vadd.f32 %v6089, %v6114
        %v6126 = vadd.f32 %v6093, %v6114
        %v6127 = vadd.f32 %v6097, %v6114
        %v6128 = vadd.f32 %v6101, %v6114
        %v6129 = vadd.f32 %v6105, %v6114
        %v6130 = vadd.f32 %v6109, %v6114
        %vm6131 = vcmp.ge.f32.partialorder %v6115, 0.0
        %vm6132 = vcmp.ge.f32.partialorder %v6116, 0.0
        %vm6133 = vcmp.ge.f32.partialorder %v6117, 0.0
        %vm6134 = vcmp.ge.f32.partialorder %v6118, 0.0
        %vm6135 = vcmp.ge.f32.partialorder %v6119, 0.0
        %vm6136 = vcmp.ge.f32.partialorder %v6120, 0.0
        %vm6137 = vcmp.ge.f32.partialorder %v6121, 0.0
        %vm6138 = vcmp.ge.f32.partialorder %v6122, 0.0
        %vm6139 = vcmp.ge.f32.partialorder %v6123, 0.0
        %vm6140 = vcmp.ge.f32.partialorder %v6124, 0.0
        %vm6141 = vcmp.ge.f32.partialorder %v6125, 0.0
        %vm6142 = vcmp.ge.f32.partialorder %v6126, 0.0
        %vm6143 = vcmp.ge.f32.partialorder %v6127, 0.0
        %vm6144 = vcmp.ge.f32.partialorder %v6128, 0.0
        %vm6145 = vcmp.ge.f32.partialorder %v6129, 0.0
        %vm6146 = vcmp.ge.f32.partialorder %v6130, 0.0
        %v6147 = vmul.f32 %v6115, 0.2
        %v6148 = vmul.f32 %v6116, 0.2
        %v6149 = vmul.f32 %v6117, 0.2
        %v6150 = vmul.f32 %v6118, 0.2
        %v6151 = vmul.f32 %v6119, 0.2
        %v6152 = vmul.f32 %v6120, 0.2
        %v6153 = vmul.f32 %v6121, 0.2
        %v6154 = vmul.f32 %v6122, 0.2
        %v6155 = vmul.f32 %v6123, 0.2
        %v6156 = vmul.f32 %v6124, 0.2
        %v6157 = vmul.f32 %v6125, 0.2
        %v6158 = vmul.f32 %v6126, 0.2
        %v6159 = vmul.f32 %v6127, 0.2
        %v6160 = vmul.f32 %v6128, 0.2
        %v6161 = vmul.f32 %v6129, 0.2
        %v6162 = vmul.f32 %v6130, 0.2
        %v6163 = vsel %vm6131, %v6115, %v6147
        %v6164 = vsel %vm6132, %v6116, %v6148
        %v6165 = vsel %vm6133, %v6117, %v6149
        %v6166 = vsel %vm6134, %v6118, %v6150
        %v6167 = vsel %vm6135, %v6119, %v6151
        %v6168 = vsel %vm6136, %v6120, %v6152
        %v6169 = vsel %vm6137, %v6121, %v6153
        %v6170 = vsel %vm6138, %v6122, %v6154
        %v6171 = vsel %vm6139, %v6123, %v6155
        %v6172 = vsel %vm6140, %v6124, %v6156
        %v6173 = vsel %vm6141, %v6125, %v6157
        %v6174 = vsel %vm6142, %v6126, %v6158
        %v6175 = vsel %vm6143, %v6127, %v6159
        %v6176 = vsel %vm6144, %v6128, %v6160
        %v6177 = vsel %vm6145, %v6129, %v6161
        %v6178 = vsel %vm6146, %v6130, %v6162
        %s6179 = sld [smem:[#allocation6 + $0x8a]]
        %v6180 = vstv %s6179
        %v6181 = vmul.f32 %v6180, %v6163
        %v6182 = vmul.f32 %v6180, %v6164
        %v6183 = vmul.f32 %v6180, %v6165
        %v6184 = vmul.f32 %v6180, %v6166
        %v6185 = vmul.f32 %v6180, %v6167
        %v6186 = vmul.f32 %v6180, %v6168
        %v6187 = vmul.f32 %v6180, %v6169
        %v6188 = vmul.f32 %v6180, %v6170
        %v6189 = vmul.f32 %v6180, %v6171
        %v6190 = vmul.f32 %v6180, %v6172
        %v6191 = vmul.f32 %v6180, %v6173
        %v6192 = vmul.f32 %v6180, %v6174
        %v6193 = vmul.f32 %v6180, %v6175
        %v6194 = vmul.f32 %v6180, %v6176
        %v6195 = vmul.f32 %v6180, %v6177
        %v6196 = vmul.f32 %v6180, %v6178
        %v6197 = vadd.f32 %v6031, %v6181
        %v6198 = vadd.f32 %v6032, %v6182
        %v6199 = vadd.f32 %v6033, %v6183
        %v6200 = vadd.f32 %v6034, %v6184
        %v6201 = vadd.f32 %v6035, %v6185
        %v6202 = vadd.f32 %v6036, %v6186
        %v6203 = vadd.f32 %v6037, %v6187
        %v6204 = vadd.f32 %v6038, %v6188
        %v6205 = vadd.f32 %v6039, %v6189
        %v6206 = vadd.f32 %v6040, %v6190
        %v6207 = vadd.f32 %v6041, %v6191
        %v6208 = vadd.f32 %v6042, %v6192
        %v6209 = vadd.f32 %v6043, %v6193
        %v6210 = vadd.f32 %v6044, %v6194
        %v6211 = vadd.f32 %v6045, %v6195
        %v6212 = vadd.f32 %v6046, %v6196
        %6213 = vset.pattern.permute.xlu0 27
        %6214 = vperm.xlu0 %6213, %v1008
        %v6215 = vpop.permute.xlu0 %6214
        %6217 = vset.pattern.permute.xlu0 27
        %6218 = vperm.xlu0 %6217, %v1009
        %v6219 = vpop.permute.xlu0 %6218
        %6221 = vset.pattern.permute.xlu0 27
        %6222 = vperm.xlu0 %6221, %v1010
        %v6223 = vpop.permute.xlu0 %6222
        %6225 = vset.pattern.permute.xlu0 27
        %6226 = vperm.xlu0 %6225, %v1011
        %v6227 = vpop.permute.xlu0 %6226
        %6229 = vset.pattern.permute.xlu0 27
        %6230 = vperm.xlu0 %6229, %v1012
        %v6231 = vpop.permute.xlu0 %6230
        %6233 = vset.pattern.permute.xlu0 27
        %6234 = vperm.xlu0 %6233, %v1013
        %v6235 = vpop.permute.xlu0 %6234
        %6237 = vset.pattern.permute.xlu0 27
        %6238 = vperm.xlu0 %6237, %v1014
        %v6239 = vpop.permute.xlu0 %6238
        %6241 = vset.pattern.permute.xlu0 27
        %6242 = vperm.xlu0 %6241, %v1015
        %v6243 = vpop.permute.xlu0 %6242
        %6245 = vset.pattern.permute.xlu0 27
        %6246 = vperm.xlu0 %6245, %v1016
        %v6247 = vpop.permute.xlu0 %6246
        %6249 = vset.pattern.permute.xlu0 27
        %6250 = vperm.xlu0 %6249, %v1017
        %v6251 = vpop.permute.xlu0 %6250
        %6253 = vset.pattern.permute.xlu0 27
        %6254 = vperm.xlu0 %6253, %v1018
        %v6255 = vpop.permute.xlu0 %6254
        %6257 = vset.pattern.permute.xlu0 27
        %6258 = vperm.xlu0 %6257, %v1019
        %v6259 = vpop.permute.xlu0 %6258
        %6261 = vset.pattern.permute.xlu0 27
        %6262 = vperm.xlu0 %6261, %v1020
        %v6263 = vpop.permute.xlu0 %6262
        %6265 = vset.pattern.permute.xlu0 27
        %6266 = vperm.xlu0 %6265, %v1021
        %v6267 = vpop.permute.xlu0 %6266
        %6269 = vset.pattern.permute.xlu0 27
        %6270 = vperm.xlu0 %6269, %v1022
        %v6271 = vpop.permute.xlu0 %6270
        %6273 = vset.pattern.permute.xlu0 27
        %6274 = vperm.xlu0 %6273, %v1023
        %v6275 = vpop.permute.xlu0 %6274
        %v6277 = vlaneseq
        %v6278 = vshrl.u32 %v6277, 7
        %v6279 = vsub.s32 3, %v6278
        %v6280 = vrot.slane %v957, %v6279
        %v6281 = vadd.f32 %v6215, %v6280
        %v6282 = vadd.f32 %v6219, %v6280
        %v6283 = vadd.f32 %v6223, %v6280
        %v6284 = vadd.f32 %v6227, %v6280
        %v6285 = vadd.f32 %v6231, %v6280
        %v6286 = vadd.f32 %v6235, %v6280
        %v6287 = vadd.f32 %v6239, %v6280
        %v6288 = vadd.f32 %v6243, %v6280
        %v6289 = vadd.f32 %v6247, %v6280
        %v6290 = vadd.f32 %v6251, %v6280
        %v6291 = vadd.f32 %v6255, %v6280
        %v6292 = vadd.f32 %v6259, %v6280
        %v6293 = vadd.f32 %v6263, %v6280
        %v6294 = vadd.f32 %v6267, %v6280
        %v6295 = vadd.f32 %v6271, %v6280
        %v6296 = vadd.f32 %v6275, %v6280
        %vm6297 = vcmp.ge.f32.partialorder %v6281, 0.0
        %vm6298 = vcmp.ge.f32.partialorder %v6282, 0.0
        %vm6299 = vcmp.ge.f32.partialorder %v6283, 0.0
        %vm6300 = vcmp.ge.f32.partialorder %v6284, 0.0
        %vm6301 = vcmp.ge.f32.partialorder %v6285, 0.0
        %vm6302 = vcmp.ge.f32.partialorder %v6286, 0.0
        %vm6303 = vcmp.ge.f32.partialorder %v6287, 0.0
        %vm6304 = vcmp.ge.f32.partialorder %v6288, 0.0
        %vm6305 = vcmp.ge.f32.partialorder %v6289, 0.0
        %vm6306 = vcmp.ge.f32.partialorder %v6290, 0.0
        %vm6307 = vcmp.ge.f32.partialorder %v6291, 0.0
        %vm6308 = vcmp.ge.f32.partialorder %v6292, 0.0
        %vm6309 = vcmp.ge.f32.partialorder %v6293, 0.0
        %vm6310 = vcmp.ge.f32.partialorder %v6294, 0.0
        %vm6311 = vcmp.ge.f32.partialorder %v6295, 0.0
        %vm6312 = vcmp.ge.f32.partialorder %v6296, 0.0
        %v6313 = vmul.f32 %v6281, 0.2
        %v6314 = vmul.f32 %v6282, 0.2
        %v6315 = vmul.f32 %v6283, 0.2
        %v6316 = vmul.f32 %v6284, 0.2
        %v6317 = vmul.f32 %v6285, 0.2
        %v6318 = vmul.f32 %v6286, 0.2
        %v6319 = vmul.f32 %v6287, 0.2
        %v6320 = vmul.f32 %v6288, 0.2
        %v6321 = vmul.f32 %v6289, 0.2
        %v6322 = vmul.f32 %v6290, 0.2
        %v6323 = vmul.f32 %v6291, 0.2
        %v6324 = vmul.f32 %v6292, 0.2
        %v6325 = vmul.f32 %v6293, 0.2
        %v6326 = vmul.f32 %v6294, 0.2
        %v6327 = vmul.f32 %v6295, 0.2
        %v6328 = vmul.f32 %v6296, 0.2
        %v6329 = vsel %vm6297, %v6281, %v6313
        %v6330 = vsel %vm6298, %v6282, %v6314
        %v6331 = vsel %vm6299, %v6283, %v6315
        %v6332 = vsel %vm6300, %v6284, %v6316
        %v6333 = vsel %vm6301, %v6285, %v6317
        %v6334 = vsel %vm6302, %v6286, %v6318
        %v6335 = vsel %vm6303, %v6287, %v6319
        %v6336 = vsel %vm6304, %v6288, %v6320
        %v6337 = vsel %vm6305, %v6289, %v6321
        %v6338 = vsel %vm6306, %v6290, %v6322
        %v6339 = vsel %vm6307, %v6291, %v6323
        %v6340 = vsel %vm6308, %v6292, %v6324
        %v6341 = vsel %vm6309, %v6293, %v6325
        %v6342 = vsel %vm6310, %v6294, %v6326
        %v6343 = vsel %vm6311, %v6295, %v6327
        %v6344 = vsel %vm6312, %v6296, %v6328
        %s6345 = sld [smem:[#allocation6 + $0x8b]]
        %v6346 = vstv %s6345
        %v6347 = vmul.f32 %v6346, %v6329
        %v6348 = vmul.f32 %v6346, %v6330
        %v6349 = vmul.f32 %v6346, %v6331
        %v6350 = vmul.f32 %v6346, %v6332
        %v6351 = vmul.f32 %v6346, %v6333
        %v6352 = vmul.f32 %v6346, %v6334
        %v6353 = vmul.f32 %v6346, %v6335
        %v6354 = vmul.f32 %v6346, %v6336
        %v6355 = vmul.f32 %v6346, %v6337
        %v6356 = vmul.f32 %v6346, %v6338
        %v6357 = vmul.f32 %v6346, %v6339
        %v6358 = vmul.f32 %v6346, %v6340
        %v6359 = vmul.f32 %v6346, %v6341
        %v6360 = vmul.f32 %v6346, %v6342
        %v6361 = vmul.f32 %v6346, %v6343
        %v6362 = vmul.f32 %v6346, %v6344
        %v6363 = vadd.f32 %v6197, %v6347
        %v6364 = vadd.f32 %v6198, %v6348
        %v6365 = vadd.f32 %v6199, %v6349
        %v6366 = vadd.f32 %v6200, %v6350
        %v6367 = vadd.f32 %v6201, %v6351
        %v6368 = vadd.f32 %v6202, %v6352
        %v6369 = vadd.f32 %v6203, %v6353
        %v6370 = vadd.f32 %v6204, %v6354
        %v6371 = vadd.f32 %v6205, %v6355
        %v6372 = vadd.f32 %v6206, %v6356
        %v6373 = vadd.f32 %v6207, %v6357
        %v6374 = vadd.f32 %v6208, %v6358
        %v6375 = vadd.f32 %v6209, %v6359
        %v6376 = vadd.f32 %v6210, %v6360
        %v6377 = vadd.f32 %v6211, %v6361
        %v6378 = vadd.f32 %v6212, %v6362
        %6379 = vset.pattern.permute.xlu0 28
        %6380 = vperm.xlu0 %6379, %v1008
        %v6381 = vpop.permute.xlu0 %6380
        %6383 = vset.pattern.permute.xlu0 28
        %6384 = vperm.xlu0 %6383, %v1009
        %v6385 = vpop.permute.xlu0 %6384
        %6387 = vset.pattern.permute.xlu0 28
        %6388 = vperm.xlu0 %6387, %v1010
        %v6389 = vpop.permute.xlu0 %6388
        %6391 = vset.pattern.permute.xlu0 28
        %6392 = vperm.xlu0 %6391, %v1011
        %v6393 = vpop.permute.xlu0 %6392
        %6395 = vset.pattern.permute.xlu0 28
        %6396 = vperm.xlu0 %6395, %v1012
        %v6397 = vpop.permute.xlu0 %6396
        %6399 = vset.pattern.permute.xlu0 28
        %6400 = vperm.xlu0 %6399, %v1013
        %v6401 = vpop.permute.xlu0 %6400
        %6403 = vset.pattern.permute.xlu0 28
        %6404 = vperm.xlu0 %6403, %v1014
        %v6405 = vpop.permute.xlu0 %6404
        %6407 = vset.pattern.permute.xlu0 28
        %6408 = vperm.xlu0 %6407, %v1015
        %v6409 = vpop.permute.xlu0 %6408
        %6411 = vset.pattern.permute.xlu0 28
        %6412 = vperm.xlu0 %6411, %v1016
        %v6413 = vpop.permute.xlu0 %6412
        %6415 = vset.pattern.permute.xlu0 28
        %6416 = vperm.xlu0 %6415, %v1017
        %v6417 = vpop.permute.xlu0 %6416
        %6419 = vset.pattern.permute.xlu0 28
        %6420 = vperm.xlu0 %6419, %v1018
        %v6421 = vpop.permute.xlu0 %6420
        %6423 = vset.pattern.permute.xlu0 28
        %6424 = vperm.xlu0 %6423, %v1019
        %v6425 = vpop.permute.xlu0 %6424
        %6427 = vset.pattern.permute.xlu0 28
        %6428 = vperm.xlu0 %6427, %v1020
        %v6429 = vpop.permute.xlu0 %6428
        %6431 = vset.pattern.permute.xlu0 28
        %6432 = vperm.xlu0 %6431, %v1021
        %v6433 = vpop.permute.xlu0 %6432
        %6435 = vset.pattern.permute.xlu0 28
        %6436 = vperm.xlu0 %6435, %v1022
        %v6437 = vpop.permute.xlu0 %6436
        %6439 = vset.pattern.permute.xlu0 28
        %6440 = vperm.xlu0 %6439, %v1023
        %v6441 = vpop.permute.xlu0 %6440
        %v6443 = vlaneseq
        %v6444 = vshrl.u32 %v6443, 7
        %v6445 = vsub.s32 4, %v6444
        %v6446 = vrot.slane %v957, %v6445
        %v6447 = vadd.f32 %v6381, %v6446
        %v6448 = vadd.f32 %v6385, %v6446
        %v6449 = vadd.f32 %v6389, %v6446
        %v6450 = vadd.f32 %v6393, %v6446
        %v6451 = vadd.f32 %v6397, %v6446
        %v6452 = vadd.f32 %v6401, %v6446
        %v6453 = vadd.f32 %v6405, %v6446
        %v6454 = vadd.f32 %v6409, %v6446
        %v6455 = vadd.f32 %v6413, %v6446
        %v6456 = vadd.f32 %v6417, %v6446
        %v6457 = vadd.f32 %v6421, %v6446
        %v6458 = vadd.f32 %v6425, %v6446
        %v6459 = vadd.f32 %v6429, %v6446
        %v6460 = vadd.f32 %v6433, %v6446
        %v6461 = vadd.f32 %v6437, %v6446
        %v6462 = vadd.f32 %v6441, %v6446
        %vm6463 = vcmp.ge.f32.partialorder %v6447, 0.0
        %vm6464 = vcmp.ge.f32.partialorder %v6448, 0.0
        %vm6465 = vcmp.ge.f32.partialorder %v6449, 0.0
        %vm6466 = vcmp.ge.f32.partialorder %v6450, 0.0
        %vm6467 = vcmp.ge.f32.partialorder %v6451, 0.0
        %vm6468 = vcmp.ge.f32.partialorder %v6452, 0.0
        %vm6469 = vcmp.ge.f32.partialorder %v6453, 0.0
        %vm6470 = vcmp.ge.f32.partialorder %v6454, 0.0
        %vm6471 = vcmp.ge.f32.partialorder %v6455, 0.0
        %vm6472 = vcmp.ge.f32.partialorder %v6456, 0.0
        %vm6473 = vcmp.ge.f32.partialorder %v6457, 0.0
        %vm6474 = vcmp.ge.f32.partialorder %v6458, 0.0
        %vm6475 = vcmp.ge.f32.partialorder %v6459, 0.0
        %vm6476 = vcmp.ge.f32.partialorder %v6460, 0.0
        %vm6477 = vcmp.ge.f32.partialorder %v6461, 0.0
        %vm6478 = vcmp.ge.f32.partialorder %v6462, 0.0
        %v6479 = vmul.f32 %v6447, 0.2
        %v6480 = vmul.f32 %v6448, 0.2
        %v6481 = vmul.f32 %v6449, 0.2
        %v6482 = vmul.f32 %v6450, 0.2
        %v6483 = vmul.f32 %v6451, 0.2
        %v6484 = vmul.f32 %v6452, 0.2
        %v6485 = vmul.f32 %v6453, 0.2
        %v6486 = vmul.f32 %v6454, 0.2
        %v6487 = vmul.f32 %v6455, 0.2
        %v6488 = vmul.f32 %v6456, 0.2
        %v6489 = vmul.f32 %v6457, 0.2
        %v6490 = vmul.f32 %v6458, 0.2
        %v6491 = vmul.f32 %v6459, 0.2
        %v6492 = vmul.f32 %v6460, 0.2
        %v6493 = vmul.f32 %v6461, 0.2
        %v6494 = vmul.f32 %v6462, 0.2
        %v6495 = vsel %vm6463, %v6447, %v6479
        %v6496 = vsel %vm6464, %v6448, %v6480
        %v6497 = vsel %vm6465, %v6449, %v6481
        %v6498 = vsel %vm6466, %v6450, %v6482
        %v6499 = vsel %vm6467, %v6451, %v6483
        %v6500 = vsel %vm6468, %v6452, %v6484
        %v6501 = vsel %vm6469, %v6453, %v6485
        %v6502 = vsel %vm6470, %v6454, %v6486
        %v6503 = vsel %vm6471, %v6455, %v6487
        %v6504 = vsel %vm6472, %v6456, %v6488
        %v6505 = vsel %vm6473, %v6457, %v6489
        %v6506 = vsel %vm6474, %v6458, %v6490
        %v6507 = vsel %vm6475, %v6459, %v6491
        %v6508 = vsel %vm6476, %v6460, %v6492
        %v6509 = vsel %vm6477, %v6461, %v6493
        %v6510 = vsel %vm6478, %v6462, %v6494
        %s6511 = sld [smem:[#allocation6 + $0x8c]]
        %v6512 = vstv %s6511
        %v6513 = vmul.f32 %v6512, %v6495
        %v6514 = vmul.f32 %v6512, %v6496
        %v6515 = vmul.f32 %v6512, %v6497
        %v6516 = vmul.f32 %v6512, %v6498
        %v6517 = vmul.f32 %v6512, %v6499
        %v6518 = vmul.f32 %v6512, %v6500
        %v6519 = vmul.f32 %v6512, %v6501
        %v6520 = vmul.f32 %v6512, %v6502
        %v6521 = vmul.f32 %v6512, %v6503
        %v6522 = vmul.f32 %v6512, %v6504
        %v6523 = vmul.f32 %v6512, %v6505
        %v6524 = vmul.f32 %v6512, %v6506
        %v6525 = vmul.f32 %v6512, %v6507
        %v6526 = vmul.f32 %v6512, %v6508
        %v6527 = vmul.f32 %v6512, %v6509
        %v6528 = vmul.f32 %v6512, %v6510
        %v6529 = vadd.f32 %v6363, %v6513
        %v6530 = vadd.f32 %v6364, %v6514
        %v6531 = vadd.f32 %v6365, %v6515
        %v6532 = vadd.f32 %v6366, %v6516
        %v6533 = vadd.f32 %v6367, %v6517
        %v6534 = vadd.f32 %v6368, %v6518
        %v6535 = vadd.f32 %v6369, %v6519
        %v6536 = vadd.f32 %v6370, %v6520
        %v6537 = vadd.f32 %v6371, %v6521
        %v6538 = vadd.f32 %v6372, %v6522
        %v6539 = vadd.f32 %v6373, %v6523
        %v6540 = vadd.f32 %v6374, %v6524
        %v6541 = vadd.f32 %v6375, %v6525
        %v6542 = vadd.f32 %v6376, %v6526
        %v6543 = vadd.f32 %v6377, %v6527
        %v6544 = vadd.f32 %v6378, %v6528
        %6545 = vset.pattern.permute.xlu0 29
        %6546 = vperm.xlu0 %6545, %v1008
        %v6547 = vpop.permute.xlu0 %6546
        %6549 = vset.pattern.permute.xlu0 29
        %6550 = vperm.xlu0 %6549, %v1009
        %v6551 = vpop.permute.xlu0 %6550
        %6553 = vset.pattern.permute.xlu0 29
        %6554 = vperm.xlu0 %6553, %v1010
        %v6555 = vpop.permute.xlu0 %6554
        %6557 = vset.pattern.permute.xlu0 29
        %6558 = vperm.xlu0 %6557, %v1011
        %v6559 = vpop.permute.xlu0 %6558
        %6561 = vset.pattern.permute.xlu0 29
        %6562 = vperm.xlu0 %6561, %v1012
        %v6563 = vpop.permute.xlu0 %6562
        %6565 = vset.pattern.permute.xlu0 29
        %6566 = vperm.xlu0 %6565, %v1013
        %v6567 = vpop.permute.xlu0 %6566
        %6569 = vset.pattern.permute.xlu0 29
        %6570 = vperm.xlu0 %6569, %v1014
        %v6571 = vpop.permute.xlu0 %6570
        %6573 = vset.pattern.permute.xlu0 29
        %6574 = vperm.xlu0 %6573, %v1015
        %v6575 = vpop.permute.xlu0 %6574
        %6577 = vset.pattern.permute.xlu0 29
        %6578 = vperm.xlu0 %6577, %v1016
        %v6579 = vpop.permute.xlu0 %6578
        %6581 = vset.pattern.permute.xlu0 29
        %6582 = vperm.xlu0 %6581, %v1017
        %v6583 = vpop.permute.xlu0 %6582
        %6585 = vset.pattern.permute.xlu0 29
        %6586 = vperm.xlu0 %6585, %v1018
        %v6587 = vpop.permute.xlu0 %6586
        %6589 = vset.pattern.permute.xlu0 29
        %6590 = vperm.xlu0 %6589, %v1019
        %v6591 = vpop.permute.xlu0 %6590
        %6593 = vset.pattern.permute.xlu0 29
        %6594 = vperm.xlu0 %6593, %v1020
        %v6595 = vpop.permute.xlu0 %6594
        %6597 = vset.pattern.permute.xlu0 29
        %6598 = vperm.xlu0 %6597, %v1021
        %v6599 = vpop.permute.xlu0 %6598
        %6601 = vset.pattern.permute.xlu0 29
        %6602 = vperm.xlu0 %6601, %v1022
        %v6603 = vpop.permute.xlu0 %6602
        %6605 = vset.pattern.permute.xlu0 29
        %6606 = vperm.xlu0 %6605, %v1023
        %v6607 = vpop.permute.xlu0 %6606
        %v6609 = vlaneseq
        %v6610 = vshrl.u32 %v6609, 7
        %v6611 = vsub.s32 5, %v6610
        %v6612 = vrot.slane %v957, %v6611
        %v6613 = vadd.f32 %v6547, %v6612
        %v6614 = vadd.f32 %v6551, %v6612
        %v6615 = vadd.f32 %v6555, %v6612
        %v6616 = vadd.f32 %v6559, %v6612
        %v6617 = vadd.f32 %v6563, %v6612
        %v6618 = vadd.f32 %v6567, %v6612
        %v6619 = vadd.f32 %v6571, %v6612
        %v6620 = vadd.f32 %v6575, %v6612
        %v6621 = vadd.f32 %v6579, %v6612
        %v6622 = vadd.f32 %v6583, %v6612
        %v6623 = vadd.f32 %v6587, %v6612
        %v6624 = vadd.f32 %v6591, %v6612
        %v6625 = vadd.f32 %v6595, %v6612
        %v6626 = vadd.f32 %v6599, %v6612
        %v6627 = vadd.f32 %v6603, %v6612
        %v6628 = vadd.f32 %v6607, %v6612
        %vm6629 = vcmp.ge.f32.partialorder %v6613, 0.0
        %vm6630 = vcmp.ge.f32.partialorder %v6614, 0.0
        %vm6631 = vcmp.ge.f32.partialorder %v6615, 0.0
        %vm6632 = vcmp.ge.f32.partialorder %v6616, 0.0
        %vm6633 = vcmp.ge.f32.partialorder %v6617, 0.0
        %vm6634 = vcmp.ge.f32.partialorder %v6618, 0.0
        %vm6635 = vcmp.ge.f32.partialorder %v6619, 0.0
        %vm6636 = vcmp.ge.f32.partialorder %v6620, 0.0
        %vm6637 = vcmp.ge.f32.partialorder %v6621, 0.0
        %vm6638 = vcmp.ge.f32.partialorder %v6622, 0.0
        %vm6639 = vcmp.ge.f32.partialorder %v6623, 0.0
        %vm6640 = vcmp.ge.f32.partialorder %v6624, 0.0
        %vm6641 = vcmp.ge.f32.partialorder %v6625, 0.0
        %vm6642 = vcmp.ge.f32.partialorder %v6626, 0.0
        %vm6643 = vcmp.ge.f32.partialorder %v6627, 0.0
        %vm6644 = vcmp.ge.f32.partialorder %v6628, 0.0
        %v6645 = vmul.f32 %v6613, 0.2
        %v6646 = vmul.f32 %v6614, 0.2
        %v6647 = vmul.f32 %v6615, 0.2
        %v6648 = vmul.f32 %v6616, 0.2
        %v6649 = vmul.f32 %v6617, 0.2
        %v6650 = vmul.f32 %v6618, 0.2
        %v6651 = vmul.f32 %v6619, 0.2
        %v6652 = vmul.f32 %v6620, 0.2
        %v6653 = vmul.f32 %v6621, 0.2
        %v6654 = vmul.f32 %v6622, 0.2
        %v6655 = vmul.f32 %v6623, 0.2
        %v6656 = vmul.f32 %v6624, 0.2
        %v6657 = vmul.f32 %v6625, 0.2
        %v6658 = vmul.f32 %v6626, 0.2
        %v6659 = vmul.f32 %v6627, 0.2
        %v6660 = vmul.f32 %v6628, 0.2
        %v6661 = vsel %vm6629, %v6613, %v6645
        %v6662 = vsel %vm6630, %v6614, %v6646
        %v6663 = vsel %vm6631, %v6615, %v6647
        %v6664 = vsel %vm6632, %v6616, %v6648
        %v6665 = vsel %vm6633, %v6617, %v6649
        %v6666 = vsel %vm6634, %v6618, %v6650
        %v6667 = vsel %vm6635, %v6619, %v6651
        %v6668 = vsel %vm6636, %v6620, %v6652
        %v6669 = vsel %vm6637, %v6621, %v6653
        %v6670 = vsel %vm6638, %v6622, %v6654
        %v6671 = vsel %vm6639, %v6623, %v6655
        %v6672 = vsel %vm6640, %v6624, %v6656
        %v6673 = vsel %vm6641, %v6625, %v6657
        %v6674 = vsel %vm6642, %v6626, %v6658
        %v6675 = vsel %vm6643, %v6627, %v6659
        %v6676 = vsel %vm6644, %v6628, %v6660
        %s6677 = sld [smem:[#allocation6 + $0x8d]]
        %v6678 = vstv %s6677
        %v6679 = vmul.f32 %v6678, %v6661
        %v6680 = vmul.f32 %v6678, %v6662
        %v6681 = vmul.f32 %v6678, %v6663
        %v6682 = vmul.f32 %v6678, %v6664
        %v6683 = vmul.f32 %v6678, %v6665
        %v6684 = vmul.f32 %v6678, %v6666
        %v6685 = vmul.f32 %v6678, %v6667
        %v6686 = vmul.f32 %v6678, %v6668
        %v6687 = vmul.f32 %v6678, %v6669
        %v6688 = vmul.f32 %v6678, %v6670
        %v6689 = vmul.f32 %v6678, %v6671
        %v6690 = vmul.f32 %v6678, %v6672
        %v6691 = vmul.f32 %v6678, %v6673
        %v6692 = vmul.f32 %v6678, %v6674
        %v6693 = vmul.f32 %v6678, %v6675
        %v6694 = vmul.f32 %v6678, %v6676
        %v6695 = vadd.f32 %v6529, %v6679
        %v6696 = vadd.f32 %v6530, %v6680
        %v6697 = vadd.f32 %v6531, %v6681
        %v6698 = vadd.f32 %v6532, %v6682
        %v6699 = vadd.f32 %v6533, %v6683
        %v6700 = vadd.f32 %v6534, %v6684
        %v6701 = vadd.f32 %v6535, %v6685
        %v6702 = vadd.f32 %v6536, %v6686
        %v6703 = vadd.f32 %v6537, %v6687
        %v6704 = vadd.f32 %v6538, %v6688
        %v6705 = vadd.f32 %v6539, %v6689
        %v6706 = vadd.f32 %v6540, %v6690
        %v6707 = vadd.f32 %v6541, %v6691
        %v6708 = vadd.f32 %v6542, %v6692
        %v6709 = vadd.f32 %v6543, %v6693
        %v6710 = vadd.f32 %v6544, %v6694
        %6711 = vset.pattern.permute.xlu0 30
        %6712 = vperm.xlu0 %6711, %v1008
        %v6713 = vpop.permute.xlu0 %6712
        %6715 = vset.pattern.permute.xlu0 30
        %6716 = vperm.xlu0 %6715, %v1009
        %v6717 = vpop.permute.xlu0 %6716
        %6719 = vset.pattern.permute.xlu0 30
        %6720 = vperm.xlu0 %6719, %v1010
        %v6721 = vpop.permute.xlu0 %6720
        %6723 = vset.pattern.permute.xlu0 30
        %6724 = vperm.xlu0 %6723, %v1011
        %v6725 = vpop.permute.xlu0 %6724
        %6727 = vset.pattern.permute.xlu0 30
        %6728 = vperm.xlu0 %6727, %v1012
        %v6729 = vpop.permute.xlu0 %6728
        %6731 = vset.pattern.permute.xlu0 30
        %6732 = vperm.xlu0 %6731, %v1013
        %v6733 = vpop.permute.xlu0 %6732
        %6735 = vset.pattern.permute.xlu0 30
        %6736 = vperm.xlu0 %6735, %v1014
        %v6737 = vpop.permute.xlu0 %6736
        %6739 = vset.pattern.permute.xlu0 30
        %6740 = vperm.xlu0 %6739, %v1015
        %v6741 = vpop.permute.xlu0 %6740
        %6743 = vset.pattern.permute.xlu0 30
        %6744 = vperm.xlu0 %6743, %v1016
        %v6745 = vpop.permute.xlu0 %6744
        %6747 = vset.pattern.permute.xlu0 30
        %6748 = vperm.xlu0 %6747, %v1017
        %v6749 = vpop.permute.xlu0 %6748
        %6751 = vset.pattern.permute.xlu0 30
        %6752 = vperm.xlu0 %6751, %v1018
        %v6753 = vpop.permute.xlu0 %6752
        %6755 = vset.pattern.permute.xlu0 30
        %6756 = vperm.xlu0 %6755, %v1019
        %v6757 = vpop.permute.xlu0 %6756
        %6759 = vset.pattern.permute.xlu0 30
        %6760 = vperm.xlu0 %6759, %v1020
        %v6761 = vpop.permute.xlu0 %6760
        %6763 = vset.pattern.permute.xlu0 30
        %6764 = vperm.xlu0 %6763, %v1021
        %v6765 = vpop.permute.xlu0 %6764
        %6767 = vset.pattern.permute.xlu0 30
        %6768 = vperm.xlu0 %6767, %v1022
        %v6769 = vpop.permute.xlu0 %6768
        %6771 = vset.pattern.permute.xlu0 30
        %6772 = vperm.xlu0 %6771, %v1023
        %v6773 = vpop.permute.xlu0 %6772
        %v6775 = vlaneseq
        %v6776 = vshrl.u32 %v6775, 7
        %v6777 = vsub.s32 6, %v6776
        %v6778 = vrot.slane %v957, %v6777
        %v6779 = vadd.f32 %v6713, %v6778
        %v6780 = vadd.f32 %v6717, %v6778
        %v6781 = vadd.f32 %v6721, %v6778
        %v6782 = vadd.f32 %v6725, %v6778
        %v6783 = vadd.f32 %v6729, %v6778
        %v6784 = vadd.f32 %v6733, %v6778
        %v6785 = vadd.f32 %v6737, %v6778
        %v6786 = vadd.f32 %v6741, %v6778
        %v6787 = vadd.f32 %v6745, %v6778
        %v6788 = vadd.f32 %v6749, %v6778
        %v6789 = vadd.f32 %v6753, %v6778
        %v6790 = vadd.f32 %v6757, %v6778
        %v6791 = vadd.f32 %v6761, %v6778
        %v6792 = vadd.f32 %v6765, %v6778
        %v6793 = vadd.f32 %v6769, %v6778
        %v6794 = vadd.f32 %v6773, %v6778
        %vm6795 = vcmp.ge.f32.partialorder %v6779, 0.0
        %vm6796 = vcmp.ge.f32.partialorder %v6780, 0.0
        %vm6797 = vcmp.ge.f32.partialorder %v6781, 0.0
        %vm6798 = vcmp.ge.f32.partialorder %v6782, 0.0
        %vm6799 = vcmp.ge.f32.partialorder %v6783, 0.0
        %vm6800 = vcmp.ge.f32.partialorder %v6784, 0.0
        %vm6801 = vcmp.ge.f32.partialorder %v6785, 0.0
        %vm6802 = vcmp.ge.f32.partialorder %v6786, 0.0
        %vm6803 = vcmp.ge.f32.partialorder %v6787, 0.0
        %vm6804 = vcmp.ge.f32.partialorder %v6788, 0.0
        %vm6805 = vcmp.ge.f32.partialorder %v6789, 0.0
        %vm6806 = vcmp.ge.f32.partialorder %v6790, 0.0
        %vm6807 = vcmp.ge.f32.partialorder %v6791, 0.0
        %vm6808 = vcmp.ge.f32.partialorder %v6792, 0.0
        %vm6809 = vcmp.ge.f32.partialorder %v6793, 0.0
        %vm6810 = vcmp.ge.f32.partialorder %v6794, 0.0
        %v6811 = vmul.f32 %v6779, 0.2
        %v6812 = vmul.f32 %v6780, 0.2
        %v6813 = vmul.f32 %v6781, 0.2
        %v6814 = vmul.f32 %v6782, 0.2
        %v6815 = vmul.f32 %v6783, 0.2
        %v6816 = vmul.f32 %v6784, 0.2
        %v6817 = vmul.f32 %v6785, 0.2
        %v6818 = vmul.f32 %v6786, 0.2
        %v6819 = vmul.f32 %v6787, 0.2
        %v6820 = vmul.f32 %v6788, 0.2
        %v6821 = vmul.f32 %v6789, 0.2
        %v6822 = vmul.f32 %v6790, 0.2
        %v6823 = vmul.f32 %v6791, 0.2
        %v6824 = vmul.f32 %v6792, 0.2
        %v6825 = vmul.f32 %v6793, 0.2
        %v6826 = vmul.f32 %v6794, 0.2
        %v6827 = vsel %vm6795, %v6779, %v6811
        %v6828 = vsel %vm6796, %v6780, %v6812
        %v6829 = vsel %vm6797, %v6781, %v6813
        %v6830 = vsel %vm6798, %v6782, %v6814
        %v6831 = vsel %vm6799, %v6783, %v6815
        %v6832 = vsel %vm6800, %v6784, %v6816
        %v6833 = vsel %vm6801, %v6785, %v6817
        %v6834 = vsel %vm6802, %v6786, %v6818
        %v6835 = vsel %vm6803, %v6787, %v6819
        %v6836 = vsel %vm6804, %v6788, %v6820
        %v6837 = vsel %vm6805, %v6789, %v6821
        %v6838 = vsel %vm6806, %v6790, %v6822
        %v6839 = vsel %vm6807, %v6791, %v6823
        %v6840 = vsel %vm6808, %v6792, %v6824
        %v6841 = vsel %vm6809, %v6793, %v6825
        %v6842 = vsel %vm6810, %v6794, %v6826
        %s6843 = sld [smem:[#allocation6 + $0x8e]]
        %v6844 = vstv %s6843
        %v6845 = vmul.f32 %v6844, %v6827
        %v6846 = vmul.f32 %v6844, %v6828
        %v6847 = vmul.f32 %v6844, %v6829
        %v6848 = vmul.f32 %v6844, %v6830
        %v6849 = vmul.f32 %v6844, %v6831
        %v6850 = vmul.f32 %v6844, %v6832
        %v6851 = vmul.f32 %v6844, %v6833
        %v6852 = vmul.f32 %v6844, %v6834
        %v6853 = vmul.f32 %v6844, %v6835
        %v6854 = vmul.f32 %v6844, %v6836
        %v6855 = vmul.f32 %v6844, %v6837
        %v6856 = vmul.f32 %v6844, %v6838
        %v6857 = vmul.f32 %v6844, %v6839
        %v6858 = vmul.f32 %v6844, %v6840
        %v6859 = vmul.f32 %v6844, %v6841
        %v6860 = vmul.f32 %v6844, %v6842
        %v6861 = vadd.f32 %v6695, %v6845
        %v6862 = vadd.f32 %v6696, %v6846
        %v6863 = vadd.f32 %v6697, %v6847
        %v6864 = vadd.f32 %v6698, %v6848
        %v6865 = vadd.f32 %v6699, %v6849
        %v6866 = vadd.f32 %v6700, %v6850
        %v6867 = vadd.f32 %v6701, %v6851
        %v6868 = vadd.f32 %v6702, %v6852
        %v6869 = vadd.f32 %v6703, %v6853
        %v6870 = vadd.f32 %v6704, %v6854
        %v6871 = vadd.f32 %v6705, %v6855
        %v6872 = vadd.f32 %v6706, %v6856
        %v6873 = vadd.f32 %v6707, %v6857
        %v6874 = vadd.f32 %v6708, %v6858
        %v6875 = vadd.f32 %v6709, %v6859
        %v6876 = vadd.f32 %v6710, %v6860
        %6877 = vset.pattern.permute.xlu0 31
        %6878 = vperm.xlu0 %6877, %v1008
        %v6879 = vpop.permute.xlu0 %6878
        %6881 = vset.pattern.permute.xlu0 31
        %6882 = vperm.xlu0 %6881, %v1009
        %v6883 = vpop.permute.xlu0 %6882
        %6885 = vset.pattern.permute.xlu0 31
        %6886 = vperm.xlu0 %6885, %v1010
        %v6887 = vpop.permute.xlu0 %6886
        %6889 = vset.pattern.permute.xlu0 31
        %6890 = vperm.xlu0 %6889, %v1011
        %v6891 = vpop.permute.xlu0 %6890
        %6893 = vset.pattern.permute.xlu0 31
        %6894 = vperm.xlu0 %6893, %v1012
        %v6895 = vpop.permute.xlu0 %6894
        %6897 = vset.pattern.permute.xlu0 31
        %6898 = vperm.xlu0 %6897, %v1013
        %v6899 = vpop.permute.xlu0 %6898
        %6901 = vset.pattern.permute.xlu0 31
        %6902 = vperm.xlu0 %6901, %v1014
        %v6903 = vpop.permute.xlu0 %6902
        %6905 = vset.pattern.permute.xlu0 31
        %6906 = vperm.xlu0 %6905, %v1015
        %v6907 = vpop.permute.xlu0 %6906
        %6909 = vset.pattern.permute.xlu0 31
        %6910 = vperm.xlu0 %6909, %v1016
        %v6911 = vpop.permute.xlu0 %6910
        %6913 = vset.pattern.permute.xlu0 31
        %6914 = vperm.xlu0 %6913, %v1017
        %v6915 = vpop.permute.xlu0 %6914
        %6917 = vset.pattern.permute.xlu0 31
        %6918 = vperm.xlu0 %6917, %v1018
        %v6919 = vpop.permute.xlu0 %6918
        %6921 = vset.pattern.permute.xlu0 31
        %6922 = vperm.xlu0 %6921, %v1019
        %v6923 = vpop.permute.xlu0 %6922
        %6925 = vset.pattern.permute.xlu0 31
        %6926 = vperm.xlu0 %6925, %v1020
        %v6927 = vpop.permute.xlu0 %6926
        %6929 = vset.pattern.permute.xlu0 31
        %6930 = vperm.xlu0 %6929, %v1021
        %v6931 = vpop.permute.xlu0 %6930
        %6933 = vset.pattern.permute.xlu0 31
        %6934 = vperm.xlu0 %6933, %v1022
        %v6935 = vpop.permute.xlu0 %6934
        %6937 = vset.pattern.permute.xlu0 31
        %6938 = vperm.xlu0 %6937, %v1023
        %v6939 = vpop.permute.xlu0 %6938
        %v6941 = vlaneseq
        %v6942 = vshrl.u32 %v6941, 7
        %v6943 = vsub.s32 7, %v6942
        %v6944 = vrot.slane %v957, %v6943
        %v6945 = vadd.f32 %v6879, %v6944
        %v6946 = vadd.f32 %v6883, %v6944
        %v6947 = vadd.f32 %v6887, %v6944
        %v6948 = vadd.f32 %v6891, %v6944
        %v6949 = vadd.f32 %v6895, %v6944
        %v6950 = vadd.f32 %v6899, %v6944
        %v6951 = vadd.f32 %v6903, %v6944
        %v6952 = vadd.f32 %v6907, %v6944
        %v6953 = vadd.f32 %v6911, %v6944
        %v6954 = vadd.f32 %v6915, %v6944
        %v6955 = vadd.f32 %v6919, %v6944
        %v6956 = vadd.f32 %v6923, %v6944
        %v6957 = vadd.f32 %v6927, %v6944
        %v6958 = vadd.f32 %v6931, %v6944
        %v6959 = vadd.f32 %v6935, %v6944
        %v6960 = vadd.f32 %v6939, %v6944
        %vm6961 = vcmp.ge.f32.partialorder %v6945, 0.0
        %vm6962 = vcmp.ge.f32.partialorder %v6946, 0.0
        %vm6963 = vcmp.ge.f32.partialorder %v6947, 0.0
        %vm6964 = vcmp.ge.f32.partialorder %v6948, 0.0
        %vm6965 = vcmp.ge.f32.partialorder %v6949, 0.0
        %vm6966 = vcmp.ge.f32.partialorder %v6950, 0.0
        %vm6967 = vcmp.ge.f32.partialorder %v6951, 0.0
        %vm6968 = vcmp.ge.f32.partialorder %v6952, 0.0
        %vm6969 = vcmp.ge.f32.partialorder %v6953, 0.0
        %vm6970 = vcmp.ge.f32.partialorder %v6954, 0.0
        %vm6971 = vcmp.ge.f32.partialorder %v6955, 0.0
        %vm6972 = vcmp.ge.f32.partialorder %v6956, 0.0
        %vm6973 = vcmp.ge.f32.partialorder %v6957, 0.0
        %vm6974 = vcmp.ge.f32.partialorder %v6958, 0.0
        %vm6975 = vcmp.ge.f32.partialorder %v6959, 0.0
        %vm6976 = vcmp.ge.f32.partialorder %v6960, 0.0
        %v6977 = vmul.f32 %v6945, 0.2
        %v6978 = vmul.f32 %v6946, 0.2
        %v6979 = vmul.f32 %v6947, 0.2
        %v6980 = vmul.f32 %v6948, 0.2
        %v6981 = vmul.f32 %v6949, 0.2
        %v6982 = vmul.f32 %v6950, 0.2
        %v6983 = vmul.f32 %v6951, 0.2
        %v6984 = vmul.f32 %v6952, 0.2
        %v6985 = vmul.f32 %v6953, 0.2
        %v6986 = vmul.f32 %v6954, 0.2
        %v6987 = vmul.f32 %v6955, 0.2
        %v6988 = vmul.f32 %v6956, 0.2
        %v6989 = vmul.f32 %v6957, 0.2
        %v6990 = vmul.f32 %v6958, 0.2
        %v6991 = vmul.f32 %v6959, 0.2
        %v6992 = vmul.f32 %v6960, 0.2
        %v6993 = vsel %vm6961, %v6945, %v6977
        %v6994 = vsel %vm6962, %v6946, %v6978
        %v6995 = vsel %vm6963, %v6947, %v6979
        %v6996 = vsel %vm6964, %v6948, %v6980
        %v6997 = vsel %vm6965, %v6949, %v6981
        %v6998 = vsel %vm6966, %v6950, %v6982
        %v6999 = vsel %vm6967, %v6951, %v6983
        %v7000 = vsel %vm6968, %v6952, %v6984
        %v7001 = vsel %vm6969, %v6953, %v6985
        %v7002 = vsel %vm6970, %v6954, %v6986
        %v7003 = vsel %vm6971, %v6955, %v6987
        %v7004 = vsel %vm6972, %v6956, %v6988
        %v7005 = vsel %vm6973, %v6957, %v6989
        %v7006 = vsel %vm6974, %v6958, %v6990
        %v7007 = vsel %vm6975, %v6959, %v6991
        %v7008 = vsel %vm6976, %v6960, %v6992
        %s7009 = sld [smem:[#allocation6 + $0x8f]]
        %v7010 = vstv %s7009
        %v7011 = vmul.f32 %v7010, %v6993
        %v7012 = vmul.f32 %v7010, %v6994
        %v7013 = vmul.f32 %v7010, %v6995
        %v7014 = vmul.f32 %v7010, %v6996
        %v7015 = vmul.f32 %v7010, %v6997
        %v7016 = vmul.f32 %v7010, %v6998
        %v7017 = vmul.f32 %v7010, %v6999
        %v7018 = vmul.f32 %v7010, %v7000
        %v7019 = vmul.f32 %v7010, %v7001
        %v7020 = vmul.f32 %v7010, %v7002
        %v7021 = vmul.f32 %v7010, %v7003
        %v7022 = vmul.f32 %v7010, %v7004
        %v7023 = vmul.f32 %v7010, %v7005
        %v7024 = vmul.f32 %v7010, %v7006
        %v7025 = vmul.f32 %v7010, %v7007
        %v7026 = vmul.f32 %v7010, %v7008
        %v7027 = vadd.f32 %v6861, %v7011
        %v7028 = vadd.f32 %v6862, %v7012
        %v7029 = vadd.f32 %v6863, %v7013
        %v7030 = vadd.f32 %v6864, %v7014
        %v7031 = vadd.f32 %v6865, %v7015
        %v7032 = vadd.f32 %v6866, %v7016
        %v7033 = vadd.f32 %v6867, %v7017
        %v7034 = vadd.f32 %v6868, %v7018
        %v7035 = vadd.f32 %v6869, %v7019
        %v7036 = vadd.f32 %v6870, %v7020
        %v7037 = vadd.f32 %v6871, %v7021
        %v7038 = vadd.f32 %v6872, %v7022
        %v7039 = vadd.f32 %v6873, %v7023
        %v7040 = vadd.f32 %v6874, %v7024
        %v7041 = vadd.f32 %v6875, %v7025
        %v7042 = vadd.f32 %v6876, %v7026
        %v7043 = vsel %vm3728, %v7027, -1e+30
        %v7044 = vsel %vm3729, %v7028, -1e+30
        %v7045 = vsel %vm3730, %v7029, -1e+30
        %v7046 = vsel %vm3731, %v7030, -1e+30
        %v7047 = vsel %vm3732, %v7031, -1e+30
        %v7048 = vsel %vm3733, %v7032, -1e+30
        %v7049 = vsel %vm3734, %v7033, -1e+30
        %v7050 = vsel %vm3735, %v7034, -1e+30
        %v7051 = vsel %vm3736, %v7035, -1e+30
        %v7052 = vsel %vm3737, %v7036, -1e+30
        %v7053 = vsel %vm3738, %v7037, -1e+30
        %v7054 = vsel %vm3739, %v7038, -1e+30
        %v7055 = vsel %vm3740, %v7039, -1e+30
        %v7056 = vsel %vm3741, %v7040, -1e+30
        %v7057 = vsel %vm3742, %v7041, -1e+30
        %v7058 = vsel %vm3743, %v7042, -1e+30
        %v7059 = vld [vmem:[#allocation3] sm:$0xff]
        %v7060 = vld [vmem:[#allocation3 + $0x8] sm:$0xff]
        %v7061 = vld [vmem:[#allocation3 + $0x10] sm:$0xff]
        %v7062 = vld [vmem:[#allocation3 + $0x18] sm:$0xff]
        %v7063 = vld [vmem:[#allocation3 + $0x20] sm:$0xff]
        %v7064 = vld [vmem:[#allocation3 + $0x28] sm:$0xff]
        %v7065 = vld [vmem:[#allocation3 + $0x30] sm:$0xff]
        %v7066 = vld [vmem:[#allocation3 + $0x38] sm:$0xff]
        %v7067 = vld [vmem:[#allocation3 + $0x40] sm:$0xff]
        %v7068 = vld [vmem:[#allocation3 + $0x48] sm:$0xff]
        %v7069 = vld [vmem:[#allocation3 + $0x50] sm:$0xff]
        %v7070 = vld [vmem:[#allocation3 + $0x58] sm:$0xff]
        %v7071 = vld [vmem:[#allocation3 + $0x60] sm:$0xff]
        %v7072 = vld [vmem:[#allocation3 + $0x68] sm:$0xff]
        %v7073 = vld [vmem:[#allocation3 + $0x70] sm:$0xff]
        %v7074 = vld [vmem:[#allocation3 + $0x78] sm:$0xff]
        %7075 = vmax.xlane.f32.xlu0 %v7043
        %v7076 = vpop.xlane.xlu0 %7075
        %7077 = vmax.xlane.f32.xlu0 %v7044
        %v7078 = vpop.xlane.xlu0 %7077
        %7079 = vmax.xlane.f32.xlu0 %v7045
        %v7080 = vpop.xlane.xlu0 %7079
        %7081 = vmax.xlane.f32.xlu0 %v7046
        %v7082 = vpop.xlane.xlu0 %7081
        %7083 = vmax.xlane.f32.xlu0 %v7047
        %v7084 = vpop.xlane.xlu0 %7083
        %7085 = vmax.xlane.f32.xlu0 %v7048
        %v7086 = vpop.xlane.xlu0 %7085
        %7087 = vmax.xlane.f32.xlu0 %v7049
        %v7088 = vpop.xlane.xlu0 %7087
        %7089 = vmax.xlane.f32.xlu0 %v7050
        %v7090 = vpop.xlane.xlu0 %7089
        %7091 = vmax.xlane.f32.xlu0 %v7051
        %v7092 = vpop.xlane.xlu0 %7091
        %7093 = vmax.xlane.f32.xlu0 %v7052
        %v7094 = vpop.xlane.xlu0 %7093
        %7095 = vmax.xlane.f32.xlu0 %v7053
        %v7096 = vpop.xlane.xlu0 %7095
        %7097 = vmax.xlane.f32.xlu0 %v7054
        %v7098 = vpop.xlane.xlu0 %7097
        %7099 = vmax.xlane.f32.xlu0 %v7055
        %v7100 = vpop.xlane.xlu0 %7099
        %7101 = vmax.xlane.f32.xlu0 %v7056
        %v7102 = vpop.xlane.xlu0 %7101
        %7103 = vmax.xlane.f32.xlu0 %v7057
        %v7104 = vpop.xlane.xlu0 %7103
        %7105 = vmax.xlane.f32.xlu0 %v7058
        %v7106 = vpop.xlane.xlu0 %7105
        %v7107 = vmax.f32 %v7059, %v7076
        %v7108 = vmax.f32 %v7060, %v7078
        %v7109 = vmax.f32 %v7061, %v7080
        %v7110 = vmax.f32 %v7062, %v7082
        %v7111 = vmax.f32 %v7063, %v7084
        %v7112 = vmax.f32 %v7064, %v7086
        %v7113 = vmax.f32 %v7065, %v7088
        %v7114 = vmax.f32 %v7066, %v7090
        %v7115 = vmax.f32 %v7067, %v7092
        %v7116 = vmax.f32 %v7068, %v7094
        %v7117 = vmax.f32 %v7069, %v7096
        %v7118 = vmax.f32 %v7070, %v7098
        %v7119 = vmax.f32 %v7071, %v7100
        %v7120 = vmax.f32 %v7072, %v7102
        %v7121 = vmax.f32 %v7073, %v7104
        %v7122 = vmax.f32 %v7074, %v7106
        %v7123 = vsub.f32 %v7059, %v7107
        %v7124 = vsub.f32 %v7060, %v7108
        %v7125 = vsub.f32 %v7061, %v7109
        %v7126 = vsub.f32 %v7062, %v7110
        %v7127 = vsub.f32 %v7063, %v7111
        %v7128 = vsub.f32 %v7064, %v7112
        %v7129 = vsub.f32 %v7065, %v7113
        %v7130 = vsub.f32 %v7066, %v7114
        %v7131 = vsub.f32 %v7067, %v7115
        %v7132 = vsub.f32 %v7068, %v7116
        %v7133 = vsub.f32 %v7069, %v7117
        %v7134 = vsub.f32 %v7070, %v7118
        %v7135 = vsub.f32 %v7071, %v7119
        %v7136 = vsub.f32 %v7072, %v7120
        %v7137 = vsub.f32 %v7073, %v7121
        %v7138 = vsub.f32 %v7074, %v7122
        %v7139 = vmul.f32 %v7123, 1.442695
        %v7140 = vpow.pop %v7139
        %v7141 = vmul.f32 %v7124, 1.442695
        %v7142 = vpow.pop %v7141
        %v7143 = vmul.f32 %v7125, 1.442695
        %v7144 = vpow.pop %v7143
        %v7145 = vmul.f32 %v7126, 1.442695
        %v7146 = vpow.pop %v7145
        %v7147 = vmul.f32 %v7127, 1.442695
        %v7148 = vpow.pop %v7147
        %v7149 = vmul.f32 %v7128, 1.442695
        %v7150 = vpow.pop %v7149
        %v7151 = vmul.f32 %v7129, 1.442695
        %v7152 = vpow.pop %v7151
        %v7153 = vmul.f32 %v7130, 1.442695
        %v7154 = vpow.pop %v7153
        %v7155 = vmul.f32 %v7131, 1.442695
        %v7156 = vpow.pop %v7155
        %v7157 = vmul.f32 %v7132, 1.442695
        %v7158 = vpow.pop %v7157
        %v7159 = vmul.f32 %v7133, 1.442695
        %v7160 = vpow.pop %v7159
        %v7161 = vmul.f32 %v7134, 1.442695
        %v7162 = vpow.pop %v7161
        %v7163 = vmul.f32 %v7135, 1.442695
        %v7164 = vpow.pop %v7163
        %v7165 = vmul.f32 %v7136, 1.442695
        %v7166 = vpow.pop %v7165
        %v7167 = vmul.f32 %v7137, 1.442695
        %v7168 = vpow.pop %v7167
        %v7169 = vmul.f32 %v7138, 1.442695
        %v7170 = vpow.pop %v7169
        %7172 = vset.pattern.permute.xlu0 1
        %7173 = vperm.xlu0 %7172, %v7107
        %v7174 = vpop.permute.xlu0 %7173
        %7177 = vset.pattern.permute.xlu0 1
        %7178 = vperm.xlu0 %7177, %v7108
        %v7179 = vpop.permute.xlu0 %7178
        %7182 = vset.pattern.permute.xlu0 1
        %7183 = vperm.xlu0 %7182, %v7109
        %v7184 = vpop.permute.xlu0 %7183
        %7187 = vset.pattern.permute.xlu0 1
        %7188 = vperm.xlu0 %7187, %v7110
        %v7189 = vpop.permute.xlu0 %7188
        %7192 = vset.pattern.permute.xlu0 1
        %7193 = vperm.xlu0 %7192, %v7111
        %v7194 = vpop.permute.xlu0 %7193
        %7197 = vset.pattern.permute.xlu0 1
        %7198 = vperm.xlu0 %7197, %v7112
        %v7199 = vpop.permute.xlu0 %7198
        %7202 = vset.pattern.permute.xlu0 1
        %7203 = vperm.xlu0 %7202, %v7113
        %v7204 = vpop.permute.xlu0 %7203
        %7207 = vset.pattern.permute.xlu0 1
        %7208 = vperm.xlu0 %7207, %v7114
        %v7209 = vpop.permute.xlu0 %7208
        %7212 = vset.pattern.permute.xlu0 1
        %7213 = vperm.xlu0 %7212, %v7115
        %v7214 = vpop.permute.xlu0 %7213
        %7217 = vset.pattern.permute.xlu0 1
        %7218 = vperm.xlu0 %7217, %v7116
        %v7219 = vpop.permute.xlu0 %7218
        %7222 = vset.pattern.permute.xlu0 1
        %7223 = vperm.xlu0 %7222, %v7117
        %v7224 = vpop.permute.xlu0 %7223
        %7227 = vset.pattern.permute.xlu0 1
        %7228 = vperm.xlu0 %7227, %v7118
        %v7229 = vpop.permute.xlu0 %7228
        %7232 = vset.pattern.permute.xlu0 1
        %7233 = vperm.xlu0 %7232, %v7119
        %v7234 = vpop.permute.xlu0 %7233
        %7237 = vset.pattern.permute.xlu0 1
        %7238 = vperm.xlu0 %7237, %v7120
        %v7239 = vpop.permute.xlu0 %7238
        %7242 = vset.pattern.permute.xlu0 1
        %7243 = vperm.xlu0 %7242, %v7121
        %v7244 = vpop.permute.xlu0 %7243
        %7247 = vset.pattern.permute.xlu0 1
        %7248 = vperm.xlu0 %7247, %v7122
        %v7249 = vpop.permute.xlu0 %7248
        %v7251 = vsub.f32 %v7043, %v7174
        %v7252 = vsub.f32 %v7044, %v7179
        %v7253 = vsub.f32 %v7045, %v7184
        %v7254 = vsub.f32 %v7046, %v7189
        %v7255 = vsub.f32 %v7047, %v7194
        %v7256 = vsub.f32 %v7048, %v7199
        %v7257 = vsub.f32 %v7049, %v7204
        %v7258 = vsub.f32 %v7050, %v7209
        %v7259 = vsub.f32 %v7051, %v7214
        %v7260 = vsub.f32 %v7052, %v7219
        %v7261 = vsub.f32 %v7053, %v7224
        %v7262 = vsub.f32 %v7054, %v7229
        %v7263 = vsub.f32 %v7055, %v7234
        %v7264 = vsub.f32 %v7056, %v7239
        %v7265 = vsub.f32 %v7057, %v7244
        %v7266 = vsub.f32 %v7058, %v7249
        %v7267 = vmul.f32 %v7251, 1.442695
        %v7268 = vpow.pop %v7267
        %v7269 = vmul.f32 %v7252, 1.442695
        %v7270 = vpow.pop %v7269
        %v7271 = vmul.f32 %v7253, 1.442695
        %v7272 = vpow.pop %v7271
        %v7273 = vmul.f32 %v7254, 1.442695
        %v7274 = vpow.pop %v7273
        %v7275 = vmul.f32 %v7255, 1.442695
        %v7276 = vpow.pop %v7275
        %v7277 = vmul.f32 %v7256, 1.442695
        %v7278 = vpow.pop %v7277
        %v7279 = vmul.f32 %v7257, 1.442695
        %v7280 = vpow.pop %v7279
        %v7281 = vmul.f32 %v7258, 1.442695
        %v7282 = vpow.pop %v7281
        %v7283 = vmul.f32 %v7259, 1.442695
        %v7284 = vpow.pop %v7283
        %v7285 = vmul.f32 %v7260, 1.442695
        %v7286 = vpow.pop %v7285
        %v7287 = vmul.f32 %v7261, 1.442695
        %v7288 = vpow.pop %v7287
        %v7289 = vmul.f32 %v7262, 1.442695
        %v7290 = vpow.pop %v7289
        %v7291 = vmul.f32 %v7263, 1.442695
        %v7292 = vpow.pop %v7291
        %v7293 = vmul.f32 %v7264, 1.442695
        %v7294 = vpow.pop %v7293
        %v7295 = vmul.f32 %v7265, 1.442695
        %v7296 = vpow.pop %v7295
        %v7297 = vmul.f32 %v7266, 1.442695
        %v7298 = vpow.pop %v7297
        %v7299 = vsel %vm3728, %v7268, 0.0
        %v7300 = vsel %vm3729, %v7270, 0.0
        %v7301 = vsel %vm3730, %v7272, 0.0
        %v7302 = vsel %vm3731, %v7274, 0.0
        %v7303 = vsel %vm3732, %v7276, 0.0
        %v7304 = vsel %vm3733, %v7278, 0.0
        %v7305 = vsel %vm3734, %v7280, 0.0
        %v7306 = vsel %vm3735, %v7282, 0.0
        %v7307 = vsel %vm3736, %v7284, 0.0
        %v7308 = vsel %vm3737, %v7286, 0.0
        %v7309 = vsel %vm3738, %v7288, 0.0
        %v7310 = vsel %vm3739, %v7290, 0.0
        %v7311 = vsel %vm3740, %v7292, 0.0
        %v7312 = vsel %vm3741, %v7294, 0.0
        %v7313 = vsel %vm3742, %v7296, 0.0
        %v7314 = vsel %vm3743, %v7298, 0.0
        %v7315 = vld [vmem:[#allocation4] sm:$0xff]
        %v7316 = vld [vmem:[#allocation4 + $0x8] sm:$0xff]
        %v7317 = vld [vmem:[#allocation4 + $0x10] sm:$0xff]
        %v7318 = vld [vmem:[#allocation4 + $0x18] sm:$0xff]
        %v7319 = vld [vmem:[#allocation4 + $0x20] sm:$0xff]
        %v7320 = vld [vmem:[#allocation4 + $0x28] sm:$0xff]
        %v7321 = vld [vmem:[#allocation4 + $0x30] sm:$0xff]
        %v7322 = vld [vmem:[#allocation4 + $0x38] sm:$0xff]
        %v7323 = vld [vmem:[#allocation4 + $0x40] sm:$0xff]
        %v7324 = vld [vmem:[#allocation4 + $0x48] sm:$0xff]
        %v7325 = vld [vmem:[#allocation4 + $0x50] sm:$0xff]
        %v7326 = vld [vmem:[#allocation4 + $0x58] sm:$0xff]
        %v7327 = vld [vmem:[#allocation4 + $0x60] sm:$0xff]
        %v7328 = vld [vmem:[#allocation4 + $0x68] sm:$0xff]
        %v7329 = vld [vmem:[#allocation4 + $0x70] sm:$0xff]
        %v7330 = vld [vmem:[#allocation4 + $0x78] sm:$0xff]
        %v7331 = vmul.f32 %v7140, %v7315
        %v7332 = vmul.f32 %v7142, %v7316
        %v7333 = vmul.f32 %v7144, %v7317
        %v7334 = vmul.f32 %v7146, %v7318
        %v7335 = vmul.f32 %v7148, %v7319
        %v7336 = vmul.f32 %v7150, %v7320
        %v7337 = vmul.f32 %v7152, %v7321
        %v7338 = vmul.f32 %v7154, %v7322
        %v7339 = vmul.f32 %v7156, %v7323
        %v7340 = vmul.f32 %v7158, %v7324
        %v7341 = vmul.f32 %v7160, %v7325
        %v7342 = vmul.f32 %v7162, %v7326
        %v7343 = vmul.f32 %v7164, %v7327
        %v7344 = vmul.f32 %v7166, %v7328
        %v7345 = vmul.f32 %v7168, %v7329
        %v7346 = vmul.f32 %v7170, %v7330
        %7347 = vadd.xlane.f32.xlu0 %v7299
        %v7348 = vpop.xlane.xlu0 %7347
        %7349 = vadd.xlane.f32.xlu0 %v7300
        %v7350 = vpop.xlane.xlu0 %7349
        %7351 = vadd.xlane.f32.xlu0 %v7301
        %v7352 = vpop.xlane.xlu0 %7351
        %7353 = vadd.xlane.f32.xlu0 %v7302
        %v7354 = vpop.xlane.xlu0 %7353
        %7355 = vadd.xlane.f32.xlu0 %v7303
        %v7356 = vpop.xlane.xlu0 %7355
        %7357 = vadd.xlane.f32.xlu0 %v7304
        %v7358 = vpop.xlane.xlu0 %7357
        %7359 = vadd.xlane.f32.xlu0 %v7305
        %v7360 = vpop.xlane.xlu0 %7359
        %7361 = vadd.xlane.f32.xlu0 %v7306
        %v7362 = vpop.xlane.xlu0 %7361
        %7363 = vadd.xlane.f32.xlu0 %v7307
        %v7364 = vpop.xlane.xlu0 %7363
        %7365 = vadd.xlane.f32.xlu0 %v7308
        %v7366 = vpop.xlane.xlu0 %7365
        %7367 = vadd.xlane.f32.xlu0 %v7309
        %v7368 = vpop.xlane.xlu0 %7367
        %7369 = vadd.xlane.f32.xlu0 %v7310
        %v7370 = vpop.xlane.xlu0 %7369
        %7371 = vadd.xlane.f32.xlu0 %v7311
        %v7372 = vpop.xlane.xlu0 %7371
        %7373 = vadd.xlane.f32.xlu0 %v7312
        %v7374 = vpop.xlane.xlu0 %7373
        %7375 = vadd.xlane.f32.xlu0 %v7313
        %v7376 = vpop.xlane.xlu0 %7375
        %7377 = vadd.xlane.f32.xlu0 %v7314
        %v7378 = vpop.xlane.xlu0 %7377
        %v7379 = vadd.f32 %v7331, %v7348
        %v7380 = vadd.f32 %v7332, %v7350
        %v7381 = vadd.f32 %v7333, %v7352
        %v7382 = vadd.f32 %v7334, %v7354
        %v7383 = vadd.f32 %v7335, %v7356
        %v7384 = vadd.f32 %v7336, %v7358
        %v7385 = vadd.f32 %v7337, %v7360
        %v7386 = vadd.f32 %v7338, %v7362
        %v7387 = vadd.f32 %v7339, %v7364
        %v7388 = vadd.f32 %v7340, %v7366
        %v7389 = vadd.f32 %v7341, %v7368
        %v7390 = vadd.f32 %v7342, %v7370
        %v7391 = vadd.f32 %v7343, %v7372
        %v7392 = vadd.f32 %v7344, %v7374
        %v7393 = vadd.f32 %v7345, %v7376
        %v7394 = vadd.f32 %v7346, %v7378
        %vm7395 = vcmask 15368
        %7396 = vst.msk [vmem:[#allocation4] sm:$0xff] %vm7395, %v7379
        %7397 = vst.msk [vmem:[#allocation4 + $0x8] sm:$0xff] %vm7395, %v7380
        %7398 = vst.msk [vmem:[#allocation4 + $0x10] sm:$0xff] %vm7395, %v7381
        %7399 = vst.msk [vmem:[#allocation4 + $0x18] sm:$0xff] %vm7395, %v7382
        %7400 = vst.msk [vmem:[#allocation4 + $0x20] sm:$0xff] %vm7395, %v7383
        %7401 = vst.msk [vmem:[#allocation4 + $0x28] sm:$0xff] %vm7395, %v7384
        %7402 = vst.msk [vmem:[#allocation4 + $0x30] sm:$0xff] %vm7395, %v7385
        %7403 = vst.msk [vmem:[#allocation4 + $0x38] sm:$0xff] %vm7395, %v7386
        %7404 = vst.msk [vmem:[#allocation4 + $0x40] sm:$0xff] %vm7395, %v7387
        %7405 = vst.msk [vmem:[#allocation4 + $0x48] sm:$0xff] %vm7395, %v7388
        %7406 = vst.msk [vmem:[#allocation4 + $0x50] sm:$0xff] %vm7395, %v7389
        %7407 = vst.msk [vmem:[#allocation4 + $0x58] sm:$0xff] %vm7395, %v7390
        %7408 = vst.msk [vmem:[#allocation4 + $0x60] sm:$0xff] %vm7395, %v7391
        %7409 = vst.msk [vmem:[#allocation4 + $0x68] sm:$0xff] %vm7395, %v7392
        %7410 = vst.msk [vmem:[#allocation4 + $0x70] sm:$0xff] %vm7395, %v7393
        %7411 = vst.msk [vmem:[#allocation4 + $0x78] sm:$0xff] %vm7395, %v7394
        %v7412 = vld [vmem:[#allocation5] sm:$0xff]
        %v7413 = vld [vmem:[#allocation5 + $0x8] sm:$0xff]
        %v7414 = vld [vmem:[#allocation5 + $0x10] sm:$0xff]
        %v7415 = vld [vmem:[#allocation5 + $0x18] sm:$0xff]
        %v7416 = vld [vmem:[#allocation5 + $0x20] sm:$0xff]
        %v7417 = vld [vmem:[#allocation5 + $0x28] sm:$0xff]
        %v7418 = vld [vmem:[#allocation5 + $0x30] sm:$0xff]
        %v7419 = vld [vmem:[#allocation5 + $0x38] sm:$0xff]
        %v7420 = vld [vmem:[#allocation5 + $0x40] sm:$0xff]
        %v7421 = vld [vmem:[#allocation5 + $0x48] sm:$0xff]
        %v7422 = vld [vmem:[#allocation5 + $0x50] sm:$0xff]
        %v7423 = vld [vmem:[#allocation5 + $0x58] sm:$0xff]
        %v7424 = vld [vmem:[#allocation5 + $0x60] sm:$0xff]
        %v7425 = vld [vmem:[#allocation5 + $0x68] sm:$0xff]
        %v7426 = vld [vmem:[#allocation5 + $0x70] sm:$0xff]
        %v7427 = vld [vmem:[#allocation5 + $0x78] sm:$0xff]
        %7429 = vset.pattern.permute.xlu0 1
        %7430 = vperm.xlu0 %7429, %v7140
        %v7431 = vpop.permute.xlu0 %7430
        %7434 = vset.pattern.permute.xlu0 1
        %7435 = vperm.xlu0 %7434, %v7142
        %v7436 = vpop.permute.xlu0 %7435
        %7439 = vset.pattern.permute.xlu0 1
        %7440 = vperm.xlu0 %7439, %v7144
        %v7441 = vpop.permute.xlu0 %7440
        %7444 = vset.pattern.permute.xlu0 1
        %7445 = vperm.xlu0 %7444, %v7146
        %v7446 = vpop.permute.xlu0 %7445
        %7449 = vset.pattern.permute.xlu0 1
        %7450 = vperm.xlu0 %7449, %v7148
        %v7451 = vpop.permute.xlu0 %7450
        %7454 = vset.pattern.permute.xlu0 1
        %7455 = vperm.xlu0 %7454, %v7150
        %v7456 = vpop.permute.xlu0 %7455
        %7459 = vset.pattern.permute.xlu0 1
        %7460 = vperm.xlu0 %7459, %v7152
        %v7461 = vpop.permute.xlu0 %7460
        %7464 = vset.pattern.permute.xlu0 1
        %7465 = vperm.xlu0 %7464, %v7154
        %v7466 = vpop.permute.xlu0 %7465
        %7469 = vset.pattern.permute.xlu0 1
        %7470 = vperm.xlu0 %7469, %v7156
        %v7471 = vpop.permute.xlu0 %7470
        %7474 = vset.pattern.permute.xlu0 1
        %7475 = vperm.xlu0 %7474, %v7158
        %v7476 = vpop.permute.xlu0 %7475
        %7479 = vset.pattern.permute.xlu0 1
        %7480 = vperm.xlu0 %7479, %v7160
        %v7481 = vpop.permute.xlu0 %7480
        %7484 = vset.pattern.permute.xlu0 1
        %7485 = vperm.xlu0 %7484, %v7162
        %v7486 = vpop.permute.xlu0 %7485
        %7489 = vset.pattern.permute.xlu0 1
        %7490 = vperm.xlu0 %7489, %v7164
        %v7491 = vpop.permute.xlu0 %7490
        %7494 = vset.pattern.permute.xlu0 1
        %7495 = vperm.xlu0 %7494, %v7166
        %v7496 = vpop.permute.xlu0 %7495
        %7499 = vset.pattern.permute.xlu0 1
        %7500 = vperm.xlu0 %7499, %v7168
        %v7501 = vpop.permute.xlu0 %7500
        %7504 = vset.pattern.permute.xlu0 1
        %7505 = vperm.xlu0 %7504, %v7170
        %v7506 = vpop.permute.xlu0 %7505
        %v7508 = vmul.f32 %v7431, %v7412
        %v7509 = vmul.f32 %v7436, %v7413
        %v7510 = vmul.f32 %v7441, %v7414
        %v7511 = vmul.f32 %v7446, %v7415
        %v7512 = vmul.f32 %v7451, %v7416
        %v7513 = vmul.f32 %v7456, %v7417
        %v7514 = vmul.f32 %v7461, %v7418
        %v7515 = vmul.f32 %v7466, %v7419
        %v7516 = vmul.f32 %v7471, %v7420
        %v7517 = vmul.f32 %v7476, %v7421
        %v7518 = vmul.f32 %v7481, %v7422
        %v7519 = vmul.f32 %v7486, %v7423
        %v7520 = vmul.f32 %v7491, %v7424
        %v7521 = vmul.f32 %v7496, %v7425
        %v7522 = vmul.f32 %v7501, %v7426
        %v7523 = vmul.f32 %v7506, %v7427
        %v7524 = vpack.c.bf16 %v7300, %v7299
        %v7525 = vpack.c.bf16 %v7302, %v7301
        %v7526 = vpack.c.bf16 %v7304, %v7303
        %v7527 = vpack.c.bf16 %v7306, %v7305
        %v7528 = vpack.c.bf16 %v7308, %v7307
        %v7529 = vpack.c.bf16 %v7310, %v7309
        %v7530 = vpack.c.bf16 %v7312, %v7311
        %v7531 = vpack.c.bf16 %v7314, %v7313
        %7540 = vrot.lane.b32.xlu0 %v4233, 112
        %v7541 = vpop.permute.xlu0 %7540
        %7542 = vrot.lane.b32.xlu0 %v4234, 112
        %v7543 = vpop.permute.xlu0 %7542
        %7544 = vrot.lane.b32.xlu0 %v4235, 112
        %v7545 = vpop.permute.xlu0 %7544
        %7546 = vrot.lane.b32.xlu0 %v4236, 112
        %v7547 = vpop.permute.xlu0 %7546
        %7548 = vrot.lane.b32.xlu0 %v4237, 112
        %v7549 = vpop.permute.xlu0 %7548
        %7550 = vrot.lane.b32.xlu0 %v4238, 112
        %v7551 = vpop.permute.xlu0 %7550
        %7552 = vrot.lane.b32.xlu0 %v4239, 112
        %v7553 = vpop.permute.xlu0 %7552
        %7554 = vrot.lane.b32.xlu0 %v4240, 112
        %v7555 = vpop.permute.xlu0 %7554
        %7564 = vmatprep.subr.bf16.mxu0 0
        %7565 = vmatpush1.bf16.msra.mxu0 %v7541
        %7566 = vmatprep.subr.bf16.mxu0 0
        %7567 = vmatpush1.bf16.msra.mxu0 %v7543
        %7568 = vmatprep.subr.bf16.mxu0 0
        %7569 = vmatpush1.bf16.msra.mxu0 %v7545
        %7570 = vmatprep.subr.bf16.mxu0 0
        %7571 = vmatpush1.bf16.msra.mxu0 %v7547
        %7572 = vmatprep.subr.bf16.mxu0 0
        %7573 = vmatpush1.bf16.msra.mxu0 %v7549
        %7574 = vmatprep.subr.bf16.mxu0 0
        %7575 = vmatpush1.bf16.msra.mxu0 %v7551
        %7576 = vmatprep.subr.bf16.mxu0 0
        %7577 = vmatpush1.bf16.msra.mxu0 %v7553
        %7578 = vmatprep.subr.bf16.mxu0 0
        %7579 = vmatpush1.bf16.msra.mxu0 %v7555
        %7580 = vmatprep.subr.bf16.mxu0 0
        %7581 = vmatpush1.bf16.msra.mxu0 0
        %7582 = vmatprep.subr.bf16.mxu0 0
        %7583 = vmatpush1.bf16.msra.mxu0 0
        %7584 = vmatprep.subr.bf16.mxu0 0
        %7585 = vmatpush1.bf16.msra.mxu0 0
        %7586 = vmatprep.subr.bf16.mxu0 0
        %7587 = vmatpush1.bf16.msra.mxu0 0
        %7588 = vmatprep.subr.bf16.mxu0 0
        %7589 = vmatpush1.bf16.msra.mxu0 0
        %7590 = vmatprep.subr.bf16.mxu0 0
        %7591 = vmatpush1.bf16.msra.mxu0 0
        %7592 = vmatprep.subr.bf16.mxu0 0
        %7593 = vmatpush1.bf16.msra.mxu0 0
        %7594 = vmatprep.subr.bf16.mxu0 0
        %7595 = vmatpush1.bf16.msra.mxu0 0
        %7596 = vmatprep.mubr.bf16.mxu0 0
        %7597 = vmatmul.mubr.bf16.gmra.mrb[0].mxu0 %v7524
        %v7598 = vpop.f32.mrb[0].mxu0
        %v7599 = vadd.f32 0.0, %v7598
        %v7600 = vpop.f32.mrb[0].mxu0
        %v7601 = vpop.f32.mrb[0].mxu0
        %v7602 = vadd.f32 0.0, %v7601
        %v7603 = vpop.f32.mrb[0].mxu0
        %7604 = vmatprep.mubr.bf16.mxu0 0
        %7605 = vmatmul.mubr.bf16.gmra.mrb[0].mxu0 %v7525
        %v7606 = vpop.f32.mrb[0].mxu0
        %v7607 = vadd.f32 0.0, %v7606
        %v7608 = vpop.f32.mrb[0].mxu0
        %v7609 = vpop.f32.mrb[0].mxu0
        %v7610 = vadd.f32 0.0, %v7609
        %v7611 = vpop.f32.mrb[0].mxu0
        %7612 = vmatprep.mubr.bf16.mxu0 0
        %7613 = vmatmul.mubr.bf16.gmra.mrb[0].mxu0 %v7526
        %v7614 = vpop.f32.mrb[0].mxu0
        %v7615 = vadd.f32 0.0, %v7614
        %v7616 = vpop.f32.mrb[0].mxu0
        %v7617 = vpop.f32.mrb[0].mxu0
        %v7618 = vadd.f32 0.0, %v7617
        %v7619 = vpop.f32.mrb[0].mxu0
        %7620 = vmatprep.mubr.bf16.mxu0 0
        %7621 = vmatmul.mubr.bf16.gmra.mrb[0].mxu0 %v7527
        %v7622 = vpop.f32.mrb[0].mxu0
        %v7623 = vadd.f32 0.0, %v7622
        %v7624 = vpop.f32.mrb[0].mxu0
        %v7625 = vpop.f32.mrb[0].mxu0
        %v7626 = vadd.f32 0.0, %v7625
        %v7627 = vpop.f32.mrb[0].mxu0
        %7628 = vmatprep.mubr.bf16.mxu0 0
        %7629 = vmatmul.mubr.bf16.gmra.mrb[0].mxu0 %v7528
        %v7630 = vpop.f32.mrb[0].mxu0
        %v7631 = vadd.f32 0.0, %v7630
        %v7632 = vpop.f32.mrb[0].mxu0
        %v7633 = vpop.f32.mrb[0].mxu0
        %v7634 = vadd.f32 0.0, %v7633
        %v7635 = vpop.f32.mrb[0].mxu0
        %7636 = vmatprep.mubr.bf16.mxu0 0
        %7637 = vmatmul.mubr.bf16.gmra.mrb[0].mxu0 %v7529
        %v7638 = vpop.f32.mrb[0].mxu0
        %v7639 = vadd.f32 0.0, %v7638
        %v7640 = vpop.f32.mrb[0].mxu0
        %v7641 = vpop.f32.mrb[0].mxu0
        %v7642 = vadd.f32 0.0, %v7641
        %v7643 = vpop.f32.mrb[0].mxu0
        %7644 = vmatprep.mubr.bf16.mxu0 0
        %7645 = vmatmul.mubr.bf16.gmra.mrb[0].mxu0 %v7530
        %v7646 = vpop.f32.mrb[0].mxu0
        %v7647 = vadd.f32 0.0, %v7646
        %v7648 = vpop.f32.mrb[0].mxu0
        %v7649 = vpop.f32.mrb[0].mxu0
        %v7650 = vadd.f32 0.0, %v7649
        %v7651 = vpop.f32.mrb[0].mxu0
        %7652 = vmatprep.mubr.bf16.mxu0 0
        %7653 = vmatmul.mubr.bf16.gmra.mrb[0].mxu0 %v7531
        %v7654 = vpop.f32.mrb[0].mxu0
        %v7655 = vadd.f32 0.0, %v7654
        %v7656 = vpop.f32.mrb[0].mxu0
        %v7657 = vpop.f32.mrb[0].mxu0
        %v7658 = vadd.f32 0.0, %v7657
        %v7659 = vpop.f32.mrb[0].mxu0
        %7660 = vdwg.mxu0
        %7677 = vrot.lane.b32.xlu0 %v7599, 16
        %v7678 = vpop.permute.xlu0 %7677
        %7679 = vrot.lane.b32.xlu0 %v7602, 16
        %v7680 = vpop.permute.xlu0 %7679
        %7681 = vrot.lane.b32.xlu0 %v7607, 16
        %v7682 = vpop.permute.xlu0 %7681
        %7683 = vrot.lane.b32.xlu0 %v7610, 16
        %v7684 = vpop.permute.xlu0 %7683
        %7685 = vrot.lane.b32.xlu0 %v7615, 16
        %v7686 = vpop.permute.xlu0 %7685
        %7687 = vrot.lane.b32.xlu0 %v7618, 16
        %v7688 = vpop.permute.xlu0 %7687
        %7689 = vrot.lane.b32.xlu0 %v7623, 16
        %v7690 = vpop.permute.xlu0 %7689
        %7691 = vrot.lane.b32.xlu0 %v7626, 16
        %v7692 = vpop.permute.xlu0 %7691
        %7693 = vrot.lane.b32.xlu0 %v7631, 16
        %v7694 = vpop.permute.xlu0 %7693
        %7695 = vrot.lane.b32.xlu0 %v7634, 16
        %v7696 = vpop.permute.xlu0 %7695
        %7697 = vrot.lane.b32.xlu0 %v7639, 16
        %v7698 = vpop.permute.xlu0 %7697
        %7699 = vrot.lane.b32.xlu0 %v7642, 16
        %v7700 = vpop.permute.xlu0 %7699
        %7701 = vrot.lane.b32.xlu0 %v7647, 16
        %v7702 = vpop.permute.xlu0 %7701
        %7703 = vrot.lane.b32.xlu0 %v7650, 16
        %v7704 = vpop.permute.xlu0 %7703
        %7705 = vrot.lane.b32.xlu0 %v7655, 16
        %v7706 = vpop.permute.xlu0 %7705
        %7707 = vrot.lane.b32.xlu0 %v7658, 16
        %v7708 = vpop.permute.xlu0 %7707
        %v7725 = vadd.f32 %v7508, %v7678
        %v7726 = vadd.f32 %v7509, %v7680
        %v7727 = vadd.f32 %v7510, %v7682
        %v7728 = vadd.f32 %v7511, %v7684
        %v7729 = vadd.f32 %v7512, %v7686
        %v7730 = vadd.f32 %v7513, %v7688
        %v7731 = vadd.f32 %v7514, %v7690
        %v7732 = vadd.f32 %v7515, %v7692
        %v7733 = vadd.f32 %v7516, %v7694
        %v7734 = vadd.f32 %v7517, %v7696
        %v7735 = vadd.f32 %v7518, %v7698
        %v7736 = vadd.f32 %v7519, %v7700
        %v7737 = vadd.f32 %v7520, %v7702
        %v7738 = vadd.f32 %v7521, %v7704
        %v7739 = vadd.f32 %v7522, %v7706
        %v7740 = vadd.f32 %v7523, %v7708
        %vm7741 = vcmask 261248
        %7742 = vst.msk [vmem:[#allocation5] sm:$0xff] %vm7741, %v7725
        %7743 = vst.msk [vmem:[#allocation5 + $0x8] sm:$0xff] %vm7741, %v7726
        %7744 = vst.msk [vmem:[#allocation5 + $0x10] sm:$0xff] %vm7741, %v7727
        %7745 = vst.msk [vmem:[#allocation5 + $0x18] sm:$0xff] %vm7741, %v7728
        %7746 = vst.msk [vmem:[#allocation5 + $0x20] sm:$0xff] %vm7741, %v7729
        %7747 = vst.msk [vmem:[#allocation5 + $0x28] sm:$0xff] %vm7741, %v7730
        %7748 = vst.msk [vmem:[#allocation5 + $0x30] sm:$0xff] %vm7741, %v7731
        %7749 = vst.msk [vmem:[#allocation5 + $0x38] sm:$0xff] %vm7741, %v7732
        %7750 = vst.msk [vmem:[#allocation5 + $0x40] sm:$0xff] %vm7741, %v7733
        %7751 = vst.msk [vmem:[#allocation5 + $0x48] sm:$0xff] %vm7741, %v7734
        %7752 = vst.msk [vmem:[#allocation5 + $0x50] sm:$0xff] %vm7741, %v7735
        %7753 = vst.msk [vmem:[#allocation5 + $0x58] sm:$0xff] %vm7741, %v7736
        %7754 = vst.msk [vmem:[#allocation5 + $0x60] sm:$0xff] %vm7741, %v7737
        %7755 = vst.msk [vmem:[#allocation5 + $0x68] sm:$0xff] %vm7741, %v7738
        %7756 = vst.msk [vmem:[#allocation5 + $0x70] sm:$0xff] %vm7741, %v7739
        %7757 = vst.msk [vmem:[#allocation5 + $0x78] sm:$0xff] %vm7741, %v7740
        %7758 = vst.msk [vmem:[#allocation3] sm:$0xff] %vm7395, %v7107
        %7759 = vst.msk [vmem:[#allocation3 + $0x8] sm:$0xff] %vm7395, %v7108
        %7760 = vst.msk [vmem:[#allocation3 + $0x10] sm:$0xff] %vm7395, %v7109
        %7761 = vst.msk [vmem:[#allocation3 + $0x18] sm:$0xff] %vm7395, %v7110
        %7762 = vst.msk [vmem:[#allocation3 + $0x20] sm:$0xff] %vm7395, %v7111
        %7763 = vst.msk [vmem:[#allocation3 + $0x28] sm:$0xff] %vm7395, %v7112
        %7764 = vst.msk [vmem:[#allocation3 + $0x30] sm:$0xff] %vm7395, %v7113
        %7765 = vst.msk [vmem:[#allocation3 + $0x38] sm:$0xff] %vm7395, %v7114
        %7766 = vst.msk [vmem:[#allocation3 + $0x40] sm:$0xff] %vm7395, %v7115
        %7767 = vst.msk [vmem:[#allocation3 + $0x48] sm:$0xff] %vm7395, %v7116
        %7768 = vst.msk [vmem:[#allocation3 + $0x50] sm:$0xff] %vm7395, %v7117
        %7769 = vst.msk [vmem:[#allocation3 + $0x58] sm:$0xff] %vm7395, %v7118
        %7770 = vst.msk [vmem:[#allocation3 + $0x60] sm:$0xff] %vm7395, %v7119
        %7771 = vst.msk [vmem:[#allocation3 + $0x68] sm:$0xff] %vm7395, %v7120
        %7772 = vst.msk [vmem:[#allocation3 + $0x70] sm:$0xff] %vm7395, %v7121
        %7773 = vst.msk [vmem:[#allocation3 + $0x78] sm:$0xff] %vm7395, %v7122
        %p7774 = scmp.eq.s32.totalorder %s25, 1
        // Predicated region
        $region102: #{tpu_custom_call.1} parent=88 // pred_check
          %p7775 = pneg %p7774
        $region103: #{tpu_custom_call.1} parent=88 // pred_check_branch
          %7777 = sbr.rel (%p7775) target = $region105
        $region104: #{tpu_custom_call.1} parent=88 // pred_region
          %v7778 = vld [vmem:[#allocation4] sm:$0xff]
          %v7779 = vld [vmem:[#allocation4 + $0x8] sm:$0xff]
          %v7780 = vld [vmem:[#allocation4 + $0x10] sm:$0xff]
          %v7781 = vld [vmem:[#allocation4 + $0x18] sm:$0xff]
          %v7782 = vld [vmem:[#allocation4 + $0x20] sm:$0xff]
          %v7783 = vld [vmem:[#allocation4 + $0x28] sm:$0xff]
          %v7784 = vld [vmem:[#allocation4 + $0x30] sm:$0xff]
          %v7785 = vld [vmem:[#allocation4 + $0x38] sm:$0xff]
          %v7786 = vld [vmem:[#allocation4 + $0x40] sm:$0xff]
          %v7787 = vld [vmem:[#allocation4 + $0x48] sm:$0xff]
          %v7788 = vld [vmem:[#allocation4 + $0x50] sm:$0xff]
          %v7789 = vld [vmem:[#allocation4 + $0x58] sm:$0xff]
          %v7790 = vld [vmem:[#allocation4 + $0x60] sm:$0xff]
          %v7791 = vld [vmem:[#allocation4 + $0x68] sm:$0xff]
          %v7792 = vld [vmem:[#allocation4 + $0x70] sm:$0xff]
          %v7793 = vld [vmem:[#allocation4 + $0x78] sm:$0xff]
          %v7794 = vmax.f32 %v7778, 1e-16
          %v7795 = vmax.f32 %v7779, 1e-16
          %v7796 = vmax.f32 %v7780, 1e-16
          %v7797 = vmax.f32 %v7781, 1e-16
          %v7798 = vmax.f32 %v7782, 1e-16
          %v7799 = vmax.f32 %v7783, 1e-16
          %v7800 = vmax.f32 %v7784, 1e-16
          %v7801 = vmax.f32 %v7785, 1e-16
          %v7802 = vmax.f32 %v7786, 1e-16
          %v7803 = vmax.f32 %v7787, 1e-16
          %v7804 = vmax.f32 %v7788, 1e-16
          %v7805 = vmax.f32 %v7789, 1e-16
          %v7806 = vmax.f32 %v7790, 1e-16
          %v7807 = vmax.f32 %v7791, 1e-16
          %v7808 = vmax.f32 %v7792, 1e-16
          %v7809 = vmax.f32 %v7793, 1e-16
          %v7810 = vrcp.pop %v7794
          %v7811 = vrcp.pop %v7795
          %v7812 = vrcp.pop %v7796
          %v7813 = vrcp.pop %v7797
          %v7814 = vrcp.pop %v7798
          %v7815 = vrcp.pop %v7799
          %v7816 = vrcp.pop %v7800
          %v7817 = vrcp.pop %v7801
          %v7818 = vrcp.pop %v7802
          %v7819 = vrcp.pop %v7803
          %v7820 = vrcp.pop %v7804
          %v7821 = vrcp.pop %v7805
          %v7822 = vrcp.pop %v7806
          %v7823 = vrcp.pop %v7807
          %v7824 = vrcp.pop %v7808
          %v7825 = vrcp.pop %v7809
          %v7826 = vld [vmem:[#allocation5] sm:$0xff]
          %v7827 = vld [vmem:[#allocation5 + $0x8] sm:$0xff]
          %v7828 = vld [vmem:[#allocation5 + $0x10] sm:$0xff]
          %v7829 = vld [vmem:[#allocation5 + $0x18] sm:$0xff]
          %v7830 = vld [vmem:[#allocation5 + $0x20] sm:$0xff]
          %v7831 = vld [vmem:[#allocation5 + $0x28] sm:$0xff]
          %v7832 = vld [vmem:[#allocation5 + $0x30] sm:$0xff]
          %v7833 = vld [vmem:[#allocation5 + $0x38] sm:$0xff]
          %v7834 = vld [vmem:[#allocation5 + $0x40] sm:$0xff]
          %v7835 = vld [vmem:[#allocation5 + $0x48] sm:$0xff]
          %v7836 = vld [vmem:[#allocation5 + $0x50] sm:$0xff]
          %v7837 = vld [vmem:[#allocation5 + $0x58] sm:$0xff]
          %v7838 = vld [vmem:[#allocation5 + $0x60] sm:$0xff]
          %v7839 = vld [vmem:[#allocation5 + $0x68] sm:$0xff]
          %v7840 = vld [vmem:[#allocation5 + $0x70] sm:$0xff]
          %v7841 = vld [vmem:[#allocation5 + $0x78] sm:$0xff]
          %7843 = vset.pattern.permute.xlu0 0
          %7844 = vperm.xlu0 %7843, %v7810
          %v7845 = vpop.permute.xlu0 %7844
          %7848 = vset.pattern.permute.xlu0 0
          %7849 = vperm.xlu0 %7848, %v7811
          %v7850 = vpop.permute.xlu0 %7849
          %7853 = vset.pattern.permute.xlu0 0
          %7854 = vperm.xlu0 %7853, %v7812
          %v7855 = vpop.permute.xlu0 %7854
          %7858 = vset.pattern.permute.xlu0 0
          %7859 = vperm.xlu0 %7858, %v7813
          %v7860 = vpop.permute.xlu0 %7859
          %7863 = vset.pattern.permute.xlu0 0
          %7864 = vperm.xlu0 %7863, %v7814
          %v7865 = vpop.permute.xlu0 %7864
          %7868 = vset.pattern.permute.xlu0 0
          %7869 = vperm.xlu0 %7868, %v7815
          %v7870 = vpop.permute.xlu0 %7869
          %7873 = vset.pattern.permute.xlu0 0
          %7874 = vperm.xlu0 %7873, %v7816
          %v7875 = vpop.permute.xlu0 %7874
          %7878 = vset.pattern.permute.xlu0 0
          %7879 = vperm.xlu0 %7878, %v7817
          %v7880 = vpop.permute.xlu0 %7879
          %7883 = vset.pattern.permute.xlu0 0
          %7884 = vperm.xlu0 %7883, %v7818
          %v7885 = vpop.permute.xlu0 %7884
          %7888 = vset.pattern.permute.xlu0 0
          %7889 = vperm.xlu0 %7888, %v7819
          %v7890 = vpop.permute.xlu0 %7889
          %7893 = vset.pattern.permute.xlu0 0
          %7894 = vperm.xlu0 %7893, %v7820
          %v7895 = vpop.permute.xlu0 %7894
          %7898 = vset.pattern.permute.xlu0 0
          %7899 = vperm.xlu0 %7898, %v7821
          %v7900 = vpop.permute.xlu0 %7899
          %7903 = vset.pattern.permute.xlu0 0
          %7904 = vperm.xlu0 %7903, %v7822
          %v7905 = vpop.permute.xlu0 %7904
          %7908 = vset.pattern.permute.xlu0 0
          %7909 = vperm.xlu0 %7908, %v7823
          %v7910 = vpop.permute.xlu0 %7909
          %7913 = vset.pattern.permute.xlu0 0
          %7914 = vperm.xlu0 %7913, %v7824
          %v7915 = vpop.permute.xlu0 %7914
          %7918 = vset.pattern.permute.xlu0 0
          %7919 = vperm.xlu0 %7918, %v7825
          %v7920 = vpop.permute.xlu0 %7919
          %v7922 = vmul.f32 %v7826, %v7845
          %v7923 = vmul.f32 %v7827, %v7850
          %v7924 = vmul.f32 %v7828, %v7855
          %v7925 = vmul.f32 %v7829, %v7860
          %v7926 = vmul.f32 %v7830, %v7865
          %v7927 = vmul.f32 %v7831, %v7870
          %v7928 = vmul.f32 %v7832, %v7875
          %v7929 = vmul.f32 %v7833, %v7880
          %v7930 = vmul.f32 %v7834, %v7885
          %v7931 = vmul.f32 %v7835, %v7890
          %v7932 = vmul.f32 %v7836, %v7895
          %v7933 = vmul.f32 %v7837, %v7900
          %v7934 = vmul.f32 %v7838, %v7905
          %v7935 = vmul.f32 %v7839, %v7910
          %v7936 = vmul.f32 %v7840, %v7915
          %v7937 = vmul.f32 %v7841, %v7920
          %v7938 = vmax.f32 %v7922, 0.0
          %v7939 = vmax.f32 %v7923, 0.0
          %v7940 = vmax.f32 %v7924, 0.0
          %v7941 = vmax.f32 %v7925, 0.0
          %v7942 = vmax.f32 %v7926, 0.0
          %v7943 = vmax.f32 %v7927, 0.0
          %v7944 = vmax.f32 %v7928, 0.0
          %v7945 = vmax.f32 %v7929, 0.0
          %v7946 = vmax.f32 %v7930, 0.0
          %v7947 = vmax.f32 %v7931, 0.0
          %v7948 = vmax.f32 %v7932, 0.0
          %v7949 = vmax.f32 %v7933, 0.0
          %v7950 = vmax.f32 %v7934, 0.0
          %v7951 = vmax.f32 %v7935, 0.0
          %v7952 = vmax.f32 %v7936, 0.0
          %v7953 = vmax.f32 %v7937, 0.0
          %7954 = vst.msk [vmem:[#allocation5] sm:$0xff] %vm4354, %v7938
          %7955 = vst.msk [vmem:[#allocation5 + $0x8] sm:$0xff] %vm4354, %v7939
          %7956 = vst.msk [vmem:[#allocation5 + $0x10] sm:$0xff] %vm4354, %v7940
          %7957 = vst.msk [vmem:[#allocation5 + $0x18] sm:$0xff] %vm4354, %v7941
          %7958 = vst.msk [vmem:[#allocation5 + $0x20] sm:$0xff] %vm4354, %v7942
          %7959 = vst.msk [vmem:[#allocation5 + $0x28] sm:$0xff] %vm4354, %v7943
          %7960 = vst.msk [vmem:[#allocation5 + $0x30] sm:$0xff] %vm4354, %v7944
          %7961 = vst.msk [vmem:[#allocation5 + $0x38] sm:$0xff] %vm4354, %v7945
          %7962 = vst.msk [vmem:[#allocation5 + $0x40] sm:$0xff] %vm4354, %v7946
          %7963 = vst.msk [vmem:[#allocation5 + $0x48] sm:$0xff] %vm4354, %v7947
          %7964 = vst.msk [vmem:[#allocation5 + $0x50] sm:$0xff] %vm4354, %v7948
          %7965 = vst.msk [vmem:[#allocation5 + $0x58] sm:$0xff] %vm4354, %v7949
          %7966 = vst.msk [vmem:[#allocation5 + $0x60] sm:$0xff] %vm4354, %v7950
          %7967 = vst.msk [vmem:[#allocation5 + $0x68] sm:$0xff] %vm4354, %v7951
          %7968 = vst.msk [vmem:[#allocation5 + $0x70] sm:$0xff] %vm4354, %v7952
          %7969 = vst.msk [vmem:[#allocation5 + $0x78] sm:$0xff] %vm4354, %v7953
          %v7970 = vld [vmem:[#allocation4] sm:$0xff]
          %v7971 = vld [vmem:[#allocation4 + $0x8] sm:$0xff]
          %v7972 = vld [vmem:[#allocation4 + $0x10] sm:$0xff]
          %v7973 = vld [vmem:[#allocation4 + $0x18] sm:$0xff]
          %v7974 = vld [vmem:[#allocation4 + $0x20] sm:$0xff]
          %v7975 = vld [vmem:[#allocation4 + $0x28] sm:$0xff]
          %v7976 = vld [vmem:[#allocation4 + $0x30] sm:$0xff]
          %v7977 = vld [vmem:[#allocation4 + $0x38] sm:$0xff]
          %v7978 = vld [vmem:[#allocation4 + $0x40] sm:$0xff]
          %v7979 = vld [vmem:[#allocation4 + $0x48] sm:$0xff]
          %v7980 = vld [vmem:[#allocation4 + $0x50] sm:$0xff]
          %v7981 = vld [vmem:[#allocation4 + $0x58] sm:$0xff]
          %v7982 = vld [vmem:[#allocation4 + $0x60] sm:$0xff]
          %v7983 = vld [vmem:[#allocation4 + $0x68] sm:$0xff]
          %v7984 = vld [vmem:[#allocation4 + $0x70] sm:$0xff]
          %v7985 = vld [vmem:[#allocation4 + $0x78] sm:$0xff]
          %v7986 = vmax.f32 %v7970, 1e-16
          %v7987 = vmax.f32 %v7971, 1e-16
          %v7988 = vmax.f32 %v7972, 1e-16
          %v7989 = vmax.f32 %v7973, 1e-16
          %v7990 = vmax.f32 %v7974, 1e-16
          %v7991 = vmax.f32 %v7975, 1e-16
          %v7992 = vmax.f32 %v7976, 1e-16
          %v7993 = vmax.f32 %v7977, 1e-16
          %v7994 = vmax.f32 %v7978, 1e-16
          %v7995 = vmax.f32 %v7979, 1e-16
          %v7996 = vmax.f32 %v7980, 1e-16
          %v7997 = vmax.f32 %v7981, 1e-16
          %v7998 = vmax.f32 %v7982, 1e-16
          %v7999 = vmax.f32 %v7983, 1e-16
          %v8000 = vmax.f32 %v7984, 1e-16
          %v8001 = vmax.f32 %v7985, 1e-16
          %v8002 = vrcp.pop %v7986
          %v8003 = vrcp.pop %v7987
          %v8004 = vrcp.pop %v7988
          %v8005 = vrcp.pop %v7989
          %v8006 = vrcp.pop %v7990
          %v8007 = vrcp.pop %v7991
          %v8008 = vrcp.pop %v7992
          %v8009 = vrcp.pop %v7993
          %v8010 = vrcp.pop %v7994
          %v8011 = vrcp.pop %v7995
          %v8012 = vrcp.pop %v7996
          %v8013 = vrcp.pop %v7997
          %v8014 = vrcp.pop %v7998
          %v8015 = vrcp.pop %v7999
          %v8016 = vrcp.pop %v8000
          %v8017 = vrcp.pop %v8001
          %v8018 = vld [vmem:[#allocation5] sm:$0xff]
          %v8019 = vld [vmem:[#allocation5 + $0x8] sm:$0xff]
          %v8020 = vld [vmem:[#allocation5 + $0x10] sm:$0xff]
          %v8021 = vld [vmem:[#allocation5 + $0x18] sm:$0xff]
          %v8022 = vld [vmem:[#allocation5 + $0x20] sm:$0xff]
          %v8023 = vld [vmem:[#allocation5 + $0x28] sm:$0xff]
          %v8024 = vld [vmem:[#allocation5 + $0x30] sm:$0xff]
          %v8025 = vld [vmem:[#allocation5 + $0x38] sm:$0xff]
          %v8026 = vld [vmem:[#allocation5 + $0x40] sm:$0xff]
          %v8027 = vld [vmem:[#allocation5 + $0x48] sm:$0xff]
          %v8028 = vld [vmem:[#allocation5 + $0x50] sm:$0xff]
          %v8029 = vld [vmem:[#allocation5 + $0x58] sm:$0xff]
          %v8030 = vld [vmem:[#allocation5 + $0x60] sm:$0xff]
          %v8031 = vld [vmem:[#allocation5 + $0x68] sm:$0xff]
          %v8032 = vld [vmem:[#allocation5 + $0x70] sm:$0xff]
          %v8033 = vld [vmem:[#allocation5 + $0x78] sm:$0xff]
          %8035 = vset.pattern.permute.xlu0 1
          %8036 = vperm.xlu0 %8035, %v8002
          %v8037 = vpop.permute.xlu0 %8036
          %8040 = vset.pattern.permute.xlu0 1
          %8041 = vperm.xlu0 %8040, %v8003
          %v8042 = vpop.permute.xlu0 %8041
          %8045 = vset.pattern.permute.xlu0 1
          %8046 = vperm.xlu0 %8045, %v8004
          %v8047 = vpop.permute.xlu0 %8046
          %8050 = vset.pattern.permute.xlu0 1
          %8051 = vperm.xlu0 %8050, %v8005
          %v8052 = vpop.permute.xlu0 %8051
          %8055 = vset.pattern.permute.xlu0 1
          %8056 = vperm.xlu0 %8055, %v8006
          %v8057 = vpop.permute.xlu0 %8056
          %8060 = vset.pattern.permute.xlu0 1
          %8061 = vperm.xlu0 %8060, %v8007
          %v8062 = vpop.permute.xlu0 %8061
          %8065 = vset.pattern.permute.xlu0 1
          %8066 = vperm.xlu0 %8065, %v8008
          %v8067 = vpop.permute.xlu0 %8066
          %8070 = vset.pattern.permute.xlu0 1
          %8071 = vperm.xlu0 %8070, %v8009
          %v8072 = vpop.permute.xlu0 %8071
          %8075 = vset.pattern.permute.xlu0 1
          %8076 = vperm.xlu0 %8075, %v8010
          %v8077 = vpop.permute.xlu0 %8076
          %8080 = vset.pattern.permute.xlu0 1
          %8081 = vperm.xlu0 %8080, %v8011
          %v8082 = vpop.permute.xlu0 %8081
          %8085 = vset.pattern.permute.xlu0 1
          %8086 = vperm.xlu0 %8085, %v8012
          %v8087 = vpop.permute.xlu0 %8086
          %8090 = vset.pattern.permute.xlu0 1
          %8091 = vperm.xlu0 %8090, %v8013
          %v8092 = vpop.permute.xlu0 %8091
          %8095 = vset.pattern.permute.xlu0 1
          %8096 = vperm.xlu0 %8095, %v8014
          %v8097 = vpop.permute.xlu0 %8096
          %8100 = vset.pattern.permute.xlu0 1
          %8101 = vperm.xlu0 %8100, %v8015
          %v8102 = vpop.permute.xlu0 %8101
          %8105 = vset.pattern.permute.xlu0 1
          %8106 = vperm.xlu0 %8105, %v8016
          %v8107 = vpop.permute.xlu0 %8106
          %8110 = vset.pattern.permute.xlu0 1
          %8111 = vperm.xlu0 %8110, %v8017
          %v8112 = vpop.permute.xlu0 %8111
          %v8114 = vmul.f32 %v8018, %v8037
          %v8115 = vmul.f32 %v8019, %v8042
          %v8116 = vmul.f32 %v8020, %v8047
          %v8117 = vmul.f32 %v8021, %v8052
          %v8118 = vmul.f32 %v8022, %v8057
          %v8119 = vmul.f32 %v8023, %v8062
          %v8120 = vmul.f32 %v8024, %v8067
          %v8121 = vmul.f32 %v8025, %v8072
          %v8122 = vmul.f32 %v8026, %v8077
          %v8123 = vmul.f32 %v8027, %v8082
          %v8124 = vmul.f32 %v8028, %v8087
          %v8125 = vmul.f32 %v8029, %v8092
          %v8126 = vmul.f32 %v8030, %v8097
          %v8127 = vmul.f32 %v8031, %v8102
          %v8128 = vmul.f32 %v8032, %v8107
          %v8129 = vmul.f32 %v8033, %v8112
          %v8130 = vmax.f32 %v8114, 0.0
          %v8131 = vmax.f32 %v8115, 0.0
          %v8132 = vmax.f32 %v8116, 0.0
          %v8133 = vmax.f32 %v8117, 0.0
          %v8134 = vmax.f32 %v8118, 0.0
          %v8135 = vmax.f32 %v8119, 0.0
          %v8136 = vmax.f32 %v8120, 0.0
          %v8137 = vmax.f32 %v8121, 0.0
          %v8138 = vmax.f32 %v8122, 0.0
          %v8139 = vmax.f32 %v8123, 0.0
          %v8140 = vmax.f32 %v8124, 0.0
          %v8141 = vmax.f32 %v8125, 0.0
          %v8142 = vmax.f32 %v8126, 0.0
          %v8143 = vmax.f32 %v8127, 0.0
          %v8144 = vmax.f32 %v8128, 0.0
          %v8145 = vmax.f32 %v8129, 0.0
          %8146 = vst.msk [vmem:[#allocation5] sm:$0xff] %vm7741, %v8130
          %8147 = vst.msk [vmem:[#allocation5 + $0x8] sm:$0xff] %vm7741, %v8131
          %8148 = vst.msk [vmem:[#allocation5 + $0x10] sm:$0xff] %vm7741, %v8132
          %8149 = vst.msk [vmem:[#allocation5 + $0x18] sm:$0xff] %vm7741, %v8133
          %8150 = vst.msk [vmem:[#allocation5 + $0x20] sm:$0xff] %vm7741, %v8134
          %8151 = vst.msk [vmem:[#allocation5 + $0x28] sm:$0xff] %vm7741, %v8135
          %8152 = vst.msk [vmem:[#allocation5 + $0x30] sm:$0xff] %vm7741, %v8136
          %8153 = vst.msk [vmem:[#allocation5 + $0x38] sm:$0xff] %vm7741, %v8137
          %8154 = vst.msk [vmem:[#allocation5 + $0x40] sm:$0xff] %vm7741, %v8138
          %8155 = vst.msk [vmem:[#allocation5 + $0x48] sm:$0xff] %vm7741, %v8139
          %8156 = vst.msk [vmem:[#allocation5 + $0x50] sm:$0xff] %vm7741, %v8140
          %8157 = vst.msk [vmem:[#allocation5 + $0x58] sm:$0xff] %vm7741, %v8141
          %8158 = vst.msk [vmem:[#allocation5 + $0x60] sm:$0xff] %vm7741, %v8142
          %8159 = vst.msk [vmem:[#allocation5 + $0x68] sm:$0xff] %vm7741, %v8143
          %8160 = vst.msk [vmem:[#allocation5 + $0x70] sm:$0xff] %vm7741, %v8144
          %8161 = vst.msk [vmem:[#allocation5 + $0x78] sm:$0xff] %vm7741, %v8145
          %v8162 = vld [vmem:[#allocation5] sm:$0xff]
          %v8163 = vld [vmem:[#allocation5 + $0x8] sm:$0xff]
          %v8164 = vld [vmem:[#allocation5 + $0x10] sm:$0xff]
          %v8165 = vld [vmem:[#allocation5 + $0x18] sm:$0xff]
          %v8166 = vld [vmem:[#allocation5 + $0x20] sm:$0xff]
          %v8167 = vld [vmem:[#allocation5 + $0x28] sm:$0xff]
          %v8168 = vld [vmem:[#allocation5 + $0x30] sm:$0xff]
          %v8169 = vld [vmem:[#allocation5 + $0x38] sm:$0xff]
          %v8170 = vld [vmem:[#allocation5 + $0x40] sm:$0xff]
          %v8171 = vld [vmem:[#allocation5 + $0x48] sm:$0xff]
          %v8172 = vld [vmem:[#allocation5 + $0x50] sm:$0xff]
          %v8173 = vld [vmem:[#allocation5 + $0x58] sm:$0xff]
          %v8174 = vld [vmem:[#allocation5 + $0x60] sm:$0xff]
          %v8175 = vld [vmem:[#allocation5 + $0x68] sm:$0xff]
          %v8176 = vld [vmem:[#allocation5 + $0x70] sm:$0xff]
          %v8177 = vld [vmem:[#allocation5 + $0x78] sm:$0xff]
          %vm8178 = vcmask 261120
          %8179 = vst.msk [vmem:[%s482] sm:$0xff] %vm8178, %v8162
          %8180 = vst.msk [vmem:[%s482 + $0x8] sm:$0xff] %vm8178, %v8163
          %8181 = vst.msk [vmem:[%s482 + $0x10] sm:$0xff] %vm8178, %v8164
          %8182 = vst.msk [vmem:[%s482 + $0x18] sm:$0xff] %vm8178, %v8165
          %8183 = vst.msk [vmem:[%s482 + $0x20] sm:$0xff] %vm8178, %v8166
          %8184 = vst.msk [vmem:[%s482 + $0x28] sm:$0xff] %vm8178, %v8167
          %8185 = vst.msk [vmem:[%s482 + $0x30] sm:$0xff] %vm8178, %v8168
          %8186 = vst.msk [vmem:[%s482 + $0x38] sm:$0xff] %vm8178, %v8169
          %8187 = vst.msk [vmem:[%s482 + $0x40] sm:$0xff] %vm8178, %v8170
          %8188 = vst.msk [vmem:[%s482 + $0x48] sm:$0xff] %vm8178, %v8171
          %8189 = vst.msk [vmem:[%s482 + $0x50] sm:$0xff] %vm8178, %v8172
          %8190 = vst.msk [vmem:[%s482 + $0x58] sm:$0xff] %vm8178, %v8173
          %8191 = vst.msk [vmem:[%s482 + $0x60] sm:$0xff] %vm8178, %v8174
          %8192 = vst.msk [vmem:[%s482 + $0x68] sm:$0xff] %vm8178, %v8175
          %8193 = vst.msk [vmem:[%s482 + $0x70] sm:$0xff] %vm8178, %v8176
          %8194 = vst.msk [vmem:[%s482 + $0x78] sm:$0xff] %vm8178, %v8177
        $region105: #{tpu_custom_call.1} parent=88 // pred_fallthru
          _
        %s8195 = smul.u32 16, %s24
        %p8196 = scmp.lt.s32.totalorder %s8195, 31
        %s8197 = scalar_select %p8196, %s8195, 31
        %s8198 = smul.addr %s8197, 8
        %s8199 = scalar_lea.vmem %s8, %s8198
        // Predicated region
        $region106: #{tpu_custom_call.1} parent=88 // pred_check
          %p8200 = pneg %p235
        $region107: #{tpu_custom_call.1} parent=88 // pred_check_branch
          %8202 = sbr.rel (%p8200) target = $region109
        $region108: #{tpu_custom_call.1} parent=88 // pred_region
          %s8203 = smul.u32 16, %s24
        $region109: #{tpu_custom_call.1} parent=88 // pred_fallthru
          _
      $region89: #{tpu_custom_call.1} parent=5 // pred_fallthru
        _
      %p8204 = scmp.le.s32.totalorder 2, %s15
      // Predicated region
      $region110: #{tpu_custom_call.1} parent=5 // pred_check
        %p8205 = pneg %p8204
      $region111: #{tpu_custom_call.1} parent=5 // pred_check_branch
        %8207 = sbr.rel (%p8205) target = $region113
      $region112: #{tpu_custom_call.1} parent=5 // pred_region
        %s8208 = ssub.s32 %s15, 2
        // Predicated region
        $region114: #{tpu_custom_call.1} parent=112 // pred_check
          %p8209 = pneg %p241
        $region115: #{tpu_custom_call.1} parent=112 // pred_check_branch
          %8211 = sbr.rel (%p8209) target = $region117
        $region116: #{tpu_custom_call.1} parent=112 // pred_region
          %s8212 = smul.u32 16, %s26
          %p8213 = scmp.lt.s32.totalorder %s8212, 31
          %s8214 = scalar_select %p8213, %s8212, 31
          %s8215 = smul.addr %s8214, 8
          %s8216 = scalar_lea.vmem %s8, %s8215
        $region117: #{tpu_custom_call.1} parent=112 // pred_fallthru
          _
      $region113: #{tpu_custom_call.1} parent=5 // pred_fallthru
        _
    $region6: #{tpu_custom_call.1} parent=1 // loop_footer
      %s19 = sadd.s32 1, %s15
    $region7: #{tpu_custom_call.1} parent=1 // loop_footer_branch
      %14 = sbr.rel target = $region3
    $region8: #{tpu_custom_call.1} parent=1 // loop_exit
      _
    %8217 = vsyncpa [#allocation7], 1
    %s8218 = scalar_lea.sflag [#allocation7], 1
    %8219 = vsyncpa %s8218, 1

</llo_original>
